<compile_context>
chip_gen: v5e
topology: v5e:2x2
jax: 0.10.0
libtpu: 0.0.40
codegen_flags: <defaults>
</compile_context>

<pallas_src>
import jax
import jax.numpy as jnp
from jax.experimental import pallas as pl
from jax.experimental.pallas import tpu as pltpu  # noqa: F401

# ----------------------------- sizes implied by the forward -------------------
N_BATCH = 2
C_IN, H_IN, W_IN = 3, 32, 32
C1, C2, KSIZE = 6, 15, 5
BETA = 0.3
SKETCH_DIM = 160                 # important_sketching output / layer1 in_features
L1_OUT = 32 * 32 * 3             # 3072
N_CLASSES = 10
P1_HW = 14                       # pooled spatial after conv1 + maxpool
P2_HW = 5                        # pooled spatial after conv2 + maxpool


# ----------------------------- Pallas kernels ---------------------------------
def conv_relu_pool_kernel(p_ref, w_ref, b_ref, o_ref):
    # Fused im2col-conv + bias + ReLU + 2x2 maxpool.
    #   p_ref: (4, M, K) bf16 — one im2col slab per 2x2-pool offset; rows are already
    #          in pooled-output (b, ph, pw) order, so the max over the leading axis
    #          IS the maxpool.  w_ref: (K, Cout) bf16, b_ref: (1, Cout) f32.
    y = jnp.dot(p_ref[0], w_ref[...], preferred_element_type=jnp.float32)
    for k in range(1, 4):
        y = jnp.maximum(y, jnp.dot(p_ref[k], w_ref[...],
                                   preferred_element_type=jnp.float32))
    o_ref[...] = jnp.maximum(y + b_ref[...], 0.0)


def stats_sketch_head_kernel(c_ref, r_ref, sc_ref, sr_ref,
                             dcov_ref, dvec_ref, dconst_ref,
                             w1_ref, b1_ref, wh_ref, bh_ref, o_ref):
    # covariance -> `final` -> sketch -> layer1 -> head, fully fused; `final`
    # never materializes.  projected = flatten([[cov, b*s],[b*s^T, 1]]) @ D is
    # decomposed into per-row matmuls against pre-sliced pieces of D.
    # Per-sample loop (B=2, unrolled) keeps every op a plain 2-D matmul/broadcast.
    for b in range(N_BATCH):
        cb = c_ref[b]                     # (15, 25) centered (torch layout)
        rb = r_ref[b]                     # (25, 15) centered .view (NOT a transpose)
        sc = sc_ref[b]                    # (15, 1)  spatial sums
        sr = sr_ref[b]                    # (1, 15)
        cov = jnp.dot(cb, rb, preferred_element_type=jnp.float32) * (1.0 / 25.0)
        cov = cov + (BETA * BETA) * (sc * sr)          # (15, 15)

        # projected = flatten(final) @ D, without ever building `final`:
        #   sum_r cov[r,:] @ D[16r:16r+15]  +  beta*s @ (D[16r+15 rows] + D[240:255])
        #   + D[255]
        proj = jnp.dot(sr, dvec_ref[...], preferred_element_type=jnp.float32)
        proj = proj + dconst_ref[...]                  # (1, 160)
        for r in range(15):
            proj = proj + jnp.dot(cov[r:r + 1, :], dcov_ref[r],
                                  preferred_element_type=jnp.float32)

        h = jnp.dot(proj.astype(jnp.bfloat16), w1_ref[...],
                    preferred_element_type=jnp.float32) + b1_ref[...]   # (1, 3072)
        # TODO(synk): reshape to (1,3,32,32) before WideResNet is a pure view and is
        #             a no-op for the linear stand-in head.
        o_ref[b:b + 1, :] = jnp.dot(h.astype(jnp.bfloat16), wh_ref[...],
                                    preferred_element_type=jnp.float32) + bh_ref[...]


# ----------------------------- wrappers (tiny layout glue in XLA) --------------
def _full_spec(shape):
    return pl.BlockSpec(shape, lambda: (0,) * len(shape))


def _pool_patches(x_nhwc, ksize, out_hw):
    # (4, B*out_hw*out_hw, ksize*ksize*C) im2col patches, one slab per 2x2 pool
    # offset; feature order is (dh, dw, cin).  No big transposes — only strided
    # slices and a concat along the channel (last) axis.
    b, _, _, c = x_nhwc.shape
    span = 2 * (out_hw - 1) + 1
    slabs = []
    for i in range(2):
        for j in range(2):
            cols = []
            for dh in range(ksize):
                for dw in range(ksize):
                    cols.append(x_nhwc[:, i + dh:i + dh + span:2,
                                       j + dw:j + dw + span:2, :])
            slab = jnp.concatenate(cols, axis=-1)             # (B, oh, ow, k*k*C)
            slabs.append(slab.reshape(b * out_hw * out_hw, ksize * ksize * c))
    return jnp.stack(slabs, axis=0).astype(jnp.bfloat16)


def conv_relu_pool(patches, w_mat, bias_row, cout):
    nslab, m, k = patches.shape
    flops = nslab * 2 * m * k * cout
    bytes_accessed = patches.size * 2 + w_mat.size * 2 + bias_row.size * 4 + m * cout * 4
    return pl.pallas_call(
        conv_relu_pool_kernel,
        out_shape=jax.ShapeDtypeStruct((m, cout), jnp.float32),
        in_specs=[_full_spec((nslab, m, k)),
                  _full_spec((k, cout)),
                  _full_spec((1, cout))],
        out_specs=_full_spec((m, cout)),
        cost_estimate=pl.CostEstimate(flops=flops, transcendentals=0,
                                      bytes_accessed=bytes_accessed),
    )(patches, w_mat, bias_row)


def stats_sketch_head(centered, centered_r, s_col, s_row,
                      dcov, dvec, dconst, w_l1, b_l1_row, w_head, b_head_row):
    b = centered.shape[0]
    operands = (centered, centered_r, s_col, s_row,
                dcov, dvec, dconst, w_l1, b_l1_row, w_head, b_head_row)
    flops = b * (2 * 15 * 25 * 15 + 16 * 2 * 15 * SKETCH_DIM
                 + 2 * SKETCH_DIM * L1_OUT + 2 * L1_OUT * N_CLASSES)
    bytes_accessed = sum(int(o.size) * (2 if o.dtype == jnp.bfloat16 else 4)
                         for o in operands) + b * N_CLASSES * 4
    return pl.pallas_call(
        stats_sketch_head_kernel,
        out_shape=jax.ShapeDtypeStruct((b, N_CLASSES), jnp.float32),
        in_specs=[_full_spec(o.shape) for o in operands],
        out_specs=_full_spec((b, N_CLASSES)),
        cost_estimate=pl.CostEstimate(flops=flops, transcendentals=0,
                                      bytes_accessed=bytes_accessed),
    )(*operands)


# ----------------------------- parameters -------------------------------------
def make_params(key):
    ks = jax.random.split(key, 8)
    w1 = 0.2 * jax.random.normal(ks[0], (C1, C_IN, KSIZE, KSIZE), jnp.float32)
    b1 = 0.05 * jax.random.normal(ks[1], (C1,), jnp.float32)
    w2 = 0.2 * jax.random.normal(ks[2], (C2, C1, KSIZE, KSIZE), jnp.float32)
    b2 = 0.05 * jax.random.normal(ks[3], (C2,), jnp.float32)
    directions = 0.05 * jax.random.normal(ks[4], (256, SKETCH_DIM), jnp.float32)
    # big dense weights stored in bf16 (HBM-stream dominated); accumulation stays f32
    w_l1 = (0.02 * jax.random.normal(ks[5], (SKETCH_DIM, L1_OUT), jnp.float32)
            ).astype(jnp.bfloat16)
    b_l1 = 0.01 * jax.random.normal(ks[6], (L1_OUT,), jnp.float32)
    w_head = (0.02 * jax.random.normal(ks[7], (L1_OUT, N_CLASSES), jnp.float32)
              ).astype(jnp.bfloat16)
    b_head = jnp.zeros((N_CLASSES,), jnp.float32)
    return (w1, b1, w2, b2, directions, w_l1, b_l1, w_head, b_head)


# ----------------------------- forward -----------------------------------------
@jax.jit
def end_to_end_forward(x, params):
    w1, b1, w2, b2, directions, w_l1, b_l1, w_head, b_head = params

    # weight-side layout prep (tiny; all permutations live on weights, not activations)
    w1_mat = jnp.transpose(w1, (2, 3, 1, 0)).reshape(KSIZE * KSIZE * C_IN, C1
                                                     ).astype(jnp.bfloat16)
    w2_mat = jnp.transpose(w2, (2, 3, 1, 0)).reshape(KSIZE * KSIZE * C1, C2
                                                     ).astype(jnp.bfloat16)
    d3 = directions.reshape(16, 16, SKETCH_DIM)
    dcov = d3[:15, :15, :]                                    # rows D[16r + c]
    dvec = BETA * (d3[:15, 15, :] + d3[15, :15, :])           # beta*s columns + row
    dconst = d3[15, 15, :].reshape(1, SKETCH_DIM)             # the constant "1" entry

    # conv1 + ReLU + 2x2 maxpool (one fused kernel)
    x_nhwc = jnp.transpose(x, (0, 2, 3, 1))                   # 12 KB, once
    p1 = _pool_patches(x_nhwc, KSIZE, P1_HW)                  # (4, 392, 75) bf16
    a1 = conv_relu_pool(p1, w1_mat, b1.reshape(1, C1), C1)    # (392, 6) == NHWC pooled

    # conv2 + ReLU + 2x2 maxpool (one fused kernel)
    a1_nhwc = a1.reshape(N_BATCH, P1_HW, P1_HW, C1)
    p2 = _pool_patches(a1_nhwc, KSIZE, P2_HW)                 # (4, 50, 150) bf16
    a2 = conv_relu_pool(p2, w2_mat, b2.reshape(1, C2), C2)    # (50, 15) == NHWC pooled

    # second-moment statistics glue (few KB; the odd torch .view semantics need a
    # genuine flat-order reshape, kept in XLA rather than risking it in-kernel)
    v = jnp.transpose(a2.reshape(N_BATCH, 25, C2), (0, 2, 1))   # == out.view(B,15,25)
    ssum = jnp.sum(v, axis=2, keepdims=True)                    # (B,15,1) torch "mean" (a sum)
    centered = v - ssum                                         # == v - cat(25*[mean])
    centered_r = centered.reshape(N_BATCH, 25, C2)              # torch .view(B,25,15)
    s_row = jnp.transpose(ssum, (0, 2, 1))                      # (B,1,15)

    # fused: cov + final + important_sketching + layer1 + (stand-in) classifier head
    return stats_sketch_head(centered, centered_r, ssum, s_row,
                             dcov, dvec, dconst,
                             w_l1, b_l1.reshape(1, L1_OUT),
                             w_head, b_head.reshape(1, N_CLASSES))


# ----------------------------- main ---------------------------------------------
if __name__ == "__main__":
    key = jax.random.PRNGKey(0)
    kx, kp = jax.random.split(key)
    x = jax.random.normal(kx, (N_BATCH, C_IN, H_IN, W_IN), jnp.float32)
    params = make_params(kp)

    out = end_to_end_forward(x, params)
    jax.block_until_ready(out)
    assert out.shape == (N_BATCH, N_CLASSES)
    print("KERNEL_OK")
</pallas_src>

<mosaic_0001>
module attributes {stable_mosaic.version = 11 : i64} {
  func.func @conv_relu_pool_kernel(%arg0: memref<4x392x75xbf16, #tpu.memory_space<vmem>>, %arg1: memref<75x6xbf16, #tpu.memory_space<vmem>>, %arg2: memref<1x6xf32, #tpu.memory_space<vmem>>, %arg3: memref<392x6xf32, #tpu.memory_space<vmem>>) attributes {dimension_semantics = [], scalar_prefetch = 0 : i64, scratch_operands = 0 : i64, tpu.core_type = #tpu.core_type<tc>} {
    %c0 = arith.constant 0 : index
    %c0_0 = arith.constant 0 : index
    %c0_1 = arith.constant 0 : index
    %0 = vector.load %arg0[%c0, %c0_0, %c0_1] : memref<4x392x75xbf16, #tpu.memory_space<vmem>>, vector<1x392x75xbf16>
    %1 = vector.shape_cast %0 : vector<1x392x75xbf16> to vector<392x75xbf16>
    %c0_2 = arith.constant 0 : index
    %c0_3 = arith.constant 0 : index
    %2 = vector.load %arg1[%c0_2, %c0_3] : memref<75x6xbf16, #tpu.memory_space<vmem>>, vector<75x6xbf16>
    %cst = arith.constant dense<0.000000e+00> : vector<392x6xf32>
    %3 = tpu.matmul %1, %2, %cst {dimension_numbers = #tpu.dot_dimension_numbers<[1], [0], [0], [1], [0, 0, 1, 1], [], []>} : vector<392x75xbf16>, vector<75x6xbf16>, vector<392x6xf32> -> vector<392x6xf32>
    %c1 = arith.constant 1 : index
    %c0_4 = arith.constant 0 : index
    %c0_5 = arith.constant 0 : index
    %4 = vector.load %arg0[%c1, %c0_4, %c0_5] : memref<4x392x75xbf16, #tpu.memory_space<vmem>>, vector<1x392x75xbf16>
    %5 = vector.shape_cast %4 : vector<1x392x75xbf16> to vector<392x75xbf16>
    %c0_6 = arith.constant 0 : index
    %c0_7 = arith.constant 0 : index
    %6 = vector.load %arg1[%c0_6, %c0_7] : memref<75x6xbf16, #tpu.memory_space<vmem>>, vector<75x6xbf16>
    %cst_8 = arith.constant dense<0.000000e+00> : vector<392x6xf32>
    %7 = tpu.matmul %5, %6, %cst_8 {dimension_numbers = #tpu.dot_dimension_numbers<[1], [0], [0], [1], [0, 0, 1, 1], [], []>} : vector<392x75xbf16>, vector<75x6xbf16>, vector<392x6xf32> -> vector<392x6xf32>
    %8 = arith.maximumf %3, %7 : vector<392x6xf32>
    %c2 = arith.constant 2 : index
    %c0_9 = arith.constant 0 : index
    %c0_10 = arith.constant 0 : index
    %9 = vector.load %arg0[%c2, %c0_9, %c0_10] : memref<4x392x75xbf16, #tpu.memory_space<vmem>>, vector<1x392x75xbf16>
    %10 = vector.shape_cast %9 : vector<1x392x75xbf16> to vector<392x75xbf16>
    %c0_11 = arith.constant 0 : index
    %c0_12 = arith.constant 0 : index
    %11 = vector.load %arg1[%c0_11, %c0_12] : memref<75x6xbf16, #tpu.memory_space<vmem>>, vector<75x6xbf16>
    %cst_13 = arith.constant dense<0.000000e+00> : vector<392x6xf32>
    %12 = tpu.matmul %10, %11, %cst_13 {dimension_numbers = #tpu.dot_dimension_numbers<[1], [0], [0], [1], [0, 0, 1, 1], [], []>} : vector<392x75xbf16>, vector<75x6xbf16>, vector<392x6xf32> -> vector<392x6xf32>
    %13 = arith.maximumf %8, %12 : vector<392x6xf32>
    %c3 = arith.constant 3 : index
    %c0_14 = arith.constant 0 : index
    %c0_15 = arith.constant 0 : index
    %14 = vector.load %arg0[%c3, %c0_14, %c0_15] : memref<4x392x75xbf16, #tpu.memory_space<vmem>>, vector<1x392x75xbf16>
    %15 = vector.shape_cast %14 : vector<1x392x75xbf16> to vector<392x75xbf16>
    %c0_16 = arith.constant 0 : index
    %c0_17 = arith.constant 0 : index
    %16 = vector.load %arg1[%c0_16, %c0_17] : memref<75x6xbf16, #tpu.memory_space<vmem>>, vector<75x6xbf16>
    %cst_18 = arith.constant dense<0.000000e+00> : vector<392x6xf32>
    %17 = tpu.matmul %15, %16, %cst_18 {dimension_numbers = #tpu.dot_dimension_numbers<[1], [0], [0], [1], [0, 0, 1, 1], [], []>} : vector<392x75xbf16>, vector<75x6xbf16>, vector<392x6xf32> -> vector<392x6xf32>
    %18 = arith.maximumf %13, %17 : vector<392x6xf32>
    %c0_19 = arith.constant 0 : index
    %c0_20 = arith.constant 0 : index
    %19 = vector.load %arg2[%c0_19, %c0_20] : memref<1x6xf32, #tpu.memory_space<vmem>>, vector<1x6xf32>
    %20 = vector.broadcast %19 : vector<1x6xf32> to vector<392x6xf32>
    %21 = arith.addf %18, %20 : vector<392x6xf32>
    %cst_21 = arith.constant 0.000000e+00 : f32
    %22 = vector.broadcast %cst_21 : f32 to vector<392x6xf32>
    %23 = arith.maximumf %21, %22 : vector<392x6xf32>
    %c0_22 = arith.constant 0 : index
    %c0_23 = arith.constant 0 : index
    %24 = vector.load %arg3[%c0_22, %c0_23] : memref<392x6xf32, #tpu.memory_space<vmem>>, vector<392x6xf32>
    tpu.vector_store %arg3[%c0_22, %c0_23], %23 {strides = array<i32>} : memref<392x6xf32, #tpu.memory_space<vmem>>, vector<392x6xf32>,
    return
  }
}

module attributes {stable_mosaic.version = 11 : i64} {
  func.func @conv_relu_pool_kernel(%arg0: memref<4x50x150xbf16, #tpu.memory_space<vmem>>, %arg1: memref<150x15xbf16, #tpu.memory_space<vmem>>, %arg2: memref<1x15xf32, #tpu.memory_space<vmem>>, %arg3: memref<50x15xf32, #tpu.memory_space<vmem>>) attributes {dimension_semantics = [], scalar_prefetch = 0 : i64, scratch_operands = 0 : i64, tpu.core_type = #tpu.core_type<tc>} {
    %c0 = arith.constant 0 : index
    %c0_0 = arith.constant 0 : index
    %c0_1 = arith.constant 0 : index
    %0 = vector.load %arg0[%c0, %c0_0, %c0_1] : memref<4x50x150xbf16, #tpu.memory_space<vmem>>, vector<1x50x150xbf16>
    %1 = vector.shape_cast %0 : vector<1x50x150xbf16> to vector<50x150xbf16>
    %c0_2 = arith.constant 0 : index
    %c0_3 = arith.constant 0 : index
    %2 = vector.load %arg1[%c0_2, %c0_3] : memref<150x15xbf16, #tpu.memory_space<vmem>>, vector<150x15xbf16>
    %cst = arith.constant dense<0.000000e+00> : vector<50x15xf32>
    %3 = tpu.matmul %1, %2, %cst {dimension_numbers = #tpu.dot_dimension_numbers<[1], [0], [0], [1], [0, 0, 1, 1], [], []>} : vector<50x150xbf16>, vector<150x15xbf16>, vector<50x15xf32> -> vector<50x15xf32>
    %c1 = arith.constant 1 : index
    %c0_4 = arith.constant 0 : index
    %c0_5 = arith.constant 0 : index
    %4 = vector.load %arg0[%c1, %c0_4, %c0_5] : memref<4x50x150xbf16, #tpu.memory_space<vmem>>, vector<1x50x150xbf16>
    %5 = vector.shape_cast %4 : vector<1x50x150xbf16> to vector<50x150xbf16>
    %c0_6 = arith.constant 0 : index
    %c0_7 = arith.constant 0 : index
    %6 = vector.load %arg1[%c0_6, %c0_7] : memref<150x15xbf16, #tpu.memory_space<vmem>>, vector<150x15xbf16>
    %cst_8 = arith.constant dense<0.000000e+00> : vector<50x15xf32>
    %7 = tpu.matmul %5, %6, %cst_8 {dimension_numbers = #tpu.dot_dimension_numbers<[1], [0], [0], [1], [0, 0, 1, 1], [], []>} : vector<50x150xbf16>, vector<150x15xbf16>, vector<50x15xf32> -> vector<50x15xf32>
    %8 = arith.maximumf %3, %7 : vector<50x15xf32>
    %c2 = arith.constant 2 : index
    %c0_9 = arith.constant 0 : index
    %c0_10 = arith.constant 0 : index
    %9 = vector.load %arg0[%c2, %c0_9, %c0_10] : memref<4x50x150xbf16, #tpu.memory_space<vmem>>, vector<1x50x150xbf16>
    %10 = vector.shape_cast %9 : vector<1x50x150xbf16> to vector<50x150xbf16>
    %c0_11 = arith.constant 0 : index
    %c0_12 = arith.constant 0 : index
    %11 = vector.load %arg1[%c0_11, %c0_12] : memref<150x15xbf16, #tpu.memory_space<vmem>>, vector<150x15xbf16>
    %cst_13 = arith.constant dense<0.000000e+00> : vector<50x15xf32>
    %12 = tpu.matmul %10, %11, %cst_13 {dimension_numbers = #tpu.dot_dimension_numbers<[1], [0], [0], [1], [0, 0, 1, 1], [], []>} : vector<50x150xbf16>, vector<150x15xbf16>, vector<50x15xf32> -> vector<50x15xf32>
    %13 = arith.maximumf %8, %12 : vector<50x15xf32>
    %c3 = arith.constant 3 : index
    %c0_14 = arith.constant 0 : index
    %c0_15 = arith.constant 0 : index
    %14 = vector.load %arg0[%c3, %c0_14, %c0_15] : memref<4x50x150xbf16, #tpu.memory_space<vmem>>, vector<1x50x150xbf16>
    %15 = vector.shape_cast %14 : vector<1x50x150xbf16> to vector<50x150xbf16>
    %c0_16 = arith.constant 0 : index
    %c0_17 = arith.constant 0 : index
    %16 = vector.load %arg1[%c0_16, %c0_17] : memref<150x15xbf16, #tpu.memory_space<vmem>>, vector<150x15xbf16>
    %cst_18 = arith.constant dense<0.000000e+00> : vector<50x15xf32>
    %17 = tpu.matmul %15, %16, %cst_18 {dimension_numbers = #tpu.dot_dimension_numbers<[1], [0], [0], [1], [0, 0, 1, 1], [], []>} : vector<50x150xbf16>, vector<150x15xbf16>, vector<50x15xf32> -> vector<50x15xf32>
    %18 = arith.maximumf %13, %17 : vector<50x15xf32>
    %c0_19 = arith.constant 0 : index
    %c0_20 = arith.constant 0 : index
    %19 = vector.load %arg2[%c0_19, %c0_20] : memref<1x15xf32, #tpu.memory_space<vmem>>, vector<1x15xf32>
    %20 = vector.broadcast %19 : vector<1x15xf32> to vector<50x15xf32>
    %21 = arith.addf %18, %20 : vector<50x15xf32>
    %cst_21 = arith.constant 0.000000e+00 : f32
    %22 = vector.broadcast %cst_21 : f32 to vector<50x15xf32>
    %23 = arith.maximumf %21, %22 : vector<50x15xf32>
    %c0_22 = arith.constant 0 : index
    %c0_23 = arith.constant 0 : index
    %24 = vector.load %arg3[%c0_22, %c0_23] : memref<50x15xf32, #tpu.memory_space<vmem>>, vector<50x15xf32>
    tpu.vector_store %arg3[%c0_22, %c0_23], %23 {strides = array<i32>} : memref<50x15xf32, #tpu.memory_space<vmem>>, vector<50x15xf32>,
    return
  }
}

module attributes {stable_mosaic.version = 11 : i64} {
  func.func @stats_sketch_head_kernel(%arg0: memref<2x15x25xf32, #tpu.memory_space<vmem>>, %arg1: memref<2x25x15xf32, #tpu.memory_space<vmem>>, %arg2: memref<2x15x1xf32, #tpu.memory_space<vmem>>, %arg3: memref<2x1x15xf32, #tpu.memory_space<vmem>>, %arg4: memref<15x15x160xf32, #tpu.memory_space<vmem>>, %arg5: memref<15x160xf32, #tpu.memory_space<vmem>>, %arg6: memref<1x160xf32, #tpu.memory_space<vmem>>, %arg7: memref<160x3072xbf16, #tpu.memory_space<vmem>>, %arg8: memref<1x3072xf32, #tpu.memory_space<vmem>>, %arg9: memref<3072x10xbf16, #tpu.memory_space<vmem>>, %arg10: memref<1x10xf32, #tpu.memory_space<vmem>>, %arg11: memref<2x10xf32, #tpu.memory_space<vmem>>) attributes {dimension_semantics = [], scalar_prefetch = 0 : i64, scratch_operands = 0 : i64, tpu.core_type = #tpu.core_type<tc>} {
    %c0 = arith.constant 0 : index
    %c0_0 = arith.constant 0 : index
    %c0_1 = arith.constant 0 : index
    %0 = vector.load %arg0[%c0, %c0_0, %c0_1] : memref<2x15x25xf32, #tpu.memory_space<vmem>>, vector<1x15x25xf32>
    %1 = vector.shape_cast %0 : vector<1x15x25xf32> to vector<15x25xf32>
    %c0_2 = arith.constant 0 : index
    %c0_3 = arith.constant 0 : index
    %c0_4 = arith.constant 0 : index
    %2 = vector.load %arg1[%c0_2, %c0_3, %c0_4] : memref<2x25x15xf32, #tpu.memory_space<vmem>>, vector<1x25x15xf32>
    %3 = vector.shape_cast %2 : vector<1x25x15xf32> to vector<25x15xf32>
    %c0_5 = arith.constant 0 : index
    %c0_6 = arith.constant 0 : index
    %c0_7 = arith.constant 0 : index
    %4 = vector.load %arg2[%c0_5, %c0_6, %c0_7] : memref<2x15x1xf32, #tpu.memory_space<vmem>>, vector<1x15x1xf32>
    %5 = vector.shape_cast %4 : vector<1x15x1xf32> to vector<15x1xf32>
    %c0_8 = arith.constant 0 : index
    %c0_9 = arith.constant 0 : index
    %c0_10 = arith.constant 0 : index
    %6 = vector.load %arg3[%c0_8, %c0_9, %c0_10] : memref<2x1x15xf32, #tpu.memory_space<vmem>>, vector<1x1x15xf32>
    %7 = vector.shape_cast %6 : vector<1x1x15xf32> to vector<1x15xf32>
    %cst = arith.constant dense<0.000000e+00> : vector<15x15xf32>
    %8 = tpu.matmul %1, %3, %cst {dimension_numbers = #tpu.dot_dimension_numbers<[1], [0], [0], [1], [0, 0, 1, 1], [], []>} : vector<15x25xf32>, vector<25x15xf32>, vector<15x15xf32> -> vector<15x15xf32>
    %cst_11 = arith.constant 4.000000e-02 : f32
    %9 = vector.broadcast %cst_11 : f32 to vector<15x15xf32>
    %10 = arith.mulf %8, %9 : vector<15x15xf32>
    %11 = vector.broadcast %5 : vector<15x1xf32> to vector<15x15xf32>
    %12 = vector.broadcast %7 : vector<1x15xf32> to vector<15x15xf32>
    %13 = arith.mulf %11, %12 : vector<15x15xf32>
    %cst_12 = arith.constant 9.000000e-02 : f32
    %14 = vector.broadcast %cst_12 : f32 to vector<15x15xf32>
    %15 = arith.mulf %14, %13 : vector<15x15xf32>
    %16 = arith.addf %10, %15 : vector<15x15xf32>
    %c0_13 = arith.constant 0 : index
    %c0_14 = arith.constant 0 : index
    %17 = vector.load %arg5[%c0_13, %c0_14] : memref<15x160xf32, #tpu.memory_space<vmem>>, vector<15x160xf32>
    %cst_15 = arith.constant dense<0.000000e+00> : vector<1x160xf32>
    %18 = tpu.matmul %7, %17, %cst_15 {dimension_numbers = #tpu.dot_dimension_numbers<[1], [0], [0], [1], [0, 0, 1, 1], [], []>} : vector<1x15xf32>, vector<15x160xf32>, vector<1x160xf32> -> vector<1x160xf32>
    %c0_16 = arith.constant 0 : index
    %c0_17 = arith.constant 0 : index
    %19 = vector.load %arg6[%c0_16, %c0_17] : memref<1x160xf32, #tpu.memory_space<vmem>>, vector<1x160xf32>
    %20 = arith.addf %18, %19 : vector<1x160xf32>
    %21 = vector.extract_strided_slice %16 {offsets = [0, 0], sizes = [1, 15], strides = [1, 1]} : vector<15x15xf32> to vector<1x15xf32>
    %c0_18 = arith.constant 0 : index
    %c0_19 = arith.constant 0 : index
    %c0_20 = arith.constant 0 : index
    %22 = vector.load %arg4[%c0_18, %c0_19, %c0_20] : memref<15x15x160xf32, #tpu.memory_space<vmem>>, vector<1x15x160xf32>
    %23 = vector.shape_cast %22 : vector<1x15x160xf32> to vector<15x160xf32>
    %cst_21 = arith.constant dense<0.000000e+00> : vector<1x160xf32>
    %24 = tpu.matmul %21, %23, %cst_21 {dimension_numbers = #tpu.dot_dimension_numbers<[1], [0], [0], [1], [0, 0, 1, 1], [], []>} : vector<1x15xf32>, vector<15x160xf32>, vector<1x160xf32> -> vector<1x160xf32>
    %25 = arith.addf %20, %24 : vector<1x160xf32>
    %26 = vector.extract_strided_slice %16 {offsets = [1, 0], sizes = [1, 15], strides = [1, 1]} : vector<15x15xf32> to vector<1x15xf32>
    %c1 = arith.constant 1 : index
    %c0_22 = arith.constant 0 : index
    %c0_23 = arith.constant 0 : index
    %27 = vector.load %arg4[%c1, %c0_22, %c0_23] : memref<15x15x160xf32, #tpu.memory_space<vmem>>, vector<1x15x160xf32>
    %28 = vector.shape_cast %27 : vector<1x15x160xf32> to vector<15x160xf32>
    %cst_24 = arith.constant dense<0.000000e+00> : vector<1x160xf32>
    %29 = tpu.matmul %26, %28, %cst_24 {dimension_numbers = #tpu.dot_dimension_numbers<[1], [0], [0], [1], [0, 0, 1, 1], [], []>} : vector<1x15xf32>, vector<15x160xf32>, vector<1x160xf32> -> vector<1x160xf32>
    %30 = arith.addf %25, %29 : vector<1x160xf32>
    %31 = vector.extract_strided_slice %16 {offsets = [2, 0], sizes = [1, 15], strides = [1, 1]} : vector<15x15xf32> to vector<1x15xf32>
    %c2 = arith.constant 2 : index
    %c0_25 = arith.constant 0 : index
    %c0_26 = arith.constant 0 : index
    %32 = vector.load %arg4[%c2, %c0_25, %c0_26] : memref<15x15x160xf32, #tpu.memory_space<vmem>>, vector<1x15x160xf32>
    %33 = vector.shape_cast %32 : vector<1x15x160xf32> to vector<15x160xf32>
    %cst_27 = arith.constant dense<0.000000e+00> : vector<1x160xf32>
    %34 = tpu.matmul %31, %33, %cst_27 {dimension_numbers = #tpu.dot_dimension_numbers<[1], [0], [0], [1], [0, 0, 1, 1], [], []>} : vector<1x15xf32>, vector<15x160xf32>, vector<1x160xf32> -> vector<1x160xf32>
    %35 = arith.addf %30, %34 : vector<1x160xf32>
    %36 = vector.extract_strided_slice %16 {offsets = [3, 0], sizes = [1, 15], strides = [1, 1]} : vector<15x15xf32> to vector<1x15xf32>
    %c3 = arith.constant 3 : index
    %c0_28 = arith.constant 0 : index
    %c0_29 = arith.constant 0 : index
    %37 = vector.load %arg4[%c3, %c0_28, %c0_29] : memref<15x15x160xf32, #tpu.memory_space<vmem>>, vector<1x15x160xf32>
    %38 = vector.shape_cast %37 : vector<1x15x160xf32> to vector<15x160xf32>
    %cst_30 = arith.constant dense<0.000000e+00> : vector<1x160xf32>
    %39 = tpu.matmul %36, %38, %cst_30 {dimension_numbers = #tpu.dot_dimension_numbers<[1], [0], [0], [1], [0, 0, 1, 1], [], []>} : vector<1x15xf32>, vector<15x160xf32>, vector<1x160xf32> -> vector<1x160xf32>
    %40 = arith.addf %35, %39 : vector<1x160xf32>
    %41 = vector.extract_strided_slice %16 {offsets = [4, 0], sizes = [1, 15], strides = [1, 1]} : vector<15x15xf32> to vector<1x15xf32>
    %c4 = arith.constant 4 : index
    %c0_31 = arith.constant 0 : index
    %c0_32 = arith.constant 0 : index
    %42 = vector.load %arg4[%c4, %c0_31, %c0_32] : memref<15x15x160xf32, #tpu.memory_space<vmem>>, vector<1x15x160xf32>
    %43 = vector.shape_cast %42 : vector<1x15x160xf32> to vector<15x160xf32>
    %cst_33 = arith.constant dense<0.000000e+00> : vector<1x160xf32>
    %44 = tpu.matmul %41, %43, %cst_33 {dimension_numbers = #tpu.dot_dimension_numbers<[1], [0], [0], [1], [0, 0, 1, 1], [], []>} : vector<1x15xf32>, vector<15x160xf32>, vector<1x160xf32> -> vector<1x160xf32>
    %45 = arith.addf %40, %44 : vector<1x160xf32>
    %46 = vector.extract_strided_slice %16 {offsets = [5, 0], sizes = [1, 15], strides = [1, 1]} : vector<15x15xf32> to vector<1x15xf32>
    %c5 = arith.constant 5 : index
    %c0_34 = arith.constant 0 : index
    %c0_35 = arith.constant 0 : index
    %47 = vector.load %arg4[%c5, %c0_34, %c0_35] : memref<15x15x160xf32, #tpu.memory_space<vmem>>, vector<1x15x160xf32>
    %48 = vector.shape_cast %47 : vector<1x15x160xf32> to vector<15x160xf32>
    %cst_36 = arith.constant dense<0.000000e+00> : vector<1x160xf32>
    %49 = tpu.matmul %46, %48, %cst_36 {dimension_numbers = #tpu.dot_dimension_numbers<[1], [0], [0], [1], [0, 0, 1, 1], [], []>} : vector<1x15xf32>, vector<15x160xf32>, vector<1x160xf32> -> vector<1x160xf32>
    %50 = arith.addf %45, %49 : vector<1x160xf32>
    %51 = vector.extract_strided_slice %16 {offsets = [6, 0], sizes = [1, 15], strides = [1, 1]} : vector<15x15xf32> to vector<1x15xf32>
    %c6 = arith.constant 6 : index
    %c0_37 = arith.constant 0 : index
    %c0_38 = arith.constant 0 : index
    %52 = vector.load %arg4[%c6, %c0_37, %c0_38] : memref<15x15x160xf32, #tpu.memory_space<vmem>>, vector<1x15x160xf32>
    %53 = vector.shape_cast %52 : vector<1x15x160xf32> to vector<15x160xf32>
    %cst_39 = arith.constant dense<0.000000e+00> : vector<1x160xf32>
    %54 = tpu.matmul %51, %53, %cst_39 {dimension_numbers = #tpu.dot_dimension_numbers<[1], [0], [0], [1], [0, 0, 1, 1], [], []>} : vector<1x15xf32>, vector<15x160xf32>, vector<1x160xf32> -> vector<1x160xf32>
    %55 = arith.addf %50, %54 : vector<1x160xf32>
    %56 = vector.extract_strided_slice %16 {offsets = [7, 0], sizes = [1, 15], strides = [1, 1]} : vector<15x15xf32> to vector<1x15xf32>
    %c7 = arith.constant 7 : index
    %c0_40 = arith.constant 0 : index
    %c0_41 = arith.constant 0 : index
    %57 = vector.load %arg4[%c7, %c0_40, %c0_41] : memref<15x15x160xf32, #tpu.memory_space<vmem>>, vector<1x15x160xf32>
    %58 = vector.shape_cast %57 : vector<1x15x160xf32> to vector<15x160xf32>
    %cst_42 = arith.constant dense<0.000000e+00> : vector<1x160xf32>
    %59 = tpu.matmul %56, %58, %cst_42 {dimension_numbers = #tpu.dot_dimension_numbers<[1], [0], [0], [1], [0, 0, 1, 1], [], []>} : vector<1x15xf32>, vector<15x160xf32>, vector<1x160xf32> -> vector<1x160xf32>
    %60 = arith.addf %55, %59 : vector<1x160xf32>
    %61 = vector.extract_strided_slice %16 {offsets = [8, 0], sizes = [1, 15], strides = [1, 1]} : vector<15x15xf32> to vector<1x15xf32>
    %c8 = arith.constant 8 : index
    %c0_43 = arith.constant 0 : index
    %c0_44 = arith.constant 0 : index
    %62 = vector.load %arg4[%c8, %c0_43, %c0_44] : memref<15x15x160xf32, #tpu.memory_space<vmem>>, vector<1x15x160xf32>
    %63 = vector.shape_cast %62 : vector<1x15x160xf32> to vector<15x160xf32>
    %cst_45 = arith.constant dense<0.000000e+00> : vector<1x160xf32>
    %64 = tpu.matmul %61, %63, %cst_45 {dimension_numbers = #tpu.dot_dimension_numbers<[1], [0], [0], [1], [0, 0, 1, 1], [], []>} : vector<1x15xf32>, vector<15x160xf32>, vector<1x160xf32> -> vector<1x160xf32>
    %65 = arith.addf %60, %64 : vector<1x160xf32>
    %66 = vector.extract_strided_slice %16 {offsets = [9, 0], sizes = [1, 15], strides = [1, 1]} : vector<15x15xf32> to vector<1x15xf32>
    %c9 = arith.constant 9 : index
    %c0_46 = arith.constant 0 : index
    %c0_47 = arith.constant 0 : index
    %67 = vector.load %arg4[%c9, %c0_46, %c0_47] : memref<15x15x160xf32, #tpu.memory_space<vmem>>, vector<1x15x160xf32>
    %68 = vector.shape_cast %67 : vector<1x15x160xf32> to vector<15x160xf32>
    %cst_48 = arith.constant dense<0.000000e+00> : vector<1x160xf32>
    %69 = tpu.matmul %66, %68, %cst_48 {dimension_numbers = #tpu.dot_dimension_numbers<[1], [0], [0], [1], [0, 0, 1, 1], [], []>} : vector<1x15xf32>, vector<15x160xf32>, vector<1x160xf32> -> vector<1x160xf32>
    %70 = arith.addf %65, %69 : vector<1x160xf32>
    %71 = vector.extract_strided_slice %16 {offsets = [10, 0], sizes = [1, 15], strides = [1, 1]} : vector<15x15xf32> to vector<1x15xf32>
    %c10 = arith.constant 10 : index
    %c0_49 = arith.constant 0 : index
    %c0_50 = arith.constant 0 : index
    %72 = vector.load %arg4[%c10, %c0_49, %c0_50] : memref<15x15x160xf32, #tpu.memory_space<vmem>>, vector<1x15x160xf32>
    %73 = vector.shape_cast %72 : vector<1x15x160xf32> to vector<15x160xf32>
    %cst_51 = arith.constant dense<0.000000e+00> : vector<1x160xf32>
    %74 = tpu.matmul %71, %73, %cst_51 {dimension_numbers = #tpu.dot_dimension_numbers<[1], [0], [0], [1], [0, 0, 1, 1], [], []>} : vector<1x15xf32>, vector<15x160xf32>, vector<1x160xf32> -> vector<1x160xf32>
    %75 = arith.addf %70, %74 : vector<1x160xf32>
    %76 = vector.extract_strided_slice %16 {offsets = [11, 0], sizes = [1, 15], strides = [1, 1]} : vector<15x15xf32> to vector<1x15xf32>
    %c11 = arith.constant 11 : index
    %c0_52 = arith.constant 0 : index
    %c0_53 = arith.constant 0 : index
    %77 = vector.load %arg4[%c11, %c0_52, %c0_53] : memref<15x15x160xf32, #tpu.memory_space<vmem>>, vector<1x15x160xf32>
    %78 = vector.shape_cast %77 : vector<1x15x160xf32> to vector<15x160xf32>
    %cst_54 = arith.constant dense<0.000000e+00> : vector<1x160xf32>
    %79 = tpu.matmul %76, %78, %cst_54 {dimension_numbers = #tpu.dot_dimension_numbers<[1], [0], [0], [1], [0, 0, 1, 1], [], []>} : vector<1x15xf32>, vector<15x160xf32>, vector<1x160xf32> -> vector<1x160xf32>
    %80 = arith.addf %75, %79 : vector<1x160xf32>
    %81 = vector.extract_strided_slice %16 {offsets = [12, 0], sizes = [1, 15], strides = [1, 1]} : vector<15x15xf32> to vector<1x15xf32>
    %c12 = arith.constant 12 : index
    %c0_55 = arith.constant 0 : index
    %c0_56 = arith.constant 0 : index
    %82 = vector.load %arg4[%c12, %c0_55, %c0_56] : memref<15x15x160xf32, #tpu.memory_space<vmem>>, vector<1x15x160xf32>
    %83 = vector.shape_cast %82 : vector<1x15x160xf32> to vector<15x160xf32>
    %cst_57 = arith.constant dense<0.000000e+00> : vector<1x160xf32>
    %84 = tpu.matmul %81, %83, %cst_57 {dimension_numbers = #tpu.dot_dimension_numbers<[1], [0], [0], [1], [0, 0, 1, 1], [], []>} : vector<1x15xf32>, vector<15x160xf32>, vector<1x160xf32> -> vector<1x160xf32>
    %85 = arith.addf %80, %84 : vector<1x160xf32>
    %86 = vector.extract_strided_slice %16 {offsets = [13, 0], sizes = [1, 15], strides = [1, 1]} : vector<15x15xf32> to vector<1x15xf32>
    %c13 = arith.constant 13 : index
    %c0_58 = arith.constant 0 : index
    %c0_59 = arith.constant 0 : index
    %87 = vector.load %arg4[%c13, %c0_58, %c0_59] : memref<15x15x160xf32, #tpu.memory_space<vmem>>, vector<1x15x160xf32>
    %88 = vector.shape_cast %87 : vector<1x15x160xf32> to vector<15x160xf32>
    %cst_60 = arith.constant dense<0.000000e+00> : vector<1x160xf32>
    %89 = tpu.matmul %86, %88, %cst_60 {dimension_numbers = #tpu.dot_dimension_numbers<[1], [0], [0], [1], [0, 0, 1, 1], [], []>} : vector<1x15xf32>, vector<15x160xf32>, vector<1x160xf32> -> vector<1x160xf32>
    %90 = arith.addf %85, %89 : vector<1x160xf32>
    %91 = vector.extract_strided_slice %16 {offsets = [14, 0], sizes = [1, 15], strides = [1, 1]} : vector<15x15xf32> to vector<1x15xf32>
    %c14 = arith.constant 14 : index
    %c0_61 = arith.constant 0 : index
    %c0_62 = arith.constant 0 : index
    %92 = vector.load %arg4[%c14, %c0_61, %c0_62] : memref<15x15x160xf32, #tpu.memory_space<vmem>>, vector<1x15x160xf32>
    %93 = vector.shape_cast %92 : vector<1x15x160xf32> to vector<15x160xf32>
    %cst_63 = arith.constant dense<0.000000e+00> : vector<1x160xf32>
    %94 = tpu.matmul %91, %93, %cst_63 {dimension_numbers = #tpu.dot_dimension_numbers<[1], [0], [0], [1], [0, 0, 1, 1], [], []>} : vector<1x15xf32>, vector<15x160xf32>, vector<1x160xf32> -> vector<1x160xf32>
    %95 = arith.addf %90, %94 : vector<1x160xf32>
    %96 = arith.truncf %95 : vector<1x160xf32> to vector<1x160xbf16>
    %c0_64 = arith.constant 0 : index
    %c0_65 = arith.constant 0 : index
    %97 = vector.load %arg7[%c0_64, %c0_65] : memref<160x3072xbf16, #tpu.memory_space<vmem>>, vector<160x3072xbf16>
    %cst_66 = arith.constant dense<0.000000e+00> : vector<1x3072xf32>
    %98 = tpu.matmul %96, %97, %cst_66 {dimension_numbers = #tpu.dot_dimension_numbers<[1], [0], [0], [1], [0, 0, 1, 1], [], []>} : vector<1x160xbf16>, vector<160x3072xbf16>, vector<1x3072xf32> -> vector<1x3072xf32>
    %c0_67 = arith.constant 0 : index
    %c0_68 = arith.constant 0 : index
    %99 = vector.load %arg8[%c0_67, %c0_68] : memref<1x3072xf32, #tpu.memory_space<vmem>>, vector<1x3072xf32>
    %100 = arith.addf %98, %99 : vector<1x3072xf32>
    %101 = arith.truncf %100 : vector<1x3072xf32> to vector<1x3072xbf16>
    %c0_69 = arith.constant 0 : index
    %c0_70 = arith.constant 0 : index
    %102 = vector.load %arg9[%c0_69, %c0_70] : memref<3072x10xbf16, #tpu.memory_space<vmem>>, vector<3072x10xbf16>
    %cst_71 = arith.constant dense<0.000000e+00> : vector<1x10xf32>
    %103 = tpu.matmul %101, %102, %cst_71 {dimension_numbers = #tpu.dot_dimension_numbers<[1], [0], [0], [1], [0, 0, 1, 1], [], []>} : vector<1x3072xbf16>, vector<3072x10xbf16>, vector<1x10xf32> -> vector<1x10xf32>
    %c0_72 = arith.constant 0 : index
    %c0_73 = arith.constant 0 : index
    %104 = vector.load %arg10[%c0_72, %c0_73] : memref<1x10xf32, #tpu.memory_space<vmem>>, vector<1x10xf32>
    %105 = arith.addf %103, %104 : vector<1x10xf32>
    %c0_74 = arith.constant 0 : index
    %c0_75 = arith.constant 0 : index
    %106 = vector.load %arg11[%c0_74, %c0_75] : memref<2x10xf32, #tpu.memory_space<vmem>>, vector<1x10xf32>
    tpu.vector_store %arg11[%c0_74, %c0_75], %105 {strides = array<i32>} : memref<2x10xf32, #tpu.memory_space<vmem>>, vector<1x10xf32>,
    %c1_76 = arith.constant 1 : index
    %c0_77 = arith.constant 0 : index
    %c0_78 = arith.constant 0 : index
    %107 = vector.load %arg0[%c1_76, %c0_77, %c0_78] : memref<2x15x25xf32, #tpu.memory_space<vmem>>, vector<1x15x25xf32>
    %108 = vector.shape_cast %107 : vector<1x15x25xf32> to vector<15x25xf32>
    %c1_79 = arith.constant 1 : index
    %c0_80 = arith.constant 0 : index
    %c0_81 = arith.constant 0 : index
    %109 = vector.load %arg1[%c1_79, %c0_80, %c0_81] : memref<2x25x15xf32, #tpu.memory_space<vmem>>, vector<1x25x15xf32>
    %110 = vector.shape_cast %109 : vector<1x25x15xf32> to vector<25x15xf32>
    %c1_82 = arith.constant 1 : index
    %c0_83 = arith.constant 0 : index
    %c0_84 = arith.constant 0 : index
    %111 = vector.load %arg2[%c1_82, %c0_83, %c0_84] : memref<2x15x1xf32, #tpu.memory_space<vmem>>, vector<1x15x1xf32>
    %112 = vector.shape_cast %111 : vector<1x15x1xf32> to vector<15x1xf32>
    %c1_85 = arith.constant 1 : index
    %c0_86 = arith.constant 0 : index
    %c0_87 = arith.constant 0 : index
    %113 = vector.load %arg3[%c1_85, %c0_86, %c0_87] : memref<2x1x15xf32, #tpu.memory_space<vmem>>, vector<1x1x15xf32>
    %114 = vector.shape_cast %113 : vector<1x1x15xf32> to vector<1x15xf32>
    %cst_88 = arith.constant dense<0.000000e+00> : vector<15x15xf32>
    %115 = tpu.matmul %108, %110, %cst_88 {dimension_numbers = #tpu.dot_dimension_numbers<[1], [0], [0], [1], [0, 0, 1, 1], [], []>} : vector<15x25xf32>, vector<25x15xf32>, vector<15x15xf32> -> vector<15x15xf32>
    %cst_89 = arith.constant 4.000000e-02 : f32
    %116 = vector.broadcast %cst_89 : f32 to vector<15x15xf32>
    %117 = arith.mulf %115, %116 : vector<15x15xf32>
    %118 = vector.broadcast %112 : vector<15x1xf32> to vector<15x15xf32>
    %119 = vector.broadcast %114 : vector<1x15xf32> to vector<15x15xf32>
    %120 = arith.mulf %118, %119 : vector<15x15xf32>
    %cst_90 = arith.constant 9.000000e-02 : f32
    %121 = vector.broadcast %cst_90 : f32 to vector<15x15xf32>
    %122 = arith.mulf %121, %120 : vector<15x15xf32>
    %123 = arith.addf %117, %122 : vector<15x15xf32>
    %c0_91 = arith.constant 0 : index
    %c0_92 = arith.constant 0 : index
    %124 = vector.load %arg5[%c0_91, %c0_92] : memref<15x160xf32, #tpu.memory_space<vmem>>, vector<15x160xf32>
    %cst_93 = arith.constant dense<0.000000e+00> : vector<1x160xf32>
    %125 = tpu.matmul %114, %124, %cst_93 {dimension_numbers = #tpu.dot_dimension_numbers<[1], [0], [0], [1], [0, 0, 1, 1], [], []>} : vector<1x15xf32>, vector<15x160xf32>, vector<1x160xf32> -> vector<1x160xf32>
    %c0_94 = arith.constant 0 : index
    %c0_95 = arith.constant 0 : index
    %126 = vector.load %arg6[%c0_94, %c0_95] : memref<1x160xf32, #tpu.memory_space<vmem>>, vector<1x160xf32>
    %127 = arith.addf %125, %126 : vector<1x160xf32>
    %128 = vector.extract_strided_slice %123 {offsets = [0, 0], sizes = [1, 15], strides = [1, 1]} : vector<15x15xf32> to vector<1x15xf32>
    %c0_96 = arith.constant 0 : index
    %c0_97 = arith.constant 0 : index
    %c0_98 = arith.constant 0 : index
    %129 = vector.load %arg4[%c0_96, %c0_97, %c0_98] : memref<15x15x160xf32, #tpu.memory_space<vmem>>, vector<1x15x160xf32>
    %130 = vector.shape_cast %129 : vector<1x15x160xf32> to vector<15x160xf32>
    %cst_99 = arith.constant dense<0.000000e+00> : vector<1x160xf32>
    %131 = tpu.matmul %128, %130, %cst_99 {dimension_numbers = #tpu.dot_dimension_numbers<[1], [0], [0], [1], [0, 0, 1, 1], [], []>} : vector<1x15xf32>, vector<15x160xf32>, vector<1x160xf32> -> vector<1x160xf32>
    %132 = arith.addf %127, %131 : vector<1x160xf32>
    %133 = vector.extract_strided_slice %123 {offsets = [1, 0], sizes = [1, 15], strides = [1, 1]} : vector<15x15xf32> to vector<1x15xf32>
    %c1_100 = arith.constant 1 : index
    %c0_101 = arith.constant 0 : index
    %c0_102 = arith.constant 0 : index
    %134 = vector.load %arg4[%c1_100, %c0_101, %c0_102] : memref<15x15x160xf32, #tpu.memory_space<vmem>>, vector<1x15x160xf32>
    %135 = vector.shape_cast %134 : vector<1x15x160xf32> to vector<15x160xf32>
    %cst_103 = arith.constant dense<0.000000e+00> : vector<1x160xf32>
    %136 = tpu.matmul %133, %135, %cst_103 {dimension_numbers = #tpu.dot_dimension_numbers<[1], [0], [0], [1], [0, 0, 1, 1], [], []>} : vector<1x15xf32>, vector<15x160xf32>, vector<1x160xf32> -> vector<1x160xf32>
    %137 = arith.addf %132, %136 : vector<1x160xf32>
    %138 = vector.extract_strided_slice %123 {offsets = [2, 0], sizes = [1, 15], strides = [1, 1]} : vector<15x15xf32> to vector<1x15xf32>
    %c2_104 = arith.constant 2 : index
    %c0_105 = arith.constant 0 : index
    %c0_106 = arith.constant 0 : index
    %139 = vector.load %arg4[%c2_104, %c0_105, %c0_106] : memref<15x15x160xf32, #tpu.memory_space<vmem>>, vector<1x15x160xf32>
    %140 = vector.shape_cast %139 : vector<1x15x160xf32> to vector<15x160xf32>
    %cst_107 = arith.constant dense<0.000000e+00> : vector<1x160xf32>
    %141 = tpu.matmul %138, %140, %cst_107 {dimension_numbers = #tpu.dot_dimension_numbers<[1], [0], [0], [1], [0, 0, 1, 1], [], []>} : vector<1x15xf32>, vector<15x160xf32>, vector<1x160xf32> -> vector<1x160xf32>
    %142 = arith.addf %137, %141 : vector<1x160xf32>
    %143 = vector.extract_strided_slice %123 {offsets = [3, 0], sizes = [1, 15], strides = [1, 1]} : vector<15x15xf32> to vector<1x15xf32>
    %c3_108 = arith.constant 3 : index
    %c0_109 = arith.constant 0 : index
    %c0_110 = arith.constant 0 : index
    %144 = vector.load %arg4[%c3_108, %c0_109, %c0_110] : memref<15x15x160xf32, #tpu.memory_space<vmem>>, vector<1x15x160xf32>
    %145 = vector.shape_cast %144 : vector<1x15x160xf32> to vector<15x160xf32>
    %cst_111 = arith.constant dense<0.000000e+00> : vector<1x160xf32>
    %146 = tpu.matmul %143, %145, %cst_111 {dimension_numbers = #tpu.dot_dimension_numbers<[1], [0], [0], [1], [0, 0, 1, 1], [], []>} : vector<1x15xf32>, vector<15x160xf32>, vector<1x160xf32> -> vector<1x160xf32>
    %147 = arith.addf %142, %146 : vector<1x160xf32>
    %148 = vector.extract_strided_slice %123 {offsets = [4, 0], sizes = [1, 15], strides = [1, 1]} : vector<15x15xf32> to vector<1x15xf32>
    %c4_112 = arith.constant 4 : index
    %c0_113 = arith.constant 0 : index
    %c0_114 = arith.constant 0 : index
    %149 = vector.load %arg4[%c4_112, %c0_113, %c0_114] : memref<15x15x160xf32, #tpu.memory_space<vmem>>, vector<1x15x160xf32>
    %150 = vector.shape_cast %149 : vector<1x15x160xf32> to vector<15x160xf32>
    %cst_115 = arith.constant dense<0.000000e+00> : vector<1x160xf32>
    %151 = tpu.matmul %148, %150, %cst_115 {dimension_numbers = #tpu.dot_dimension_numbers<[1], [0], [0], [1], [0, 0, 1, 1], [], []>} : vector<1x15xf32>, vector<15x160xf32>, vector<1x160xf32> -> vector<1x160xf32>
    %152 = arith.addf %147, %151 : vector<1x160xf32>
    %153 = vector.extract_strided_slice %123 {offsets = [5, 0], sizes = [1, 15], strides = [1, 1]} : vector<15x15xf32> to vector<1x15xf32>
    %c5_116 = arith.constant 5 : index
    %c0_117 = arith.constant 0 : index
    %c0_118 = arith.constant 0 : index
    %154 = vector.load %arg4[%c5_116, %c0_117, %c0_118] : memref<15x15x160xf32, #tpu.memory_space<vmem>>, vector<1x15x160xf32>
    %155 = vector.shape_cast %154 : vector<1x15x160xf32> to vector<15x160xf32>
    %cst_119 = arith.constant dense<0.000000e+00> : vector<1x160xf32>
    %156 = tpu.matmul %153, %155, %cst_119 {dimension_numbers = #tpu.dot_dimension_numbers<[1], [0], [0], [1], [0, 0, 1, 1], [], []>} : vector<1x15xf32>, vector<15x160xf32>, vector<1x160xf32> -> vector<1x160xf32>
    %157 = arith.addf %152, %156 : vector<1x160xf32>
    %158 = vector.extract_strided_slice %123 {offsets = [6, 0], sizes = [1, 15], strides = [1, 1]} : vector<15x15xf32> to vector<1x15xf32>
    %c6_120 = arith.constant 6 : index
    %c0_121 = arith.constant 0 : index
    %c0_122 = arith.constant 0 : index
    %159 = vector.load %arg4[%c6_120, %c0_121, %c0_122] : memref<15x15x160xf32, #tpu.memory_space<vmem>>, vector<1x15x160xf32>
    %160 = vector.shape_cast %159 : vector<1x15x160xf32> to vector<15x160xf32>
    %cst_123 = arith.constant dense<0.000000e+00> : vector<1x160xf32>
    %161 = tpu.matmul %158, %160, %cst_123 {dimension_numbers = #tpu.dot_dimension_numbers<[1], [0], [0], [1], [0, 0, 1, 1], [], []>} : vector<1x15xf32>, vector<15x160xf32>, vector<1x160xf32> -> vector<1x160xf32>
    %162 = arith.addf %157, %161 : vector<1x160xf32>
    %163 = vector.extract_strided_slice %123 {offsets = [7, 0], sizes = [1, 15], strides = [1, 1]} : vector<15x15xf32> to vector<1x15xf32>
    %c7_124 = arith.constant 7 : index
    %c0_125 = arith.constant 0 : index
    %c0_126 = arith.constant 0 : index
    %164 = vector.load %arg4[%c7_124, %c0_125, %c0_126] : memref<15x15x160xf32, #tpu.memory_space<vmem>>, vector<1x15x160xf32>
    %165 = vector.shape_cast %164 : vector<1x15x160xf32> to vector<15x160xf32>
    %cst_127 = arith.constant dense<0.000000e+00> : vector<1x160xf32>
    %166 = tpu.matmul %163, %165, %cst_127 {dimension_numbers = #tpu.dot_dimension_numbers<[1], [0], [0], [1], [0, 0, 1, 1], [], []>} : vector<1x15xf32>, vector<15x160xf32>, vector<1x160xf32> -> vector<1x160xf32>
    %167 = arith.addf %162, %166 : vector<1x160xf32>
    %168 = vector.extract_strided_slice %123 {offsets = [8, 0], sizes = [1, 15], strides = [1, 1]} : vector<15x15xf32> to vector<1x15xf32>
    %c8_128 = arith.constant 8 : index
    %c0_129 = arith.constant 0 : index
    %c0_130 = arith.constant 0 : index
    %169 = vector.load %arg4[%c8_128, %c0_129, %c0_130] : memref<15x15x160xf32, #tpu.memory_space<vmem>>, vector<1x15x160xf32>
    %170 = vector.shape_cast %169 : vector<1x15x160xf32> to vector<15x160xf32>
    %cst_131 = arith.constant dense<0.000000e+00> : vector<1x160xf32>
    %171 = tpu.matmul %168, %170, %cst_131 {dimension_numbers = #tpu.dot_dimension_numbers<[1], [0], [0], [1], [0, 0, 1, 1], [], []>} : vector<1x15xf32>, vector<15x160xf32>, vector<1x160xf32> -> vector<1x160xf32>
    %172 = arith.addf %167, %171 : vector<1x160xf32>
    %173 = vector.extract_strided_slice %123 {offsets = [9, 0], sizes = [1, 15], strides = [1, 1]} : vector<15x15xf32> to vector<1x15xf32>
    %c9_132 = arith.constant 9 : index
    %c0_133 = arith.constant 0 : index
    %c0_134 = arith.constant 0 : index
    %174 = vector.load %arg4[%c9_132, %c0_133, %c0_134] : memref<15x15x160xf32, #tpu.memory_space<vmem>>, vector<1x15x160xf32>
    %175 = vector.shape_cast %174 : vector<1x15x160xf32> to vector<15x160xf32>
    %cst_135 = arith.constant dense<0.000000e+00> : vector<1x160xf32>
    %176 = tpu.matmul %173, %175, %cst_135 {dimension_numbers = #tpu.dot_dimension_numbers<[1], [0], [0], [1], [0, 0, 1, 1], [], []>} : vector<1x15xf32>, vector<15x160xf32>, vector<1x160xf32> -> vector<1x160xf32>
    %177 = arith.addf %172, %176 : vector<1x160xf32>
    %178 = vector.extract_strided_slice %123 {offsets = [10, 0], sizes = [1, 15], strides = [1, 1]} : vector<15x15xf32> to vector<1x15xf32>
    %c10_136 = arith.constant 10 : index
    %c0_137 = arith.constant 0 : index
    %c0_138 = arith.constant 0 : index
    %179 = vector.load %arg4[%c10_136, %c0_137, %c0_138] : memref<15x15x160xf32, #tpu.memory_space<vmem>>, vector<1x15x160xf32>
    %180 = vector.shape_cast %179 : vector<1x15x160xf32> to vector<15x160xf32>
    %cst_139 = arith.constant dense<0.000000e+00> : vector<1x160xf32>
    %181 = tpu.matmul %178, %180, %cst_139 {dimension_numbers = #tpu.dot_dimension_numbers<[1], [0], [0], [1], [0, 0, 1, 1], [], []>} : vector<1x15xf32>, vector<15x160xf32>, vector<1x160xf32> -> vector<1x160xf32>
    %182 = arith.addf %177, %181 : vector<1x160xf32>
    %183 = vector.extract_strided_slice %123 {offsets = [11, 0], sizes = [1, 15], strides = [1, 1]} : vector<15x15xf32> to vector<1x15xf32>
    %c11_140 = arith.constant 11 : index
    %c0_141 = arith.constant 0 : index
    %c0_142 = arith.constant 0 : index
    %184 = vector.load %arg4[%c11_140, %c0_141, %c0_142] : memref<15x15x160xf32, #tpu.memory_space<vmem>>, vector<1x15x160xf32>
    %185 = vector.shape_cast %184 : vector<1x15x160xf32> to vector<15x160xf32>
    %cst_143 = arith.constant dense<0.000000e+00> : vector<1x160xf32>
    %186 = tpu.matmul %183, %185, %cst_143 {dimension_numbers = #tpu.dot_dimension_numbers<[1], [0], [0], [1], [0, 0, 1, 1], [], []>} : vector<1x15xf32>, vector<15x160xf32>, vector<1x160xf32> -> vector<1x160xf32>
    %187 = arith.addf %182, %186 : vector<1x160xf32>
    %188 = vector.extract_strided_slice %123 {offsets = [12, 0], sizes = [1, 15], strides = [1, 1]} : vector<15x15xf32> to vector<1x15xf32>
    %c12_144 = arith.constant 12 : index
    %c0_145 = arith.constant 0 : index
    %c0_146 = arith.constant 0 : index
    %189 = vector.load %arg4[%c12_144, %c0_145, %c0_146] : memref<15x15x160xf32, #tpu.memory_space<vmem>>, vector<1x15x160xf32>
    %190 = vector.shape_cast %189 : vector<1x15x160xf32> to vector<15x160xf32>
    %cst_147 = arith.constant dense<0.000000e+00> : vector<1x160xf32>
    %191 = tpu.matmul %188, %190, %cst_147 {dimension_numbers = #tpu.dot_dimension_numbers<[1], [0], [0], [1], [0, 0, 1, 1], [], []>} : vector<1x15xf32>, vector<15x160xf32>, vector<1x160xf32> -> vector<1x160xf32>
    %192 = arith.addf %187, %191 : vector<1x160xf32>
    %193 = vector.extract_strided_slice %123 {offsets = [13, 0], sizes = [1, 15], strides = [1, 1]} : vector<15x15xf32> to vector<1x15xf32>
    %c13_148 = arith.constant 13 : index
    %c0_149 = arith.constant 0 : index
    %c0_150 = arith.constant 0 : index
    %194 = vector.load %arg4[%c13_148, %c0_149, %c0_150] : memref<15x15x160xf32, #tpu.memory_space<vmem>>, vector<1x15x160xf32>
    %195 = vector.shape_cast %194 : vector<1x15x160xf32> to vector<15x160xf32>
    %cst_151 = arith.constant dense<0.000000e+00> : vector<1x160xf32>
    %196 = tpu.matmul %193, %195, %cst_151 {dimension_numbers = #tpu.dot_dimension_numbers<[1], [0], [0], [1], [0, 0, 1, 1], [], []>} : vector<1x15xf32>, vector<15x160xf32>, vector<1x160xf32> -> vector<1x160xf32>
    %197 = arith.addf %192, %196 : vector<1x160xf32>
    %198 = vector.extract_strided_slice %123 {offsets = [14, 0], sizes = [1, 15], strides = [1, 1]} : vector<15x15xf32> to vector<1x15xf32>
    %c14_152 = arith.constant 14 : index
    %c0_153 = arith.constant 0 : index
    %c0_154 = arith.constant 0 : index
    %199 = vector.load %arg4[%c14_152, %c0_153, %c0_154] : memref<15x15x160xf32, #tpu.memory_space<vmem>>, vector<1x15x160xf32>
    %200 = vector.shape_cast %199 : vector<1x15x160xf32> to vector<15x160xf32>
    %cst_155 = arith.constant dense<0.000000e+00> : vector<1x160xf32>
    %201 = tpu.matmul %198, %200, %cst_155 {dimension_numbers = #tpu.dot_dimension_numbers<[1], [0], [0], [1], [0, 0, 1, 1], [], []>} : vector<1x15xf32>, vector<15x160xf32>, vector<1x160xf32> -> vector<1x160xf32>
    %202 = arith.addf %197, %201 : vector<1x160xf32>
    %203 = arith.truncf %202 : vector<1x160xf32> to vector<1x160xbf16>
    %c0_156 = arith.constant 0 : index
    %c0_157 = arith.constant 0 : index
    %204 = vector.load %arg7[%c0_156, %c0_157] : memref<160x3072xbf16, #tpu.memory_space<vmem>>, vector<160x3072xbf16>
    %cst_158 = arith.constant dense<0.000000e+00> : vector<1x3072xf32>
    %205 = tpu.matmul %203, %204, %cst_158 {dimension_numbers = #tpu.dot_dimension_numbers<[1], [0], [0], [1], [0, 0, 1, 1], [], []>} : vector<1x160xbf16>, vector<160x3072xbf16>, vector<1x3072xf32> -> vector<1x3072xf32>
    %c0_159 = arith.constant 0 : index
    %c0_160 = arith.constant 0 : index
    %206 = vector.load %arg8[%c0_159, %c0_160] : memref<1x3072xf32, #tpu.memory_space<vmem>>, vector<1x3072xf32>
    %207 = arith.addf %205, %206 : vector<1x3072xf32>
    %208 = arith.truncf %207 : vector<1x3072xf32> to vector<1x3072xbf16>
    %c0_161 = arith.constant 0 : index
    %c0_162 = arith.constant 0 : index
    %209 = vector.load %arg9[%c0_161, %c0_162] : memref<3072x10xbf16, #tpu.memory_space<vmem>>, vector<3072x10xbf16>
    %cst_163 = arith.constant dense<0.000000e+00> : vector<1x10xf32>
    %210 = tpu.matmul %208, %209, %cst_163 {dimension_numbers = #tpu.dot_dimension_numbers<[1], [0], [0], [1], [0, 0, 1, 1], [], []>} : vector<1x3072xbf16>, vector<3072x10xbf16>, vector<1x10xf32> -> vector<1x10xf32>
    %c0_164 = arith.constant 0 : index
    %c0_165 = arith.constant 0 : index
    %211 = vector.load %arg10[%c0_164, %c0_165] : memref<1x10xf32, #tpu.memory_space<vmem>>, vector<1x10xf32>
    %212 = arith.addf %210, %211 : vector<1x10xf32>
    %c1_166 = arith.constant 1 : index
    %c0_167 = arith.constant 0 : index
    %213 = vector.load %arg11[%c1_166, %c0_167] : memref<2x10xf32, #tpu.memory_space<vmem>>, vector<1x10xf32>
    tpu.vector_store %arg11[%c1_166, %c0_167], %212 {strides = array<i32>} : memref<2x10xf32, #tpu.memory_space<vmem>>, vector<1x10xf32>,
    return
  }
}

</mosaic_0001>

<llo_original>
// kernel: end_to_end_forward.3
$region0: #{end_to_end_forward.3}
  #allocation0 [shape = 'u32[]', space=smem, size = 0x4, offset = 0x4, fixed_abs, tag = 'smem constant byte address 0x4 - core index']
  #allocation1 [shape = 'u32[72,128]{1,0:T(1,128)}', space=vmem, size = 0x9000, scoped, tag = 'internal scratch']
  %s0 = inlined_call_operand.vmem [shape: bf16[4,392,75], index: 0, kind: input, shape index: {}]
  %s1 = inlined_call_operand.vmem [shape: bf16[75,6], index: 1, kind: input, shape index: {}]
  %s2 = inlined_call_operand.vmem [shape: f32[1,6], index: 2, kind: input, shape index: {}]
  %s3 = inlined_call_operand.vmem [shape: f32[392,6], index: 3, kind: output, shape index: {}]
  %s4 = sld [smem:[#allocation0]]
  $region22: #{end_to_end_forward.3} parent=0
    _
  %s6 = ssub.s32 1, %s4
  %s7 = scalar_select 0, %s6, %s4
  // Predicated region
  $region2: #{end_to_end_forward.3} parent=0 // pred_check
    _
  $region3: #{end_to_end_forward.3} parent=0 // pred_check_branch
    %9 = sbr.rel (0) target = $region5
  $region4: #{end_to_end_forward.3} parent=0 // pred_region
    _
  $region5: #{end_to_end_forward.3} parent=0 // pred_fallthru
    _
  // Predicated region
  $region6: #{end_to_end_forward.3} parent=0 // pred_check
    _
  $region7: #{end_to_end_forward.3} parent=0 // pred_check_branch
    %11 = sbr.rel (0) target = $region9
  $region8: #{end_to_end_forward.3} parent=0 // pred_region
    _
  $region9: #{end_to_end_forward.3} parent=0 // pred_fallthru
    _
  // Predicated region
  $region10: #{end_to_end_forward.3} parent=0 // pred_check
    _
  $region11: #{end_to_end_forward.3} parent=0 // pred_check_branch
    %13 = sbr.rel (0) target = $region13
  $region12: #{end_to_end_forward.3} parent=0 // pred_region
    _
  $region13: #{end_to_end_forward.3} parent=0 // pred_fallthru
    _
  %v15 = vld [vmem:[%s0] sm:$0xf]
  %v16 = vld [vmem:[%s0 + $0x4] sm:$0xf]
  %v17 = vld [vmem:[%s0 + $0x8] sm:$0xf]
  %v18 = vld [vmem:[%s0 + $0xc] sm:$0xf]
  %v19 = vld [vmem:[%s0 + $0x10] sm:$0xf]
  %v20 = vld [vmem:[%s0 + $0x14] sm:$0xf]
  %v21 = vld [vmem:[%s0 + $0x18] sm:$0xf]
  %v22 = vld [vmem:[%s0 + $0x1c] sm:$0xf]
  %v23 = vld [vmem:[%s0 + $0x20] sm:$0xf]
  %v24 = vld [vmem:[%s0 + $0x24] sm:$0xf]
  %v25 = vld [vmem:[%s0 + $0x28] sm:$0xf]
  %v26 = vld [vmem:[%s0 + $0x2c] sm:$0xf]
  %v27 = vld [vmem:[%s0 + $0x30] sm:$0xf]
  %v28 = vld [vmem:[%s0 + $0x34] sm:$0xf]
  %v29 = vld [vmem:[%s0 + $0x38] sm:$0xf]
  %v30 = vld [vmem:[%s0 + $0x3c] sm:$0xf]
  %v31 = vld [vmem:[%s0 + $0x40] sm:$0xf]
  %v32 = vld [vmem:[%s0 + $0x44] sm:$0xf]
  %v33 = vld [vmem:[%s0 + $0x48] sm:$0xf]
  %v34 = vld [vmem:[%s0 + $0x4c] sm:$0xf]
  %v35 = vld [vmem:[%s0 + $0x50] sm:$0xf]
  %v36 = vld [vmem:[%s0 + $0x54] sm:$0xf]
  %v37 = vld [vmem:[%s0 + $0x58] sm:$0xf]
  %v38 = vld [vmem:[%s0 + $0x5c] sm:$0xf]
  %v39 = vld [vmem:[%s0 + $0x60] sm:$0xf]
  %v40 = vld [vmem:[%s0 + $0x64] sm:$0xf]
  %v41 = vld [vmem:[%s0 + $0x68] sm:$0xf]
  %v42 = vld [vmem:[%s0 + $0x6c] sm:$0xf]
  %v43 = vld [vmem:[%s0 + $0x70] sm:$0xf]
  %v44 = vld [vmem:[%s0 + $0x74] sm:$0xf]
  %v45 = vld [vmem:[%s0 + $0x78] sm:$0xf]
  %v46 = vld [vmem:[%s0 + $0x7c] sm:$0xf]
  %v47 = vld [vmem:[%s0 + $0x80] sm:$0xf]
  %v48 = vld [vmem:[%s0 + $0x84] sm:$0xf]
  %v49 = vld [vmem:[%s0 + $0x88] sm:$0xf]
  %v50 = vld [vmem:[%s0 + $0x8c] sm:$0xf]
  %v51 = vld [vmem:[%s0 + $0x90] sm:$0xf]
  %v52 = vld [vmem:[%s0 + $0x94] sm:$0xf]
  %v53 = vld [vmem:[%s0 + $0x98] sm:$0xf]
  %v54 = vld [vmem:[%s0 + $0x9c] sm:$0xf]
  %v55 = vld [vmem:[%s0 + $0xa0] sm:$0xf]
  %v56 = vld [vmem:[%s0 + $0xa4] sm:$0xf]
  %v57 = vld [vmem:[%s0 + $0xa8] sm:$0xf]
  %v58 = vld [vmem:[%s0 + $0xac] sm:$0xf]
  %v59 = vld [vmem:[%s0 + $0xb0] sm:$0xf]
  %v60 = vld [vmem:[%s0 + $0xb4] sm:$0xf]
  %v61 = vld [vmem:[%s0 + $0xb8] sm:$0xf]
  %v62 = vld [vmem:[%s0 + $0xbc] sm:$0xf]
  %v63 = vld [vmem:[%s0 + $0xc0] sm:$0xf]
  %v64 = vld [vmem:[%s1] sm:$0xf]
  %v65 = vld [vmem:[%s1 + $0x4] sm:$0xf]
  %v66 = vld [vmem:[%s1 + $0x8] sm:$0xf]
  %v67 = vld [vmem:[%s1 + $0xc] sm:$0xf]
  %v68 = vld [vmem:[%s1 + $0x10] sm:$0xf]
  %v69 = vld [vmem:[%s1 + $0x14] sm:$0xf]
  %v70 = vld [vmem:[%s1 + $0x18] sm:$0xf]
  %v71 = vld [vmem:[%s1 + $0x1c] sm:$0xf]
  %v72 = vld [vmem:[%s1 + $0x20] sm:$0xf]
  %v73 = vld [vmem:[%s1 + $0x24] sm:$0x3]
  %v123 = vunpack.c.l.b16 %v15
  %v124 = vunpack.c.l.b16 %v16
  %v125 = vunpack.c.l.b16 %v17
  %v126 = vunpack.c.l.b16 %v18
  %v127 = vunpack.c.l.b16 %v19
  %v128 = vunpack.c.l.b16 %v20
  %v129 = vunpack.c.l.b16 %v21
  %v130 = vunpack.c.l.b16 %v22
  %v131 = vunpack.c.l.b16 %v23
  %v132 = vunpack.c.l.b16 %v24
  %v133 = vunpack.c.l.b16 %v25
  %v134 = vunpack.c.l.b16 %v26
  %v135 = vunpack.c.l.b16 %v27
  %v136 = vunpack.c.l.b16 %v28
  %v137 = vunpack.c.l.b16 %v29
  %v138 = vunpack.c.l.b16 %v30
  %v139 = vunpack.c.l.b16 %v31
  %v140 = vunpack.c.l.b16 %v32
  %v141 = vunpack.c.l.b16 %v33
  %v142 = vunpack.c.l.b16 %v34
  %v143 = vunpack.c.l.b16 %v35
  %v144 = vunpack.c.l.b16 %v36
  %v145 = vunpack.c.l.b16 %v37
  %v146 = vunpack.c.l.b16 %v38
  %v147 = vunpack.c.l.b16 %v39
  %v148 = vunpack.c.l.b16 %v40
  %v149 = vunpack.c.l.b16 %v41
  %v150 = vunpack.c.l.b16 %v42
  %v151 = vunpack.c.l.b16 %v43
  %v152 = vunpack.c.l.b16 %v44
  %v153 = vunpack.c.l.b16 %v45
  %v154 = vunpack.c.l.b16 %v46
  %v155 = vunpack.c.l.b16 %v47
  %v156 = vunpack.c.l.b16 %v48
  %v157 = vunpack.c.l.b16 %v49
  %v158 = vunpack.c.l.b16 %v50
  %v159 = vunpack.c.l.b16 %v51
  %v160 = vunpack.c.l.b16 %v52
  %v161 = vunpack.c.l.b16 %v53
  %v162 = vunpack.c.l.b16 %v54
  %v163 = vunpack.c.l.b16 %v55
  %v164 = vunpack.c.l.b16 %v56
  %v165 = vunpack.c.l.b16 %v57
  %v166 = vunpack.c.l.b16 %v58
  %v167 = vunpack.c.l.b16 %v59
  %v168 = vunpack.c.l.b16 %v60
  %v169 = vunpack.c.l.b16 %v61
  %v170 = vunpack.c.l.b16 %v62
  %v171 = vunpack.c.l.b16 %v63
  %v172 = vpack.c.b16 %v124, %v123
  %v173 = vpack.c.b16 %v126, %v125
  %v174 = vpack.c.b16 %v128, %v127
  %v175 = vpack.c.b16 %v130, %v129
  %v176 = vpack.c.b16 %v132, %v131
  %v177 = vpack.c.b16 %v134, %v133
  %v178 = vpack.c.b16 %v136, %v135
  %v179 = vpack.c.b16 %v138, %v137
  %v180 = vpack.c.b16 %v140, %v139
  %v181 = vpack.c.b16 %v142, %v141
  %v182 = vpack.c.b16 %v144, %v143
  %v183 = vpack.c.b16 %v146, %v145
  %v184 = vpack.c.b16 %v148, %v147
  %v185 = vpack.c.b16 %v150, %v149
  %v186 = vpack.c.b16 %v152, %v151
  %v187 = vpack.c.b16 %v154, %v153
  %v188 = vpack.c.b16 %v156, %v155
  %v189 = vpack.c.b16 %v158, %v157
  %v190 = vpack.c.b16 %v160, %v159
  %v191 = vpack.c.b16 %v162, %v161
  %v192 = vpack.c.b16 %v164, %v163
  %v193 = vpack.c.b16 %v166, %v165
  %v194 = vpack.c.b16 %v168, %v167
  %v195 = vpack.c.b16 %v170, %v169
  %v196 = vpack.c.b16 %v171, %v171
  %v207 = vunpack.c.l.b16 %v64
  %v208 = vunpack.c.l.b16 %v65
  %v209 = vunpack.c.l.b16 %v66
  %v210 = vunpack.c.l.b16 %v67
  %v211 = vunpack.c.l.b16 %v68
  %v212 = vunpack.c.l.b16 %v69
  %v213 = vunpack.c.l.b16 %v70
  %v214 = vunpack.c.l.b16 %v71
  %v215 = vunpack.c.l.b16 %v72
  %v216 = vunpack.c.l.b16 %v73
  %v217 = vpack.c.b16 %v208, %v207
  %v218 = vpack.c.b16 %v210, %v209
  %v219 = vpack.c.b16 %v212, %v211
  %v220 = vpack.c.b16 %v214, %v213
  %v221 = vpack.c.b16 %v216, %v215
  %vm226 = vcmask 613376
  %v228 = vsel %vm226, %v172, 0
  %v231 = vsel %vm226, %v173, 0
  %v234 = vsel %vm226, %v174, 0
  %v237 = vsel %vm226, %v175, 0
  %v240 = vsel %vm226, %v176, 0
  %v243 = vsel %vm226, %v177, 0
  %v246 = vsel %vm226, %v178, 0
  %v249 = vsel %vm226, %v179, 0
  %v252 = vsel %vm226, %v180, 0
  %v255 = vsel %vm226, %v181, 0
  %v258 = vsel %vm226, %v182, 0
  %v261 = vsel %vm226, %v183, 0
  %v264 = vsel %vm226, %v184, 0
  %v267 = vsel %vm226, %v185, 0
  %v270 = vsel %vm226, %v186, 0
  %v273 = vsel %vm226, %v187, 0
  %v276 = vsel %vm226, %v188, 0
  %v279 = vsel %vm226, %v189, 0
  %v282 = vsel %vm226, %v190, 0
  %v285 = vsel %vm226, %v191, 0
  %v288 = vsel %vm226, %v192, 0
  %v291 = vsel %vm226, %v193, 0
  %v294 = vsel %vm226, %v194, 0
  %v297 = vsel %vm226, %v195, 0
  %v300 = vsel %vm226, %v196, 0
  %vm302 = vcmask 1044480
  %vm303 = vcmask 1045504
  %v304 = vsel %vm302, 4294967295, 65535
  %v305 = vsel %vm303, %v304, 0
  %v307 = vand.u32 %v221, %v305
  %309 = vmatpush.bf16.msra.mxu0 0
  %310 = vmatpush.bf16.msra.mxu0 0
  %311 = vmatpush.bf16.msra.mxu0 0
  %312 = vmatpush.bf16.msra.mxu0 %v307
  %313 = vmatpush.bf16.msra.mxu0 %v220
  %314 = vmatpush.bf16.msra.mxu0 %v219
  %315 = vmatpush.bf16.msra.mxu0 %v218
  %316 = vmatpush.bf16.msra.mxu0 %v217
  %317 = vmatmul.bf16.gmra.mxu0 %v228
  %v318 = vpop.f32.mrf.mxu0
  %v319 = vadd.f32 0.0, %v318
  %v320 = vpop.f32.mrf.mxu0
  %v321 = vadd.f32 0.0, %v320
  %322 = vmatmul.bf16.gmra.mxu0 %v231
  %v323 = vpop.f32.mrf.mxu0
  %v324 = vadd.f32 0.0, %v323
  %v325 = vpop.f32.mrf.mxu0
  %v326 = vadd.f32 0.0, %v325
  %327 = vmatmul.bf16.gmra.mxu0 %v234
  %v328 = vpop.f32.mrf.mxu0
  %v329 = vadd.f32 0.0, %v328
  %v330 = vpop.f32.mrf.mxu0
  %v331 = vadd.f32 0.0, %v330
  %332 = vmatmul.bf16.gmra.mxu0 %v237
  %v333 = vpop.f32.mrf.mxu0
  %v334 = vadd.f32 0.0, %v333
  %v335 = vpop.f32.mrf.mxu0
  %v336 = vadd.f32 0.0, %v335
  %337 = vmatmul.bf16.gmra.mxu0 %v240
  %v338 = vpop.f32.mrf.mxu0
  %v339 = vadd.f32 0.0, %v338
  %v340 = vpop.f32.mrf.mxu0
  %v341 = vadd.f32 0.0, %v340
  %342 = vmatmul.bf16.gmra.mxu0 %v243
  %v343 = vpop.f32.mrf.mxu0
  %v344 = vadd.f32 0.0, %v343
  %v345 = vpop.f32.mrf.mxu0
  %v346 = vadd.f32 0.0, %v345
  %347 = vmatmul.bf16.gmra.mxu0 %v246
  %v348 = vpop.f32.mrf.mxu0
  %v349 = vadd.f32 0.0, %v348
  %v350 = vpop.f32.mrf.mxu0
  %v351 = vadd.f32 0.0, %v350
  %352 = vmatmul.bf16.gmra.mxu0 %v249
  %v353 = vpop.f32.mrf.mxu0
  %v354 = vadd.f32 0.0, %v353
  %v355 = vpop.f32.mrf.mxu0
  %v356 = vadd.f32 0.0, %v355
  %357 = vmatmul.bf16.gmra.mxu0 %v252
  %v358 = vpop.f32.mrf.mxu0
  %v359 = vadd.f32 0.0, %v358
  %v360 = vpop.f32.mrf.mxu0
  %v361 = vadd.f32 0.0, %v360
  %362 = vmatmul.bf16.gmra.mxu0 %v255
  %v363 = vpop.f32.mrf.mxu0
  %v364 = vadd.f32 0.0, %v363
  %v365 = vpop.f32.mrf.mxu0
  %v366 = vadd.f32 0.0, %v365
  %367 = vmatmul.bf16.gmra.mxu0 %v258
  %v368 = vpop.f32.mrf.mxu0
  %v369 = vadd.f32 0.0, %v368
  %v370 = vpop.f32.mrf.mxu0
  %v371 = vadd.f32 0.0, %v370
  %372 = vmatmul.bf16.gmra.mxu0 %v261
  %v373 = vpop.f32.mrf.mxu0
  %v374 = vadd.f32 0.0, %v373
  %v375 = vpop.f32.mrf.mxu0
  %v376 = vadd.f32 0.0, %v375
  %377 = vmatmul.bf16.gmra.mxu0 %v264
  %v378 = vpop.f32.mrf.mxu0
  %v379 = vadd.f32 0.0, %v378
  %v380 = vpop.f32.mrf.mxu0
  %v381 = vadd.f32 0.0, %v380
  %382 = vmatmul.bf16.gmra.mxu0 %v267
  %v383 = vpop.f32.mrf.mxu0
  %v384 = vadd.f32 0.0, %v383
  %v385 = vpop.f32.mrf.mxu0
  %v386 = vadd.f32 0.0, %v385
  %387 = vmatmul.bf16.gmra.mxu0 %v270
  %v388 = vpop.f32.mrf.mxu0
  %v389 = vadd.f32 0.0, %v388
  %v390 = vpop.f32.mrf.mxu0
  %v391 = vadd.f32 0.0, %v390
  %392 = vmatmul.bf16.gmra.mxu0 %v273
  %v393 = vpop.f32.mrf.mxu0
  %v394 = vadd.f32 0.0, %v393
  %v395 = vpop.f32.mrf.mxu0
  %v396 = vadd.f32 0.0, %v395
  %397 = vmatmul.bf16.gmra.mxu0 %v276
  %v398 = vpop.f32.mrf.mxu0
  %v399 = vadd.f32 0.0, %v398
  %v400 = vpop.f32.mrf.mxu0
  %v401 = vadd.f32 0.0, %v400
  %402 = vmatmul.bf16.gmra.mxu0 %v279
  %v403 = vpop.f32.mrf.mxu0
  %v404 = vadd.f32 0.0, %v403
  %v405 = vpop.f32.mrf.mxu0
  %v406 = vadd.f32 0.0, %v405
  %407 = vmatmul.bf16.gmra.mxu0 %v282
  %v408 = vpop.f32.mrf.mxu0
  %v409 = vadd.f32 0.0, %v408
  %v410 = vpop.f32.mrf.mxu0
  %v411 = vadd.f32 0.0, %v410
  %412 = vmatmul.bf16.gmra.mxu0 %v285
  %v413 = vpop.f32.mrf.mxu0
  %v414 = vadd.f32 0.0, %v413
  %v415 = vpop.f32.mrf.mxu0
  %v416 = vadd.f32 0.0, %v415
  %417 = vmatmul.bf16.gmra.mxu0 %v288
  %v418 = vpop.f32.mrf.mxu0
  %v419 = vadd.f32 0.0, %v418
  %v420 = vpop.f32.mrf.mxu0
  %v421 = vadd.f32 0.0, %v420
  %422 = vmatmul.bf16.gmra.mxu0 %v291
  %v423 = vpop.f32.mrf.mxu0
  %v424 = vadd.f32 0.0, %v423
  %v425 = vpop.f32.mrf.mxu0
  %v426 = vadd.f32 0.0, %v425
  %427 = vmatmul.bf16.gmra.mxu0 %v294
  %v428 = vpop.f32.mrf.mxu0
  %v429 = vadd.f32 0.0, %v428
  %v430 = vpop.f32.mrf.mxu0
  %v431 = vadd.f32 0.0, %v430
  %432 = vmatmul.bf16.gmra.mxu0 %v297
  %v433 = vpop.f32.mrf.mxu0
  %v434 = vadd.f32 0.0, %v433
  %v435 = vpop.f32.mrf.mxu0
  %v436 = vadd.f32 0.0, %v435
  %437 = vmatmul.bf16.gmra.mxu0 %v300
  %v438 = vpop.f32.mrf.mxu0
  %v439 = vadd.f32 0.0, %v438
  %v440 = vpop.f32.mrf.mxu0
  %441 = vdwg.mxu0
  %s442 = scalar_lea.vmem %s0, 196
  %v443 = vld [vmem:[%s442] sm:$0xf]
  %v444 = vld [vmem:[%s442 + $0x4] sm:$0xf]
  %v445 = vld [vmem:[%s442 + $0x8] sm:$0xf]
  %v446 = vld [vmem:[%s442 + $0xc] sm:$0xf]
  %v447 = vld [vmem:[%s442 + $0x10] sm:$0xf]
  %v448 = vld [vmem:[%s442 + $0x14] sm:$0xf]
  %v449 = vld [vmem:[%s442 + $0x18] sm:$0xf]
  %v450 = vld [vmem:[%s442 + $0x1c] sm:$0xf]
  %v451 = vld [vmem:[%s442 + $0x20] sm:$0xf]
  %v452 = vld [vmem:[%s442 + $0x24] sm:$0xf]
  %v453 = vld [vmem:[%s442 + $0x28] sm:$0xf]
  %v454 = vld [vmem:[%s442 + $0x2c] sm:$0xf]
  %v455 = vld [vmem:[%s442 + $0x30] sm:$0xf]
  %v456 = vld [vmem:[%s442 + $0x34] sm:$0xf]
  %v457 = vld [vmem:[%s442 + $0x38] sm:$0xf]
  %v458 = vld [vmem:[%s442 + $0x3c] sm:$0xf]
  %v459 = vld [vmem:[%s442 + $0x40] sm:$0xf]
  %v460 = vld [vmem:[%s442 + $0x44] sm:$0xf]
  %v461 = vld [vmem:[%s442 + $0x48] sm:$0xf]
  %v462 = vld [vmem:[%s442 + $0x4c] sm:$0xf]
  %v463 = vld [vmem:[%s442 + $0x50] sm:$0xf]
  %v464 = vld [vmem:[%s442 + $0x54] sm:$0xf]
  %v465 = vld [vmem:[%s442 + $0x58] sm:$0xf]
  %v466 = vld [vmem:[%s442 + $0x5c] sm:$0xf]
  %v467 = vld [vmem:[%s442 + $0x60] sm:$0xf]
  %v468 = vld [vmem:[%s442 + $0x64] sm:$0xf]
  %v469 = vld [vmem:[%s442 + $0x68] sm:$0xf]
  %v470 = vld [vmem:[%s442 + $0x6c] sm:$0xf]
  %v471 = vld [vmem:[%s442 + $0x70] sm:$0xf]
  %v472 = vld [vmem:[%s442 + $0x74] sm:$0xf]
  %v473 = vld [vmem:[%s442 + $0x78] sm:$0xf]
  %v474 = vld [vmem:[%s442 + $0x7c] sm:$0xf]
  %v475 = vld [vmem:[%s442 + $0x80] sm:$0xf]
  %v476 = vld [vmem:[%s442 + $0x84] sm:$0xf]
  %v477 = vld [vmem:[%s442 + $0x88] sm:$0xf]
  %v478 = vld [vmem:[%s442 + $0x8c] sm:$0xf]
  %v479 = vld [vmem:[%s442 + $0x90] sm:$0xf]
  %v480 = vld [vmem:[%s442 + $0x94] sm:$0xf]
  %v481 = vld [vmem:[%s442 + $0x98] sm:$0xf]
  %v482 = vld [vmem:[%s442 + $0x9c] sm:$0xf]
  %v483 = vld [vmem:[%s442 + $0xa0] sm:$0xf]
  %v484 = vld [vmem:[%s442 + $0xa4] sm:$0xf]
  %v485 = vld [vmem:[%s442 + $0xa8] sm:$0xf]
  %v486 = vld [vmem:[%s442 + $0xac] sm:$0xf]
  %v487 = vld [vmem:[%s442 + $0xb0] sm:$0xf]
  %v488 = vld [vmem:[%s442 + $0xb4] sm:$0xf]
  %v489 = vld [vmem:[%s442 + $0xb8] sm:$0xf]
  %v490 = vld [vmem:[%s442 + $0xbc] sm:$0xf]
  %v491 = vld [vmem:[%s442 + $0xc0] sm:$0xf]
  %v541 = vunpack.c.l.b16 %v443
  %v542 = vunpack.c.l.b16 %v444
  %v543 = vunpack.c.l.b16 %v445
  %v544 = vunpack.c.l.b16 %v446
  %v545 = vunpack.c.l.b16 %v447
  %v546 = vunpack.c.l.b16 %v448
  %v547 = vunpack.c.l.b16 %v449
  %v548 = vunpack.c.l.b16 %v450
  %v549 = vunpack.c.l.b16 %v451
  %v550 = vunpack.c.l.b16 %v452
  %v551 = vunpack.c.l.b16 %v453
  %v552 = vunpack.c.l.b16 %v454
  %v553 = vunpack.c.l.b16 %v455
  %v554 = vunpack.c.l.b16 %v456
  %v555 = vunpack.c.l.b16 %v457
  %v556 = vunpack.c.l.b16 %v458
  %v557 = vunpack.c.l.b16 %v459
  %v558 = vunpack.c.l.b16 %v460
  %v559 = vunpack.c.l.b16 %v461
  %v560 = vunpack.c.l.b16 %v462
  %v561 = vunpack.c.l.b16 %v463
  %v562 = vunpack.c.l.b16 %v464
  %v563 = vunpack.c.l.b16 %v465
  %v564 = vunpack.c.l.b16 %v466
  %v565 = vunpack.c.l.b16 %v467
  %v566 = vunpack.c.l.b16 %v468
  %v567 = vunpack.c.l.b16 %v469
  %v568 = vunpack.c.l.b16 %v470
  %v569 = vunpack.c.l.b16 %v471
  %v570 = vunpack.c.l.b16 %v472
  %v571 = vunpack.c.l.b16 %v473
  %v572 = vunpack.c.l.b16 %v474
  %v573 = vunpack.c.l.b16 %v475
  %v574 = vunpack.c.l.b16 %v476
  %v575 = vunpack.c.l.b16 %v477
  %v576 = vunpack.c.l.b16 %v478
  %v577 = vunpack.c.l.b16 %v479
  %v578 = vunpack.c.l.b16 %v480
  %v579 = vunpack.c.l.b16 %v481
  %v580 = vunpack.c.l.b16 %v482
  %v581 = vunpack.c.l.b16 %v483
  %v582 = vunpack.c.l.b16 %v484
  %v583 = vunpack.c.l.b16 %v485
  %v584 = vunpack.c.l.b16 %v486
  %v585 = vunpack.c.l.b16 %v487
  %v586 = vunpack.c.l.b16 %v488
  %v587 = vunpack.c.l.b16 %v489
  %v588 = vunpack.c.l.b16 %v490
  %v589 = vunpack.c.l.b16 %v491
  %v590 = vpack.c.b16 %v542, %v541
  %v591 = vpack.c.b16 %v544, %v543
  %v592 = vpack.c.b16 %v546, %v545
  %v593 = vpack.c.b16 %v548, %v547
  %v594 = vpack.c.b16 %v550, %v549
  %v595 = vpack.c.b16 %v552, %v551
  %v596 = vpack.c.b16 %v554, %v553
  %v597 = vpack.c.b16 %v556, %v555
  %v598 = vpack.c.b16 %v558, %v557
  %v599 = vpack.c.b16 %v560, %v559
  %v600 = vpack.c.b16 %v562, %v561
  %v601 = vpack.c.b16 %v564, %v563
  %v602 = vpack.c.b16 %v566, %v565
  %v603 = vpack.c.b16 %v568, %v567
  %v604 = vpack.c.b16 %v570, %v569
  %v605 = vpack.c.b16 %v572, %v571
  %v606 = vpack.c.b16 %v574, %v573
  %v607 = vpack.c.b16 %v576, %v575
  %v608 = vpack.c.b16 %v578, %v577
  %v609 = vpack.c.b16 %v580, %v579
  %v610 = vpack.c.b16 %v582, %v581
  %v611 = vpack.c.b16 %v584, %v583
  %v612 = vpack.c.b16 %v586, %v585
  %v613 = vpack.c.b16 %v588, %v587
  %v614 = vpack.c.b16 %v589, %v589
  %v616 = vsel %vm226, %v590, 0
  %v619 = vsel %vm226, %v591, 0
  %v622 = vsel %vm226, %v592, 0
  %v625 = vsel %vm226, %v593, 0
  %v628 = vsel %vm226, %v594, 0
  %v631 = vsel %vm226, %v595, 0
  %v634 = vsel %vm226, %v596, 0
  %v637 = vsel %vm226, %v597, 0
  %v640 = vsel %vm226, %v598, 0
  %v643 = vsel %vm226, %v599, 0
  %v646 = vsel %vm226, %v600, 0
  %v649 = vsel %vm226, %v601, 0
  %v652 = vsel %vm226, %v602, 0
  %v655 = vsel %vm226, %v603, 0
  %v658 = vsel %vm226, %v604, 0
  %v661 = vsel %vm226, %v605, 0
  %v664 = vsel %vm226, %v606, 0
  %v667 = vsel %vm226, %v607, 0
  %v670 = vsel %vm226, %v608, 0
  %v673 = vsel %vm226, %v609, 0
  %v676 = vsel %vm226, %v610, 0
  %v679 = vsel %vm226, %v611, 0
  %v682 = vsel %vm226, %v612, 0
  %v685 = vsel %vm226, %v613, 0
  %v688 = vsel %vm226, %v614, 0
  %690 = vmatpush.bf16.msra.mxu0 0
  %691 = vmatpush.bf16.msra.mxu0 0
  %692 = vmatpush.bf16.msra.mxu0 0
  %693 = vmatpush.bf16.msra.mxu0 %v307
  %694 = vmatpush.bf16.msra.mxu0 %v220
  %695 = vmatpush.bf16.msra.mxu0 %v219
  %696 = vmatpush.bf16.msra.mxu0 %v218
  %697 = vmatpush.bf16.msra.mxu0 %v217
  %698 = vmatmul.bf16.gmra.mxu0 %v616
  %v699 = vpop.f32.mrf.mxu0
  %v700 = vadd.f32 0.0, %v699
  %v701 = vpop.f32.mrf.mxu0
  %v702 = vadd.f32 0.0, %v701
  %703 = vmatmul.bf16.gmra.mxu0 %v619
  %v704 = vpop.f32.mrf.mxu0
  %v705 = vadd.f32 0.0, %v704
  %v706 = vpop.f32.mrf.mxu0
  %v707 = vadd.f32 0.0, %v706
  %708 = vmatmul.bf16.gmra.mxu0 %v622
  %v709 = vpop.f32.mrf.mxu0
  %v710 = vadd.f32 0.0, %v709
  %v711 = vpop.f32.mrf.mxu0
  %v712 = vadd.f32 0.0, %v711
  %713 = vmatmul.bf16.gmra.mxu0 %v625
  %v714 = vpop.f32.mrf.mxu0
  %v715 = vadd.f32 0.0, %v714
  %v716 = vpop.f32.mrf.mxu0
  %v717 = vadd.f32 0.0, %v716
  %718 = vmatmul.bf16.gmra.mxu0 %v628
  %v719 = vpop.f32.mrf.mxu0
  %v720 = vadd.f32 0.0, %v719
  %v721 = vpop.f32.mrf.mxu0
  %v722 = vadd.f32 0.0, %v721
  %723 = vmatmul.bf16.gmra.mxu0 %v631
  %v724 = vpop.f32.mrf.mxu0
  %v725 = vadd.f32 0.0, %v724
  %v726 = vpop.f32.mrf.mxu0
  %v727 = vadd.f32 0.0, %v726
  %728 = vmatmul.bf16.gmra.mxu0 %v634
  %v729 = vpop.f32.mrf.mxu0
  %v730 = vadd.f32 0.0, %v729
  %v731 = vpop.f32.mrf.mxu0
  %v732 = vadd.f32 0.0, %v731
  %733 = vmatmul.bf16.gmra.mxu0 %v637
  %v734 = vpop.f32.mrf.mxu0
  %v735 = vadd.f32 0.0, %v734
  %v736 = vpop.f32.mrf.mxu0
  %v737 = vadd.f32 0.0, %v736
  %738 = vmatmul.bf16.gmra.mxu0 %v640
  %v739 = vpop.f32.mrf.mxu0
  %v740 = vadd.f32 0.0, %v739
  %v741 = vpop.f32.mrf.mxu0
  %v742 = vadd.f32 0.0, %v741
  %743 = vmatmul.bf16.gmra.mxu0 %v643
  %v744 = vpop.f32.mrf.mxu0
  %v745 = vadd.f32 0.0, %v744
  %v746 = vpop.f32.mrf.mxu0
  %v747 = vadd.f32 0.0, %v746
  %748 = vmatmul.bf16.gmra.mxu0 %v646
  %v749 = vpop.f32.mrf.mxu0
  %v750 = vadd.f32 0.0, %v749
  %v751 = vpop.f32.mrf.mxu0
  %v752 = vadd.f32 0.0, %v751
  %753 = vmatmul.bf16.gmra.mxu0 %v649
  %v754 = vpop.f32.mrf.mxu0
  %v755 = vadd.f32 0.0, %v754
  %v756 = vpop.f32.mrf.mxu0
  %v757 = vadd.f32 0.0, %v756
  %758 = vmatmul.bf16.gmra.mxu0 %v652
  %v759 = vpop.f32.mrf.mxu0
  %v760 = vadd.f32 0.0, %v759
  %v761 = vpop.f32.mrf.mxu0
  %v762 = vadd.f32 0.0, %v761
  %763 = vmatmul.bf16.gmra.mxu0 %v655
  %v764 = vpop.f32.mrf.mxu0
  %v765 = vadd.f32 0.0, %v764
  %v766 = vpop.f32.mrf.mxu0
  %v767 = vadd.f32 0.0, %v766
  %768 = vmatmul.bf16.gmra.mxu0 %v658
  %v769 = vpop.f32.mrf.mxu0
  %v770 = vadd.f32 0.0, %v769
  %v771 = vpop.f32.mrf.mxu0
  %v772 = vadd.f32 0.0, %v771
  %773 = vmatmul.bf16.gmra.mxu0 %v661
  %v774 = vpop.f32.mrf.mxu0
  %v775 = vadd.f32 0.0, %v774
  %v776 = vpop.f32.mrf.mxu0
  %v777 = vadd.f32 0.0, %v776
  %778 = vmatmul.bf16.gmra.mxu0 %v664
  %v779 = vpop.f32.mrf.mxu0
  %v780 = vadd.f32 0.0, %v779
  %v781 = vpop.f32.mrf.mxu0
  %v782 = vadd.f32 0.0, %v781
  %783 = vmatmul.bf16.gmra.mxu0 %v667
  %v784 = vpop.f32.mrf.mxu0
  %v785 = vadd.f32 0.0, %v784
  %v786 = vpop.f32.mrf.mxu0
  %v787 = vadd.f32 0.0, %v786
  %788 = vmatmul.bf16.gmra.mxu0 %v670
  %v789 = vpop.f32.mrf.mxu0
  %v790 = vadd.f32 0.0, %v789
  %v791 = vpop.f32.mrf.mxu0
  %v792 = vadd.f32 0.0, %v791
  %793 = vmatmul.bf16.gmra.mxu0 %v673
  %v794 = vpop.f32.mrf.mxu0
  %v795 = vadd.f32 0.0, %v794
  %v796 = vpop.f32.mrf.mxu0
  %v797 = vadd.f32 0.0, %v796
  %798 = vmatmul.bf16.gmra.mxu0 %v676
  %v799 = vpop.f32.mrf.mxu0
  %v800 = vadd.f32 0.0, %v799
  %v801 = vpop.f32.mrf.mxu0
  %v802 = vadd.f32 0.0, %v801
  %803 = vmatmul.bf16.gmra.mxu0 %v679
  %v804 = vpop.f32.mrf.mxu0
  %v805 = vadd.f32 0.0, %v804
  %v806 = vpop.f32.mrf.mxu0
  %v807 = vadd.f32 0.0, %v806
  %808 = vmatmul.bf16.gmra.mxu0 %v682
  %v809 = vpop.f32.mrf.mxu0
  %v810 = vadd.f32 0.0, %v809
  %v811 = vpop.f32.mrf.mxu0
  %v812 = vadd.f32 0.0, %v811
  %813 = vmatmul.bf16.gmra.mxu0 %v685
  %v814 = vpop.f32.mrf.mxu0
  %v815 = vadd.f32 0.0, %v814
  %v816 = vpop.f32.mrf.mxu0
  %v817 = vadd.f32 0.0, %v816
  %818 = vmatmul.bf16.gmra.mxu0 %v688
  %v819 = vpop.f32.mrf.mxu0
  %v820 = vadd.f32 0.0, %v819
  %v821 = vpop.f32.mrf.mxu0
  %822 = vdwg.mxu0
  %v823 = vmax.f32 %v319, %v700
  %v824 = vmax.f32 %v321, %v702
  %v825 = vmax.f32 %v324, %v705
  %v826 = vmax.f32 %v326, %v707
  %v827 = vmax.f32 %v329, %v710
  %v828 = vmax.f32 %v331, %v712
  %v829 = vmax.f32 %v334, %v715
  %v830 = vmax.f32 %v336, %v717
  %v831 = vmax.f32 %v339, %v720
  %v832 = vmax.f32 %v341, %v722
  %v833 = vmax.f32 %v344, %v725
  %v834 = vmax.f32 %v346, %v727
  %v835 = vmax.f32 %v349, %v730
  %v836 = vmax.f32 %v351, %v732
  %v837 = vmax.f32 %v354, %v735
  %v838 = vmax.f32 %v356, %v737
  %v839 = vmax.f32 %v359, %v740
  %v840 = vmax.f32 %v361, %v742
  %v841 = vmax.f32 %v364, %v745
  %v842 = vmax.f32 %v366, %v747
  %v843 = vmax.f32 %v369, %v750
  %v844 = vmax.f32 %v371, %v752
  %v845 = vmax.f32 %v374, %v755
  %v846 = vmax.f32 %v376, %v757
  %v847 = vmax.f32 %v379, %v760
  %v848 = vmax.f32 %v381, %v762
  %v849 = vmax.f32 %v384, %v765
  %v850 = vmax.f32 %v386, %v767
  %v851 = vmax.f32 %v389, %v770
  %v852 = vmax.f32 %v391, %v772
  %v853 = vmax.f32 %v394, %v775
  %v854 = vmax.f32 %v396, %v777
  %v855 = vmax.f32 %v399, %v780
  %v856 = vmax.f32 %v401, %v782
  %v857 = vmax.f32 %v404, %v785
  %v858 = vmax.f32 %v406, %v787
  %v859 = vmax.f32 %v409, %v790
  %v860 = vmax.f32 %v411, %v792
  %v861 = vmax.f32 %v414, %v795
  %v862 = vmax.f32 %v416, %v797
  %v863 = vmax.f32 %v419, %v800
  %v864 = vmax.f32 %v421, %v802
  %v865 = vmax.f32 %v424, %v805
  %v866 = vmax.f32 %v426, %v807
  %v867 = vmax.f32 %v429, %v810
  %v868 = vmax.f32 %v431, %v812
  %v869 = vmax.f32 %v434, %v815
  %v870 = vmax.f32 %v436, %v817
  %v871 = vmax.f32 %v439, %v820
  %s872 = scalar_lea.vmem %s0, 392
  %v873 = vld [vmem:[%s872] sm:$0xf]
  %v874 = vld [vmem:[%s872 + $0x4] sm:$0xf]
  %v875 = vld [vmem:[%s872 + $0x8] sm:$0xf]
  %v876 = vld [vmem:[%s872 + $0xc] sm:$0xf]
  %v877 = vld [vmem:[%s872 + $0x10] sm:$0xf]
  %v878 = vld [vmem:[%s872 + $0x14] sm:$0xf]
  %v879 = vld [vmem:[%s872 + $0x18] sm:$0xf]
  %v880 = vld [vmem:[%s872 + $0x1c] sm:$0xf]
  %v881 = vld [vmem:[%s872 + $0x20] sm:$0xf]
  %v882 = vld [vmem:[%s872 + $0x24] sm:$0xf]
  %v883 = vld [vmem:[%s872 + $0x28] sm:$0xf]
  %v884 = vld [vmem:[%s872 + $0x2c] sm:$0xf]
  %v885 = vld [vmem:[%s872 + $0x30] sm:$0xf]
  %v886 = vld [vmem:[%s872 + $0x34] sm:$0xf]
  %v887 = vld [vmem:[%s872 + $0x38] sm:$0xf]
  %v888 = vld [vmem:[%s872 + $0x3c] sm:$0xf]
  %v889 = vld [vmem:[%s872 + $0x40] sm:$0xf]
  %v890 = vld [vmem:[%s872 + $0x44] sm:$0xf]
  %v891 = vld [vmem:[%s872 + $0x48] sm:$0xf]
  %v892 = vld [vmem:[%s872 + $0x4c] sm:$0xf]
  %v893 = vld [vmem:[%s872 + $0x50] sm:$0xf]
  %v894 = vld [vmem:[%s872 + $0x54] sm:$0xf]
  %v895 = vld [vmem:[%s872 + $0x58] sm:$0xf]
  %v896 = vld [vmem:[%s872 + $0x5c] sm:$0xf]
  %v897 = vld [vmem:[%s872 + $0x60] sm:$0xf]
  %v898 = vld [vmem:[%s872 + $0x64] sm:$0xf]
  %v899 = vld [vmem:[%s872 + $0x68] sm:$0xf]
  %v900 = vld [vmem:[%s872 + $0x6c] sm:$0xf]
  %v901 = vld [vmem:[%s872 + $0x70] sm:$0xf]
  %v902 = vld [vmem:[%s872 + $0x74] sm:$0xf]
  %v903 = vld [vmem:[%s872 + $0x78] sm:$0xf]
  %v904 = vld [vmem:[%s872 + $0x7c] sm:$0xf]
  %v905 = vld [vmem:[%s872 + $0x80] sm:$0xf]
  %v906 = vld [vmem:[%s872 + $0x84] sm:$0xf]
  %v907 = vld [vmem:[%s872 + $0x88] sm:$0xf]
  %v908 = vld [vmem:[%s872 + $0x8c] sm:$0xf]
  %v909 = vld [vmem:[%s872 + $0x90] sm:$0xf]
  %v910 = vld [vmem:[%s872 + $0x94] sm:$0xf]
  %v911 = vld [vmem:[%s872 + $0x98] sm:$0xf]
  %v912 = vld [vmem:[%s872 + $0x9c] sm:$0xf]
  %v913 = vld [vmem:[%s872 + $0xa0] sm:$0xf]
  %v914 = vld [vmem:[%s872 + $0xa4] sm:$0xf]
  %v915 = vld [vmem:[%s872 + $0xa8] sm:$0xf]
  %v916 = vld [vmem:[%s872 + $0xac] sm:$0xf]
  %v917 = vld [vmem:[%s872 + $0xb0] sm:$0xf]
  %v918 = vld [vmem:[%s872 + $0xb4] sm:$0xf]
  %v919 = vld [vmem:[%s872 + $0xb8] sm:$0xf]
  %v920 = vld [vmem:[%s872 + $0xbc] sm:$0xf]
  %v921 = vld [vmem:[%s872 + $0xc0] sm:$0xf]
  %v971 = vunpack.c.l.b16 %v873
  %v972 = vunpack.c.l.b16 %v874
  %v973 = vunpack.c.l.b16 %v875
  %v974 = vunpack.c.l.b16 %v876
  %v975 = vunpack.c.l.b16 %v877
  %v976 = vunpack.c.l.b16 %v878
  %v977 = vunpack.c.l.b16 %v879
  %v978 = vunpack.c.l.b16 %v880
  %v979 = vunpack.c.l.b16 %v881
  %v980 = vunpack.c.l.b16 %v882
  %v981 = vunpack.c.l.b16 %v883
  %v982 = vunpack.c.l.b16 %v884
  %v983 = vunpack.c.l.b16 %v885
  %v984 = vunpack.c.l.b16 %v886
  %v985 = vunpack.c.l.b16 %v887
  %v986 = vunpack.c.l.b16 %v888
  %v987 = vunpack.c.l.b16 %v889
  %v988 = vunpack.c.l.b16 %v890
  %v989 = vunpack.c.l.b16 %v891
  %v990 = vunpack.c.l.b16 %v892
  %v991 = vunpack.c.l.b16 %v893
  %v992 = vunpack.c.l.b16 %v894
  %v993 = vunpack.c.l.b16 %v895
  %v994 = vunpack.c.l.b16 %v896
  %v995 = vunpack.c.l.b16 %v897
  %v996 = vunpack.c.l.b16 %v898
  %v997 = vunpack.c.l.b16 %v899
  %v998 = vunpack.c.l.b16 %v900
  %v999 = vunpack.c.l.b16 %v901
  %v1000 = vunpack.c.l.b16 %v902
  %v1001 = vunpack.c.l.b16 %v903
  %v1002 = vunpack.c.l.b16 %v904
  %v1003 = vunpack.c.l.b16 %v905
  %v1004 = vunpack.c.l.b16 %v906
  %v1005 = vunpack.c.l.b16 %v907
  %v1006 = vunpack.c.l.b16 %v908
  %v1007 = vunpack.c.l.b16 %v909
  %v1008 = vunpack.c.l.b16 %v910
  %v1009 = vunpack.c.l.b16 %v911
  %v1010 = vunpack.c.l.b16 %v912
  %v1011 = vunpack.c.l.b16 %v913
  %v1012 = vunpack.c.l.b16 %v914
  %v1013 = vunpack.c.l.b16 %v915
  %v1014 = vunpack.c.l.b16 %v916
  %v1015 = vunpack.c.l.b16 %v917
  %v1016 = vunpack.c.l.b16 %v918
  %v1017 = vunpack.c.l.b16 %v919
  %v1018 = vunpack.c.l.b16 %v920
  %v1019 = vunpack.c.l.b16 %v921
  %v1020 = vpack.c.b16 %v972, %v971
  %v1021 = vpack.c.b16 %v974, %v973
  %v1022 = vpack.c.b16 %v976, %v975
  %v1023 = vpack.c.b16 %v978, %v977
  %v1024 = vpack.c.b16 %v980, %v979
  %v1025 = vpack.c.b16 %v982, %v981
  %v1026 = vpack.c.b16 %v984, %v983
  %v1027 = vpack.c.b16 %v986, %v985
  %v1028 = vpack.c.b16 %v988, %v987
  %v1029 = vpack.c.b16 %v990, %v989
  %v1030 = vpack.c.b16 %v992, %v991
  %v1031 = vpack.c.b16 %v994, %v993
  %v1032 = vpack.c.b16 %v996, %v995
  %v1033 = vpack.c.b16 %v998, %v997
  %v1034 = vpack.c.b16 %v1000, %v999
  %v1035 = vpack.c.b16 %v1002, %v1001
  %v1036 = vpack.c.b16 %v1004, %v1003
  %v1037 = vpack.c.b16 %v1006, %v1005
  %v1038 = vpack.c.b16 %v1008, %v1007
  %v1039 = vpack.c.b16 %v1010, %v1009
  %v1040 = vpack.c.b16 %v1012, %v1011
  %v1041 = vpack.c.b16 %v1014, %v1013
  %v1042 = vpack.c.b16 %v1016, %v1015
  %v1043 = vpack.c.b16 %v1018, %v1017
  %v1044 = vpack.c.b16 %v1019, %v1019
  %v1046 = vsel %vm226, %v1020, 0
  %v1049 = vsel %vm226, %v1021, 0
  %v1052 = vsel %vm226, %v1022, 0
  %v1055 = vsel %vm226, %v1023, 0
  %v1058 = vsel %vm226, %v1024, 0
  %v1061 = vsel %vm226, %v1025, 0
  %v1064 = vsel %vm226, %v1026, 0
  %v1067 = vsel %vm226, %v1027, 0
  %v1070 = vsel %vm226, %v1028, 0
  %v1073 = vsel %vm226, %v1029, 0
  %v1076 = vsel %vm226, %v1030, 0
  %v1079 = vsel %vm226, %v1031, 0
  %v1082 = vsel %vm226, %v1032, 0
  %v1085 = vsel %vm226, %v1033, 0
  %v1088 = vsel %vm226, %v1034, 0
  %v1091 = vsel %vm226, %v1035, 0
  %v1094 = vsel %vm226, %v1036, 0
  %v1097 = vsel %vm226, %v1037, 0
  %v1100 = vsel %vm226, %v1038, 0
  %v1103 = vsel %vm226, %v1039, 0
  %v1106 = vsel %vm226, %v1040, 0
  %v1109 = vsel %vm226, %v1041, 0
  %v1112 = vsel %vm226, %v1042, 0
  %v1115 = vsel %vm226, %v1043, 0
  %v1118 = vsel %vm226, %v1044, 0
  %1120 = vmatpush.bf16.msra.mxu0 0
  %1121 = vmatpush.bf16.msra.mxu0 0
  %1122 = vmatpush.bf16.msra.mxu0 0
  %1123 = vmatpush.bf16.msra.mxu0 %v307
  %1124 = vmatpush.bf16.msra.mxu0 %v220
  %1125 = vmatpush.bf16.msra.mxu0 %v219
  %1126 = vmatpush.bf16.msra.mxu0 %v218
  %1127 = vmatpush.bf16.msra.mxu0 %v217
  %1128 = vmatmul.bf16.gmra.mxu0 %v1046
  %v1129 = vpop.f32.mrf.mxu0
  %v1130 = vadd.f32 0.0, %v1129
  %v1131 = vpop.f32.mrf.mxu0
  %v1132 = vadd.f32 0.0, %v1131
  %1133 = vmatmul.bf16.gmra.mxu0 %v1049
  %v1134 = vpop.f32.mrf.mxu0
  %v1135 = vadd.f32 0.0, %v1134
  %v1136 = vpop.f32.mrf.mxu0
  %v1137 = vadd.f32 0.0, %v1136
  %1138 = vmatmul.bf16.gmra.mxu0 %v1052
  %v1139 = vpop.f32.mrf.mxu0
  %v1140 = vadd.f32 0.0, %v1139
  %v1141 = vpop.f32.mrf.mxu0
  %v1142 = vadd.f32 0.0, %v1141
  %1143 = vmatmul.bf16.gmra.mxu0 %v1055
  %v1144 = vpop.f32.mrf.mxu0
  %v1145 = vadd.f32 0.0, %v1144
  %v1146 = vpop.f32.mrf.mxu0
  %v1147 = vadd.f32 0.0, %v1146
  %1148 = vmatmul.bf16.gmra.mxu0 %v1058
  %v1149 = vpop.f32.mrf.mxu0
  %v1150 = vadd.f32 0.0, %v1149
  %v1151 = vpop.f32.mrf.mxu0
  %v1152 = vadd.f32 0.0, %v1151
  %1153 = vmatmul.bf16.gmra.mxu0 %v1061
  %v1154 = vpop.f32.mrf.mxu0
  %v1155 = vadd.f32 0.0, %v1154
  %v1156 = vpop.f32.mrf.mxu0
  %v1157 = vadd.f32 0.0, %v1156
  %1158 = vmatmul.bf16.gmra.mxu0 %v1064
  %v1159 = vpop.f32.mrf.mxu0
  %v1160 = vadd.f32 0.0, %v1159
  %v1161 = vpop.f32.mrf.mxu0
  %v1162 = vadd.f32 0.0, %v1161
  %1163 = vmatmul.bf16.gmra.mxu0 %v1067
  %v1164 = vpop.f32.mrf.mxu0
  %v1165 = vadd.f32 0.0, %v1164
  %v1166 = vpop.f32.mrf.mxu0
  %v1167 = vadd.f32 0.0, %v1166
  %1168 = vmatmul.bf16.gmra.mxu0 %v1070
  %v1169 = vpop.f32.mrf.mxu0
  %v1170 = vadd.f32 0.0, %v1169
  %v1171 = vpop.f32.mrf.mxu0
  %v1172 = vadd.f32 0.0, %v1171
  %1173 = vmatmul.bf16.gmra.mxu0 %v1073
  %v1174 = vpop.f32.mrf.mxu0
  %v1175 = vadd.f32 0.0, %v1174
  %v1176 = vpop.f32.mrf.mxu0
  %v1177 = vadd.f32 0.0, %v1176
  %1178 = vmatmul.bf16.gmra.mxu0 %v1076
  %v1179 = vpop.f32.mrf.mxu0
  %v1180 = vadd.f32 0.0, %v1179
  %v1181 = vpop.f32.mrf.mxu0
  %v1182 = vadd.f32 0.0, %v1181
  %1183 = vmatmul.bf16.gmra.mxu0 %v1079
  %v1184 = vpop.f32.mrf.mxu0
  %v1185 = vadd.f32 0.0, %v1184
  %v1186 = vpop.f32.mrf.mxu0
  %v1187 = vadd.f32 0.0, %v1186
  %1188 = vmatmul.bf16.gmra.mxu0 %v1082
  %v1189 = vpop.f32.mrf.mxu0
  %v1190 = vadd.f32 0.0, %v1189
  %v1191 = vpop.f32.mrf.mxu0
  %v1192 = vadd.f32 0.0, %v1191
  %1193 = vmatmul.bf16.gmra.mxu0 %v1085
  %v1194 = vpop.f32.mrf.mxu0
  %v1195 = vadd.f32 0.0, %v1194
  %v1196 = vpop.f32.mrf.mxu0
  %v1197 = vadd.f32 0.0, %v1196
  %1198 = vmatmul.bf16.gmra.mxu0 %v1088
  %v1199 = vpop.f32.mrf.mxu0
  %v1200 = vadd.f32 0.0, %v1199
  %v1201 = vpop.f32.mrf.mxu0
  %v1202 = vadd.f32 0.0, %v1201
  %1203 = vmatmul.bf16.gmra.mxu0 %v1091
  %v1204 = vpop.f32.mrf.mxu0
  %v1205 = vadd.f32 0.0, %v1204
  %v1206 = vpop.f32.mrf.mxu0
  %v1207 = vadd.f32 0.0, %v1206
  %1208 = vmatmul.bf16.gmra.mxu0 %v1094
  %v1209 = vpop.f32.mrf.mxu0
  %v1210 = vadd.f32 0.0, %v1209
  %v1211 = vpop.f32.mrf.mxu0
  %v1212 = vadd.f32 0.0, %v1211
  %1213 = vmatmul.bf16.gmra.mxu0 %v1097
  %v1214 = vpop.f32.mrf.mxu0
  %v1215 = vadd.f32 0.0, %v1214
  %v1216 = vpop.f32.mrf.mxu0
  %v1217 = vadd.f32 0.0, %v1216
  %1218 = vmatmul.bf16.gmra.mxu0 %v1100
  %v1219 = vpop.f32.mrf.mxu0
  %v1220 = vadd.f32 0.0, %v1219
  %v1221 = vpop.f32.mrf.mxu0
  %v1222 = vadd.f32 0.0, %v1221
  %1223 = vmatmul.bf16.gmra.mxu0 %v1103
  %v1224 = vpop.f32.mrf.mxu0
  %v1225 = vadd.f32 0.0, %v1224
  %v1226 = vpop.f32.mrf.mxu0
  %v1227 = vadd.f32 0.0, %v1226
  %1228 = vmatmul.bf16.gmra.mxu0 %v1106
  %v1229 = vpop.f32.mrf.mxu0
  %v1230 = vadd.f32 0.0, %v1229
  %v1231 = vpop.f32.mrf.mxu0
  %v1232 = vadd.f32 0.0, %v1231
  %1233 = vmatmul.bf16.gmra.mxu0 %v1109
  %v1234 = vpop.f32.mrf.mxu0
  %v1235 = vadd.f32 0.0, %v1234
  %v1236 = vpop.f32.mrf.mxu0
  %v1237 = vadd.f32 0.0, %v1236
  %1238 = vmatmul.bf16.gmra.mxu0 %v1112
  %v1239 = vpop.f32.mrf.mxu0
  %v1240 = vadd.f32 0.0, %v1239
  %v1241 = vpop.f32.mrf.mxu0
  %v1242 = vadd.f32 0.0, %v1241
  %1243 = vmatmul.bf16.gmra.mxu0 %v1115
  %v1244 = vpop.f32.mrf.mxu0
  %v1245 = vadd.f32 0.0, %v1244
  %v1246 = vpop.f32.mrf.mxu0
  %v1247 = vadd.f32 0.0, %v1246
  %1248 = vmatmul.bf16.gmra.mxu0 %v1118
  %v1249 = vpop.f32.mrf.mxu0
  %v1250 = vadd.f32 0.0, %v1249
  %v1251 = vpop.f32.mrf.mxu0
  %1252 = vdwg.mxu0
  %v1253 = vmax.f32 %v823, %v1130
  %v1254 = vmax.f32 %v824, %v1132
  %v1255 = vmax.f32 %v825, %v1135
  %v1256 = vmax.f32 %v826, %v1137
  %v1257 = vmax.f32 %v827, %v1140
  %v1258 = vmax.f32 %v828, %v1142
  %v1259 = vmax.f32 %v829, %v1145
  %v1260 = vmax.f32 %v830, %v1147
  %v1261 = vmax.f32 %v831, %v1150
  %v1262 = vmax.f32 %v832, %v1152
  %v1263 = vmax.f32 %v833, %v1155
  %v1264 = vmax.f32 %v834, %v1157
  %v1265 = vmax.f32 %v835, %v1160
  %v1266 = vmax.f32 %v836, %v1162
  %v1267 = vmax.f32 %v837, %v1165
  %v1268 = vmax.f32 %v838, %v1167
  %v1269 = vmax.f32 %v839, %v1170
  %v1270 = vmax.f32 %v840, %v1172
  %v1271 = vmax.f32 %v841, %v1175
  %v1272 = vmax.f32 %v842, %v1177
  %v1273 = vmax.f32 %v843, %v1180
  %v1274 = vmax.f32 %v844, %v1182
  %v1275 = vmax.f32 %v845, %v1185
  %v1276 = vmax.f32 %v846, %v1187
  %v1277 = vmax.f32 %v847, %v1190
  %v1278 = vmax.f32 %v848, %v1192
  %v1279 = vmax.f32 %v849, %v1195
  %v1280 = vmax.f32 %v850, %v1197
  %v1281 = vmax.f32 %v851, %v1200
  %v1282 = vmax.f32 %v852, %v1202
  %v1283 = vmax.f32 %v853, %v1205
  %v1284 = vmax.f32 %v854, %v1207
  %v1285 = vmax.f32 %v855, %v1210
  %v1286 = vmax.f32 %v856, %v1212
  %v1287 = vmax.f32 %v857, %v1215
  %v1288 = vmax.f32 %v858, %v1217
  %v1289 = vmax.f32 %v859, %v1220
  %v1290 = vmax.f32 %v860, %v1222
  %v1291 = vmax.f32 %v861, %v1225
  %v1292 = vmax.f32 %v862, %v1227
  %v1293 = vmax.f32 %v863, %v1230
  %v1294 = vmax.f32 %v864, %v1232
  %v1295 = vmax.f32 %v865, %v1235
  %v1296 = vmax.f32 %v866, %v1237
  %v1297 = vmax.f32 %v867, %v1240
  %v1298 = vmax.f32 %v868, %v1242
  %v1299 = vmax.f32 %v869, %v1245
  %v1300 = vmax.f32 %v870, %v1247
  %v1301 = vmax.f32 %v871, %v1250
  %s1302 = scalar_lea.vmem %s0, 588
  %v1303 = vld [vmem:[%s1302] sm:$0xf]
  %v1304 = vld [vmem:[%s1302 + $0x4] sm:$0xf]
  %v1305 = vld [vmem:[%s1302 + $0x8] sm:$0xf]
  %v1306 = vld [vmem:[%s1302 + $0xc] sm:$0xf]
  %v1307 = vld [vmem:[%s1302 + $0x10] sm:$0xf]
  %v1308 = vld [vmem:[%s1302 + $0x14] sm:$0xf]
  %v1309 = vld [vmem:[%s1302 + $0x18] sm:$0xf]
  %v1310 = vld [vmem:[%s1302 + $0x1c] sm:$0xf]
  %v1311 = vld [vmem:[%s1302 + $0x20] sm:$0xf]
  %v1312 = vld [vmem:[%s1302 + $0x24] sm:$0xf]
  %v1313 = vld [vmem:[%s1302 + $0x28] sm:$0xf]
  %v1314 = vld [vmem:[%s1302 + $0x2c] sm:$0xf]
  %v1315 = vld [vmem:[%s1302 + $0x30] sm:$0xf]
  %v1316 = vld [vmem:[%s1302 + $0x34] sm:$0xf]
  %v1317 = vld [vmem:[%s1302 + $0x38] sm:$0xf]
  %v1318 = vld [vmem:[%s1302 + $0x3c] sm:$0xf]
  %v1319 = vld [vmem:[%s1302 + $0x40] sm:$0xf]
  %v1320 = vld [vmem:[%s1302 + $0x44] sm:$0xf]
  %v1321 = vld [vmem:[%s1302 + $0x48] sm:$0xf]
  %v1322 = vld [vmem:[%s1302 + $0x4c] sm:$0xf]
  %v1323 = vld [vmem:[%s1302 + $0x50] sm:$0xf]
  %v1324 = vld [vmem:[%s1302 + $0x54] sm:$0xf]
  %v1325 = vld [vmem:[%s1302 + $0x58] sm:$0xf]
  %v1326 = vld [vmem:[%s1302 + $0x5c] sm:$0xf]
  %v1327 = vld [vmem:[%s1302 + $0x60] sm:$0xf]
  %v1328 = vld [vmem:[%s1302 + $0x64] sm:$0xf]
  %v1329 = vld [vmem:[%s1302 + $0x68] sm:$0xf]
  %v1330 = vld [vmem:[%s1302 + $0x6c] sm:$0xf]
  %v1331 = vld [vmem:[%s1302 + $0x70] sm:$0xf]
  %v1332 = vld [vmem:[%s1302 + $0x74] sm:$0xf]
  %v1333 = vld [vmem:[%s1302 + $0x78] sm:$0xf]
  %v1334 = vld [vmem:[%s1302 + $0x7c] sm:$0xf]
  %v1335 = vld [vmem:[%s1302 + $0x80] sm:$0xf]
  %v1336 = vld [vmem:[%s1302 + $0x84] sm:$0xf]
  %v1337 = vld [vmem:[%s1302 + $0x88] sm:$0xf]
  %v1338 = vld [vmem:[%s1302 + $0x8c] sm:$0xf]
  %v1339 = vld [vmem:[%s1302 + $0x90] sm:$0xf]
  %v1340 = vld [vmem:[%s1302 + $0x94] sm:$0xf]
  %v1341 = vld [vmem:[%s1302 + $0x98] sm:$0xf]
  %v1342 = vld [vmem:[%s1302 + $0x9c] sm:$0xf]
  %v1343 = vld [vmem:[%s1302 + $0xa0] sm:$0xf]
  %v1344 = vld [vmem:[%s1302 + $0xa4] sm:$0xf]
  %v1345 = vld [vmem:[%s1302 + $0xa8] sm:$0xf]
  %v1346 = vld [vmem:[%s1302 + $0xac] sm:$0xf]
  %v1347 = vld [vmem:[%s1302 + $0xb0] sm:$0xf]
  %v1348 = vld [vmem:[%s1302 + $0xb4] sm:$0xf]
  %v1349 = vld [vmem:[%s1302 + $0xb8] sm:$0xf]
  %v1350 = vld [vmem:[%s1302 + $0xbc] sm:$0xf]
  %v1351 = vld [vmem:[%s1302 + $0xc0] sm:$0xf]
  %v1401 = vunpack.c.l.b16 %v1303
  %v1402 = vunpack.c.l.b16 %v1304
  %v1403 = vunpack.c.l.b16 %v1305
  %v1404 = vunpack.c.l.b16 %v1306
  %v1405 = vunpack.c.l.b16 %v1307
  %v1406 = vunpack.c.l.b16 %v1308
  %v1407 = vunpack.c.l.b16 %v1309
  %v1408 = vunpack.c.l.b16 %v1310
  %v1409 = vunpack.c.l.b16 %v1311
  %v1410 = vunpack.c.l.b16 %v1312
  %v1411 = vunpack.c.l.b16 %v1313
  %v1412 = vunpack.c.l.b16 %v1314
  %v1413 = vunpack.c.l.b16 %v1315
  %v1414 = vunpack.c.l.b16 %v1316
  %v1415 = vunpack.c.l.b16 %v1317
  %v1416 = vunpack.c.l.b16 %v1318
  %v1417 = vunpack.c.l.b16 %v1319
  %v1418 = vunpack.c.l.b16 %v1320
  %v1419 = vunpack.c.l.b16 %v1321
  %v1420 = vunpack.c.l.b16 %v1322
  %v1421 = vunpack.c.l.b16 %v1323
  %v1422 = vunpack.c.l.b16 %v1324
  %v1423 = vunpack.c.l.b16 %v1325
  %v1424 = vunpack.c.l.b16 %v1326
  %v1425 = vunpack.c.l.b16 %v1327
  %v1426 = vunpack.c.l.b16 %v1328
  %v1427 = vunpack.c.l.b16 %v1329
  %v1428 = vunpack.c.l.b16 %v1330
  %v1429 = vunpack.c.l.b16 %v1331
  %v1430 = vunpack.c.l.b16 %v1332
  %v1431 = vunpack.c.l.b16 %v1333
  %v1432 = vunpack.c.l.b16 %v1334
  %v1433 = vunpack.c.l.b16 %v1335
  %v1434 = vunpack.c.l.b16 %v1336
  %v1435 = vunpack.c.l.b16 %v1337
  %v1436 = vunpack.c.l.b16 %v1338
  %v1437 = vunpack.c.l.b16 %v1339
  %v1438 = vunpack.c.l.b16 %v1340
  %v1439 = vunpack.c.l.b16 %v1341
  %v1440 = vunpack.c.l.b16 %v1342
  %v1441 = vunpack.c.l.b16 %v1343
  %v1442 = vunpack.c.l.b16 %v1344
  %v1443 = vunpack.c.l.b16 %v1345
  %v1444 = vunpack.c.l.b16 %v1346
  %v1445 = vunpack.c.l.b16 %v1347
  %v1446 = vunpack.c.l.b16 %v1348
  %v1447 = vunpack.c.l.b16 %v1349
  %v1448 = vunpack.c.l.b16 %v1350
  %v1449 = vunpack.c.l.b16 %v1351
  %v1450 = vpack.c.b16 %v1402, %v1401
  %v1451 = vpack.c.b16 %v1404, %v1403
  %v1452 = vpack.c.b16 %v1406, %v1405
  %v1453 = vpack.c.b16 %v1408, %v1407
  %v1454 = vpack.c.b16 %v1410, %v1409
  %v1455 = vpack.c.b16 %v1412, %v1411
  %v1456 = vpack.c.b16 %v1414, %v1413
  %v1457 = vpack.c.b16 %v1416, %v1415
  %v1458 = vpack.c.b16 %v1418, %v1417
  %v1459 = vpack.c.b16 %v1420, %v1419
  %v1460 = vpack.c.b16 %v1422, %v1421
  %v1461 = vpack.c.b16 %v1424, %v1423
  %v1462 = vpack.c.b16 %v1426, %v1425
  %v1463 = vpack.c.b16 %v1428, %v1427
  %v1464 = vpack.c.b16 %v1430, %v1429
  %v1465 = vpack.c.b16 %v1432, %v1431
  %v1466 = vpack.c.b16 %v1434, %v1433
  %v1467 = vpack.c.b16 %v1436, %v1435
  %v1468 = vpack.c.b16 %v1438, %v1437
  %v1469 = vpack.c.b16 %v1440, %v1439
  %v1470 = vpack.c.b16 %v1442, %v1441
  %v1471 = vpack.c.b16 %v1444, %v1443
  %v1472 = vpack.c.b16 %v1446, %v1445
  %v1473 = vpack.c.b16 %v1448, %v1447
  %v1474 = vpack.c.b16 %v1449, %v1449
  %v1476 = vsel %vm226, %v1450, 0
  %v1479 = vsel %vm226, %v1451, 0
  %v1482 = vsel %vm226, %v1452, 0
  %v1485 = vsel %vm226, %v1453, 0
  %v1488 = vsel %vm226, %v1454, 0
  %v1491 = vsel %vm226, %v1455, 0
  %v1494 = vsel %vm226, %v1456, 0
  %v1497 = vsel %vm226, %v1457, 0
  %v1500 = vsel %vm226, %v1458, 0
  %v1503 = vsel %vm226, %v1459, 0
  %v1506 = vsel %vm226, %v1460, 0
  %v1509 = vsel %vm226, %v1461, 0
  %v1512 = vsel %vm226, %v1462, 0
  %v1515 = vsel %vm226, %v1463, 0
  %v1518 = vsel %vm226, %v1464, 0
  %v1521 = vsel %vm226, %v1465, 0
  %v1524 = vsel %vm226, %v1466, 0
  %v1527 = vsel %vm226, %v1467, 0
  %v1530 = vsel %vm226, %v1468, 0
  %v1533 = vsel %vm226, %v1469, 0
  %v1536 = vsel %vm226, %v1470, 0
  %v1539 = vsel %vm226, %v1471, 0
  %v1542 = vsel %vm226, %v1472, 0
  %v1545 = vsel %vm226, %v1473, 0
  %v1548 = vsel %vm226, %v1474, 0
  %1550 = vmatpush.bf16.msra.mxu0 0
  %1551 = vmatpush.bf16.msra.mxu0 0
  %1552 = vmatpush.bf16.msra.mxu0 0
  %1553 = vmatpush.bf16.msra.mxu0 %v307
  %1554 = vmatpush.bf16.msra.mxu0 %v220
  %1555 = vmatpush.bf16.msra.mxu0 %v219
  %1556 = vmatpush.bf16.msra.mxu0 %v218
  %1557 = vmatpush.bf16.msra.mxu0 %v217
  %1558 = vmatmul.bf16.gmra.mxu0 %v1476
  %v1559 = vpop.f32.mrf.mxu0
  %v1560 = vadd.f32 0.0, %v1559
  %v1561 = vpop.f32.mrf.mxu0
  %v1562 = vadd.f32 0.0, %v1561
  %1563 = vmatmul.bf16.gmra.mxu0 %v1479
  %v1564 = vpop.f32.mrf.mxu0
  %v1565 = vadd.f32 0.0, %v1564
  %v1566 = vpop.f32.mrf.mxu0
  %v1567 = vadd.f32 0.0, %v1566
  %1568 = vmatmul.bf16.gmra.mxu0 %v1482
  %v1569 = vpop.f32.mrf.mxu0
  %v1570 = vadd.f32 0.0, %v1569
  %v1571 = vpop.f32.mrf.mxu0
  %v1572 = vadd.f32 0.0, %v1571
  %1573 = vmatmul.bf16.gmra.mxu0 %v1485
  %v1574 = vpop.f32.mrf.mxu0
  %v1575 = vadd.f32 0.0, %v1574
  %v1576 = vpop.f32.mrf.mxu0
  %v1577 = vadd.f32 0.0, %v1576
  %1578 = vmatmul.bf16.gmra.mxu0 %v1488
  %v1579 = vpop.f32.mrf.mxu0
  %v1580 = vadd.f32 0.0, %v1579
  %v1581 = vpop.f32.mrf.mxu0
  %v1582 = vadd.f32 0.0, %v1581
  %1583 = vmatmul.bf16.gmra.mxu0 %v1491
  %v1584 = vpop.f32.mrf.mxu0
  %v1585 = vadd.f32 0.0, %v1584
  %v1586 = vpop.f32.mrf.mxu0
  %v1587 = vadd.f32 0.0, %v1586
  %1588 = vmatmul.bf16.gmra.mxu0 %v1494
  %v1589 = vpop.f32.mrf.mxu0
  %v1590 = vadd.f32 0.0, %v1589
  %v1591 = vpop.f32.mrf.mxu0
  %v1592 = vadd.f32 0.0, %v1591
  %1593 = vmatmul.bf16.gmra.mxu0 %v1497
  %v1594 = vpop.f32.mrf.mxu0
  %v1595 = vadd.f32 0.0, %v1594
  %v1596 = vpop.f32.mrf.mxu0
  %v1597 = vadd.f32 0.0, %v1596
  %1598 = vmatmul.bf16.gmra.mxu0 %v1500
  %v1599 = vpop.f32.mrf.mxu0
  %v1600 = vadd.f32 0.0, %v1599
  %v1601 = vpop.f32.mrf.mxu0
  %v1602 = vadd.f32 0.0, %v1601
  %1603 = vmatmul.bf16.gmra.mxu0 %v1503
  %v1604 = vpop.f32.mrf.mxu0
  %v1605 = vadd.f32 0.0, %v1604
  %v1606 = vpop.f32.mrf.mxu0
  %v1607 = vadd.f32 0.0, %v1606
  %1608 = vmatmul.bf16.gmra.mxu0 %v1506
  %v1609 = vpop.f32.mrf.mxu0
  %v1610 = vadd.f32 0.0, %v1609
  %v1611 = vpop.f32.mrf.mxu0
  %v1612 = vadd.f32 0.0, %v1611
  %1613 = vmatmul.bf16.gmra.mxu0 %v1509
  %v1614 = vpop.f32.mrf.mxu0
  %v1615 = vadd.f32 0.0, %v1614
  %v1616 = vpop.f32.mrf.mxu0
  %v1617 = vadd.f32 0.0, %v1616
  %1618 = vmatmul.bf16.gmra.mxu0 %v1512
  %v1619 = vpop.f32.mrf.mxu0
  %v1620 = vadd.f32 0.0, %v1619
  %v1621 = vpop.f32.mrf.mxu0
  %v1622 = vadd.f32 0.0, %v1621
  %1623 = vmatmul.bf16.gmra.mxu0 %v1515
  %v1624 = vpop.f32.mrf.mxu0
  %v1625 = vadd.f32 0.0, %v1624
  %v1626 = vpop.f32.mrf.mxu0
  %v1627 = vadd.f32 0.0, %v1626
  %1628 = vmatmul.bf16.gmra.mxu0 %v1518
  %v1629 = vpop.f32.mrf.mxu0
  %v1630 = vadd.f32 0.0, %v1629
  %v1631 = vpop.f32.mrf.mxu0
  %v1632 = vadd.f32 0.0, %v1631
  %1633 = vmatmul.bf16.gmra.mxu0 %v1521
  %v1634 = vpop.f32.mrf.mxu0
  %v1635 = vadd.f32 0.0, %v1634
  %v1636 = vpop.f32.mrf.mxu0
  %v1637 = vadd.f32 0.0, %v1636
  %1638 = vmatmul.bf16.gmra.mxu0 %v1524
  %v1639 = vpop.f32.mrf.mxu0
  %v1640 = vadd.f32 0.0, %v1639
  %v1641 = vpop.f32.mrf.mxu0
  %v1642 = vadd.f32 0.0, %v1641
  %1643 = vmatmul.bf16.gmra.mxu0 %v1527
  %v1644 = vpop.f32.mrf.mxu0
  %v1645 = vadd.f32 0.0, %v1644
  %v1646 = vpop.f32.mrf.mxu0
  %v1647 = vadd.f32 0.0, %v1646
  %1648 = vmatmul.bf16.gmra.mxu0 %v1530
  %v1649 = vpop.f32.mrf.mxu0
  %v1650 = vadd.f32 0.0, %v1649
  %v1651 = vpop.f32.mrf.mxu0
  %v1652 = vadd.f32 0.0, %v1651
  %1653 = vmatmul.bf16.gmra.mxu0 %v1533
  %v1654 = vpop.f32.mrf.mxu0
  %v1655 = vadd.f32 0.0, %v1654
  %v1656 = vpop.f32.mrf.mxu0
  %v1657 = vadd.f32 0.0, %v1656
  %1658 = vmatmul.bf16.gmra.mxu0 %v1536
  %v1659 = vpop.f32.mrf.mxu0
  %v1660 = vadd.f32 0.0, %v1659
  %v1661 = vpop.f32.mrf.mxu0
  %v1662 = vadd.f32 0.0, %v1661
  %1663 = vmatmul.bf16.gmra.mxu0 %v1539
  %v1664 = vpop.f32.mrf.mxu0
  %v1665 = vadd.f32 0.0, %v1664
  %v1666 = vpop.f32.mrf.mxu0
  %v1667 = vadd.f32 0.0, %v1666
  %1668 = vmatmul.bf16.gmra.mxu0 %v1542
  %v1669 = vpop.f32.mrf.mxu0
  %v1670 = vadd.f32 0.0, %v1669
  %v1671 = vpop.f32.mrf.mxu0
  %v1672 = vadd.f32 0.0, %v1671
  %1673 = vmatmul.bf16.gmra.mxu0 %v1545
  %v1674 = vpop.f32.mrf.mxu0
  %v1675 = vadd.f32 0.0, %v1674
  %v1676 = vpop.f32.mrf.mxu0
  %v1677 = vadd.f32 0.0, %v1676
  %1678 = vmatmul.bf16.gmra.mxu0 %v1548
  %v1679 = vpop.f32.mrf.mxu0
  %v1680 = vadd.f32 0.0, %v1679
  %v1681 = vpop.f32.mrf.mxu0
  %1682 = vdwg.mxu0
  %v1683 = vmax.f32 %v1253, %v1560
  %v1684 = vmax.f32 %v1254, %v1562
  %v1685 = vmax.f32 %v1255, %v1565
  %v1686 = vmax.f32 %v1256, %v1567
  %v1687 = vmax.f32 %v1257, %v1570
  %v1688 = vmax.f32 %v1258, %v1572
  %v1689 = vmax.f32 %v1259, %v1575
  %v1690 = vmax.f32 %v1260, %v1577
  %v1691 = vmax.f32 %v1261, %v1580
  %v1692 = vmax.f32 %v1262, %v1582
  %v1693 = vmax.f32 %v1263, %v1585
  %v1694 = vmax.f32 %v1264, %v1587
  %v1695 = vmax.f32 %v1265, %v1590
  %v1696 = vmax.f32 %v1266, %v1592
  %v1697 = vmax.f32 %v1267, %v1595
  %v1698 = vmax.f32 %v1268, %v1597
  %v1699 = vmax.f32 %v1269, %v1600
  %v1700 = vmax.f32 %v1270, %v1602
  %v1701 = vmax.f32 %v1271, %v1605
  %v1702 = vmax.f32 %v1272, %v1607
  %v1703 = vmax.f32 %v1273, %v1610
  %v1704 = vmax.f32 %v1274, %v1612
  %v1705 = vmax.f32 %v1275, %v1615
  %v1706 = vmax.f32 %v1276, %v1617
  %v1707 = vmax.f32 %v1277, %v1620
  %v1708 = vmax.f32 %v1278, %v1622
  %v1709 = vmax.f32 %v1279, %v1625
  %v1710 = vmax.f32 %v1280, %v1627
  %v1711 = vmax.f32 %v1281, %v1630
  %v1712 = vmax.f32 %v1282, %v1632
  %v1713 = vmax.f32 %v1283, %v1635
  %v1714 = vmax.f32 %v1284, %v1637
  %v1715 = vmax.f32 %v1285, %v1640
  %v1716 = vmax.f32 %v1286, %v1642
  %v1717 = vmax.f32 %v1287, %v1645
  %v1718 = vmax.f32 %v1288, %v1647
  %v1719 = vmax.f32 %v1289, %v1650
  %v1720 = vmax.f32 %v1290, %v1652
  %v1721 = vmax.f32 %v1291, %v1655
  %v1722 = vmax.f32 %v1292, %v1657
  %v1723 = vmax.f32 %v1293, %v1660
  %v1724 = vmax.f32 %v1294, %v1662
  %v1725 = vmax.f32 %v1295, %v1665
  %v1726 = vmax.f32 %v1296, %v1667
  %v1727 = vmax.f32 %v1297, %v1670
  %v1728 = vmax.f32 %v1298, %v1672
  %v1729 = vmax.f32 %v1299, %v1675
  %v1730 = vmax.f32 %v1300, %v1677
  %v1731 = vmax.f32 %v1301, %v1680
  %v1732 = vld [vmem:[%s2] sm:$0x1]
  %v1734 = vperm.slane %v1732, 0
  %v1736 = vadd.f32 %v1683, %v1734
  %v1737 = vadd.f32 %v1684, %v1734
  %v1738 = vadd.f32 %v1685, %v1734
  %v1739 = vadd.f32 %v1686, %v1734
  %v1740 = vadd.f32 %v1687, %v1734
  %v1741 = vadd.f32 %v1688, %v1734
  %v1742 = vadd.f32 %v1689, %v1734
  %v1743 = vadd.f32 %v1690, %v1734
  %v1744 = vadd.f32 %v1691, %v1734
  %v1745 = vadd.f32 %v1692, %v1734
  %v1746 = vadd.f32 %v1693, %v1734
  %v1747 = vadd.f32 %v1694, %v1734
  %v1748 = vadd.f32 %v1695, %v1734
  %v1749 = vadd.f32 %v1696, %v1734
  %v1750 = vadd.f32 %v1697, %v1734
  %v1751 = vadd.f32 %v1698, %v1734
  %v1752 = vadd.f32 %v1699, %v1734
  %v1753 = vadd.f32 %v1700, %v1734
  %v1754 = vadd.f32 %v1701, %v1734
  %v1755 = vadd.f32 %v1702, %v1734
  %v1756 = vadd.f32 %v1703, %v1734
  %v1757 = vadd.f32 %v1704, %v1734
  %v1758 = vadd.f32 %v1705, %v1734
  %v1759 = vadd.f32 %v1706, %v1734
  %v1760 = vadd.f32 %v1707, %v1734
  %v1761 = vadd.f32 %v1708, %v1734
  %v1762 = vadd.f32 %v1709, %v1734
  %v1763 = vadd.f32 %v1710, %v1734
  %v1764 = vadd.f32 %v1711, %v1734
  %v1765 = vadd.f32 %v1712, %v1734
  %v1766 = vadd.f32 %v1713, %v1734
  %v1767 = vadd.f32 %v1714, %v1734
  %v1768 = vadd.f32 %v1715, %v1734
  %v1769 = vadd.f32 %v1716, %v1734
  %v1770 = vadd.f32 %v1717, %v1734
  %v1771 = vadd.f32 %v1718, %v1734
  %v1772 = vadd.f32 %v1719, %v1734
  %v1773 = vadd.f32 %v1720, %v1734
  %v1774 = vadd.f32 %v1721, %v1734
  %v1775 = vadd.f32 %v1722, %v1734
  %v1776 = vadd.f32 %v1723, %v1734
  %v1777 = vadd.f32 %v1724, %v1734
  %v1778 = vadd.f32 %v1725, %v1734
  %v1779 = vadd.f32 %v1726, %v1734
  %v1780 = vadd.f32 %v1727, %v1734
  %v1781 = vadd.f32 %v1728, %v1734
  %v1782 = vadd.f32 %v1729, %v1734
  %v1783 = vadd.f32 %v1730, %v1734
  %v1784 = vadd.f32 %v1731, %v1734
  %v1785 = vmax.f32 %v1736, 0.0
  %v1786 = vmax.f32 %v1737, 0.0
  %v1787 = vmax.f32 %v1738, 0.0
  %v1788 = vmax.f32 %v1739, 0.0
  %v1789 = vmax.f32 %v1740, 0.0
  %v1790 = vmax.f32 %v1741, 0.0
  %v1791 = vmax.f32 %v1742, 0.0
  %v1792 = vmax.f32 %v1743, 0.0
  %v1793 = vmax.f32 %v1744, 0.0
  %v1794 = vmax.f32 %v1745, 0.0
  %v1795 = vmax.f32 %v1746, 0.0
  %v1796 = vmax.f32 %v1747, 0.0
  %v1797 = vmax.f32 %v1748, 0.0
  %v1798 = vmax.f32 %v1749, 0.0
  %v1799 = vmax.f32 %v1750, 0.0
  %v1800 = vmax.f32 %v1751, 0.0
  %v1801 = vmax.f32 %v1752, 0.0
  %v1802 = vmax.f32 %v1753, 0.0
  %v1803 = vmax.f32 %v1754, 0.0
  %v1804 = vmax.f32 %v1755, 0.0
  %v1805 = vmax.f32 %v1756, 0.0
  %v1806 = vmax.f32 %v1757, 0.0
  %v1807 = vmax.f32 %v1758, 0.0
  %v1808 = vmax.f32 %v1759, 0.0
  %v1809 = vmax.f32 %v1760, 0.0
  %v1810 = vmax.f32 %v1761, 0.0
  %v1811 = vmax.f32 %v1762, 0.0
  %v1812 = vmax.f32 %v1763, 0.0
  %v1813 = vmax.f32 %v1764, 0.0
  %v1814 = vmax.f32 %v1765, 0.0
  %v1815 = vmax.f32 %v1766, 0.0
  %v1816 = vmax.f32 %v1767, 0.0
  %v1817 = vmax.f32 %v1768, 0.0
  %v1818 = vmax.f32 %v1769, 0.0
  %v1819 = vmax.f32 %v1770, 0.0
  %v1820 = vmax.f32 %v1771, 0.0
  %v1821 = vmax.f32 %v1772, 0.0
  %v1822 = vmax.f32 %v1773, 0.0
  %v1823 = vmax.f32 %v1774, 0.0
  %v1824 = vmax.f32 %v1775, 0.0
  %v1825 = vmax.f32 %v1776, 0.0
  %v1826 = vmax.f32 %v1777, 0.0
  %v1827 = vmax.f32 %v1778, 0.0
  %v1828 = vmax.f32 %v1779, 0.0
  %v1829 = vmax.f32 %v1780, 0.0
  %v1830 = vmax.f32 %v1781, 0.0
  %v1831 = vmax.f32 %v1782, 0.0
  %v1832 = vmax.f32 %v1783, 0.0
  %v1833 = vmax.f32 %v1784, 0.0
  %vm1834 = vcmask 48128
  %1835 = vst.msk [vmem:[%s3] sm:$0xff] %vm1834, %v1785
  %1836 = vst.msk [vmem:[%s3 + $0x8] sm:$0xff] %vm1834, %v1786
  %1837 = vst.msk [vmem:[%s3 + $0x10] sm:$0xff] %vm1834, %v1787
  %1838 = vst.msk [vmem:[%s3 + $0x18] sm:$0xff] %vm1834, %v1788
  %1839 = vst.msk [vmem:[%s3 + $0x20] sm:$0xff] %vm1834, %v1789
  %1840 = vst.msk [vmem:[%s3 + $0x28] sm:$0xff] %vm1834, %v1790
  %1841 = vst.msk [vmem:[%s3 + $0x30] sm:$0xff] %vm1834, %v1791
  %1842 = vst.msk [vmem:[%s3 + $0x38] sm:$0xff] %vm1834, %v1792
  %1843 = vst.msk [vmem:[%s3 + $0x40] sm:$0xff] %vm1834, %v1793
  %1844 = vst.msk [vmem:[%s3 + $0x48] sm:$0xff] %vm1834, %v1794
  %1845 = vst.msk [vmem:[%s3 + $0x50] sm:$0xff] %vm1834, %v1795
  %1846 = vst.msk [vmem:[%s3 + $0x58] sm:$0xff] %vm1834, %v1796
  %1847 = vst.msk [vmem:[%s3 + $0x60] sm:$0xff] %vm1834, %v1797
  %1848 = vst.msk [vmem:[%s3 + $0x68] sm:$0xff] %vm1834, %v1798
  %1849 = vst.msk [vmem:[%s3 + $0x70] sm:$0xff] %vm1834, %v1799
  %1850 = vst.msk [vmem:[%s3 + $0x78] sm:$0xff] %vm1834, %v1800
  %1851 = vst.msk [vmem:[%s3 + $0x80] sm:$0xff] %vm1834, %v1801
  %1852 = vst.msk [vmem:[%s3 + $0x88] sm:$0xff] %vm1834, %v1802
  %1853 = vst.msk [vmem:[%s3 + $0x90] sm:$0xff] %vm1834, %v1803
  %1854 = vst.msk [vmem:[%s3 + $0x98] sm:$0xff] %vm1834, %v1804
  %1855 = vst.msk [vmem:[%s3 + $0xa0] sm:$0xff] %vm1834, %v1805
  %1856 = vst.msk [vmem:[%s3 + $0xa8] sm:$0xff] %vm1834, %v1806
  %1857 = vst.msk [vmem:[%s3 + $0xb0] sm:$0xff] %vm1834, %v1807
  %1858 = vst.msk [vmem:[%s3 + $0xb8] sm:$0xff] %vm1834, %v1808
  %1859 = vst.msk [vmem:[%s3 + $0xc0] sm:$0xff] %vm1834, %v1809
  %1860 = vst.msk [vmem:[%s3 + $0xc8] sm:$0xff] %vm1834, %v1810
  %1861 = vst.msk [vmem:[%s3 + $0xd0] sm:$0xff] %vm1834, %v1811
  %1862 = vst.msk [vmem:[%s3 + $0xd8] sm:$0xff] %vm1834, %v1812
  %1863 = vst.msk [vmem:[%s3 + $0xe0] sm:$0xff] %vm1834, %v1813
  %1864 = vst.msk [vmem:[%s3 + $0xe8] sm:$0xff] %vm1834, %v1814
  %1865 = vst.msk [vmem:[%s3 + $0xf0] sm:$0xff] %vm1834, %v1815
  %1866 = vst.msk [vmem:[%s3 + $0xf8] sm:$0xff] %vm1834, %v1816
  %1867 = vst.msk [vmem:[%s3 + $0x100] sm:$0xff] %vm1834, %v1817
  %1868 = vst.msk [vmem:[%s3 + $0x108] sm:$0xff] %vm1834, %v1818
  %1869 = vst.msk [vmem:[%s3 + $0x110] sm:$0xff] %vm1834, %v1819
  %1870 = vst.msk [vmem:[%s3 + $0x118] sm:$0xff] %vm1834, %v1820
  %1871 = vst.msk [vmem:[%s3 + $0x120] sm:$0xff] %vm1834, %v1821
  %1872 = vst.msk [vmem:[%s3 + $0x128] sm:$0xff] %vm1834, %v1822
  %1873 = vst.msk [vmem:[%s3 + $0x130] sm:$0xff] %vm1834, %v1823
  %1874 = vst.msk [vmem:[%s3 + $0x138] sm:$0xff] %vm1834, %v1824
  %1875 = vst.msk [vmem:[%s3 + $0x140] sm:$0xff] %vm1834, %v1825
  %1876 = vst.msk [vmem:[%s3 + $0x148] sm:$0xff] %vm1834, %v1826
  %1877 = vst.msk [vmem:[%s3 + $0x150] sm:$0xff] %vm1834, %v1827
  %1878 = vst.msk [vmem:[%s3 + $0x158] sm:$0xff] %vm1834, %v1828
  %1879 = vst.msk [vmem:[%s3 + $0x160] sm:$0xff] %vm1834, %v1829
  %1880 = vst.msk [vmem:[%s3 + $0x168] sm:$0xff] %vm1834, %v1830
  %1881 = vst.msk [vmem:[%s3 + $0x170] sm:$0xff] %vm1834, %v1831
  %1882 = vst.msk [vmem:[%s3 + $0x178] sm:$0xff] %vm1834, %v1832
  %1883 = vst.msk [vmem:[%s3 + $0x180] sm:$0xff] %vm1834, %v1833
  // Predicated region
  $region14: #{end_to_end_forward.3} parent=0 // pred_check
    _
  $region15: #{end_to_end_forward.3} parent=0 // pred_check_branch
    %1885 = sbr.rel (0) target = $region17
  $region16: #{end_to_end_forward.3} parent=0 // pred_region
    _
  $region17: #{end_to_end_forward.3} parent=0 // pred_fallthru
    _
  // Predicated region
  $region18: #{end_to_end_forward.3} parent=0 // pred_check
    _
  $region19: #{end_to_end_forward.3} parent=0 // pred_check_branch
    %1887 = sbr.rel (0) target = $region21
  $region20: #{end_to_end_forward.3} parent=0 // pred_region
    _
  $region21: #{end_to_end_forward.3} parent=0 // pred_fallthru
    _

// kernel: end_to_end_forward.4
$region0: #{end_to_end_forward.4}
  #allocation0 [shape = 'u32[]', space=smem, size = 0x4, offset = 0x4, fixed_abs, tag = 'smem constant byte address 0x4 - core index']
  #allocation1 [shape = 'u32[72,128]{1,0:T(1,128)}', space=vmem, size = 0x9000, scoped, tag = 'internal scratch']
  %s0 = inlined_call_operand.vmem [shape: bf16[4,50,150], index: 0, kind: input, shape index: {}]
  %s1 = inlined_call_operand.vmem [shape: bf16[150,15], index: 1, kind: input, shape index: {}]
  %s2 = inlined_call_operand.vmem [shape: f32[1,15], index: 2, kind: input, shape index: {}]
  %s3 = inlined_call_operand.vmem [shape: f32[50,15], index: 3, kind: output, shape index: {}]
  %s4 = sld [smem:[#allocation0]]
  $region22: #{end_to_end_forward.4} parent=0
    _
  %s6 = ssub.s32 1, %s4
  %s7 = scalar_select 0, %s6, %s4
  // Predicated region
  $region2: #{end_to_end_forward.4} parent=0 // pred_check
    _
  $region3: #{end_to_end_forward.4} parent=0 // pred_check_branch
    %9 = sbr.rel (0) target = $region5
  $region4: #{end_to_end_forward.4} parent=0 // pred_region
    _
  $region5: #{end_to_end_forward.4} parent=0 // pred_fallthru
    _
  // Predicated region
  $region6: #{end_to_end_forward.4} parent=0 // pred_check
    _
  $region7: #{end_to_end_forward.4} parent=0 // pred_check_branch
    %11 = sbr.rel (0) target = $region9
  $region8: #{end_to_end_forward.4} parent=0 // pred_region
    _
  $region9: #{end_to_end_forward.4} parent=0 // pred_fallthru
    _
  // Predicated region
  $region10: #{end_to_end_forward.4} parent=0 // pred_check
    _
  $region11: #{end_to_end_forward.4} parent=0 // pred_check_branch
    %13 = sbr.rel (0) target = $region13
  $region12: #{end_to_end_forward.4} parent=0 // pred_region
    _
  $region13: #{end_to_end_forward.4} parent=0 // pred_fallthru
    _
  %v15 = vld [vmem:[%s0] sm:$0xff]
  %v16 = vld [vmem:[%s0 + $0x8] sm:$0xff]
  %v17 = vld [vmem:[%s0 + $0x10] sm:$0xff]
  %v18 = vld [vmem:[%s0 + $0x18] sm:$0xff]
  %v19 = vld [vmem:[%s0 + $0x20] sm:$0xff]
  %v20 = vld [vmem:[%s0 + $0x28] sm:$0xff]
  %v21 = vld [vmem:[%s0 + $0x30] sm:$0x11]
  %v22 = vld [vmem:[%s1] sm:$0xf]
  %v23 = vld [vmem:[%s1 + $0x4] sm:$0xf]
  %v24 = vld [vmem:[%s1 + $0x8] sm:$0xf]
  %v25 = vld [vmem:[%s1 + $0xc] sm:$0xf]
  %v26 = vld [vmem:[%s1 + $0x10] sm:$0xf]
  %v27 = vld [vmem:[%s1 + $0x14] sm:$0xf]
  %v28 = vld [vmem:[%s1 + $0x18] sm:$0xf]
  %v29 = vld [vmem:[%s1 + $0x1c] sm:$0xf]
  %v30 = vld [vmem:[%s1 + $0x20] sm:$0xf]
  %v31 = vld [vmem:[%s1 + $0x24] sm:$0xf]
  %v32 = vld [vmem:[%s1 + $0x28] sm:$0xf]
  %v33 = vld [vmem:[%s1 + $0x2c] sm:$0xf]
  %v34 = vld [vmem:[%s1 + $0x30] sm:$0xf]
  %v35 = vld [vmem:[%s1 + $0x34] sm:$0xf]
  %v36 = vld [vmem:[%s1 + $0x38] sm:$0xf]
  %v37 = vld [vmem:[%s1 + $0x3c] sm:$0xf]
  %v38 = vld [vmem:[%s1 + $0x40] sm:$0xf]
  %v39 = vld [vmem:[%s1 + $0x44] sm:$0xf]
  %v40 = vld [vmem:[%s1 + $0x48] sm:$0x7]
  %v48 = vunpack.c.l.b16 %v15
  %v49 = vunpack.c.h.b16 %v15
  %v50 = vunpack.c.l.b16 %v16
  %v51 = vunpack.c.h.b16 %v16
  %v52 = vunpack.c.l.b16 %v17
  %v53 = vunpack.c.h.b16 %v17
  %v54 = vunpack.c.l.b16 %v18
  %v55 = vunpack.c.h.b16 %v18
  %v56 = vunpack.c.l.b16 %v19
  %v57 = vunpack.c.h.b16 %v19
  %v58 = vunpack.c.l.b16 %v20
  %v59 = vunpack.c.h.b16 %v20
  %v60 = vunpack.c.l.b16 %v21
  %v61 = vunpack.c.h.b16 %v21
  %v62 = vpack.c.b16 %v50, %v48
  %v63 = vpack.c.b16 %v51, %v49
  %v64 = vpack.c.b16 %v54, %v52
  %v65 = vpack.c.b16 %v55, %v53
  %v66 = vpack.c.b16 %v58, %v56
  %v67 = vpack.c.b16 %v59, %v57
  %v68 = vpack.c.b16 %v60, %v60
  %v69 = vpack.c.b16 %v61, %v61
  %v93 = vunpack.c.l.b16 %v22
  %v94 = vunpack.c.l.b16 %v23
  %v95 = vunpack.c.l.b16 %v24
  %v96 = vunpack.c.l.b16 %v25
  %v97 = vunpack.c.l.b16 %v26
  %v98 = vunpack.c.l.b16 %v27
  %v99 = vunpack.c.l.b16 %v28
  %v100 = vunpack.c.l.b16 %v29
  %v101 = vunpack.c.l.b16 %v30
  %v102 = vunpack.c.l.b16 %v31
  %v103 = vunpack.c.l.b16 %v32
  %v104 = vunpack.c.l.b16 %v33
  %v105 = vunpack.c.l.b16 %v34
  %v106 = vunpack.c.l.b16 %v35
  %v107 = vunpack.c.l.b16 %v36
  %v108 = vunpack.c.l.b16 %v37
  %v109 = vunpack.c.l.b16 %v38
  %v110 = vunpack.c.l.b16 %v39
  %v111 = vunpack.c.l.b16 %v40
  %v112 = vpack.c.b16 %v94, %v93
  %v113 = vpack.c.b16 %v96, %v95
  %v114 = vpack.c.b16 %v98, %v97
  %v115 = vpack.c.b16 %v100, %v99
  %v116 = vpack.c.b16 %v102, %v101
  %v117 = vpack.c.b16 %v104, %v103
  %v118 = vpack.c.b16 %v106, %v105
  %v119 = vpack.c.b16 %v108, %v107
  %v120 = vpack.c.b16 %v110, %v109
  %v121 = vpack.c.b16 %v111, %v111
  %vm131 = vcmask 179200
  %v133 = vsel %vm131, %v63, 0
  %v136 = vsel %vm131, %v65, 0
  %v139 = vsel %vm131, %v67, 0
  %v142 = vsel %vm131, %v69, 0
  %vm144 = vcmask 1042432
  %v146 = vsel %vm144, %v121, 0
  %148 = vmatpush.bf16.msra.mxu0 %v119
  %149 = vmatpush.bf16.msra.mxu0 %v118
  %150 = vmatpush.bf16.msra.mxu0 %v117
  %151 = vmatpush.bf16.msra.mxu0 %v116
  %152 = vmatpush.bf16.msra.mxu0 %v115
  %153 = vmatpush.bf16.msra.mxu0 %v114
  %154 = vmatpush.bf16.msra.mxu0 %v113
  %155 = vmatpush.bf16.msra.mxu0 %v112
  %156 = vmatmul.bf16.gmra.mxu0 %v62
  %v157 = vpop.f32.mrf.mxu0
  %v158 = vadd.f32 0.0, %v157
  %v159 = vpop.f32.mrf.mxu0
  %v160 = vadd.f32 0.0, %v159
  %161 = vmatmul.bf16.gmra.mxu0 %v64
  %v162 = vpop.f32.mrf.mxu0
  %v163 = vadd.f32 0.0, %v162
  %v164 = vpop.f32.mrf.mxu0
  %v165 = vadd.f32 0.0, %v164
  %166 = vmatmul.bf16.gmra.mxu0 %v66
  %v167 = vpop.f32.mrf.mxu0
  %v168 = vadd.f32 0.0, %v167
  %v169 = vpop.f32.mrf.mxu0
  %v170 = vadd.f32 0.0, %v169
  %171 = vmatmul.bf16.gmra.mxu0 %v68
  %v172 = vpop.f32.mrf.mxu0
  %v173 = vadd.f32 0.0, %v172
  %v174 = vpop.f32.mrf.mxu0
  %175 = vdwg.mxu0
  %176 = vmatpush.bf16.msra.mxu0 0
  %177 = vmatpush.bf16.msra.mxu0 0
  %178 = vmatpush.bf16.msra.mxu0 0
  %179 = vmatpush.bf16.msra.mxu0 0
  %180 = vmatpush.bf16.msra.mxu0 0
  %181 = vmatpush.bf16.msra.mxu0 0
  %182 = vmatpush.bf16.msra.mxu0 %v146
  %183 = vmatpush.bf16.msra.mxu0 %v120
  %184 = vmatmul.bf16.gmra.mxu0 %v133
  %v185 = vpop.f32.mrf.mxu0
  %v186 = vadd.f32 %v158, %v185
  %v187 = vpop.f32.mrf.mxu0
  %v188 = vadd.f32 %v160, %v187
  %189 = vmatmul.bf16.gmra.mxu0 %v136
  %v190 = vpop.f32.mrf.mxu0
  %v191 = vadd.f32 %v163, %v190
  %v192 = vpop.f32.mrf.mxu0
  %v193 = vadd.f32 %v165, %v192
  %194 = vmatmul.bf16.gmra.mxu0 %v139
  %v195 = vpop.f32.mrf.mxu0
  %v196 = vadd.f32 %v168, %v195
  %v197 = vpop.f32.mrf.mxu0
  %v198 = vadd.f32 %v170, %v197
  %199 = vmatmul.bf16.gmra.mxu0 %v142
  %v200 = vpop.f32.mrf.mxu0
  %v201 = vadd.f32 %v173, %v200
  %v202 = vpop.f32.mrf.mxu0
  %203 = vdwg.mxu0
  %s204 = scalar_lea.vmem %s0, 56
  %v205 = vld [vmem:[%s204] sm:$0xff]
  %v206 = vld [vmem:[%s204 + $0x8] sm:$0xff]
  %v207 = vld [vmem:[%s204 + $0x10] sm:$0xff]
  %v208 = vld [vmem:[%s204 + $0x18] sm:$0xff]
  %v209 = vld [vmem:[%s204 + $0x20] sm:$0xff]
  %v210 = vld [vmem:[%s204 + $0x28] sm:$0xff]
  %v211 = vld [vmem:[%s204 + $0x30] sm:$0x11]
  %v219 = vunpack.c.l.b16 %v205
  %v220 = vunpack.c.h.b16 %v205
  %v221 = vunpack.c.l.b16 %v206
  %v222 = vunpack.c.h.b16 %v206
  %v223 = vunpack.c.l.b16 %v207
  %v224 = vunpack.c.h.b16 %v207
  %v225 = vunpack.c.l.b16 %v208
  %v226 = vunpack.c.h.b16 %v208
  %v227 = vunpack.c.l.b16 %v209
  %v228 = vunpack.c.h.b16 %v209
  %v229 = vunpack.c.l.b16 %v210
  %v230 = vunpack.c.h.b16 %v210
  %v231 = vunpack.c.l.b16 %v211
  %v232 = vunpack.c.h.b16 %v211
  %v233 = vpack.c.b16 %v221, %v219
  %v234 = vpack.c.b16 %v222, %v220
  %v235 = vpack.c.b16 %v225, %v223
  %v236 = vpack.c.b16 %v226, %v224
  %v237 = vpack.c.b16 %v229, %v227
  %v238 = vpack.c.b16 %v230, %v228
  %v239 = vpack.c.b16 %v231, %v231
  %v240 = vpack.c.b16 %v232, %v232
  %v246 = vsel %vm131, %v234, 0
  %v249 = vsel %vm131, %v236, 0
  %v252 = vsel %vm131, %v238, 0
  %v255 = vsel %vm131, %v240, 0
  %257 = vmatpush.bf16.msra.mxu0 %v119
  %258 = vmatpush.bf16.msra.mxu0 %v118
  %259 = vmatpush.bf16.msra.mxu0 %v117
  %260 = vmatpush.bf16.msra.mxu0 %v116
  %261 = vmatpush.bf16.msra.mxu0 %v115
  %262 = vmatpush.bf16.msra.mxu0 %v114
  %263 = vmatpush.bf16.msra.mxu0 %v113
  %264 = vmatpush.bf16.msra.mxu0 %v112
  %265 = vmatmul.bf16.gmra.mxu0 %v233
  %v266 = vpop.f32.mrf.mxu0
  %v267 = vadd.f32 0.0, %v266
  %v268 = vpop.f32.mrf.mxu0
  %v269 = vadd.f32 0.0, %v268
  %270 = vmatmul.bf16.gmra.mxu0 %v235
  %v271 = vpop.f32.mrf.mxu0
  %v272 = vadd.f32 0.0, %v271
  %v273 = vpop.f32.mrf.mxu0
  %v274 = vadd.f32 0.0, %v273
  %275 = vmatmul.bf16.gmra.mxu0 %v237
  %v276 = vpop.f32.mrf.mxu0
  %v277 = vadd.f32 0.0, %v276
  %v278 = vpop.f32.mrf.mxu0
  %v279 = vadd.f32 0.0, %v278
  %280 = vmatmul.bf16.gmra.mxu0 %v239
  %v281 = vpop.f32.mrf.mxu0
  %v282 = vadd.f32 0.0, %v281
  %v283 = vpop.f32.mrf.mxu0
  %284 = vdwg.mxu0
  %285 = vmatpush.bf16.msra.mxu0 0
  %286 = vmatpush.bf16.msra.mxu0 0
  %287 = vmatpush.bf16.msra.mxu0 0
  %288 = vmatpush.bf16.msra.mxu0 0
  %289 = vmatpush.bf16.msra.mxu0 0
  %290 = vmatpush.bf16.msra.mxu0 0
  %291 = vmatpush.bf16.msra.mxu0 %v146
  %292 = vmatpush.bf16.msra.mxu0 %v120
  %293 = vmatmul.bf16.gmra.mxu0 %v246
  %v294 = vpop.f32.mrf.mxu0
  %v295 = vadd.f32 %v267, %v294
  %v296 = vpop.f32.mrf.mxu0
  %v297 = vadd.f32 %v269, %v296
  %298 = vmatmul.bf16.gmra.mxu0 %v249
  %v299 = vpop.f32.mrf.mxu0
  %v300 = vadd.f32 %v272, %v299
  %v301 = vpop.f32.mrf.mxu0
  %v302 = vadd.f32 %v274, %v301
  %303 = vmatmul.bf16.gmra.mxu0 %v252
  %v304 = vpop.f32.mrf.mxu0
  %v305 = vadd.f32 %v277, %v304
  %v306 = vpop.f32.mrf.mxu0
  %v307 = vadd.f32 %v279, %v306
  %308 = vmatmul.bf16.gmra.mxu0 %v255
  %v309 = vpop.f32.mrf.mxu0
  %v310 = vadd.f32 %v282, %v309
  %v311 = vpop.f32.mrf.mxu0
  %312 = vdwg.mxu0
  %v313 = vmax.f32 %v186, %v295
  %v314 = vmax.f32 %v188, %v297
  %v315 = vmax.f32 %v191, %v300
  %v316 = vmax.f32 %v193, %v302
  %v317 = vmax.f32 %v196, %v305
  %v318 = vmax.f32 %v198, %v307
  %v319 = vmax.f32 %v201, %v310
  %s320 = scalar_lea.vmem %s0, 112
  %v321 = vld [vmem:[%s320] sm:$0xff]
  %v322 = vld [vmem:[%s320 + $0x8] sm:$0xff]
  %v323 = vld [vmem:[%s320 + $0x10] sm:$0xff]
  %v324 = vld [vmem:[%s320 + $0x18] sm:$0xff]
  %v325 = vld [vmem:[%s320 + $0x20] sm:$0xff]
  %v326 = vld [vmem:[%s320 + $0x28] sm:$0xff]
  %v327 = vld [vmem:[%s320 + $0x30] sm:$0x11]
  %v335 = vunpack.c.l.b16 %v321
  %v336 = vunpack.c.h.b16 %v321
  %v337 = vunpack.c.l.b16 %v322
  %v338 = vunpack.c.h.b16 %v322
  %v339 = vunpack.c.l.b16 %v323
  %v340 = vunpack.c.h.b16 %v323
  %v341 = vunpack.c.l.b16 %v324
  %v342 = vunpack.c.h.b16 %v324
  %v343 = vunpack.c.l.b16 %v325
  %v344 = vunpack.c.h.b16 %v325
  %v345 = vunpack.c.l.b16 %v326
  %v346 = vunpack.c.h.b16 %v326
  %v347 = vunpack.c.l.b16 %v327
  %v348 = vunpack.c.h.b16 %v327
  %v349 = vpack.c.b16 %v337, %v335
  %v350 = vpack.c.b16 %v338, %v336
  %v351 = vpack.c.b16 %v341, %v339
  %v352 = vpack.c.b16 %v342, %v340
  %v353 = vpack.c.b16 %v345, %v343
  %v354 = vpack.c.b16 %v346, %v344
  %v355 = vpack.c.b16 %v347, %v347
  %v356 = vpack.c.b16 %v348, %v348
  %v362 = vsel %vm131, %v350, 0
  %v365 = vsel %vm131, %v352, 0
  %v368 = vsel %vm131, %v354, 0
  %v371 = vsel %vm131, %v356, 0
  %373 = vmatpush.bf16.msra.mxu0 %v119
  %374 = vmatpush.bf16.msra.mxu0 %v118
  %375 = vmatpush.bf16.msra.mxu0 %v117
  %376 = vmatpush.bf16.msra.mxu0 %v116
  %377 = vmatpush.bf16.msra.mxu0 %v115
  %378 = vmatpush.bf16.msra.mxu0 %v114
  %379 = vmatpush.bf16.msra.mxu0 %v113
  %380 = vmatpush.bf16.msra.mxu0 %v112
  %381 = vmatmul.bf16.gmra.mxu0 %v349
  %v382 = vpop.f32.mrf.mxu0
  %v383 = vadd.f32 0.0, %v382
  %v384 = vpop.f32.mrf.mxu0
  %v385 = vadd.f32 0.0, %v384
  %386 = vmatmul.bf16.gmra.mxu0 %v351
  %v387 = vpop.f32.mrf.mxu0
  %v388 = vadd.f32 0.0, %v387
  %v389 = vpop.f32.mrf.mxu0
  %v390 = vadd.f32 0.0, %v389
  %391 = vmatmul.bf16.gmra.mxu0 %v353
  %v392 = vpop.f32.mrf.mxu0
  %v393 = vadd.f32 0.0, %v392
  %v394 = vpop.f32.mrf.mxu0
  %v395 = vadd.f32 0.0, %v394
  %396 = vmatmul.bf16.gmra.mxu0 %v355
  %v397 = vpop.f32.mrf.mxu0
  %v398 = vadd.f32 0.0, %v397
  %v399 = vpop.f32.mrf.mxu0
  %400 = vdwg.mxu0
  %401 = vmatpush.bf16.msra.mxu0 0
  %402 = vmatpush.bf16.msra.mxu0 0
  %403 = vmatpush.bf16.msra.mxu0 0
  %404 = vmatpush.bf16.msra.mxu0 0
  %405 = vmatpush.bf16.msra.mxu0 0
  %406 = vmatpush.bf16.msra.mxu0 0
  %407 = vmatpush.bf16.msra.mxu0 %v146
  %408 = vmatpush.bf16.msra.mxu0 %v120
  %409 = vmatmul.bf16.gmra.mxu0 %v362
  %v410 = vpop.f32.mrf.mxu0
  %v411 = vadd.f32 %v383, %v410
  %v412 = vpop.f32.mrf.mxu0
  %v413 = vadd.f32 %v385, %v412
  %414 = vmatmul.bf16.gmra.mxu0 %v365
  %v415 = vpop.f32.mrf.mxu0
  %v416 = vadd.f32 %v388, %v415
  %v417 = vpop.f32.mrf.mxu0
  %v418 = vadd.f32 %v390, %v417
  %419 = vmatmul.bf16.gmra.mxu0 %v368
  %v420 = vpop.f32.mrf.mxu0
  %v421 = vadd.f32 %v393, %v420
  %v422 = vpop.f32.mrf.mxu0
  %v423 = vadd.f32 %v395, %v422
  %424 = vmatmul.bf16.gmra.mxu0 %v371
  %v425 = vpop.f32.mrf.mxu0
  %v426 = vadd.f32 %v398, %v425
  %v427 = vpop.f32.mrf.mxu0
  %428 = vdwg.mxu0
  %v429 = vmax.f32 %v313, %v411
  %v430 = vmax.f32 %v314, %v413
  %v431 = vmax.f32 %v315, %v416
  %v432 = vmax.f32 %v316, %v418
  %v433 = vmax.f32 %v317, %v421
  %v434 = vmax.f32 %v318, %v423
  %v435 = vmax.f32 %v319, %v426
  %s436 = scalar_lea.vmem %s0, 168
  %v437 = vld [vmem:[%s436] sm:$0xff]
  %v438 = vld [vmem:[%s436 + $0x8] sm:$0xff]
  %v439 = vld [vmem:[%s436 + $0x10] sm:$0xff]
  %v440 = vld [vmem:[%s436 + $0x18] sm:$0xff]
  %v441 = vld [vmem:[%s436 + $0x20] sm:$0xff]
  %v442 = vld [vmem:[%s436 + $0x28] sm:$0xff]
  %v443 = vld [vmem:[%s436 + $0x30] sm:$0x11]
  %v451 = vunpack.c.l.b16 %v437
  %v452 = vunpack.c.h.b16 %v437
  %v453 = vunpack.c.l.b16 %v438
  %v454 = vunpack.c.h.b16 %v438
  %v455 = vunpack.c.l.b16 %v439
  %v456 = vunpack.c.h.b16 %v439
  %v457 = vunpack.c.l.b16 %v440
  %v458 = vunpack.c.h.b16 %v440
  %v459 = vunpack.c.l.b16 %v441
  %v460 = vunpack.c.h.b16 %v441
  %v461 = vunpack.c.l.b16 %v442
  %v462 = vunpack.c.h.b16 %v442
  %v463 = vunpack.c.l.b16 %v443
  %v464 = vunpack.c.h.b16 %v443
  %v465 = vpack.c.b16 %v453, %v451
  %v466 = vpack.c.b16 %v454, %v452
  %v467 = vpack.c.b16 %v457, %v455
  %v468 = vpack.c.b16 %v458, %v456
  %v469 = vpack.c.b16 %v461, %v459
  %v470 = vpack.c.b16 %v462, %v460
  %v471 = vpack.c.b16 %v463, %v463
  %v472 = vpack.c.b16 %v464, %v464
  %v478 = vsel %vm131, %v466, 0
  %v481 = vsel %vm131, %v468, 0
  %v484 = vsel %vm131, %v470, 0
  %v487 = vsel %vm131, %v472, 0
  %489 = vmatpush.bf16.msra.mxu0 %v119
  %490 = vmatpush.bf16.msra.mxu0 %v118
  %491 = vmatpush.bf16.msra.mxu0 %v117
  %492 = vmatpush.bf16.msra.mxu0 %v116
  %493 = vmatpush.bf16.msra.mxu0 %v115
  %494 = vmatpush.bf16.msra.mxu0 %v114
  %495 = vmatpush.bf16.msra.mxu0 %v113
  %496 = vmatpush.bf16.msra.mxu0 %v112
  %497 = vmatmul.bf16.gmra.mxu0 %v465
  %v498 = vpop.f32.mrf.mxu0
  %v499 = vadd.f32 0.0, %v498
  %v500 = vpop.f32.mrf.mxu0
  %v501 = vadd.f32 0.0, %v500
  %502 = vmatmul.bf16.gmra.mxu0 %v467
  %v503 = vpop.f32.mrf.mxu0
  %v504 = vadd.f32 0.0, %v503
  %v505 = vpop.f32.mrf.mxu0
  %v506 = vadd.f32 0.0, %v505
  %507 = vmatmul.bf16.gmra.mxu0 %v469
  %v508 = vpop.f32.mrf.mxu0
  %v509 = vadd.f32 0.0, %v508
  %v510 = vpop.f32.mrf.mxu0
  %v511 = vadd.f32 0.0, %v510
  %512 = vmatmul.bf16.gmra.mxu0 %v471
  %v513 = vpop.f32.mrf.mxu0
  %v514 = vadd.f32 0.0, %v513
  %v515 = vpop.f32.mrf.mxu0
  %516 = vdwg.mxu0
  %517 = vmatpush.bf16.msra.mxu0 0
  %518 = vmatpush.bf16.msra.mxu0 0
  %519 = vmatpush.bf16.msra.mxu0 0
  %520 = vmatpush.bf16.msra.mxu0 0
  %521 = vmatpush.bf16.msra.mxu0 0
  %522 = vmatpush.bf16.msra.mxu0 0
  %523 = vmatpush.bf16.msra.mxu0 %v146
  %524 = vmatpush.bf16.msra.mxu0 %v120
  %525 = vmatmul.bf16.gmra.mxu0 %v478
  %v526 = vpop.f32.mrf.mxu0
  %v527 = vadd.f32 %v499, %v526
  %v528 = vpop.f32.mrf.mxu0
  %v529 = vadd.f32 %v501, %v528
  %530 = vmatmul.bf16.gmra.mxu0 %v481
  %v531 = vpop.f32.mrf.mxu0
  %v532 = vadd.f32 %v504, %v531
  %v533 = vpop.f32.mrf.mxu0
  %v534 = vadd.f32 %v506, %v533
  %535 = vmatmul.bf16.gmra.mxu0 %v484
  %v536 = vpop.f32.mrf.mxu0
  %v537 = vadd.f32 %v509, %v536
  %v538 = vpop.f32.mrf.mxu0
  %v539 = vadd.f32 %v511, %v538
  %540 = vmatmul.bf16.gmra.mxu0 %v487
  %v541 = vpop.f32.mrf.mxu0
  %v542 = vadd.f32 %v514, %v541
  %v543 = vpop.f32.mrf.mxu0
  %544 = vdwg.mxu0
  %v545 = vmax.f32 %v429, %v527
  %v546 = vmax.f32 %v430, %v529
  %v547 = vmax.f32 %v431, %v532
  %v548 = vmax.f32 %v432, %v534
  %v549 = vmax.f32 %v433, %v537
  %v550 = vmax.f32 %v434, %v539
  %v551 = vmax.f32 %v435, %v542
  %v552 = vld [vmem:[%s2] sm:$0x1]
  %v554 = vperm.slane %v552, 0
  %v556 = vadd.f32 %v545, %v554
  %v557 = vadd.f32 %v546, %v554
  %v558 = vadd.f32 %v547, %v554
  %v559 = vadd.f32 %v548, %v554
  %v560 = vadd.f32 %v549, %v554
  %v561 = vadd.f32 %v550, %v554
  %v562 = vadd.f32 %v551, %v554
  %v563 = vmax.f32 %v556, 0.0
  %v564 = vmax.f32 %v557, 0.0
  %v565 = vmax.f32 %v558, 0.0
  %v566 = vmax.f32 %v559, 0.0
  %v567 = vmax.f32 %v560, 0.0
  %v568 = vmax.f32 %v561, 0.0
  %v569 = vmax.f32 %v562, 0.0
  %vm570 = vcmask 121856
  %571 = vst.msk [vmem:[%s3] sm:$0xff] %vm570, %v563
  %572 = vst.msk [vmem:[%s3 + $0x8] sm:$0xff] %vm570, %v564
  %573 = vst.msk [vmem:[%s3 + $0x10] sm:$0xff] %vm570, %v565
  %574 = vst.msk [vmem:[%s3 + $0x18] sm:$0xff] %vm570, %v566
  %575 = vst.msk [vmem:[%s3 + $0x20] sm:$0xff] %vm570, %v567
  %576 = vst.msk [vmem:[%s3 + $0x28] sm:$0xff] %vm570, %v568
  %vm577 = vcmask 115712
  %578 = vst.msk [vmem:[%s3 + $0x30] sm:$0x3] %vm577, %v569
  // Predicated region
  $region14: #{end_to_end_forward.4} parent=0 // pred_check
    _
  $region15: #{end_to_end_forward.4} parent=0 // pred_check_branch
    %580 = sbr.rel (0) target = $region17
  $region16: #{end_to_end_forward.4} parent=0 // pred_region
    _
  $region17: #{end_to_end_forward.4} parent=0 // pred_fallthru
    _
  // Predicated region
  $region18: #{end_to_end_forward.4} parent=0 // pred_check
    _
  $region19: #{end_to_end_forward.4} parent=0 // pred_check_branch
    %582 = sbr.rel (0) target = $region21
  $region20: #{end_to_end_forward.4} parent=0 // pred_region
    _
  $region21: #{end_to_end_forward.4} parent=0 // pred_fallthru
    _

// kernel: end_to_end_forward.5
$region0: #{end_to_end_forward.5}
  #allocation0 [shape = 'u32[]', space=smem, size = 0x4, offset = 0x4, fixed_abs, tag = 'smem constant byte address 0x4 - core index']
  #allocation1 [shape = 'u32[72,128]{1,0:T(1,128)}', space=vmem, size = 0x9000, scoped, tag = 'internal scratch']
  %s0 = inlined_call_operand.vmem [shape: f32[2,15,25], index: 0, kind: input, shape index: {}]
  %s1 = inlined_call_operand.vmem [shape: f32[2,25,15], index: 1, kind: input, shape index: {}]
  %s2 = inlined_call_operand.vmem [shape: f32[2,15,1], index: 2, kind: input, shape index: {}]
  %s3 = inlined_call_operand.vmem [shape: f32[2,1,15], index: 3, kind: input, shape index: {}]
  %s4 = inlined_call_operand.vmem [shape: f32[15,15,160], index: 4, kind: input, shape index: {}]
  %s5 = inlined_call_operand.vmem [shape: f32[15,160], index: 5, kind: input, shape index: {}]
  %s6 = inlined_call_operand.vmem [shape: f32[1,160], index: 6, kind: input, shape index: {}]
  %s7 = inlined_call_operand.vmem [shape: bf16[160,3072], index: 7, kind: input, shape index: {}]
  %s8 = inlined_call_operand.vmem [shape: f32[1,3072], index: 8, kind: input, shape index: {}]
  %s9 = inlined_call_operand.vmem [shape: bf16[3072,10], index: 9, kind: input, shape index: {}]
  %s10 = inlined_call_operand.vmem [shape: f32[1,10], index: 10, kind: input, shape index: {}]
  %s11 = inlined_call_operand.hbm [shape: f32[2,10], index: 11, kind: output, shape index: {}]
  %s12 = sld [smem:[#allocation0]]
  $region54: #{end_to_end_forward.5} parent=0
    _
  %s14 = ssub.s32 1, %s12
  %s15 = scalar_select 0, %s14, %s12
  $region1: #{end_to_end_forward.5} parent=0
    #allocation2 [shape = 'u8[1024]{0}', space=vmem, size = 0x400, scoped, tag = 'output window, operand 0, single buffered']
    #allocation3 [shape = 's32[1]{0}', space=sflag, size = 0x4, scoped, tag = 'scoped memory for end_to_end_forward.5']
    %16 = vsyncpa [#allocation3], 0
    // Predicated region
    $region2: #{end_to_end_forward.5} parent=1 // pred_check
      _
    $region3: #{end_to_end_forward.5} parent=1 // pred_check_branch
      %18 = sbr.rel (0) target = $region5
    $region4: #{end_to_end_forward.5} parent=1 // pred_region
      _
    $region5: #{end_to_end_forward.5} parent=1 // pred_fallthru
      _
    // Predicated region
    $region6: #{end_to_end_forward.5} parent=1 // pred_check
      _
    $region7: #{end_to_end_forward.5} parent=1 // pred_check_branch
      %20 = sbr.rel (0) target = $region9
    $region8: #{end_to_end_forward.5} parent=1 // pred_region
      _
    $region9: #{end_to_end_forward.5} parent=1 // pred_fallthru
      _
    // Predicated region
    $region10: #{end_to_end_forward.5} parent=1 // pred_check
      _
    $region11: #{end_to_end_forward.5} parent=1 // pred_check_branch
      %22 = sbr.rel (0) target = $region13
    $region12: #{end_to_end_forward.5} parent=1 // pred_region
      _
    $region13: #{end_to_end_forward.5} parent=1 // pred_fallthru
      _
    // Predicated region
    $region14: #{end_to_end_forward.5} parent=1 // pred_check
      _
    $region15: #{end_to_end_forward.5} parent=1 // pred_check_branch
      %24 = sbr.rel (0) target = $region17
    $region16: #{end_to_end_forward.5} parent=1 // pred_region
      _
    $region17: #{end_to_end_forward.5} parent=1 // pred_fallthru
      _
    // Predicated region
    $region18: #{end_to_end_forward.5} parent=1 // pred_check
      _
    $region19: #{end_to_end_forward.5} parent=1 // pred_check_branch
      %26 = sbr.rel (0) target = $region21
    $region20: #{end_to_end_forward.5} parent=1 // pred_region
      _
    $region21: #{end_to_end_forward.5} parent=1 // pred_fallthru
      _
    // Predicated region
    $region22: #{end_to_end_forward.5} parent=1 // pred_check
      _
    $region23: #{end_to_end_forward.5} parent=1 // pred_check_branch
      %28 = sbr.rel (0) target = $region25
    $region24: #{end_to_end_forward.5} parent=1 // pred_region
      _
    $region25: #{end_to_end_forward.5} parent=1 // pred_fallthru
      _
    // Predicated region
    $region26: #{end_to_end_forward.5} parent=1 // pred_check
      _
    $region27: #{end_to_end_forward.5} parent=1 // pred_check_branch
      %30 = sbr.rel (0) target = $region29
    $region28: #{end_to_end_forward.5} parent=1 // pred_region
      _
    $region29: #{end_to_end_forward.5} parent=1 // pred_fallthru
      _
    // Predicated region
    $region30: #{end_to_end_forward.5} parent=1 // pred_check
      _
    $region31: #{end_to_end_forward.5} parent=1 // pred_check_branch
      %32 = sbr.rel (0) target = $region33
    $region32: #{end_to_end_forward.5} parent=1 // pred_region
      _
    $region33: #{end_to_end_forward.5} parent=1 // pred_fallthru
      _
    // Predicated region
    $region34: #{end_to_end_forward.5} parent=1 // pred_check
      _
    $region35: #{end_to_end_forward.5} parent=1 // pred_check_branch
      %34 = sbr.rel (0) target = $region37
    $region36: #{end_to_end_forward.5} parent=1 // pred_region
      _
    $region37: #{end_to_end_forward.5} parent=1 // pred_fallthru
      _
    // Predicated region
    $region38: #{end_to_end_forward.5} parent=1 // pred_check
      _
    $region39: #{end_to_end_forward.5} parent=1 // pred_check_branch
      %36 = sbr.rel (0) target = $region41
    $region40: #{end_to_end_forward.5} parent=1 // pred_region
      _
    $region41: #{end_to_end_forward.5} parent=1 // pred_fallthru
      _
    // Predicated region
    $region42: #{end_to_end_forward.5} parent=1 // pred_check
      _
    $region43: #{end_to_end_forward.5} parent=1 // pred_check_branch
      %38 = sbr.rel (0) target = $region45
    $region44: #{end_to_end_forward.5} parent=1 // pred_region
      _
    $region45: #{end_to_end_forward.5} parent=1 // pred_fallthru
      _
    %v40 = vld [vmem:[%s0] sm:$0xff]
    %v41 = vld [vmem:[%s0 + $0x8] sm:$0x7f]
    %v42 = vld [vmem:[%s1] sm:$0xff]
    %v43 = vld [vmem:[%s1 + $0x8] sm:$0xff]
    %v44 = vld [vmem:[%s1 + $0x10] sm:$0xff]
    %v45 = vld [vmem:[%s1 + $0x18] sm:$0x1]
    %v46 = vld [vmem:[%s2] sm:$0xff]
    %v47 = vld [vmem:[%s2 + $0x8] sm:$0x7f]
    %v48 = vld [vmem:[%s3] sm:$0x1]
    %vm49 = vcmask 203776
    %v51 = vsel %vm49, %v40, 0
    %v54 = vsel %vm49, %v41, 0
    %vm56 = vcmask 1040384
    %v58 = vsel %vm56, %v45, 0
    %60 = vmatpush.msra.mxu0 0.0
    %61 = vmatpush.msra.mxu0 0.0
    %62 = vmatpush.msra.mxu0 0.0
    %63 = vmatpush.msra.mxu0 0.0
    %64 = vmatpush.msra.mxu0 0.0
    %65 = vmatpush.msra.mxu0 0.0
    %66 = vmatpush.msra.mxu0 0.0
    %67 = vmatpush.msra.mxu0 0.0
    %68 = vmatpush.msra.mxu0 0.0
    %69 = vmatpush.msra.mxu0 0.0
    %70 = vmatpush.msra.mxu0 0.0
    %71 = vmatpush.msra.mxu0 0.0
    %72 = vmatpush.msra.mxu0 %v58
    %73 = vmatpush.msra.mxu0 %v44
    %74 = vmatpush.msra.mxu0 %v43
    %75 = vmatpush.msra.mxu0 %v42
    %76 = vmatmul.f32.gmra.mxu0 %v51
    %v77 = vpop.f32.mrf.mxu0
    %v78 = vadd.f32 0.0, %v77
    %79 = vmatmul.f32.gmra.mxu0 %v54
    %v80 = vpop.f32.mrf.mxu0
    %v81 = vadd.f32 0.0, %v80
    %82 = vdwg.mxu0
    %v83 = vmul.f32 %v78, 0.04
    %v84 = vmul.f32 %v81, 0.04
    %86 = vset.pattern.permute.xlu0 0
    %87 = vperm.xlu0 %86, %v46
    %v88 = vpop.permute.xlu0 %87
    %91 = vset.pattern.permute.xlu0 0
    %92 = vperm.xlu0 %91, %v47
    %v93 = vpop.permute.xlu0 %92
    %v96 = vperm.slane %v48, 0
    %v98 = vmul.f32 %v88, %v96
    %v99 = vmul.f32 %v93, %v96
    %v100 = vmul.f32 %v98, 0.09
    %v101 = vmul.f32 %v99, 0.09
    %v102 = vadd.f32 %v83, %v100
    %v103 = vadd.f32 %v84, %v101
    %v104 = vld [vmem:[%s5] sm:$0xff]
    %v105 = vld [vmem:[%s5 + $0x8] sm:$0xff]
    %v106 = vld [vmem:[%s5 + $0x10] sm:$0x7f]
    %v107 = vld [vmem:[%s5 + $0x18] sm:$0x7f]
    %v108 = vld [vmem:[%s6] sm:$0x3]
    %v110 = vperm.slane %v108, 0
    %v111 = vperm.slane %v108, 1
    %vm114 = vcmask 121856
    %v115 = vsel %vm114, %v48, 0
    %vm117 = vcmask 1046528
    %v119 = vsel %vm117, %v106, 0
    %v122 = vsel %vm117, %v107, 0
    %124 = vmatpush.msra.mxu0 0.0
    %125 = vmatpush.msra.mxu0 0.0
    %126 = vmatpush.msra.mxu0 0.0
    %127 = vmatpush.msra.mxu0 0.0
    %128 = vmatpush.msra.mxu0 0.0
    %129 = vmatpush.msra.mxu0 0.0
    %130 = vmatpush.msra.mxu0 0.0
    %131 = vmatpush.msra.mxu0 0.0
    %132 = vmatpush.msra.mxu0 0.0
    %133 = vmatpush.msra.mxu0 0.0
    %134 = vmatpush.msra.mxu0 0.0
    %135 = vmatpush.msra.mxu0 0.0
    %136 = vmatpush.msra.mxu0 0.0
    %137 = vmatpush.msra.mxu0 0.0
    %138 = vmatpush.msra.mxu0 %v119
    %139 = vmatpush.msra.mxu0 %v104
    %140 = vmatmul.f32.gmra.mxu0 %v115
    %v141 = vpop.f32.mrf.mxu0
    %v142 = vadd.f32 %v110, %v141
    %143 = vdwg.mxu0
    %144 = vmatpush.msra.mxu0 0.0
    %145 = vmatpush.msra.mxu0 0.0
    %146 = vmatpush.msra.mxu0 0.0
    %147 = vmatpush.msra.mxu0 0.0
    %148 = vmatpush.msra.mxu0 0.0
    %149 = vmatpush.msra.mxu0 0.0
    %150 = vmatpush.msra.mxu0 0.0
    %151 = vmatpush.msra.mxu0 0.0
    %152 = vmatpush.msra.mxu0 0.0
    %153 = vmatpush.msra.mxu0 0.0
    %154 = vmatpush.msra.mxu0 0.0
    %155 = vmatpush.msra.mxu0 0.0
    %156 = vmatpush.msra.mxu0 0.0
    %157 = vmatpush.msra.mxu0 0.0
    %158 = vmatpush.msra.mxu0 %v122
    %159 = vmatpush.msra.mxu0 %v105
    %160 = vmatmul.f32.gmra.mxu0 %v115
    %v161 = vpop.f32.mrf.mxu0
    %v162 = vadd.f32 %v111, %v161
    %163 = vdwg.mxu0
    %v164 = vld [vmem:[%s4] sm:$0xff]
    %v165 = vld [vmem:[%s4 + $0x8] sm:$0xff]
    %v166 = vld [vmem:[%s4 + $0x10] sm:$0x7f]
    %v167 = vld [vmem:[%s4 + $0x18] sm:$0x7f]
    %v169 = vsel %vm114, %v102, 0
    %v172 = vsel %vm117, %v166, 0
    %v175 = vsel %vm117, %v167, 0
    %177 = vmatpush.msra.mxu0 0.0
    %178 = vmatpush.msra.mxu0 0.0
    %179 = vmatpush.msra.mxu0 0.0
    %180 = vmatpush.msra.mxu0 0.0
    %181 = vmatpush.msra.mxu0 0.0
    %182 = vmatpush.msra.mxu0 0.0
    %183 = vmatpush.msra.mxu0 0.0
    %184 = vmatpush.msra.mxu0 0.0
    %185 = vmatpush.msra.mxu0 0.0
    %186 = vmatpush.msra.mxu0 0.0
    %187 = vmatpush.msra.mxu0 0.0
    %188 = vmatpush.msra.mxu0 0.0
    %189 = vmatpush.msra.mxu0 0.0
    %190 = vmatpush.msra.mxu0 0.0
    %191 = vmatpush.msra.mxu0 %v172
    %192 = vmatpush.msra.mxu0 %v164
    %193 = vmatmul.f32.gmra.mxu0 %v169
    %v194 = vpop.f32.mrf.mxu0
    %v195 = vadd.f32 0.0, %v194
    %196 = vdwg.mxu0
    %197 = vmatpush.msra.mxu0 0.0
    %198 = vmatpush.msra.mxu0 0.0
    %199 = vmatpush.msra.mxu0 0.0
    %200 = vmatpush.msra.mxu0 0.0
    %201 = vmatpush.msra.mxu0 0.0
    %202 = vmatpush.msra.mxu0 0.0
    %203 = vmatpush.msra.mxu0 0.0
    %204 = vmatpush.msra.mxu0 0.0
    %205 = vmatpush.msra.mxu0 0.0
    %206 = vmatpush.msra.mxu0 0.0
    %207 = vmatpush.msra.mxu0 0.0
    %208 = vmatpush.msra.mxu0 0.0
    %209 = vmatpush.msra.mxu0 0.0
    %210 = vmatpush.msra.mxu0 0.0
    %211 = vmatpush.msra.mxu0 %v175
    %212 = vmatpush.msra.mxu0 %v165
    %213 = vmatmul.f32.gmra.mxu0 %v169
    %v214 = vpop.f32.mrf.mxu0
    %v215 = vadd.f32 0.0, %v214
    %216 = vdwg.mxu0
    %v217 = vadd.f32 %v142, %v195
    %v218 = vadd.f32 %v162, %v215
    %s219 = scalar_lea.vmem %s4, 32
    %v220 = vld [vmem:[%s219] sm:$0xff]
    %v221 = vld [vmem:[%s219 + $0x8] sm:$0xff]
    %v222 = vld [vmem:[%s219 + $0x10] sm:$0x7f]
    %v223 = vld [vmem:[%s219 + $0x18] sm:$0x7f]
    %v224 = vrot.slane %v102, 1
    %v225 = vsel %vm114, %v224, 0
    %v228 = vsel %vm117, %v222, 0
    %v231 = vsel %vm117, %v223, 0
    %233 = vmatpush.msra.mxu0 0.0
    %234 = vmatpush.msra.mxu0 0.0
    %235 = vmatpush.msra.mxu0 0.0
    %236 = vmatpush.msra.mxu0 0.0
    %237 = vmatpush.msra.mxu0 0.0
    %238 = vmatpush.msra.mxu0 0.0
    %239 = vmatpush.msra.mxu0 0.0
    %240 = vmatpush.msra.mxu0 0.0
    %241 = vmatpush.msra.mxu0 0.0
    %242 = vmatpush.msra.mxu0 0.0
    %243 = vmatpush.msra.mxu0 0.0
    %244 = vmatpush.msra.mxu0 0.0
    %245 = vmatpush.msra.mxu0 0.0
    %246 = vmatpush.msra.mxu0 0.0
    %247 = vmatpush.msra.mxu0 %v228
    %248 = vmatpush.msra.mxu0 %v220
    %249 = vmatmul.f32.gmra.mxu0 %v225
    %v250 = vpop.f32.mrf.mxu0
    %v251 = vadd.f32 0.0, %v250
    %252 = vdwg.mxu0
    %253 = vmatpush.msra.mxu0 0.0
    %254 = vmatpush.msra.mxu0 0.0
    %255 = vmatpush.msra.mxu0 0.0
    %256 = vmatpush.msra.mxu0 0.0
    %257 = vmatpush.msra.mxu0 0.0
    %258 = vmatpush.msra.mxu0 0.0
    %259 = vmatpush.msra.mxu0 0.0
    %260 = vmatpush.msra.mxu0 0.0
    %261 = vmatpush.msra.mxu0 0.0
    %262 = vmatpush.msra.mxu0 0.0
    %263 = vmatpush.msra.mxu0 0.0
    %264 = vmatpush.msra.mxu0 0.0
    %265 = vmatpush.msra.mxu0 0.0
    %266 = vmatpush.msra.mxu0 0.0
    %267 = vmatpush.msra.mxu0 %v231
    %268 = vmatpush.msra.mxu0 %v221
    %269 = vmatmul.f32.gmra.mxu0 %v225
    %v270 = vpop.f32.mrf.mxu0
    %v271 = vadd.f32 0.0, %v270
    %272 = vdwg.mxu0
    %v273 = vadd.f32 %v217, %v251
    %v274 = vadd.f32 %v218, %v271
    %s275 = scalar_lea.vmem %s4, 64
    %v276 = vld [vmem:[%s275] sm:$0xff]
    %v277 = vld [vmem:[%s275 + $0x8] sm:$0xff]
    %v278 = vld [vmem:[%s275 + $0x10] sm:$0x7f]
    %v279 = vld [vmem:[%s275 + $0x18] sm:$0x7f]
    %v280 = vrot.slane %v102, 2
    %v281 = vsel %vm114, %v280, 0
    %v284 = vsel %vm117, %v278, 0
    %v287 = vsel %vm117, %v279, 0
    %289 = vmatpush.msra.mxu0 0.0
    %290 = vmatpush.msra.mxu0 0.0
    %291 = vmatpush.msra.mxu0 0.0
    %292 = vmatpush.msra.mxu0 0.0
    %293 = vmatpush.msra.mxu0 0.0
    %294 = vmatpush.msra.mxu0 0.0
    %295 = vmatpush.msra.mxu0 0.0
    %296 = vmatpush.msra.mxu0 0.0
    %297 = vmatpush.msra.mxu0 0.0
    %298 = vmatpush.msra.mxu0 0.0
    %299 = vmatpush.msra.mxu0 0.0
    %300 = vmatpush.msra.mxu0 0.0
    %301 = vmatpush.msra.mxu0 0.0
    %302 = vmatpush.msra.mxu0 0.0
    %303 = vmatpush.msra.mxu0 %v284
    %304 = vmatpush.msra.mxu0 %v276
    %305 = vmatmul.f32.gmra.mxu0 %v281
    %v306 = vpop.f32.mrf.mxu0
    %v307 = vadd.f32 0.0, %v306
    %308 = vdwg.mxu0
    %309 = vmatpush.msra.mxu0 0.0
    %310 = vmatpush.msra.mxu0 0.0
    %311 = vmatpush.msra.mxu0 0.0
    %312 = vmatpush.msra.mxu0 0.0
    %313 = vmatpush.msra.mxu0 0.0
    %314 = vmatpush.msra.mxu0 0.0
    %315 = vmatpush.msra.mxu0 0.0
    %316 = vmatpush.msra.mxu0 0.0
    %317 = vmatpush.msra.mxu0 0.0
    %318 = vmatpush.msra.mxu0 0.0
    %319 = vmatpush.msra.mxu0 0.0
    %320 = vmatpush.msra.mxu0 0.0
    %321 = vmatpush.msra.mxu0 0.0
    %322 = vmatpush.msra.mxu0 0.0
    %323 = vmatpush.msra.mxu0 %v287
    %324 = vmatpush.msra.mxu0 %v277
    %325 = vmatmul.f32.gmra.mxu0 %v281
    %v326 = vpop.f32.mrf.mxu0
    %v327 = vadd.f32 0.0, %v326
    %328 = vdwg.mxu0
    %v329 = vadd.f32 %v273, %v307
    %v330 = vadd.f32 %v274, %v327
    %s331 = scalar_lea.vmem %s4, 96
    %v332 = vld [vmem:[%s331] sm:$0xff]
    %v333 = vld [vmem:[%s331 + $0x8] sm:$0xff]
    %v334 = vld [vmem:[%s331 + $0x10] sm:$0x7f]
    %v335 = vld [vmem:[%s331 + $0x18] sm:$0x7f]
    %v336 = vrot.slane %v102, 3
    %v337 = vsel %vm114, %v336, 0
    %v340 = vsel %vm117, %v334, 0
    %v343 = vsel %vm117, %v335, 0
    %345 = vmatpush.msra.mxu0 0.0
    %346 = vmatpush.msra.mxu0 0.0
    %347 = vmatpush.msra.mxu0 0.0
    %348 = vmatpush.msra.mxu0 0.0
    %349 = vmatpush.msra.mxu0 0.0
    %350 = vmatpush.msra.mxu0 0.0
    %351 = vmatpush.msra.mxu0 0.0
    %352 = vmatpush.msra.mxu0 0.0
    %353 = vmatpush.msra.mxu0 0.0
    %354 = vmatpush.msra.mxu0 0.0
    %355 = vmatpush.msra.mxu0 0.0
    %356 = vmatpush.msra.mxu0 0.0
    %357 = vmatpush.msra.mxu0 0.0
    %358 = vmatpush.msra.mxu0 0.0
    %359 = vmatpush.msra.mxu0 %v340
    %360 = vmatpush.msra.mxu0 %v332
    %361 = vmatmul.f32.gmra.mxu0 %v337
    %v362 = vpop.f32.mrf.mxu0
    %v363 = vadd.f32 0.0, %v362
    %364 = vdwg.mxu0
    %365 = vmatpush.msra.mxu0 0.0
    %366 = vmatpush.msra.mxu0 0.0
    %367 = vmatpush.msra.mxu0 0.0
    %368 = vmatpush.msra.mxu0 0.0
    %369 = vmatpush.msra.mxu0 0.0
    %370 = vmatpush.msra.mxu0 0.0
    %371 = vmatpush.msra.mxu0 0.0
    %372 = vmatpush.msra.mxu0 0.0
    %373 = vmatpush.msra.mxu0 0.0
    %374 = vmatpush.msra.mxu0 0.0
    %375 = vmatpush.msra.mxu0 0.0
    %376 = vmatpush.msra.mxu0 0.0
    %377 = vmatpush.msra.mxu0 0.0
    %378 = vmatpush.msra.mxu0 0.0
    %379 = vmatpush.msra.mxu0 %v343
    %380 = vmatpush.msra.mxu0 %v333
    %381 = vmatmul.f32.gmra.mxu0 %v337
    %v382 = vpop.f32.mrf.mxu0
    %v383 = vadd.f32 0.0, %v382
    %384 = vdwg.mxu0
    %v385 = vadd.f32 %v329, %v363
    %v386 = vadd.f32 %v330, %v383
    %s387 = scalar_lea.vmem %s4, 128
    %v388 = vld [vmem:[%s387] sm:$0xff]
    %v389 = vld [vmem:[%s387 + $0x8] sm:$0xff]
    %v390 = vld [vmem:[%s387 + $0x10] sm:$0x7f]
    %v391 = vld [vmem:[%s387 + $0x18] sm:$0x7f]
    %v392 = vrot.slane %v102, 4
    %v393 = vsel %vm114, %v392, 0
    %v396 = vsel %vm117, %v390, 0
    %v399 = vsel %vm117, %v391, 0
    %401 = vmatpush.msra.mxu0 0.0
    %402 = vmatpush.msra.mxu0 0.0
    %403 = vmatpush.msra.mxu0 0.0
    %404 = vmatpush.msra.mxu0 0.0
    %405 = vmatpush.msra.mxu0 0.0
    %406 = vmatpush.msra.mxu0 0.0
    %407 = vmatpush.msra.mxu0 0.0
    %408 = vmatpush.msra.mxu0 0.0
    %409 = vmatpush.msra.mxu0 0.0
    %410 = vmatpush.msra.mxu0 0.0
    %411 = vmatpush.msra.mxu0 0.0
    %412 = vmatpush.msra.mxu0 0.0
    %413 = vmatpush.msra.mxu0 0.0
    %414 = vmatpush.msra.mxu0 0.0
    %415 = vmatpush.msra.mxu0 %v396
    %416 = vmatpush.msra.mxu0 %v388
    %417 = vmatmul.f32.gmra.mxu0 %v393
    %v418 = vpop.f32.mrf.mxu0
    %v419 = vadd.f32 0.0, %v418
    %420 = vdwg.mxu0
    %421 = vmatpush.msra.mxu0 0.0
    %422 = vmatpush.msra.mxu0 0.0
    %423 = vmatpush.msra.mxu0 0.0
    %424 = vmatpush.msra.mxu0 0.0
    %425 = vmatpush.msra.mxu0 0.0
    %426 = vmatpush.msra.mxu0 0.0
    %427 = vmatpush.msra.mxu0 0.0
    %428 = vmatpush.msra.mxu0 0.0
    %429 = vmatpush.msra.mxu0 0.0
    %430 = vmatpush.msra.mxu0 0.0
    %431 = vmatpush.msra.mxu0 0.0
    %432 = vmatpush.msra.mxu0 0.0
    %433 = vmatpush.msra.mxu0 0.0
    %434 = vmatpush.msra.mxu0 0.0
    %435 = vmatpush.msra.mxu0 %v399
    %436 = vmatpush.msra.mxu0 %v389
    %437 = vmatmul.f32.gmra.mxu0 %v393
    %v438 = vpop.f32.mrf.mxu0
    %v439 = vadd.f32 0.0, %v438
    %440 = vdwg.mxu0
    %v441 = vadd.f32 %v385, %v419
    %v442 = vadd.f32 %v386, %v439
    %s443 = scalar_lea.vmem %s4, 160
    %v444 = vld [vmem:[%s443] sm:$0xff]
    %v445 = vld [vmem:[%s443 + $0x8] sm:$0xff]
    %v446 = vld [vmem:[%s443 + $0x10] sm:$0x7f]
    %v447 = vld [vmem:[%s443 + $0x18] sm:$0x7f]
    %v448 = vrot.slane %v102, 5
    %v449 = vsel %vm114, %v448, 0
    %v452 = vsel %vm117, %v446, 0
    %v455 = vsel %vm117, %v447, 0
    %457 = vmatpush.msra.mxu0 0.0
    %458 = vmatpush.msra.mxu0 0.0
    %459 = vmatpush.msra.mxu0 0.0
    %460 = vmatpush.msra.mxu0 0.0
    %461 = vmatpush.msra.mxu0 0.0
    %462 = vmatpush.msra.mxu0 0.0
    %463 = vmatpush.msra.mxu0 0.0
    %464 = vmatpush.msra.mxu0 0.0
    %465 = vmatpush.msra.mxu0 0.0
    %466 = vmatpush.msra.mxu0 0.0
    %467 = vmatpush.msra.mxu0 0.0
    %468 = vmatpush.msra.mxu0 0.0
    %469 = vmatpush.msra.mxu0 0.0
    %470 = vmatpush.msra.mxu0 0.0
    %471 = vmatpush.msra.mxu0 %v452
    %472 = vmatpush.msra.mxu0 %v444
    %473 = vmatmul.f32.gmra.mxu0 %v449
    %v474 = vpop.f32.mrf.mxu0
    %v475 = vadd.f32 0.0, %v474
    %476 = vdwg.mxu0
    %477 = vmatpush.msra.mxu0 0.0
    %478 = vmatpush.msra.mxu0 0.0
    %479 = vmatpush.msra.mxu0 0.0
    %480 = vmatpush.msra.mxu0 0.0
    %481 = vmatpush.msra.mxu0 0.0
    %482 = vmatpush.msra.mxu0 0.0
    %483 = vmatpush.msra.mxu0 0.0
    %484 = vmatpush.msra.mxu0 0.0
    %485 = vmatpush.msra.mxu0 0.0
    %486 = vmatpush.msra.mxu0 0.0
    %487 = vmatpush.msra.mxu0 0.0
    %488 = vmatpush.msra.mxu0 0.0
    %489 = vmatpush.msra.mxu0 0.0
    %490 = vmatpush.msra.mxu0 0.0
    %491 = vmatpush.msra.mxu0 %v455
    %492 = vmatpush.msra.mxu0 %v445
    %493 = vmatmul.f32.gmra.mxu0 %v449
    %v494 = vpop.f32.mrf.mxu0
    %v495 = vadd.f32 0.0, %v494
    %496 = vdwg.mxu0
    %v497 = vadd.f32 %v441, %v475
    %v498 = vadd.f32 %v442, %v495
    %s499 = scalar_lea.vmem %s4, 192
    %v500 = vld [vmem:[%s499] sm:$0xff]
    %v501 = vld [vmem:[%s499 + $0x8] sm:$0xff]
    %v502 = vld [vmem:[%s499 + $0x10] sm:$0x7f]
    %v503 = vld [vmem:[%s499 + $0x18] sm:$0x7f]
    %v504 = vrot.slane %v102, 6
    %v505 = vsel %vm114, %v504, 0
    %v508 = vsel %vm117, %v502, 0
    %v511 = vsel %vm117, %v503, 0
    %513 = vmatpush.msra.mxu0 0.0
    %514 = vmatpush.msra.mxu0 0.0
    %515 = vmatpush.msra.mxu0 0.0
    %516 = vmatpush.msra.mxu0 0.0
    %517 = vmatpush.msra.mxu0 0.0
    %518 = vmatpush.msra.mxu0 0.0
    %519 = vmatpush.msra.mxu0 0.0
    %520 = vmatpush.msra.mxu0 0.0
    %521 = vmatpush.msra.mxu0 0.0
    %522 = vmatpush.msra.mxu0 0.0
    %523 = vmatpush.msra.mxu0 0.0
    %524 = vmatpush.msra.mxu0 0.0
    %525 = vmatpush.msra.mxu0 0.0
    %526 = vmatpush.msra.mxu0 0.0
    %527 = vmatpush.msra.mxu0 %v508
    %528 = vmatpush.msra.mxu0 %v500
    %529 = vmatmul.f32.gmra.mxu0 %v505
    %v530 = vpop.f32.mrf.mxu0
    %v531 = vadd.f32 0.0, %v530
    %532 = vdwg.mxu0
    %533 = vmatpush.msra.mxu0 0.0
    %534 = vmatpush.msra.mxu0 0.0
    %535 = vmatpush.msra.mxu0 0.0
    %536 = vmatpush.msra.mxu0 0.0
    %537 = vmatpush.msra.mxu0 0.0
    %538 = vmatpush.msra.mxu0 0.0
    %539 = vmatpush.msra.mxu0 0.0
    %540 = vmatpush.msra.mxu0 0.0
    %541 = vmatpush.msra.mxu0 0.0
    %542 = vmatpush.msra.mxu0 0.0
    %543 = vmatpush.msra.mxu0 0.0
    %544 = vmatpush.msra.mxu0 0.0
    %545 = vmatpush.msra.mxu0 0.0
    %546 = vmatpush.msra.mxu0 0.0
    %547 = vmatpush.msra.mxu0 %v511
    %548 = vmatpush.msra.mxu0 %v501
    %549 = vmatmul.f32.gmra.mxu0 %v505
    %v550 = vpop.f32.mrf.mxu0
    %v551 = vadd.f32 0.0, %v550
    %552 = vdwg.mxu0
    %v553 = vadd.f32 %v497, %v531
    %v554 = vadd.f32 %v498, %v551
    %s555 = scalar_lea.vmem %s4, 224
    %v556 = vld [vmem:[%s555] sm:$0xff]
    %v557 = vld [vmem:[%s555 + $0x8] sm:$0xff]
    %v558 = vld [vmem:[%s555 + $0x10] sm:$0x7f]
    %v559 = vld [vmem:[%s555 + $0x18] sm:$0x7f]
    %v560 = vrot.slane %v102, 7
    %v561 = vsel %vm114, %v560, 0
    %v564 = vsel %vm117, %v558, 0
    %v567 = vsel %vm117, %v559, 0
    %569 = vmatpush.msra.mxu0 0.0
    %570 = vmatpush.msra.mxu0 0.0
    %571 = vmatpush.msra.mxu0 0.0
    %572 = vmatpush.msra.mxu0 0.0
    %573 = vmatpush.msra.mxu0 0.0
    %574 = vmatpush.msra.mxu0 0.0
    %575 = vmatpush.msra.mxu0 0.0
    %576 = vmatpush.msra.mxu0 0.0
    %577 = vmatpush.msra.mxu0 0.0
    %578 = vmatpush.msra.mxu0 0.0
    %579 = vmatpush.msra.mxu0 0.0
    %580 = vmatpush.msra.mxu0 0.0
    %581 = vmatpush.msra.mxu0 0.0
    %582 = vmatpush.msra.mxu0 0.0
    %583 = vmatpush.msra.mxu0 %v564
    %584 = vmatpush.msra.mxu0 %v556
    %585 = vmatmul.f32.gmra.mxu0 %v561
    %v586 = vpop.f32.mrf.mxu0
    %v587 = vadd.f32 0.0, %v586
    %588 = vdwg.mxu0
    %589 = vmatpush.msra.mxu0 0.0
    %590 = vmatpush.msra.mxu0 0.0
    %591 = vmatpush.msra.mxu0 0.0
    %592 = vmatpush.msra.mxu0 0.0
    %593 = vmatpush.msra.mxu0 0.0
    %594 = vmatpush.msra.mxu0 0.0
    %595 = vmatpush.msra.mxu0 0.0
    %596 = vmatpush.msra.mxu0 0.0
    %597 = vmatpush.msra.mxu0 0.0
    %598 = vmatpush.msra.mxu0 0.0
    %599 = vmatpush.msra.mxu0 0.0
    %600 = vmatpush.msra.mxu0 0.0
    %601 = vmatpush.msra.mxu0 0.0
    %602 = vmatpush.msra.mxu0 0.0
    %603 = vmatpush.msra.mxu0 %v567
    %604 = vmatpush.msra.mxu0 %v557
    %605 = vmatmul.f32.gmra.mxu0 %v561
    %v606 = vpop.f32.mrf.mxu0
    %v607 = vadd.f32 0.0, %v606
    %608 = vdwg.mxu0
    %v609 = vadd.f32 %v553, %v587
    %v610 = vadd.f32 %v554, %v607
    %s611 = scalar_lea.vmem %s4, 256
    %v612 = vld [vmem:[%s611] sm:$0xff]
    %v613 = vld [vmem:[%s611 + $0x8] sm:$0xff]
    %v614 = vld [vmem:[%s611 + $0x10] sm:$0x7f]
    %v615 = vld [vmem:[%s611 + $0x18] sm:$0x7f]
    %v617 = vsel %vm114, %v103, 0
    %v620 = vsel %vm117, %v614, 0
    %v623 = vsel %vm117, %v615, 0
    %625 = vmatpush.msra.mxu0 0.0
    %626 = vmatpush.msra.mxu0 0.0
    %627 = vmatpush.msra.mxu0 0.0
    %628 = vmatpush.msra.mxu0 0.0
    %629 = vmatpush.msra.mxu0 0.0
    %630 = vmatpush.msra.mxu0 0.0
    %631 = vmatpush.msra.mxu0 0.0
    %632 = vmatpush.msra.mxu0 0.0
    %633 = vmatpush.msra.mxu0 0.0
    %634 = vmatpush.msra.mxu0 0.0
    %635 = vmatpush.msra.mxu0 0.0
    %636 = vmatpush.msra.mxu0 0.0
    %637 = vmatpush.msra.mxu0 0.0
    %638 = vmatpush.msra.mxu0 0.0
    %639 = vmatpush.msra.mxu0 %v620
    %640 = vmatpush.msra.mxu0 %v612
    %641 = vmatmul.f32.gmra.mxu0 %v617
    %v642 = vpop.f32.mrf.mxu0
    %v643 = vadd.f32 0.0, %v642
    %644 = vdwg.mxu0
    %645 = vmatpush.msra.mxu0 0.0
    %646 = vmatpush.msra.mxu0 0.0
    %647 = vmatpush.msra.mxu0 0.0
    %648 = vmatpush.msra.mxu0 0.0
    %649 = vmatpush.msra.mxu0 0.0
    %650 = vmatpush.msra.mxu0 0.0
    %651 = vmatpush.msra.mxu0 0.0
    %652 = vmatpush.msra.mxu0 0.0
    %653 = vmatpush.msra.mxu0 0.0
    %654 = vmatpush.msra.mxu0 0.0
    %655 = vmatpush.msra.mxu0 0.0
    %656 = vmatpush.msra.mxu0 0.0
    %657 = vmatpush.msra.mxu0 0.0
    %658 = vmatpush.msra.mxu0 0.0
    %659 = vmatpush.msra.mxu0 %v623
    %660 = vmatpush.msra.mxu0 %v613
    %661 = vmatmul.f32.gmra.mxu0 %v617
    %v662 = vpop.f32.mrf.mxu0
    %v663 = vadd.f32 0.0, %v662
    %664 = vdwg.mxu0
    %v665 = vadd.f32 %v609, %v643
    %v666 = vadd.f32 %v610, %v663
    %s667 = scalar_lea.vmem %s4, 288
    %v668 = vld [vmem:[%s667] sm:$0xff]
    %v669 = vld [vmem:[%s667 + $0x8] sm:$0xff]
    %v670 = vld [vmem:[%s667 + $0x10] sm:$0x7f]
    %v671 = vld [vmem:[%s667 + $0x18] sm:$0x7f]
    %v672 = vrot.slane %v103, 1
    %v673 = vsel %vm114, %v672, 0
    %v676 = vsel %vm117, %v670, 0
    %v679 = vsel %vm117, %v671, 0
    %681 = vmatpush.msra.mxu0 0.0
    %682 = vmatpush.msra.mxu0 0.0
    %683 = vmatpush.msra.mxu0 0.0
    %684 = vmatpush.msra.mxu0 0.0
    %685 = vmatpush.msra.mxu0 0.0
    %686 = vmatpush.msra.mxu0 0.0
    %687 = vmatpush.msra.mxu0 0.0
    %688 = vmatpush.msra.mxu0 0.0
    %689 = vmatpush.msra.mxu0 0.0
    %690 = vmatpush.msra.mxu0 0.0
    %691 = vmatpush.msra.mxu0 0.0
    %692 = vmatpush.msra.mxu0 0.0
    %693 = vmatpush.msra.mxu0 0.0
    %694 = vmatpush.msra.mxu0 0.0
    %695 = vmatpush.msra.mxu0 %v676
    %696 = vmatpush.msra.mxu0 %v668
    %697 = vmatmul.f32.gmra.mxu0 %v673
    %v698 = vpop.f32.mrf.mxu0
    %v699 = vadd.f32 0.0, %v698
    %700 = vdwg.mxu0
    %701 = vmatpush.msra.mxu0 0.0
    %702 = vmatpush.msra.mxu0 0.0
    %703 = vmatpush.msra.mxu0 0.0
    %704 = vmatpush.msra.mxu0 0.0
    %705 = vmatpush.msra.mxu0 0.0
    %706 = vmatpush.msra.mxu0 0.0
    %707 = vmatpush.msra.mxu0 0.0
    %708 = vmatpush.msra.mxu0 0.0
    %709 = vmatpush.msra.mxu0 0.0
    %710 = vmatpush.msra.mxu0 0.0
    %711 = vmatpush.msra.mxu0 0.0
    %712 = vmatpush.msra.mxu0 0.0
    %713 = vmatpush.msra.mxu0 0.0
    %714 = vmatpush.msra.mxu0 0.0
    %715 = vmatpush.msra.mxu0 %v679
    %716 = vmatpush.msra.mxu0 %v669
    %717 = vmatmul.f32.gmra.mxu0 %v673
    %v718 = vpop.f32.mrf.mxu0
    %v719 = vadd.f32 0.0, %v718
    %720 = vdwg.mxu0
    %v721 = vadd.f32 %v665, %v699
    %v722 = vadd.f32 %v666, %v719
    %s723 = scalar_lea.vmem %s4, 320
    %v724 = vld [vmem:[%s723] sm:$0xff]
    %v725 = vld [vmem:[%s723 + $0x8] sm:$0xff]
    %v726 = vld [vmem:[%s723 + $0x10] sm:$0x7f]
    %v727 = vld [vmem:[%s723 + $0x18] sm:$0x7f]
    %v728 = vrot.slane %v103, 2
    %v729 = vsel %vm114, %v728, 0
    %v732 = vsel %vm117, %v726, 0
    %v735 = vsel %vm117, %v727, 0
    %737 = vmatpush.msra.mxu0 0.0
    %738 = vmatpush.msra.mxu0 0.0
    %739 = vmatpush.msra.mxu0 0.0
    %740 = vmatpush.msra.mxu0 0.0
    %741 = vmatpush.msra.mxu0 0.0
    %742 = vmatpush.msra.mxu0 0.0
    %743 = vmatpush.msra.mxu0 0.0
    %744 = vmatpush.msra.mxu0 0.0
    %745 = vmatpush.msra.mxu0 0.0
    %746 = vmatpush.msra.mxu0 0.0
    %747 = vmatpush.msra.mxu0 0.0
    %748 = vmatpush.msra.mxu0 0.0
    %749 = vmatpush.msra.mxu0 0.0
    %750 = vmatpush.msra.mxu0 0.0
    %751 = vmatpush.msra.mxu0 %v732
    %752 = vmatpush.msra.mxu0 %v724
    %753 = vmatmul.f32.gmra.mxu0 %v729
    %v754 = vpop.f32.mrf.mxu0
    %v755 = vadd.f32 0.0, %v754
    %756 = vdwg.mxu0
    %757 = vmatpush.msra.mxu0 0.0
    %758 = vmatpush.msra.mxu0 0.0
    %759 = vmatpush.msra.mxu0 0.0
    %760 = vmatpush.msra.mxu0 0.0
    %761 = vmatpush.msra.mxu0 0.0
    %762 = vmatpush.msra.mxu0 0.0
    %763 = vmatpush.msra.mxu0 0.0
    %764 = vmatpush.msra.mxu0 0.0
    %765 = vmatpush.msra.mxu0 0.0
    %766 = vmatpush.msra.mxu0 0.0
    %767 = vmatpush.msra.mxu0 0.0
    %768 = vmatpush.msra.mxu0 0.0
    %769 = vmatpush.msra.mxu0 0.0
    %770 = vmatpush.msra.mxu0 0.0
    %771 = vmatpush.msra.mxu0 %v735
    %772 = vmatpush.msra.mxu0 %v725
    %773 = vmatmul.f32.gmra.mxu0 %v729
    %v774 = vpop.f32.mrf.mxu0
    %v775 = vadd.f32 0.0, %v774
    %776 = vdwg.mxu0
    %v777 = vadd.f32 %v721, %v755
    %v778 = vadd.f32 %v722, %v775
    %s779 = scalar_lea.vmem %s4, 352
    %v780 = vld [vmem:[%s779] sm:$0xff]
    %v781 = vld [vmem:[%s779 + $0x8] sm:$0xff]
    %v782 = vld [vmem:[%s779 + $0x10] sm:$0x7f]
    %v783 = vld [vmem:[%s779 + $0x18] sm:$0x7f]
    %v784 = vrot.slane %v103, 3
    %v785 = vsel %vm114, %v784, 0
    %v788 = vsel %vm117, %v782, 0
    %v791 = vsel %vm117, %v783, 0
    %793 = vmatpush.msra.mxu0 0.0
    %794 = vmatpush.msra.mxu0 0.0
    %795 = vmatpush.msra.mxu0 0.0
    %796 = vmatpush.msra.mxu0 0.0
    %797 = vmatpush.msra.mxu0 0.0
    %798 = vmatpush.msra.mxu0 0.0
    %799 = vmatpush.msra.mxu0 0.0
    %800 = vmatpush.msra.mxu0 0.0
    %801 = vmatpush.msra.mxu0 0.0
    %802 = vmatpush.msra.mxu0 0.0
    %803 = vmatpush.msra.mxu0 0.0
    %804 = vmatpush.msra.mxu0 0.0
    %805 = vmatpush.msra.mxu0 0.0
    %806 = vmatpush.msra.mxu0 0.0
    %807 = vmatpush.msra.mxu0 %v788
    %808 = vmatpush.msra.mxu0 %v780
    %809 = vmatmul.f32.gmra.mxu0 %v785
    %v810 = vpop.f32.mrf.mxu0
    %v811 = vadd.f32 0.0, %v810
    %812 = vdwg.mxu0
    %813 = vmatpush.msra.mxu0 0.0
    %814 = vmatpush.msra.mxu0 0.0
    %815 = vmatpush.msra.mxu0 0.0
    %816 = vmatpush.msra.mxu0 0.0
    %817 = vmatpush.msra.mxu0 0.0
    %818 = vmatpush.msra.mxu0 0.0
    %819 = vmatpush.msra.mxu0 0.0
    %820 = vmatpush.msra.mxu0 0.0
    %821 = vmatpush.msra.mxu0 0.0
    %822 = vmatpush.msra.mxu0 0.0
    %823 = vmatpush.msra.mxu0 0.0
    %824 = vmatpush.msra.mxu0 0.0
    %825 = vmatpush.msra.mxu0 0.0
    %826 = vmatpush.msra.mxu0 0.0
    %827 = vmatpush.msra.mxu0 %v791
    %828 = vmatpush.msra.mxu0 %v781
    %829 = vmatmul.f32.gmra.mxu0 %v785
    %v830 = vpop.f32.mrf.mxu0
    %v831 = vadd.f32 0.0, %v830
    %832 = vdwg.mxu0
    %v833 = vadd.f32 %v777, %v811
    %v834 = vadd.f32 %v778, %v831
    %s835 = scalar_lea.vmem %s4, 384
    %v836 = vld [vmem:[%s835] sm:$0xff]
    %v837 = vld [vmem:[%s835 + $0x8] sm:$0xff]
    %v838 = vld [vmem:[%s835 + $0x10] sm:$0x7f]
    %v839 = vld [vmem:[%s835 + $0x18] sm:$0x7f]
    %v840 = vrot.slane %v103, 4
    %v841 = vsel %vm114, %v840, 0
    %v844 = vsel %vm117, %v838, 0
    %v847 = vsel %vm117, %v839, 0
    %849 = vmatpush.msra.mxu0 0.0
    %850 = vmatpush.msra.mxu0 0.0
    %851 = vmatpush.msra.mxu0 0.0
    %852 = vmatpush.msra.mxu0 0.0
    %853 = vmatpush.msra.mxu0 0.0
    %854 = vmatpush.msra.mxu0 0.0
    %855 = vmatpush.msra.mxu0 0.0
    %856 = vmatpush.msra.mxu0 0.0
    %857 = vmatpush.msra.mxu0 0.0
    %858 = vmatpush.msra.mxu0 0.0
    %859 = vmatpush.msra.mxu0 0.0
    %860 = vmatpush.msra.mxu0 0.0
    %861 = vmatpush.msra.mxu0 0.0
    %862 = vmatpush.msra.mxu0 0.0
    %863 = vmatpush.msra.mxu0 %v844
    %864 = vmatpush.msra.mxu0 %v836
    %865 = vmatmul.f32.gmra.mxu0 %v841
    %v866 = vpop.f32.mrf.mxu0
    %v867 = vadd.f32 0.0, %v866
    %868 = vdwg.mxu0
    %869 = vmatpush.msra.mxu0 0.0
    %870 = vmatpush.msra.mxu0 0.0
    %871 = vmatpush.msra.mxu0 0.0
    %872 = vmatpush.msra.mxu0 0.0
    %873 = vmatpush.msra.mxu0 0.0
    %874 = vmatpush.msra.mxu0 0.0
    %875 = vmatpush.msra.mxu0 0.0
    %876 = vmatpush.msra.mxu0 0.0
    %877 = vmatpush.msra.mxu0 0.0
    %878 = vmatpush.msra.mxu0 0.0
    %879 = vmatpush.msra.mxu0 0.0
    %880 = vmatpush.msra.mxu0 0.0
    %881 = vmatpush.msra.mxu0 0.0
    %882 = vmatpush.msra.mxu0 0.0
    %883 = vmatpush.msra.mxu0 %v847
    %884 = vmatpush.msra.mxu0 %v837
    %885 = vmatmul.f32.gmra.mxu0 %v841
    %v886 = vpop.f32.mrf.mxu0
    %v887 = vadd.f32 0.0, %v886
    %888 = vdwg.mxu0
    %v889 = vadd.f32 %v833, %v867
    %v890 = vadd.f32 %v834, %v887
    %s891 = scalar_lea.vmem %s4, 416
    %v892 = vld [vmem:[%s891] sm:$0xff]
    %v893 = vld [vmem:[%s891 + $0x8] sm:$0xff]
    %v894 = vld [vmem:[%s891 + $0x10] sm:$0x7f]
    %v895 = vld [vmem:[%s891 + $0x18] sm:$0x7f]
    %v896 = vrot.slane %v103, 5
    %v897 = vsel %vm114, %v896, 0
    %v900 = vsel %vm117, %v894, 0
    %v903 = vsel %vm117, %v895, 0
    %905 = vmatpush.msra.mxu0 0.0
    %906 = vmatpush.msra.mxu0 0.0
    %907 = vmatpush.msra.mxu0 0.0
    %908 = vmatpush.msra.mxu0 0.0
    %909 = vmatpush.msra.mxu0 0.0
    %910 = vmatpush.msra.mxu0 0.0
    %911 = vmatpush.msra.mxu0 0.0
    %912 = vmatpush.msra.mxu0 0.0
    %913 = vmatpush.msra.mxu0 0.0
    %914 = vmatpush.msra.mxu0 0.0
    %915 = vmatpush.msra.mxu0 0.0
    %916 = vmatpush.msra.mxu0 0.0
    %917 = vmatpush.msra.mxu0 0.0
    %918 = vmatpush.msra.mxu0 0.0
    %919 = vmatpush.msra.mxu0 %v900
    %920 = vmatpush.msra.mxu0 %v892
    %921 = vmatmul.f32.gmra.mxu0 %v897
    %v922 = vpop.f32.mrf.mxu0
    %v923 = vadd.f32 0.0, %v922
    %924 = vdwg.mxu0
    %925 = vmatpush.msra.mxu0 0.0
    %926 = vmatpush.msra.mxu0 0.0
    %927 = vmatpush.msra.mxu0 0.0
    %928 = vmatpush.msra.mxu0 0.0
    %929 = vmatpush.msra.mxu0 0.0
    %930 = vmatpush.msra.mxu0 0.0
    %931 = vmatpush.msra.mxu0 0.0
    %932 = vmatpush.msra.mxu0 0.0
    %933 = vmatpush.msra.mxu0 0.0
    %934 = vmatpush.msra.mxu0 0.0
    %935 = vmatpush.msra.mxu0 0.0
    %936 = vmatpush.msra.mxu0 0.0
    %937 = vmatpush.msra.mxu0 0.0
    %938 = vmatpush.msra.mxu0 0.0
    %939 = vmatpush.msra.mxu0 %v903
    %940 = vmatpush.msra.mxu0 %v893
    %941 = vmatmul.f32.gmra.mxu0 %v897
    %v942 = vpop.f32.mrf.mxu0
    %v943 = vadd.f32 0.0, %v942
    %944 = vdwg.mxu0
    %v945 = vadd.f32 %v889, %v923
    %v946 = vadd.f32 %v890, %v943
    %s947 = scalar_lea.vmem %s4, 448
    %v948 = vld [vmem:[%s947] sm:$0xff]
    %v949 = vld [vmem:[%s947 + $0x8] sm:$0xff]
    %v950 = vld [vmem:[%s947 + $0x10] sm:$0x7f]
    %v951 = vld [vmem:[%s947 + $0x18] sm:$0x7f]
    %v952 = vrot.slane %v103, 6
    %v953 = vsel %vm114, %v952, 0
    %v956 = vsel %vm117, %v950, 0
    %v959 = vsel %vm117, %v951, 0
    %961 = vmatpush.msra.mxu0 0.0
    %962 = vmatpush.msra.mxu0 0.0
    %963 = vmatpush.msra.mxu0 0.0
    %964 = vmatpush.msra.mxu0 0.0
    %965 = vmatpush.msra.mxu0 0.0
    %966 = vmatpush.msra.mxu0 0.0
    %967 = vmatpush.msra.mxu0 0.0
    %968 = vmatpush.msra.mxu0 0.0
    %969 = vmatpush.msra.mxu0 0.0
    %970 = vmatpush.msra.mxu0 0.0
    %971 = vmatpush.msra.mxu0 0.0
    %972 = vmatpush.msra.mxu0 0.0
    %973 = vmatpush.msra.mxu0 0.0
    %974 = vmatpush.msra.mxu0 0.0
    %975 = vmatpush.msra.mxu0 %v956
    %976 = vmatpush.msra.mxu0 %v948
    %977 = vmatmul.f32.gmra.mxu0 %v953
    %v978 = vpop.f32.mrf.mxu0
    %v979 = vadd.f32 0.0, %v978
    %980 = vdwg.mxu0
    %981 = vmatpush.msra.mxu0 0.0
    %982 = vmatpush.msra.mxu0 0.0
    %983 = vmatpush.msra.mxu0 0.0
    %984 = vmatpush.msra.mxu0 0.0
    %985 = vmatpush.msra.mxu0 0.0
    %986 = vmatpush.msra.mxu0 0.0
    %987 = vmatpush.msra.mxu0 0.0
    %988 = vmatpush.msra.mxu0 0.0
    %989 = vmatpush.msra.mxu0 0.0
    %990 = vmatpush.msra.mxu0 0.0
    %991 = vmatpush.msra.mxu0 0.0
    %992 = vmatpush.msra.mxu0 0.0
    %993 = vmatpush.msra.mxu0 0.0
    %994 = vmatpush.msra.mxu0 0.0
    %995 = vmatpush.msra.mxu0 %v959
    %996 = vmatpush.msra.mxu0 %v949
    %997 = vmatmul.f32.gmra.mxu0 %v953
    %v998 = vpop.f32.mrf.mxu0
    %v999 = vadd.f32 0.0, %v998
    %1000 = vdwg.mxu0
    %v1001 = vadd.f32 %v945, %v979
    %v1002 = vadd.f32 %v946, %v999
    %v1003 = vpack.c.bf16 %v1001, %v1001
    %v1004 = vpack.c.bf16 %v1002, %v1002
    %v1005 = vld [vmem:[%s7] sm:$0xff]
    %v1006 = vld [vmem:[%s7 + $0x8] sm:$0xff]
    %v1007 = vld [vmem:[%s7 + $0x10] sm:$0xff]
    %v1008 = vld [vmem:[%s7 + $0x18] sm:$0xff]
    %v1009 = vld [vmem:[%s7 + $0x20] sm:$0xff]
    %v1010 = vld [vmem:[%s7 + $0x28] sm:$0xff]
    %v1011 = vld [vmem:[%s7 + $0x30] sm:$0xff]
    %v1012 = vld [vmem:[%s7 + $0x38] sm:$0xff]
    %v1013 = vld [vmem:[%s7 + $0x40] sm:$0xff]
    %v1014 = vld [vmem:[%s7 + $0x48] sm:$0xff]
    %v1015 = vld [vmem:[%s7 + $0x50] sm:$0xff]
    %v1016 = vld [vmem:[%s7 + $0x58] sm:$0xff]
    %v1017 = vld [vmem:[%s7 + $0x60] sm:$0xff]
    %v1018 = vld [vmem:[%s7 + $0x68] sm:$0xff]
    %v1019 = vld [vmem:[%s7 + $0x70] sm:$0xff]
    %v1020 = vld [vmem:[%s7 + $0x78] sm:$0xff]
    %v1021 = vld [vmem:[%s7 + $0x80] sm:$0xff]
    %v1022 = vld [vmem:[%s7 + $0x88] sm:$0xff]
    %v1023 = vld [vmem:[%s7 + $0x90] sm:$0xff]
    %v1024 = vld [vmem:[%s7 + $0x98] sm:$0xff]
    %v1025 = vld [vmem:[%s7 + $0xa0] sm:$0xff]
    %v1026 = vld [vmem:[%s7 + $0xa8] sm:$0xff]
    %v1027 = vld [vmem:[%s7 + $0xb0] sm:$0xff]
    %v1028 = vld [vmem:[%s7 + $0xb8] sm:$0xff]
    %v1029 = vld [vmem:[%s7 + $0xc0] sm:$0xff]
    %v1030 = vld [vmem:[%s7 + $0xc8] sm:$0xff]
    %v1031 = vld [vmem:[%s7 + $0xd0] sm:$0xff]
    %v1032 = vld [vmem:[%s7 + $0xd8] sm:$0xff]
    %v1033 = vld [vmem:[%s7 + $0xe0] sm:$0xff]
    %v1034 = vld [vmem:[%s7 + $0xe8] sm:$0xff]
    %v1035 = vld [vmem:[%s7 + $0xf0] sm:$0xff]
    %v1036 = vld [vmem:[%s7 + $0xf8] sm:$0xff]
    %v1037 = vld [vmem:[%s7 + $0x100] sm:$0xff]
    %v1038 = vld [vmem:[%s7 + $0x108] sm:$0xff]
    %v1039 = vld [vmem:[%s7 + $0x110] sm:$0xff]
    %v1040 = vld [vmem:[%s7 + $0x118] sm:$0xff]
    %v1041 = vld [vmem:[%s7 + $0x120] sm:$0xff]
    %v1042 = vld [vmem:[%s7 + $0x128] sm:$0xff]
    %v1043 = vld [vmem:[%s7 + $0x130] sm:$0xff]
    %v1044 = vld [vmem:[%s7 + $0x138] sm:$0xff]
    %v1045 = vld [vmem:[%s7 + $0x140] sm:$0xff]
    %v1046 = vld [vmem:[%s7 + $0x148] sm:$0xff]
    %v1047 = vld [vmem:[%s7 + $0x150] sm:$0xff]
    %v1048 = vld [vmem:[%s7 + $0x158] sm:$0xff]
    %v1049 = vld [vmem:[%s7 + $0x160] sm:$0xff]
    %v1050 = vld [vmem:[%s7 + $0x168] sm:$0xff]
    %v1051 = vld [vmem:[%s7 + $0x170] sm:$0xff]
    %v1052 = vld [vmem:[%s7 + $0x178] sm:$0xff]
    %v1053 = vld [vmem:[%s7 + $0x180] sm:$0xff]
    %v1054 = vld [vmem:[%s7 + $0x188] sm:$0xff]
    %v1055 = vld [vmem:[%s7 + $0x190] sm:$0xff]
    %v1056 = vld [vmem:[%s7 + $0x198] sm:$0xff]
    %v1057 = vld [vmem:[%s7 + $0x1a0] sm:$0xff]
    %v1058 = vld [vmem:[%s7 + $0x1a8] sm:$0xff]
    %v1059 = vld [vmem:[%s7 + $0x1b0] sm:$0xff]
    %v1060 = vld [vmem:[%s7 + $0x1b8] sm:$0xff]
    %v1061 = vld [vmem:[%s7 + $0x1c0] sm:$0xff]
    %v1062 = vld [vmem:[%s7 + $0x1c8] sm:$0xff]
    %v1063 = vld [vmem:[%s7 + $0x1d0] sm:$0xff]
    %v1064 = vld [vmem:[%s7 + $0x1d8] sm:$0xff]
    %v1065 = vld [vmem:[%s7 + $0x1e0] sm:$0xff]
    %v1066 = vld [vmem:[%s7 + $0x1e8] sm:$0xff]
    %v1067 = vld [vmem:[%s7 + $0x1f0] sm:$0xff]
    %v1068 = vld [vmem:[%s7 + $0x1f8] sm:$0xff]
    %v1069 = vld [vmem:[%s7 + $0x200] sm:$0xff]
    %v1070 = vld [vmem:[%s7 + $0x208] sm:$0xff]
    %v1071 = vld [vmem:[%s7 + $0x210] sm:$0xff]
    %v1072 = vld [vmem:[%s7 + $0x218] sm:$0xff]
    %v1073 = vld [vmem:[%s7 + $0x220] sm:$0xff]
    %v1074 = vld [vmem:[%s7 + $0x228] sm:$0xff]
    %v1075 = vld [vmem:[%s7 + $0x230] sm:$0xff]
    %v1076 = vld [vmem:[%s7 + $0x238] sm:$0xff]
    %v1077 = vld [vmem:[%s7 + $0x240] sm:$0xff]
    %v1078 = vld [vmem:[%s7 + $0x248] sm:$0xff]
    %v1079 = vld [vmem:[%s7 + $0x250] sm:$0xff]
    %v1080 = vld [vmem:[%s7 + $0x258] sm:$0xff]
    %v1081 = vld [vmem:[%s7 + $0x260] sm:$0xff]
    %v1082 = vld [vmem:[%s7 + $0x268] sm:$0xff]
    %v1083 = vld [vmem:[%s7 + $0x270] sm:$0xff]
    %v1084 = vld [vmem:[%s7 + $0x278] sm:$0xff]
    %v1085 = vld [vmem:[%s7 + $0x280] sm:$0xff]
    %v1086 = vld [vmem:[%s7 + $0x288] sm:$0xff]
    %v1087 = vld [vmem:[%s7 + $0x290] sm:$0xff]
    %v1088 = vld [vmem:[%s7 + $0x298] sm:$0xff]
    %v1089 = vld [vmem:[%s7 + $0x2a0] sm:$0xff]
    %v1090 = vld [vmem:[%s7 + $0x2a8] sm:$0xff]
    %v1091 = vld [vmem:[%s7 + $0x2b0] sm:$0xff]
    %v1092 = vld [vmem:[%s7 + $0x2b8] sm:$0xff]
    %v1093 = vld [vmem:[%s7 + $0x2c0] sm:$0xff]
    %v1094 = vld [vmem:[%s7 + $0x2c8] sm:$0xff]
    %v1095 = vld [vmem:[%s7 + $0x2d0] sm:$0xff]
    %v1096 = vld [vmem:[%s7 + $0x2d8] sm:$0xff]
    %v1097 = vld [vmem:[%s7 + $0x2e0] sm:$0xff]
    %v1098 = vld [vmem:[%s7 + $0x2e8] sm:$0xff]
    %v1099 = vld [vmem:[%s7 + $0x2f0] sm:$0xff]
    %v1100 = vld [vmem:[%s7 + $0x2f8] sm:$0xff]
    %v1101 = vld [vmem:[%s7 + $0x300] sm:$0xff]
    %v1102 = vld [vmem:[%s7 + $0x308] sm:$0xff]
    %v1103 = vld [vmem:[%s7 + $0x310] sm:$0xff]
    %v1104 = vld [vmem:[%s7 + $0x318] sm:$0xff]
    %v1105 = vld [vmem:[%s7 + $0x320] sm:$0xff]
    %v1106 = vld [vmem:[%s7 + $0x328] sm:$0xff]
    %v1107 = vld [vmem:[%s7 + $0x330] sm:$0xff]
    %v1108 = vld [vmem:[%s7 + $0x338] sm:$0xff]
    %v1109 = vld [vmem:[%s7 + $0x340] sm:$0xff]
    %v1110 = vld [vmem:[%s7 + $0x348] sm:$0xff]
    %v1111 = vld [vmem:[%s7 + $0x350] sm:$0xff]
    %v1112 = vld [vmem:[%s7 + $0x358] sm:$0xff]
    %v1113 = vld [vmem:[%s7 + $0x360] sm:$0xff]
    %v1114 = vld [vmem:[%s7 + $0x368] sm:$0xff]
    %v1115 = vld [vmem:[%s7 + $0x370] sm:$0xff]
    %v1116 = vld [vmem:[%s7 + $0x378] sm:$0xff]
    %v1117 = vld [vmem:[%s7 + $0x380] sm:$0xff]
    %v1118 = vld [vmem:[%s7 + $0x388] sm:$0xff]
    %v1119 = vld [vmem:[%s7 + $0x390] sm:$0xff]
    %v1120 = vld [vmem:[%s7 + $0x398] sm:$0xff]
    %v1121 = vld [vmem:[%s7 + $0x3a0] sm:$0xff]
    %v1122 = vld [vmem:[%s7 + $0x3a8] sm:$0xff]
    %v1123 = vld [vmem:[%s7 + $0x3b0] sm:$0xff]
    %v1124 = vld [vmem:[%s7 + $0x3b8] sm:$0xff]
    %v1125 = vld [vmem:[%s7 + $0x3c0] sm:$0xff]
    %v1126 = vld [vmem:[%s7 + $0x3c8] sm:$0xff]
    %v1127 = vld [vmem:[%s7 + $0x3d0] sm:$0xff]
    %v1128 = vld [vmem:[%s7 + $0x3d8] sm:$0xff]
    %v1129 = vld [vmem:[%s7 + $0x3e0] sm:$0xff]
    %v1130 = vld [vmem:[%s7 + $0x3e8] sm:$0xff]
    %v1131 = vld [vmem:[%s7 + $0x3f0] sm:$0xff]
    %v1132 = vld [vmem:[%s7 + $0x3f8] sm:$0xff]
    %v1133 = vld [vmem:[%s7 + $0x400] sm:$0xff]
    %v1134 = vld [vmem:[%s7 + $0x408] sm:$0xff]
    %v1135 = vld [vmem:[%s7 + $0x410] sm:$0xff]
    %v1136 = vld [vmem:[%s7 + $0x418] sm:$0xff]
    %v1137 = vld [vmem:[%s7 + $0x420] sm:$0xff]
    %v1138 = vld [vmem:[%s7 + $0x428] sm:$0xff]
    %v1139 = vld [vmem:[%s7 + $0x430] sm:$0xff]
    %v1140 = vld [vmem:[%s7 + $0x438] sm:$0xff]
    %v1141 = vld [vmem:[%s7 + $0x440] sm:$0xff]
    %v1142 = vld [vmem:[%s7 + $0x448] sm:$0xff]
    %v1143 = vld [vmem:[%s7 + $0x450] sm:$0xff]
    %v1144 = vld [vmem:[%s7 + $0x458] sm:$0xff]
    %v1145 = vld [vmem:[%s7 + $0x460] sm:$0xff]
    %v1146 = vld [vmem:[%s7 + $0x468] sm:$0xff]
    %v1147 = vld [vmem:[%s7 + $0x470] sm:$0xff]
    %v1148 = vld [vmem:[%s7 + $0x478] sm:$0xff]
    %v1149 = vld [vmem:[%s7 + $0x480] sm:$0xff]
    %v1150 = vld [vmem:[%s7 + $0x488] sm:$0xff]
    %v1151 = vld [vmem:[%s7 + $0x490] sm:$0xff]
    %v1152 = vld [vmem:[%s7 + $0x498] sm:$0xff]
    %v1153 = vld [vmem:[%s7 + $0x4a0] sm:$0xff]
    %v1154 = vld [vmem:[%s7 + $0x4a8] sm:$0xff]
    %v1155 = vld [vmem:[%s7 + $0x4b0] sm:$0xff]
    %v1156 = vld [vmem:[%s7 + $0x4b8] sm:$0xff]
    %v1157 = vld [vmem:[%s7 + $0x4c0] sm:$0xff]
    %v1158 = vld [vmem:[%s7 + $0x4c8] sm:$0xff]
    %v1159 = vld [vmem:[%s7 + $0x4d0] sm:$0xff]
    %v1160 = vld [vmem:[%s7 + $0x4d8] sm:$0xff]
    %v1161 = vld [vmem:[%s7 + $0x4e0] sm:$0xff]
    %v1162 = vld [vmem:[%s7 + $0x4e8] sm:$0xff]
    %v1163 = vld [vmem:[%s7 + $0x4f0] sm:$0xff]
    %v1164 = vld [vmem:[%s7 + $0x4f8] sm:$0xff]
    %v1165 = vld [vmem:[%s7 + $0x500] sm:$0xff]
    %v1166 = vld [vmem:[%s7 + $0x508] sm:$0xff]
    %v1167 = vld [vmem:[%s7 + $0x510] sm:$0xff]
    %v1168 = vld [vmem:[%s7 + $0x518] sm:$0xff]
    %v1169 = vld [vmem:[%s7 + $0x520] sm:$0xff]
    %v1170 = vld [vmem:[%s7 + $0x528] sm:$0xff]
    %v1171 = vld [vmem:[%s7 + $0x530] sm:$0xff]
    %v1172 = vld [vmem:[%s7 + $0x538] sm:$0xff]
    %v1173 = vld [vmem:[%s7 + $0x540] sm:$0xff]
    %v1174 = vld [vmem:[%s7 + $0x548] sm:$0xff]
    %v1175 = vld [vmem:[%s7 + $0x550] sm:$0xff]
    %v1176 = vld [vmem:[%s7 + $0x558] sm:$0xff]
    %v1177 = vld [vmem:[%s7 + $0x560] sm:$0xff]
    %v1178 = vld [vmem:[%s7 + $0x568] sm:$0xff]
    %v1179 = vld [vmem:[%s7 + $0x570] sm:$0xff]
    %v1180 = vld [vmem:[%s7 + $0x578] sm:$0xff]
    %v1181 = vld [vmem:[%s7 + $0x580] sm:$0xff]
    %v1182 = vld [vmem:[%s7 + $0x588] sm:$0xff]
    %v1183 = vld [vmem:[%s7 + $0x590] sm:$0xff]
    %v1184 = vld [vmem:[%s7 + $0x598] sm:$0xff]
    %v1185 = vld [vmem:[%s7 + $0x5a0] sm:$0xff]
    %v1186 = vld [vmem:[%s7 + $0x5a8] sm:$0xff]
    %v1187 = vld [vmem:[%s7 + $0x5b0] sm:$0xff]
    %v1188 = vld [vmem:[%s7 + $0x5b8] sm:$0xff]
    %v1189 = vld [vmem:[%s7 + $0x5c0] sm:$0xff]
    %v1190 = vld [vmem:[%s7 + $0x5c8] sm:$0xff]
    %v1191 = vld [vmem:[%s7 + $0x5d0] sm:$0xff]
    %v1192 = vld [vmem:[%s7 + $0x5d8] sm:$0xff]
    %v1193 = vld [vmem:[%s7 + $0x5e0] sm:$0xff]
    %v1194 = vld [vmem:[%s7 + $0x5e8] sm:$0xff]
    %v1195 = vld [vmem:[%s7 + $0x5f0] sm:$0xff]
    %v1196 = vld [vmem:[%s7 + $0x5f8] sm:$0xff]
    %v1197 = vld [vmem:[%s7 + $0x600] sm:$0xff]
    %v1198 = vld [vmem:[%s7 + $0x608] sm:$0xff]
    %v1199 = vld [vmem:[%s7 + $0x610] sm:$0xff]
    %v1200 = vld [vmem:[%s7 + $0x618] sm:$0xff]
    %v1201 = vld [vmem:[%s7 + $0x620] sm:$0xff]
    %v1202 = vld [vmem:[%s7 + $0x628] sm:$0xff]
    %v1203 = vld [vmem:[%s7 + $0x630] sm:$0xff]
    %v1204 = vld [vmem:[%s7 + $0x638] sm:$0xff]
    %v1205 = vld [vmem:[%s7 + $0x640] sm:$0xff]
    %v1206 = vld [vmem:[%s7 + $0x648] sm:$0xff]
    %v1207 = vld [vmem:[%s7 + $0x650] sm:$0xff]
    %v1208 = vld [vmem:[%s7 + $0x658] sm:$0xff]
    %v1209 = vld [vmem:[%s7 + $0x660] sm:$0xff]
    %v1210 = vld [vmem:[%s7 + $0x668] sm:$0xff]
    %v1211 = vld [vmem:[%s7 + $0x670] sm:$0xff]
    %v1212 = vld [vmem:[%s7 + $0x678] sm:$0xff]
    %v1213 = vld [vmem:[%s7 + $0x680] sm:$0xff]
    %v1214 = vld [vmem:[%s7 + $0x688] sm:$0xff]
    %v1215 = vld [vmem:[%s7 + $0x690] sm:$0xff]
    %v1216 = vld [vmem:[%s7 + $0x698] sm:$0xff]
    %v1217 = vld [vmem:[%s7 + $0x6a0] sm:$0xff]
    %v1218 = vld [vmem:[%s7 + $0x6a8] sm:$0xff]
    %v1219 = vld [vmem:[%s7 + $0x6b0] sm:$0xff]
    %v1220 = vld [vmem:[%s7 + $0x6b8] sm:$0xff]
    %v1221 = vld [vmem:[%s7 + $0x6c0] sm:$0xff]
    %v1222 = vld [vmem:[%s7 + $0x6c8] sm:$0xff]
    %v1223 = vld [vmem:[%s7 + $0x6d0] sm:$0xff]
    %v1224 = vld [vmem:[%s7 + $0x6d8] sm:$0xff]
    %v1225 = vld [vmem:[%s7 + $0x6e0] sm:$0xff]
    %v1226 = vld [vmem:[%s7 + $0x6e8] sm:$0xff]
    %v1227 = vld [vmem:[%s7 + $0x6f0] sm:$0xff]
    %v1228 = vld [vmem:[%s7 + $0x6f8] sm:$0xff]
    %v1229 = vld [vmem:[%s7 + $0x700] sm:$0xff]
    %v1230 = vld [vmem:[%s7 + $0x708] sm:$0xff]
    %v1231 = vld [vmem:[%s7 + $0x710] sm:$0xff]
    %v1232 = vld [vmem:[%s7 + $0x718] sm:$0xff]
    %v1233 = vld [vmem:[%s7 + $0x720] sm:$0xff]
    %v1234 = vld [vmem:[%s7 + $0x728] sm:$0xff]
    %v1235 = vld [vmem:[%s7 + $0x730] sm:$0xff]
    %v1236 = vld [vmem:[%s7 + $0x738] sm:$0xff]
    %v1237 = vld [vmem:[%s7 + $0x740] sm:$0xff]
    %v1238 = vld [vmem:[%s7 + $0x748] sm:$0xff]
    %v1239 = vld [vmem:[%s7 + $0x750] sm:$0xff]
    %v1240 = vld [vmem:[%s7 + $0x758] sm:$0xff]
    %v1241 = vld [vmem:[%s7 + $0x760] sm:$0xff]
    %v1242 = vld [vmem:[%s7 + $0x768] sm:$0xff]
    %v1243 = vld [vmem:[%s7 + $0x770] sm:$0xff]
    %v1244 = vld [vmem:[%s7 + $0x778] sm:$0xff]
    %v1245 = vld [vmem:[%s8] sm:$0xff]
    %v1246 = vld [vmem:[%s8 + $0x8] sm:$0xff]
    %v1247 = vld [vmem:[%s8 + $0x10] sm:$0xff]
    %v1488 = vunpack.c.l.b16 %v1005
    %v1489 = vunpack.c.h.b16 %v1005
    %v1490 = vunpack.c.l.b16 %v1006
    %v1491 = vunpack.c.h.b16 %v1006
    %v1492 = vunpack.c.l.b16 %v1007
    %v1493 = vunpack.c.h.b16 %v1007
    %v1494 = vunpack.c.l.b16 %v1008
    %v1495 = vunpack.c.h.b16 %v1008
    %v1496 = vunpack.c.l.b16 %v1009
    %v1497 = vunpack.c.h.b16 %v1009
    %v1498 = vunpack.c.l.b16 %v1010
    %v1499 = vunpack.c.h.b16 %v1010
    %v1500 = vunpack.c.l.b16 %v1011
    %v1501 = vunpack.c.h.b16 %v1011
    %v1502 = vunpack.c.l.b16 %v1012
    %v1503 = vunpack.c.h.b16 %v1012
    %v1504 = vunpack.c.l.b16 %v1013
    %v1505 = vunpack.c.h.b16 %v1013
    %v1506 = vunpack.c.l.b16 %v1014
    %v1507 = vunpack.c.h.b16 %v1014
    %v1508 = vunpack.c.l.b16 %v1015
    %v1509 = vunpack.c.h.b16 %v1015
    %v1510 = vunpack.c.l.b16 %v1016
    %v1511 = vunpack.c.h.b16 %v1016
    %v1512 = vunpack.c.l.b16 %v1017
    %v1513 = vunpack.c.h.b16 %v1017
    %v1514 = vunpack.c.l.b16 %v1018
    %v1515 = vunpack.c.h.b16 %v1018
    %v1516 = vunpack.c.l.b16 %v1019
    %v1517 = vunpack.c.h.b16 %v1019
    %v1518 = vunpack.c.l.b16 %v1020
    %v1519 = vunpack.c.h.b16 %v1020
    %v1520 = vunpack.c.l.b16 %v1021
    %v1521 = vunpack.c.h.b16 %v1021
    %v1522 = vunpack.c.l.b16 %v1022
    %v1523 = vunpack.c.h.b16 %v1022
    %v1524 = vunpack.c.l.b16 %v1023
    %v1525 = vunpack.c.h.b16 %v1023
    %v1526 = vunpack.c.l.b16 %v1024
    %v1527 = vunpack.c.h.b16 %v1024
    %v1528 = vunpack.c.l.b16 %v1025
    %v1529 = vunpack.c.h.b16 %v1025
    %v1530 = vunpack.c.l.b16 %v1026
    %v1531 = vunpack.c.h.b16 %v1026
    %v1532 = vunpack.c.l.b16 %v1027
    %v1533 = vunpack.c.h.b16 %v1027
    %v1534 = vunpack.c.l.b16 %v1028
    %v1535 = vunpack.c.h.b16 %v1028
    %v1536 = vunpack.c.l.b16 %v1029
    %v1537 = vunpack.c.h.b16 %v1029
    %v1538 = vunpack.c.l.b16 %v1030
    %v1539 = vunpack.c.h.b16 %v1030
    %v1540 = vunpack.c.l.b16 %v1031
    %v1541 = vunpack.c.h.b16 %v1031
    %v1542 = vunpack.c.l.b16 %v1032
    %v1543 = vunpack.c.h.b16 %v1032
    %v1544 = vunpack.c.l.b16 %v1033
    %v1545 = vunpack.c.h.b16 %v1033
    %v1546 = vunpack.c.l.b16 %v1034
    %v1547 = vunpack.c.h.b16 %v1034
    %v1548 = vunpack.c.l.b16 %v1035
    %v1549 = vunpack.c.h.b16 %v1035
    %v1550 = vunpack.c.l.b16 %v1036
    %v1551 = vunpack.c.h.b16 %v1036
    %v1552 = vunpack.c.l.b16 %v1037
    %v1553 = vunpack.c.h.b16 %v1037
    %v1554 = vunpack.c.l.b16 %v1038
    %v1555 = vunpack.c.h.b16 %v1038
    %v1556 = vunpack.c.l.b16 %v1039
    %v1557 = vunpack.c.h.b16 %v1039
    %v1558 = vunpack.c.l.b16 %v1040
    %v1559 = vunpack.c.h.b16 %v1040
    %v1560 = vunpack.c.l.b16 %v1041
    %v1561 = vunpack.c.h.b16 %v1041
    %v1562 = vunpack.c.l.b16 %v1042
    %v1563 = vunpack.c.h.b16 %v1042
    %v1564 = vunpack.c.l.b16 %v1043
    %v1565 = vunpack.c.h.b16 %v1043
    %v1566 = vunpack.c.l.b16 %v1044
    %v1567 = vunpack.c.h.b16 %v1044
    %v1568 = vunpack.c.l.b16 %v1045
    %v1569 = vunpack.c.h.b16 %v1045
    %v1570 = vunpack.c.l.b16 %v1046
    %v1571 = vunpack.c.h.b16 %v1046
    %v1572 = vunpack.c.l.b16 %v1047
    %v1573 = vunpack.c.h.b16 %v1047
    %v1574 = vunpack.c.l.b16 %v1048
    %v1575 = vunpack.c.h.b16 %v1048
    %v1576 = vunpack.c.l.b16 %v1049
    %v1577 = vunpack.c.h.b16 %v1049
    %v1578 = vunpack.c.l.b16 %v1050
    %v1579 = vunpack.c.h.b16 %v1050
    %v1580 = vunpack.c.l.b16 %v1051
    %v1581 = vunpack.c.h.b16 %v1051
    %v1582 = vunpack.c.l.b16 %v1052
    %v1583 = vunpack.c.h.b16 %v1052
    %v1584 = vunpack.c.l.b16 %v1053
    %v1585 = vunpack.c.h.b16 %v1053
    %v1586 = vunpack.c.l.b16 %v1054
    %v1587 = vunpack.c.h.b16 %v1054
    %v1588 = vunpack.c.l.b16 %v1055
    %v1589 = vunpack.c.h.b16 %v1055
    %v1590 = vunpack.c.l.b16 %v1056
    %v1591 = vunpack.c.h.b16 %v1056
    %v1592 = vunpack.c.l.b16 %v1057
    %v1593 = vunpack.c.h.b16 %v1057
    %v1594 = vunpack.c.l.b16 %v1058
    %v1595 = vunpack.c.h.b16 %v1058
    %v1596 = vunpack.c.l.b16 %v1059
    %v1597 = vunpack.c.h.b16 %v1059
    %v1598 = vunpack.c.l.b16 %v1060
    %v1599 = vunpack.c.h.b16 %v1060
    %v1600 = vunpack.c.l.b16 %v1061
    %v1601 = vunpack.c.h.b16 %v1061
    %v1602 = vunpack.c.l.b16 %v1062
    %v1603 = vunpack.c.h.b16 %v1062
    %v1604 = vunpack.c.l.b16 %v1063
    %v1605 = vunpack.c.h.b16 %v1063
    %v1606 = vunpack.c.l.b16 %v1064
    %v1607 = vunpack.c.h.b16 %v1064
    %v1608 = vunpack.c.l.b16 %v1065
    %v1609 = vunpack.c.h.b16 %v1065
    %v1610 = vunpack.c.l.b16 %v1066
    %v1611 = vunpack.c.h.b16 %v1066
    %v1612 = vunpack.c.l.b16 %v1067
    %v1613 = vunpack.c.h.b16 %v1067
    %v1614 = vunpack.c.l.b16 %v1068
    %v1615 = vunpack.c.h.b16 %v1068
    %v1616 = vunpack.c.l.b16 %v1069
    %v1617 = vunpack.c.h.b16 %v1069
    %v1618 = vunpack.c.l.b16 %v1070
    %v1619 = vunpack.c.h.b16 %v1070
    %v1620 = vunpack.c.l.b16 %v1071
    %v1621 = vunpack.c.h.b16 %v1071
    %v1622 = vunpack.c.l.b16 %v1072
    %v1623 = vunpack.c.h.b16 %v1072
    %v1624 = vunpack.c.l.b16 %v1073
    %v1625 = vunpack.c.h.b16 %v1073
    %v1626 = vunpack.c.l.b16 %v1074
    %v1627 = vunpack.c.h.b16 %v1074
    %v1628 = vunpack.c.l.b16 %v1075
    %v1629 = vunpack.c.h.b16 %v1075
    %v1630 = vunpack.c.l.b16 %v1076
    %v1631 = vunpack.c.h.b16 %v1076
    %v1632 = vunpack.c.l.b16 %v1077
    %v1633 = vunpack.c.h.b16 %v1077
    %v1634 = vunpack.c.l.b16 %v1078
    %v1635 = vunpack.c.h.b16 %v1078
    %v1636 = vunpack.c.l.b16 %v1079
    %v1637 = vunpack.c.h.b16 %v1079
    %v1638 = vunpack.c.l.b16 %v1080
    %v1639 = vunpack.c.h.b16 %v1080
    %v1640 = vunpack.c.l.b16 %v1081
    %v1641 = vunpack.c.h.b16 %v1081
    %v1642 = vunpack.c.l.b16 %v1082
    %v1643 = vunpack.c.h.b16 %v1082
    %v1644 = vunpack.c.l.b16 %v1083
    %v1645 = vunpack.c.h.b16 %v1083
    %v1646 = vunpack.c.l.b16 %v1084
    %v1647 = vunpack.c.h.b16 %v1084
    %v1648 = vunpack.c.l.b16 %v1085
    %v1649 = vunpack.c.h.b16 %v1085
    %v1650 = vunpack.c.l.b16 %v1086
    %v1651 = vunpack.c.h.b16 %v1086
    %v1652 = vunpack.c.l.b16 %v1087
    %v1653 = vunpack.c.h.b16 %v1087
    %v1654 = vunpack.c.l.b16 %v1088
    %v1655 = vunpack.c.h.b16 %v1088
    %v1656 = vunpack.c.l.b16 %v1089
    %v1657 = vunpack.c.h.b16 %v1089
    %v1658 = vunpack.c.l.b16 %v1090
    %v1659 = vunpack.c.h.b16 %v1090
    %v1660 = vunpack.c.l.b16 %v1091
    %v1661 = vunpack.c.h.b16 %v1091
    %v1662 = vunpack.c.l.b16 %v1092
    %v1663 = vunpack.c.h.b16 %v1092
    %v1664 = vunpack.c.l.b16 %v1093
    %v1665 = vunpack.c.h.b16 %v1093
    %v1666 = vunpack.c.l.b16 %v1094
    %v1667 = vunpack.c.h.b16 %v1094
    %v1668 = vunpack.c.l.b16 %v1095
    %v1669 = vunpack.c.h.b16 %v1095
    %v1670 = vunpack.c.l.b16 %v1096
    %v1671 = vunpack.c.h.b16 %v1096
    %v1672 = vunpack.c.l.b16 %v1097
    %v1673 = vunpack.c.h.b16 %v1097
    %v1674 = vunpack.c.l.b16 %v1098
    %v1675 = vunpack.c.h.b16 %v1098
    %v1676 = vunpack.c.l.b16 %v1099
    %v1677 = vunpack.c.h.b16 %v1099
    %v1678 = vunpack.c.l.b16 %v1100
    %v1679 = vunpack.c.h.b16 %v1100
    %v1680 = vunpack.c.l.b16 %v1101
    %v1681 = vunpack.c.h.b16 %v1101
    %v1682 = vunpack.c.l.b16 %v1102
    %v1683 = vunpack.c.h.b16 %v1102
    %v1684 = vunpack.c.l.b16 %v1103
    %v1685 = vunpack.c.h.b16 %v1103
    %v1686 = vunpack.c.l.b16 %v1104
    %v1687 = vunpack.c.h.b16 %v1104
    %v1688 = vunpack.c.l.b16 %v1105
    %v1689 = vunpack.c.h.b16 %v1105
    %v1690 = vunpack.c.l.b16 %v1106
    %v1691 = vunpack.c.h.b16 %v1106
    %v1692 = vunpack.c.l.b16 %v1107
    %v1693 = vunpack.c.h.b16 %v1107
    %v1694 = vunpack.c.l.b16 %v1108
    %v1695 = vunpack.c.h.b16 %v1108
    %v1696 = vunpack.c.l.b16 %v1109
    %v1697 = vunpack.c.h.b16 %v1109
    %v1698 = vunpack.c.l.b16 %v1110
    %v1699 = vunpack.c.h.b16 %v1110
    %v1700 = vunpack.c.l.b16 %v1111
    %v1701 = vunpack.c.h.b16 %v1111
    %v1702 = vunpack.c.l.b16 %v1112
    %v1703 = vunpack.c.h.b16 %v1112
    %v1704 = vunpack.c.l.b16 %v1113
    %v1705 = vunpack.c.h.b16 %v1113
    %v1706 = vunpack.c.l.b16 %v1114
    %v1707 = vunpack.c.h.b16 %v1114
    %v1708 = vunpack.c.l.b16 %v1115
    %v1709 = vunpack.c.h.b16 %v1115
    %v1710 = vunpack.c.l.b16 %v1116
    %v1711 = vunpack.c.h.b16 %v1116
    %v1712 = vunpack.c.l.b16 %v1117
    %v1713 = vunpack.c.h.b16 %v1117
    %v1714 = vunpack.c.l.b16 %v1118
    %v1715 = vunpack.c.h.b16 %v1118
    %v1716 = vunpack.c.l.b16 %v1119
    %v1717 = vunpack.c.h.b16 %v1119
    %v1718 = vunpack.c.l.b16 %v1120
    %v1719 = vunpack.c.h.b16 %v1120
    %v1720 = vunpack.c.l.b16 %v1121
    %v1721 = vunpack.c.h.b16 %v1121
    %v1722 = vunpack.c.l.b16 %v1122
    %v1723 = vunpack.c.h.b16 %v1122
    %v1724 = vunpack.c.l.b16 %v1123
    %v1725 = vunpack.c.h.b16 %v1123
    %v1726 = vunpack.c.l.b16 %v1124
    %v1727 = vunpack.c.h.b16 %v1124
    %v1728 = vunpack.c.l.b16 %v1125
    %v1729 = vunpack.c.h.b16 %v1125
    %v1730 = vunpack.c.l.b16 %v1126
    %v1731 = vunpack.c.h.b16 %v1126
    %v1732 = vunpack.c.l.b16 %v1127
    %v1733 = vunpack.c.h.b16 %v1127
    %v1734 = vunpack.c.l.b16 %v1128
    %v1735 = vunpack.c.h.b16 %v1128
    %v1736 = vunpack.c.l.b16 %v1129
    %v1737 = vunpack.c.h.b16 %v1129
    %v1738 = vunpack.c.l.b16 %v1130
    %v1739 = vunpack.c.h.b16 %v1130
    %v1740 = vunpack.c.l.b16 %v1131
    %v1741 = vunpack.c.h.b16 %v1131
    %v1742 = vunpack.c.l.b16 %v1132
    %v1743 = vunpack.c.h.b16 %v1132
    %v1744 = vunpack.c.l.b16 %v1133
    %v1745 = vunpack.c.h.b16 %v1133
    %v1746 = vunpack.c.l.b16 %v1134
    %v1747 = vunpack.c.h.b16 %v1134
    %v1748 = vunpack.c.l.b16 %v1135
    %v1749 = vunpack.c.h.b16 %v1135
    %v1750 = vunpack.c.l.b16 %v1136
    %v1751 = vunpack.c.h.b16 %v1136
    %v1752 = vunpack.c.l.b16 %v1137
    %v1753 = vunpack.c.h.b16 %v1137
    %v1754 = vunpack.c.l.b16 %v1138
    %v1755 = vunpack.c.h.b16 %v1138
    %v1756 = vunpack.c.l.b16 %v1139
    %v1757 = vunpack.c.h.b16 %v1139
    %v1758 = vunpack.c.l.b16 %v1140
    %v1759 = vunpack.c.h.b16 %v1140
    %v1760 = vunpack.c.l.b16 %v1141
    %v1761 = vunpack.c.h.b16 %v1141
    %v1762 = vunpack.c.l.b16 %v1142
    %v1763 = vunpack.c.h.b16 %v1142
    %v1764 = vunpack.c.l.b16 %v1143
    %v1765 = vunpack.c.h.b16 %v1143
    %v1766 = vunpack.c.l.b16 %v1144
    %v1767 = vunpack.c.h.b16 %v1144
    %v1768 = vunpack.c.l.b16 %v1145
    %v1769 = vunpack.c.h.b16 %v1145
    %v1770 = vunpack.c.l.b16 %v1146
    %v1771 = vunpack.c.h.b16 %v1146
    %v1772 = vunpack.c.l.b16 %v1147
    %v1773 = vunpack.c.h.b16 %v1147
    %v1774 = vunpack.c.l.b16 %v1148
    %v1775 = vunpack.c.h.b16 %v1148
    %v1776 = vunpack.c.l.b16 %v1149
    %v1777 = vunpack.c.h.b16 %v1149
    %v1778 = vunpack.c.l.b16 %v1150
    %v1779 = vunpack.c.h.b16 %v1150
    %v1780 = vunpack.c.l.b16 %v1151
    %v1781 = vunpack.c.h.b16 %v1151
    %v1782 = vunpack.c.l.b16 %v1152
    %v1783 = vunpack.c.h.b16 %v1152
    %v1784 = vunpack.c.l.b16 %v1153
    %v1785 = vunpack.c.h.b16 %v1153
    %v1786 = vunpack.c.l.b16 %v1154
    %v1787 = vunpack.c.h.b16 %v1154
    %v1788 = vunpack.c.l.b16 %v1155
    %v1789 = vunpack.c.h.b16 %v1155
    %v1790 = vunpack.c.l.b16 %v1156
    %v1791 = vunpack.c.h.b16 %v1156
    %v1792 = vunpack.c.l.b16 %v1157
    %v1793 = vunpack.c.h.b16 %v1157
    %v1794 = vunpack.c.l.b16 %v1158
    %v1795 = vunpack.c.h.b16 %v1158
    %v1796 = vunpack.c.l.b16 %v1159
    %v1797 = vunpack.c.h.b16 %v1159
    %v1798 = vunpack.c.l.b16 %v1160
    %v1799 = vunpack.c.h.b16 %v1160
    %v1800 = vunpack.c.l.b16 %v1161
    %v1801 = vunpack.c.h.b16 %v1161
    %v1802 = vunpack.c.l.b16 %v1162
    %v1803 = vunpack.c.h.b16 %v1162
    %v1804 = vunpack.c.l.b16 %v1163
    %v1805 = vunpack.c.h.b16 %v1163
    %v1806 = vunpack.c.l.b16 %v1164
    %v1807 = vunpack.c.h.b16 %v1164
    %v1808 = vunpack.c.l.b16 %v1165
    %v1809 = vunpack.c.h.b16 %v1165
    %v1810 = vunpack.c.l.b16 %v1166
    %v1811 = vunpack.c.h.b16 %v1166
    %v1812 = vunpack.c.l.b16 %v1167
    %v1813 = vunpack.c.h.b16 %v1167
    %v1814 = vunpack.c.l.b16 %v1168
    %v1815 = vunpack.c.h.b16 %v1168
    %v1816 = vunpack.c.l.b16 %v1169
    %v1817 = vunpack.c.h.b16 %v1169
    %v1818 = vunpack.c.l.b16 %v1170
    %v1819 = vunpack.c.h.b16 %v1170
    %v1820 = vunpack.c.l.b16 %v1171
    %v1821 = vunpack.c.h.b16 %v1171
    %v1822 = vunpack.c.l.b16 %v1172
    %v1823 = vunpack.c.h.b16 %v1172
    %v1824 = vunpack.c.l.b16 %v1173
    %v1825 = vunpack.c.h.b16 %v1173
    %v1826 = vunpack.c.l.b16 %v1174
    %v1827 = vunpack.c.h.b16 %v1174
    %v1828 = vunpack.c.l.b16 %v1175
    %v1829 = vunpack.c.h.b16 %v1175
    %v1830 = vunpack.c.l.b16 %v1176
    %v1831 = vunpack.c.h.b16 %v1176
    %v1832 = vunpack.c.l.b16 %v1177
    %v1833 = vunpack.c.h.b16 %v1177
    %v1834 = vunpack.c.l.b16 %v1178
    %v1835 = vunpack.c.h.b16 %v1178
    %v1836 = vunpack.c.l.b16 %v1179
    %v1837 = vunpack.c.h.b16 %v1179
    %v1838 = vunpack.c.l.b16 %v1180
    %v1839 = vunpack.c.h.b16 %v1180
    %v1840 = vunpack.c.l.b16 %v1181
    %v1841 = vunpack.c.h.b16 %v1181
    %v1842 = vunpack.c.l.b16 %v1182
    %v1843 = vunpack.c.h.b16 %v1182
    %v1844 = vunpack.c.l.b16 %v1183
    %v1845 = vunpack.c.h.b16 %v1183
    %v1846 = vunpack.c.l.b16 %v1184
    %v1847 = vunpack.c.h.b16 %v1184
    %v1848 = vunpack.c.l.b16 %v1185
    %v1849 = vunpack.c.h.b16 %v1185
    %v1850 = vunpack.c.l.b16 %v1186
    %v1851 = vunpack.c.h.b16 %v1186
    %v1852 = vunpack.c.l.b16 %v1187
    %v1853 = vunpack.c.h.b16 %v1187
    %v1854 = vunpack.c.l.b16 %v1188
    %v1855 = vunpack.c.h.b16 %v1188
    %v1856 = vunpack.c.l.b16 %v1189
    %v1857 = vunpack.c.h.b16 %v1189
    %v1858 = vunpack.c.l.b16 %v1190
    %v1859 = vunpack.c.h.b16 %v1190
    %v1860 = vunpack.c.l.b16 %v1191
    %v1861 = vunpack.c.h.b16 %v1191
    %v1862 = vunpack.c.l.b16 %v1192
    %v1863 = vunpack.c.h.b16 %v1192
    %v1864 = vunpack.c.l.b16 %v1193
    %v1865 = vunpack.c.h.b16 %v1193
    %v1866 = vunpack.c.l.b16 %v1194
    %v1867 = vunpack.c.h.b16 %v1194
    %v1868 = vunpack.c.l.b16 %v1195
    %v1869 = vunpack.c.h.b16 %v1195
    %v1870 = vunpack.c.l.b16 %v1196
    %v1871 = vunpack.c.h.b16 %v1196
    %v1872 = vunpack.c.l.b16 %v1197
    %v1873 = vunpack.c.h.b16 %v1197
    %v1874 = vunpack.c.l.b16 %v1198
    %v1875 = vunpack.c.h.b16 %v1198
    %v1876 = vunpack.c.l.b16 %v1199
    %v1877 = vunpack.c.h.b16 %v1199
    %v1878 = vunpack.c.l.b16 %v1200
    %v1879 = vunpack.c.h.b16 %v1200
    %v1880 = vunpack.c.l.b16 %v1201
    %v1881 = vunpack.c.h.b16 %v1201
    %v1882 = vunpack.c.l.b16 %v1202
    %v1883 = vunpack.c.h.b16 %v1202
    %v1884 = vunpack.c.l.b16 %v1203
    %v1885 = vunpack.c.h.b16 %v1203
    %v1886 = vunpack.c.l.b16 %v1204
    %v1887 = vunpack.c.h.b16 %v1204
    %v1888 = vunpack.c.l.b16 %v1205
    %v1889 = vunpack.c.h.b16 %v1205
    %v1890 = vunpack.c.l.b16 %v1206
    %v1891 = vunpack.c.h.b16 %v1206
    %v1892 = vunpack.c.l.b16 %v1207
    %v1893 = vunpack.c.h.b16 %v1207
    %v1894 = vunpack.c.l.b16 %v1208
    %v1895 = vunpack.c.h.b16 %v1208
    %v1896 = vunpack.c.l.b16 %v1209
    %v1897 = vunpack.c.h.b16 %v1209
    %v1898 = vunpack.c.l.b16 %v1210
    %v1899 = vunpack.c.h.b16 %v1210
    %v1900 = vunpack.c.l.b16 %v1211
    %v1901 = vunpack.c.h.b16 %v1211
    %v1902 = vunpack.c.l.b16 %v1212
    %v1903 = vunpack.c.h.b16 %v1212
    %v1904 = vunpack.c.l.b16 %v1213
    %v1905 = vunpack.c.h.b16 %v1213
    %v1906 = vunpack.c.l.b16 %v1214
    %v1907 = vunpack.c.h.b16 %v1214
    %v1908 = vunpack.c.l.b16 %v1215
    %v1909 = vunpack.c.h.b16 %v1215
    %v1910 = vunpack.c.l.b16 %v1216
    %v1911 = vunpack.c.h.b16 %v1216
    %v1912 = vunpack.c.l.b16 %v1217
    %v1913 = vunpack.c.h.b16 %v1217
    %v1914 = vunpack.c.l.b16 %v1218
    %v1915 = vunpack.c.h.b16 %v1218
    %v1916 = vunpack.c.l.b16 %v1219
    %v1917 = vunpack.c.h.b16 %v1219
    %v1918 = vunpack.c.l.b16 %v1220
    %v1919 = vunpack.c.h.b16 %v1220
    %v1920 = vunpack.c.l.b16 %v1221
    %v1921 = vunpack.c.h.b16 %v1221
    %v1922 = vunpack.c.l.b16 %v1222
    %v1923 = vunpack.c.h.b16 %v1222
    %v1924 = vunpack.c.l.b16 %v1223
    %v1925 = vunpack.c.h.b16 %v1223
    %v1926 = vunpack.c.l.b16 %v1224
    %v1927 = vunpack.c.h.b16 %v1224
    %v1928 = vunpack.c.l.b16 %v1225
    %v1929 = vunpack.c.h.b16 %v1225
    %v1930 = vunpack.c.l.b16 %v1226
    %v1931 = vunpack.c.h.b16 %v1226
    %v1932 = vunpack.c.l.b16 %v1227
    %v1933 = vunpack.c.h.b16 %v1227
    %v1934 = vunpack.c.l.b16 %v1228
    %v1935 = vunpack.c.h.b16 %v1228
    %v1936 = vunpack.c.l.b16 %v1229
    %v1937 = vunpack.c.h.b16 %v1229
    %v1938 = vunpack.c.l.b16 %v1230
    %v1939 = vunpack.c.h.b16 %v1230
    %v1940 = vunpack.c.l.b16 %v1231
    %v1941 = vunpack.c.h.b16 %v1231
    %v1942 = vunpack.c.l.b16 %v1232
    %v1943 = vunpack.c.h.b16 %v1232
    %v1944 = vunpack.c.l.b16 %v1233
    %v1945 = vunpack.c.h.b16 %v1233
    %v1946 = vunpack.c.l.b16 %v1234
    %v1947 = vunpack.c.h.b16 %v1234
    %v1948 = vunpack.c.l.b16 %v1235
    %v1949 = vunpack.c.h.b16 %v1235
    %v1950 = vunpack.c.l.b16 %v1236
    %v1951 = vunpack.c.h.b16 %v1236
    %v1952 = vunpack.c.l.b16 %v1237
    %v1953 = vunpack.c.h.b16 %v1237
    %v1954 = vunpack.c.l.b16 %v1238
    %v1955 = vunpack.c.h.b16 %v1238
    %v1956 = vunpack.c.l.b16 %v1239
    %v1957 = vunpack.c.h.b16 %v1239
    %v1958 = vunpack.c.l.b16 %v1240
    %v1959 = vunpack.c.h.b16 %v1240
    %v1960 = vunpack.c.l.b16 %v1241
    %v1961 = vunpack.c.h.b16 %v1241
    %v1962 = vunpack.c.l.b16 %v1242
    %v1963 = vunpack.c.h.b16 %v1242
    %v1964 = vunpack.c.l.b16 %v1243
    %v1965 = vunpack.c.h.b16 %v1243
    %v1966 = vunpack.c.l.b16 %v1244
    %v1967 = vunpack.c.h.b16 %v1244
    %v1968 = vpack.c.b16 %v1512, %v1488
    %v1969 = vpack.c.b16 %v1513, %v1489
    %v1970 = vpack.c.b16 %v1514, %v1490
    %v1971 = vpack.c.b16 %v1515, %v1491
    %v1972 = vpack.c.b16 %v1516, %v1492
    %v1973 = vpack.c.b16 %v1517, %v1493
    %v1974 = vpack.c.b16 %v1518, %v1494
    %v1975 = vpack.c.b16 %v1519, %v1495
    %v1976 = vpack.c.b16 %v1520, %v1496
    %v1977 = vpack.c.b16 %v1521, %v1497
    %v1978 = vpack.c.b16 %v1522, %v1498
    %v1979 = vpack.c.b16 %v1523, %v1499
    %v1980 = vpack.c.b16 %v1524, %v1500
    %v1981 = vpack.c.b16 %v1525, %v1501
    %v1982 = vpack.c.b16 %v1526, %v1502
    %v1983 = vpack.c.b16 %v1527, %v1503
    %v1984 = vpack.c.b16 %v1528, %v1504
    %v1985 = vpack.c.b16 %v1529, %v1505
    %v1986 = vpack.c.b16 %v1530, %v1506
    %v1987 = vpack.c.b16 %v1531, %v1507
    %v1988 = vpack.c.b16 %v1532, %v1508
    %v1989 = vpack.c.b16 %v1533, %v1509
    %v1990 = vpack.c.b16 %v1534, %v1510
    %v1991 = vpack.c.b16 %v1535, %v1511
    %v1992 = vpack.c.b16 %v1560, %v1536
    %v1993 = vpack.c.b16 %v1561, %v1537
    %v1994 = vpack.c.b16 %v1562, %v1538
    %v1995 = vpack.c.b16 %v1563, %v1539
    %v1996 = vpack.c.b16 %v1564, %v1540
    %v1997 = vpack.c.b16 %v1565, %v1541
    %v1998 = vpack.c.b16 %v1566, %v1542
    %v1999 = vpack.c.b16 %v1567, %v1543
    %v2000 = vpack.c.b16 %v1568, %v1544
    %v2001 = vpack.c.b16 %v1569, %v1545
    %v2002 = vpack.c.b16 %v1570, %v1546
    %v2003 = vpack.c.b16 %v1571, %v1547
    %v2004 = vpack.c.b16 %v1572, %v1548
    %v2005 = vpack.c.b16 %v1573, %v1549
    %v2006 = vpack.c.b16 %v1574, %v1550
    %v2007 = vpack.c.b16 %v1575, %v1551
    %v2008 = vpack.c.b16 %v1576, %v1552
    %v2009 = vpack.c.b16 %v1577, %v1553
    %v2010 = vpack.c.b16 %v1578, %v1554
    %v2011 = vpack.c.b16 %v1579, %v1555
    %v2012 = vpack.c.b16 %v1580, %v1556
    %v2013 = vpack.c.b16 %v1581, %v1557
    %v2014 = vpack.c.b16 %v1582, %v1558
    %v2015 = vpack.c.b16 %v1583, %v1559
    %v2016 = vpack.c.b16 %v1608, %v1584
    %v2017 = vpack.c.b16 %v1609, %v1585
    %v2018 = vpack.c.b16 %v1610, %v1586
    %v2019 = vpack.c.b16 %v1611, %v1587
    %v2020 = vpack.c.b16 %v1612, %v1588
    %v2021 = vpack.c.b16 %v1613, %v1589
    %v2022 = vpack.c.b16 %v1614, %v1590
    %v2023 = vpack.c.b16 %v1615, %v1591
    %v2024 = vpack.c.b16 %v1616, %v1592
    %v2025 = vpack.c.b16 %v1617, %v1593
    %v2026 = vpack.c.b16 %v1618, %v1594
    %v2027 = vpack.c.b16 %v1619, %v1595
    %v2028 = vpack.c.b16 %v1620, %v1596
    %v2029 = vpack.c.b16 %v1621, %v1597
    %v2030 = vpack.c.b16 %v1622, %v1598
    %v2031 = vpack.c.b16 %v1623, %v1599
    %v2032 = vpack.c.b16 %v1624, %v1600
    %v2033 = vpack.c.b16 %v1625, %v1601
    %v2034 = vpack.c.b16 %v1626, %v1602
    %v2035 = vpack.c.b16 %v1627, %v1603
    %v2036 = vpack.c.b16 %v1628, %v1604
    %v2037 = vpack.c.b16 %v1629, %v1605
    %v2038 = vpack.c.b16 %v1630, %v1606
    %v2039 = vpack.c.b16 %v1631, %v1607
    %v2040 = vpack.c.b16 %v1656, %v1632
    %v2041 = vpack.c.b16 %v1657, %v1633
    %v2042 = vpack.c.b16 %v1658, %v1634
    %v2043 = vpack.c.b16 %v1659, %v1635
    %v2044 = vpack.c.b16 %v1660, %v1636
    %v2045 = vpack.c.b16 %v1661, %v1637
    %v2046 = vpack.c.b16 %v1662, %v1638
    %v2047 = vpack.c.b16 %v1663, %v1639
    %v2048 = vpack.c.b16 %v1664, %v1640
    %v2049 = vpack.c.b16 %v1665, %v1641
    %v2050 = vpack.c.b16 %v1666, %v1642
    %v2051 = vpack.c.b16 %v1667, %v1643
    %v2052 = vpack.c.b16 %v1668, %v1644
    %v2053 = vpack.c.b16 %v1669, %v1645
    %v2054 = vpack.c.b16 %v1670, %v1646
    %v2055 = vpack.c.b16 %v1671, %v1647
    %v2056 = vpack.c.b16 %v1672, %v1648
    %v2057 = vpack.c.b16 %v1673, %v1649
    %v2058 = vpack.c.b16 %v1674, %v1650
    %v2059 = vpack.c.b16 %v1675, %v1651
    %v2060 = vpack.c.b16 %v1676, %v1652
    %v2061 = vpack.c.b16 %v1677, %v1653
    %v2062 = vpack.c.b16 %v1678, %v1654
    %v2063 = vpack.c.b16 %v1679, %v1655
    %v2064 = vpack.c.b16 %v1704, %v1680
    %v2065 = vpack.c.b16 %v1705, %v1681
    %v2066 = vpack.c.b16 %v1706, %v1682
    %v2067 = vpack.c.b16 %v1707, %v1683
    %v2068 = vpack.c.b16 %v1708, %v1684
    %v2069 = vpack.c.b16 %v1709, %v1685
    %v2070 = vpack.c.b16 %v1710, %v1686
    %v2071 = vpack.c.b16 %v1711, %v1687
    %v2072 = vpack.c.b16 %v1712, %v1688
    %v2073 = vpack.c.b16 %v1713, %v1689
    %v2074 = vpack.c.b16 %v1714, %v1690
    %v2075 = vpack.c.b16 %v1715, %v1691
    %v2076 = vpack.c.b16 %v1716, %v1692
    %v2077 = vpack.c.b16 %v1717, %v1693
    %v2078 = vpack.c.b16 %v1718, %v1694
    %v2079 = vpack.c.b16 %v1719, %v1695
    %v2080 = vpack.c.b16 %v1720, %v1696
    %v2081 = vpack.c.b16 %v1721, %v1697
    %v2082 = vpack.c.b16 %v1722, %v1698
    %v2083 = vpack.c.b16 %v1723, %v1699
    %v2084 = vpack.c.b16 %v1724, %v1700
    %v2085 = vpack.c.b16 %v1725, %v1701
    %v2086 = vpack.c.b16 %v1726, %v1702
    %v2087 = vpack.c.b16 %v1727, %v1703
    %v2088 = vpack.c.b16 %v1752, %v1728
    %v2089 = vpack.c.b16 %v1753, %v1729
    %v2090 = vpack.c.b16 %v1754, %v1730
    %v2091 = vpack.c.b16 %v1755, %v1731
    %v2092 = vpack.c.b16 %v1756, %v1732
    %v2093 = vpack.c.b16 %v1757, %v1733
    %v2094 = vpack.c.b16 %v1758, %v1734
    %v2095 = vpack.c.b16 %v1759, %v1735
    %v2096 = vpack.c.b16 %v1760, %v1736
    %v2097 = vpack.c.b16 %v1761, %v1737
    %v2098 = vpack.c.b16 %v1762, %v1738
    %v2099 = vpack.c.b16 %v1763, %v1739
    %v2100 = vpack.c.b16 %v1764, %v1740
    %v2101 = vpack.c.b16 %v1765, %v1741
    %v2102 = vpack.c.b16 %v1766, %v1742
    %v2103 = vpack.c.b16 %v1767, %v1743
    %v2104 = vpack.c.b16 %v1768, %v1744
    %v2105 = vpack.c.b16 %v1769, %v1745
    %v2106 = vpack.c.b16 %v1770, %v1746
    %v2107 = vpack.c.b16 %v1771, %v1747
    %v2108 = vpack.c.b16 %v1772, %v1748
    %v2109 = vpack.c.b16 %v1773, %v1749
    %v2110 = vpack.c.b16 %v1774, %v1750
    %v2111 = vpack.c.b16 %v1775, %v1751
    %v2112 = vpack.c.b16 %v1800, %v1776
    %v2113 = vpack.c.b16 %v1801, %v1777
    %v2114 = vpack.c.b16 %v1802, %v1778
    %v2115 = vpack.c.b16 %v1803, %v1779
    %v2116 = vpack.c.b16 %v1804, %v1780
    %v2117 = vpack.c.b16 %v1805, %v1781
    %v2118 = vpack.c.b16 %v1806, %v1782
    %v2119 = vpack.c.b16 %v1807, %v1783
    %v2120 = vpack.c.b16 %v1808, %v1784
    %v2121 = vpack.c.b16 %v1809, %v1785
    %v2122 = vpack.c.b16 %v1810, %v1786
    %v2123 = vpack.c.b16 %v1811, %v1787
    %v2124 = vpack.c.b16 %v1812, %v1788
    %v2125 = vpack.c.b16 %v1813, %v1789
    %v2126 = vpack.c.b16 %v1814, %v1790
    %v2127 = vpack.c.b16 %v1815, %v1791
    %v2128 = vpack.c.b16 %v1816, %v1792
    %v2129 = vpack.c.b16 %v1817, %v1793
    %v2130 = vpack.c.b16 %v1818, %v1794
    %v2131 = vpack.c.b16 %v1819, %v1795
    %v2132 = vpack.c.b16 %v1820, %v1796
    %v2133 = vpack.c.b16 %v1821, %v1797
    %v2134 = vpack.c.b16 %v1822, %v1798
    %v2135 = vpack.c.b16 %v1823, %v1799
    %v2136 = vpack.c.b16 %v1848, %v1824
    %v2137 = vpack.c.b16 %v1849, %v1825
    %v2138 = vpack.c.b16 %v1850, %v1826
    %v2139 = vpack.c.b16 %v1851, %v1827
    %v2140 = vpack.c.b16 %v1852, %v1828
    %v2141 = vpack.c.b16 %v1853, %v1829
    %v2142 = vpack.c.b16 %v1854, %v1830
    %v2143 = vpack.c.b16 %v1855, %v1831
    %v2144 = vpack.c.b16 %v1856, %v1832
    %v2145 = vpack.c.b16 %v1857, %v1833
    %v2146 = vpack.c.b16 %v1858, %v1834
    %v2147 = vpack.c.b16 %v1859, %v1835
    %v2148 = vpack.c.b16 %v1860, %v1836
    %v2149 = vpack.c.b16 %v1861, %v1837
    %v2150 = vpack.c.b16 %v1862, %v1838
    %v2151 = vpack.c.b16 %v1863, %v1839
    %v2152 = vpack.c.b16 %v1864, %v1840
    %v2153 = vpack.c.b16 %v1865, %v1841
    %v2154 = vpack.c.b16 %v1866, %v1842
    %v2155 = vpack.c.b16 %v1867, %v1843
    %v2156 = vpack.c.b16 %v1868, %v1844
    %v2157 = vpack.c.b16 %v1869, %v1845
    %v2158 = vpack.c.b16 %v1870, %v1846
    %v2159 = vpack.c.b16 %v1871, %v1847
    %v2160 = vpack.c.b16 %v1896, %v1872
    %v2161 = vpack.c.b16 %v1897, %v1873
    %v2162 = vpack.c.b16 %v1898, %v1874
    %v2163 = vpack.c.b16 %v1899, %v1875
    %v2164 = vpack.c.b16 %v1900, %v1876
    %v2165 = vpack.c.b16 %v1901, %v1877
    %v2166 = vpack.c.b16 %v1902, %v1878
    %v2167 = vpack.c.b16 %v1903, %v1879
    %v2168 = vpack.c.b16 %v1904, %v1880
    %v2169 = vpack.c.b16 %v1905, %v1881
    %v2170 = vpack.c.b16 %v1906, %v1882
    %v2171 = vpack.c.b16 %v1907, %v1883
    %v2172 = vpack.c.b16 %v1908, %v1884
    %v2173 = vpack.c.b16 %v1909, %v1885
    %v2174 = vpack.c.b16 %v1910, %v1886
    %v2175 = vpack.c.b16 %v1911, %v1887
    %v2176 = vpack.c.b16 %v1912, %v1888
    %v2177 = vpack.c.b16 %v1913, %v1889
    %v2178 = vpack.c.b16 %v1914, %v1890
    %v2179 = vpack.c.b16 %v1915, %v1891
    %v2180 = vpack.c.b16 %v1916, %v1892
    %v2181 = vpack.c.b16 %v1917, %v1893
    %v2182 = vpack.c.b16 %v1918, %v1894
    %v2183 = vpack.c.b16 %v1919, %v1895
    %v2184 = vpack.c.b16 %v1944, %v1920
    %v2185 = vpack.c.b16 %v1945, %v1921
    %v2186 = vpack.c.b16 %v1946, %v1922
    %v2187 = vpack.c.b16 %v1947, %v1923
    %v2188 = vpack.c.b16 %v1948, %v1924
    %v2189 = vpack.c.b16 %v1949, %v1925
    %v2190 = vpack.c.b16 %v1950, %v1926
    %v2191 = vpack.c.b16 %v1951, %v1927
    %v2192 = vpack.c.b16 %v1952, %v1928
    %v2193 = vpack.c.b16 %v1953, %v1929
    %v2194 = vpack.c.b16 %v1954, %v1930
    %v2195 = vpack.c.b16 %v1955, %v1931
    %v2196 = vpack.c.b16 %v1956, %v1932
    %v2197 = vpack.c.b16 %v1957, %v1933
    %v2198 = vpack.c.b16 %v1958, %v1934
    %v2199 = vpack.c.b16 %v1959, %v1935
    %v2200 = vpack.c.b16 %v1960, %v1936
    %v2201 = vpack.c.b16 %v1961, %v1937
    %v2202 = vpack.c.b16 %v1962, %v1938
    %v2203 = vpack.c.b16 %v1963, %v1939
    %v2204 = vpack.c.b16 %v1964, %v1940
    %v2205 = vpack.c.b16 %v1965, %v1941
    %v2206 = vpack.c.b16 %v1966, %v1942
    %v2207 = vpack.c.b16 %v1967, %v1943
    %v2451 = vperm.slane %v1245, 0
    %v2452 = vperm.slane %v1245, 1
    %v2453 = vperm.slane %v1245, 2
    %v2454 = vperm.slane %v1245, 3
    %v2455 = vperm.slane %v1245, 4
    %v2456 = vperm.slane %v1245, 5
    %v2457 = vperm.slane %v1245, 6
    %v2458 = vperm.slane %v1245, 7
    %v2459 = vperm.slane %v1246, 0
    %v2460 = vperm.slane %v1246, 1
    %v2461 = vperm.slane %v1246, 2
    %v2462 = vperm.slane %v1246, 3
    %v2463 = vperm.slane %v1246, 4
    %v2464 = vperm.slane %v1246, 5
    %v2465 = vperm.slane %v1246, 6
    %v2466 = vperm.slane %v1246, 7
    %v2467 = vperm.slane %v1247, 0
    %v2468 = vperm.slane %v1247, 1
    %v2469 = vperm.slane %v1247, 2
    %v2470 = vperm.slane %v1247, 3
    %v2471 = vperm.slane %v1247, 4
    %v2472 = vperm.slane %v1247, 5
    %v2473 = vperm.slane %v1247, 6
    %v2474 = vperm.slane %v1247, 7
    %vm2499 = vcmask 261120
    %v2501 = vsel %vm2499, %v1004, 0
    %2503 = vmatpush.bf16.msra.mxu0 %v2136
    %2504 = vmatpush.bf16.msra.mxu0 %v2112
    %2505 = vmatpush.bf16.msra.mxu0 %v2088
    %2506 = vmatpush.bf16.msra.mxu0 %v2064
    %2507 = vmatpush.bf16.msra.mxu0 %v2040
    %2508 = vmatpush.bf16.msra.mxu0 %v2016
    %2509 = vmatpush.bf16.msra.mxu0 %v1992
    %2510 = vmatpush.bf16.msra.mxu0 %v1968
    %2511 = vmatmul.bf16.gmra.mxu0 %v1003
    %v2512 = vpop.f32.mrf.mxu0
    %v2513 = vadd.f32 %v2451, %v2512
    %v2514 = vpop.f32.mrf.mxu0
    %2515 = vdwg.mxu0
    %2516 = vmatpush.bf16.msra.mxu0 0
    %2517 = vmatpush.bf16.msra.mxu0 0
    %2518 = vmatpush.bf16.msra.mxu0 0
    %2519 = vmatpush.bf16.msra.mxu0 0
    %2520 = vmatpush.bf16.msra.mxu0 0
    %2521 = vmatpush.bf16.msra.mxu0 0
    %2522 = vmatpush.bf16.msra.mxu0 %v2184
    %2523 = vmatpush.bf16.msra.mxu0 %v2160
    %2524 = vmatmul.bf16.gmra.mxu0 %v2501
    %v2525 = vpop.f32.mrf.mxu0
    %v2526 = vadd.f32 %v2513, %v2525
    %v2527 = vpop.f32.mrf.mxu0
    %2528 = vdwg.mxu0
    %2529 = vmatpush.bf16.msra.mxu0 %v2137
    %2530 = vmatpush.bf16.msra.mxu0 %v2113
    %2531 = vmatpush.bf16.msra.mxu0 %v2089
    %2532 = vmatpush.bf16.msra.mxu0 %v2065
    %2533 = vmatpush.bf16.msra.mxu0 %v2041
    %2534 = vmatpush.bf16.msra.mxu0 %v2017
    %2535 = vmatpush.bf16.msra.mxu0 %v1993
    %2536 = vmatpush.bf16.msra.mxu0 %v1969
    %2537 = vmatmul.bf16.gmra.mxu0 %v1003
    %v2538 = vpop.f32.mrf.mxu0
    %v2539 = vadd.f32 %v2452, %v2538
    %v2540 = vpop.f32.mrf.mxu0
    %2541 = vdwg.mxu0
    %2542 = vmatpush.bf16.msra.mxu0 0
    %2543 = vmatpush.bf16.msra.mxu0 0
    %2544 = vmatpush.bf16.msra.mxu0 0
    %2545 = vmatpush.bf16.msra.mxu0 0
    %2546 = vmatpush.bf16.msra.mxu0 0
    %2547 = vmatpush.bf16.msra.mxu0 0
    %2548 = vmatpush.bf16.msra.mxu0 %v2185
    %2549 = vmatpush.bf16.msra.mxu0 %v2161
    %2550 = vmatmul.bf16.gmra.mxu0 %v2501
    %v2551 = vpop.f32.mrf.mxu0
    %v2552 = vadd.f32 %v2539, %v2551
    %v2553 = vpop.f32.mrf.mxu0
    %2554 = vdwg.mxu0
    %2555 = vmatpush.bf16.msra.mxu0 %v2138
    %2556 = vmatpush.bf16.msra.mxu0 %v2114
    %2557 = vmatpush.bf16.msra.mxu0 %v2090
    %2558 = vmatpush.bf16.msra.mxu0 %v2066
    %2559 = vmatpush.bf16.msra.mxu0 %v2042
    %2560 = vmatpush.bf16.msra.mxu0 %v2018
    %2561 = vmatpush.bf16.msra.mxu0 %v1994
    %2562 = vmatpush.bf16.msra.mxu0 %v1970
    %2563 = vmatmul.bf16.gmra.mxu0 %v1003
    %v2564 = vpop.f32.mrf.mxu0
    %v2565 = vadd.f32 %v2453, %v2564
    %v2566 = vpop.f32.mrf.mxu0
    %2567 = vdwg.mxu0
    %2568 = vmatpush.bf16.msra.mxu0 0
    %2569 = vmatpush.bf16.msra.mxu0 0
    %2570 = vmatpush.bf16.msra.mxu0 0
    %2571 = vmatpush.bf16.msra.mxu0 0
    %2572 = vmatpush.bf16.msra.mxu0 0
    %2573 = vmatpush.bf16.msra.mxu0 0
    %2574 = vmatpush.bf16.msra.mxu0 %v2186
    %2575 = vmatpush.bf16.msra.mxu0 %v2162
    %2576 = vmatmul.bf16.gmra.mxu0 %v2501
    %v2577 = vpop.f32.mrf.mxu0
    %v2578 = vadd.f32 %v2565, %v2577
    %v2579 = vpop.f32.mrf.mxu0
    %2580 = vdwg.mxu0
    %2581 = vmatpush.bf16.msra.mxu0 %v2139
    %2582 = vmatpush.bf16.msra.mxu0 %v2115
    %2583 = vmatpush.bf16.msra.mxu0 %v2091
    %2584 = vmatpush.bf16.msra.mxu0 %v2067
    %2585 = vmatpush.bf16.msra.mxu0 %v2043
    %2586 = vmatpush.bf16.msra.mxu0 %v2019
    %2587 = vmatpush.bf16.msra.mxu0 %v1995
    %2588 = vmatpush.bf16.msra.mxu0 %v1971
    %2589 = vmatmul.bf16.gmra.mxu0 %v1003
    %v2590 = vpop.f32.mrf.mxu0
    %v2591 = vadd.f32 %v2454, %v2590
    %v2592 = vpop.f32.mrf.mxu0
    %2593 = vdwg.mxu0
    %2594 = vmatpush.bf16.msra.mxu0 0
    %2595 = vmatpush.bf16.msra.mxu0 0
    %2596 = vmatpush.bf16.msra.mxu0 0
    %2597 = vmatpush.bf16.msra.mxu0 0
    %2598 = vmatpush.bf16.msra.mxu0 0
    %2599 = vmatpush.bf16.msra.mxu0 0
    %2600 = vmatpush.bf16.msra.mxu0 %v2187
    %2601 = vmatpush.bf16.msra.mxu0 %v2163
    %2602 = vmatmul.bf16.gmra.mxu0 %v2501
    %v2603 = vpop.f32.mrf.mxu0
    %v2604 = vadd.f32 %v2591, %v2603
    %v2605 = vpop.f32.mrf.mxu0
    %2606 = vdwg.mxu0
    %2607 = vmatpush.bf16.msra.mxu0 %v2140
    %2608 = vmatpush.bf16.msra.mxu0 %v2116
    %2609 = vmatpush.bf16.msra.mxu0 %v2092
    %2610 = vmatpush.bf16.msra.mxu0 %v2068
    %2611 = vmatpush.bf16.msra.mxu0 %v2044
    %2612 = vmatpush.bf16.msra.mxu0 %v2020
    %2613 = vmatpush.bf16.msra.mxu0 %v1996
    %2614 = vmatpush.bf16.msra.mxu0 %v1972
    %2615 = vmatmul.bf16.gmra.mxu0 %v1003
    %v2616 = vpop.f32.mrf.mxu0
    %v2617 = vadd.f32 %v2455, %v2616
    %v2618 = vpop.f32.mrf.mxu0
    %2619 = vdwg.mxu0
    %2620 = vmatpush.bf16.msra.mxu0 0
    %2621 = vmatpush.bf16.msra.mxu0 0
    %2622 = vmatpush.bf16.msra.mxu0 0
    %2623 = vmatpush.bf16.msra.mxu0 0
    %2624 = vmatpush.bf16.msra.mxu0 0
    %2625 = vmatpush.bf16.msra.mxu0 0
    %2626 = vmatpush.bf16.msra.mxu0 %v2188
    %2627 = vmatpush.bf16.msra.mxu0 %v2164
    %2628 = vmatmul.bf16.gmra.mxu0 %v2501
    %v2629 = vpop.f32.mrf.mxu0
    %v2630 = vadd.f32 %v2617, %v2629
    %v2631 = vpop.f32.mrf.mxu0
    %2632 = vdwg.mxu0
    %2633 = vmatpush.bf16.msra.mxu0 %v2141
    %2634 = vmatpush.bf16.msra.mxu0 %v2117
    %2635 = vmatpush.bf16.msra.mxu0 %v2093
    %2636 = vmatpush.bf16.msra.mxu0 %v2069
    %2637 = vmatpush.bf16.msra.mxu0 %v2045
    %2638 = vmatpush.bf16.msra.mxu0 %v2021
    %2639 = vmatpush.bf16.msra.mxu0 %v1997
    %2640 = vmatpush.bf16.msra.mxu0 %v1973
    %2641 = vmatmul.bf16.gmra.mxu0 %v1003
    %v2642 = vpop.f32.mrf.mxu0
    %v2643 = vadd.f32 %v2456, %v2642
    %v2644 = vpop.f32.mrf.mxu0
    %2645 = vdwg.mxu0
    %2646 = vmatpush.bf16.msra.mxu0 0
    %2647 = vmatpush.bf16.msra.mxu0 0
    %2648 = vmatpush.bf16.msra.mxu0 0
    %2649 = vmatpush.bf16.msra.mxu0 0
    %2650 = vmatpush.bf16.msra.mxu0 0
    %2651 = vmatpush.bf16.msra.mxu0 0
    %2652 = vmatpush.bf16.msra.mxu0 %v2189
    %2653 = vmatpush.bf16.msra.mxu0 %v2165
    %2654 = vmatmul.bf16.gmra.mxu0 %v2501
    %v2655 = vpop.f32.mrf.mxu0
    %v2656 = vadd.f32 %v2643, %v2655
    %v2657 = vpop.f32.mrf.mxu0
    %2658 = vdwg.mxu0
    %2659 = vmatpush.bf16.msra.mxu0 %v2142
    %2660 = vmatpush.bf16.msra.mxu0 %v2118
    %2661 = vmatpush.bf16.msra.mxu0 %v2094
    %2662 = vmatpush.bf16.msra.mxu0 %v2070
    %2663 = vmatpush.bf16.msra.mxu0 %v2046
    %2664 = vmatpush.bf16.msra.mxu0 %v2022
    %2665 = vmatpush.bf16.msra.mxu0 %v1998
    %2666 = vmatpush.bf16.msra.mxu0 %v1974
    %2667 = vmatmul.bf16.gmra.mxu0 %v1003
    %v2668 = vpop.f32.mrf.mxu0
    %v2669 = vadd.f32 %v2457, %v2668
    %v2670 = vpop.f32.mrf.mxu0
    %2671 = vdwg.mxu0
    %2672 = vmatpush.bf16.msra.mxu0 0
    %2673 = vmatpush.bf16.msra.mxu0 0
    %2674 = vmatpush.bf16.msra.mxu0 0
    %2675 = vmatpush.bf16.msra.mxu0 0
    %2676 = vmatpush.bf16.msra.mxu0 0
    %2677 = vmatpush.bf16.msra.mxu0 0
    %2678 = vmatpush.bf16.msra.mxu0 %v2190
    %2679 = vmatpush.bf16.msra.mxu0 %v2166
    %2680 = vmatmul.bf16.gmra.mxu0 %v2501
    %v2681 = vpop.f32.mrf.mxu0
    %v2682 = vadd.f32 %v2669, %v2681
    %v2683 = vpop.f32.mrf.mxu0
    %2684 = vdwg.mxu0
    %2685 = vmatpush.bf16.msra.mxu0 %v2143
    %2686 = vmatpush.bf16.msra.mxu0 %v2119
    %2687 = vmatpush.bf16.msra.mxu0 %v2095
    %2688 = vmatpush.bf16.msra.mxu0 %v2071
    %2689 = vmatpush.bf16.msra.mxu0 %v2047
    %2690 = vmatpush.bf16.msra.mxu0 %v2023
    %2691 = vmatpush.bf16.msra.mxu0 %v1999
    %2692 = vmatpush.bf16.msra.mxu0 %v1975
    %2693 = vmatmul.bf16.gmra.mxu0 %v1003
    %v2694 = vpop.f32.mrf.mxu0
    %v2695 = vadd.f32 %v2458, %v2694
    %v2696 = vpop.f32.mrf.mxu0
    %2697 = vdwg.mxu0
    %2698 = vmatpush.bf16.msra.mxu0 0
    %2699 = vmatpush.bf16.msra.mxu0 0
    %2700 = vmatpush.bf16.msra.mxu0 0
    %2701 = vmatpush.bf16.msra.mxu0 0
    %2702 = vmatpush.bf16.msra.mxu0 0
    %2703 = vmatpush.bf16.msra.mxu0 0
    %2704 = vmatpush.bf16.msra.mxu0 %v2191
    %2705 = vmatpush.bf16.msra.mxu0 %v2167
    %2706 = vmatmul.bf16.gmra.mxu0 %v2501
    %v2707 = vpop.f32.mrf.mxu0
    %v2708 = vadd.f32 %v2695, %v2707
    %v2709 = vpop.f32.mrf.mxu0
    %2710 = vdwg.mxu0
    %2711 = vmatpush.bf16.msra.mxu0 %v2144
    %2712 = vmatpush.bf16.msra.mxu0 %v2120
    %2713 = vmatpush.bf16.msra.mxu0 %v2096
    %2714 = vmatpush.bf16.msra.mxu0 %v2072
    %2715 = vmatpush.bf16.msra.mxu0 %v2048
    %2716 = vmatpush.bf16.msra.mxu0 %v2024
    %2717 = vmatpush.bf16.msra.mxu0 %v2000
    %2718 = vmatpush.bf16.msra.mxu0 %v1976
    %2719 = vmatmul.bf16.gmra.mxu0 %v1003
    %v2720 = vpop.f32.mrf.mxu0
    %v2721 = vadd.f32 %v2459, %v2720
    %v2722 = vpop.f32.mrf.mxu0
    %2723 = vdwg.mxu0
    %2724 = vmatpush.bf16.msra.mxu0 0
    %2725 = vmatpush.bf16.msra.mxu0 0
    %2726 = vmatpush.bf16.msra.mxu0 0
    %2727 = vmatpush.bf16.msra.mxu0 0
    %2728 = vmatpush.bf16.msra.mxu0 0
    %2729 = vmatpush.bf16.msra.mxu0 0
    %2730 = vmatpush.bf16.msra.mxu0 %v2192
    %2731 = vmatpush.bf16.msra.mxu0 %v2168
    %2732 = vmatmul.bf16.gmra.mxu0 %v2501
    %v2733 = vpop.f32.mrf.mxu0
    %v2734 = vadd.f32 %v2721, %v2733
    %v2735 = vpop.f32.mrf.mxu0
    %2736 = vdwg.mxu0
    %2737 = vmatpush.bf16.msra.mxu0 %v2145
    %2738 = vmatpush.bf16.msra.mxu0 %v2121
    %2739 = vmatpush.bf16.msra.mxu0 %v2097
    %2740 = vmatpush.bf16.msra.mxu0 %v2073
    %2741 = vmatpush.bf16.msra.mxu0 %v2049
    %2742 = vmatpush.bf16.msra.mxu0 %v2025
    %2743 = vmatpush.bf16.msra.mxu0 %v2001
    %2744 = vmatpush.bf16.msra.mxu0 %v1977
    %2745 = vmatmul.bf16.gmra.mxu0 %v1003
    %v2746 = vpop.f32.mrf.mxu0
    %v2747 = vadd.f32 %v2460, %v2746
    %v2748 = vpop.f32.mrf.mxu0
    %2749 = vdwg.mxu0
    %2750 = vmatpush.bf16.msra.mxu0 0
    %2751 = vmatpush.bf16.msra.mxu0 0
    %2752 = vmatpush.bf16.msra.mxu0 0
    %2753 = vmatpush.bf16.msra.mxu0 0
    %2754 = vmatpush.bf16.msra.mxu0 0
    %2755 = vmatpush.bf16.msra.mxu0 0
    %2756 = vmatpush.bf16.msra.mxu0 %v2193
    %2757 = vmatpush.bf16.msra.mxu0 %v2169
    %2758 = vmatmul.bf16.gmra.mxu0 %v2501
    %v2759 = vpop.f32.mrf.mxu0
    %v2760 = vadd.f32 %v2747, %v2759
    %v2761 = vpop.f32.mrf.mxu0
    %2762 = vdwg.mxu0
    %2763 = vmatpush.bf16.msra.mxu0 %v2146
    %2764 = vmatpush.bf16.msra.mxu0 %v2122
    %2765 = vmatpush.bf16.msra.mxu0 %v2098
    %2766 = vmatpush.bf16.msra.mxu0 %v2074
    %2767 = vmatpush.bf16.msra.mxu0 %v2050
    %2768 = vmatpush.bf16.msra.mxu0 %v2026
    %2769 = vmatpush.bf16.msra.mxu0 %v2002
    %2770 = vmatpush.bf16.msra.mxu0 %v1978
    %2771 = vmatmul.bf16.gmra.mxu0 %v1003
    %v2772 = vpop.f32.mrf.mxu0
    %v2773 = vadd.f32 %v2461, %v2772
    %v2774 = vpop.f32.mrf.mxu0
    %2775 = vdwg.mxu0
    %2776 = vmatpush.bf16.msra.mxu0 0
    %2777 = vmatpush.bf16.msra.mxu0 0
    %2778 = vmatpush.bf16.msra.mxu0 0
    %2779 = vmatpush.bf16.msra.mxu0 0
    %2780 = vmatpush.bf16.msra.mxu0 0
    %2781 = vmatpush.bf16.msra.mxu0 0
    %2782 = vmatpush.bf16.msra.mxu0 %v2194
    %2783 = vmatpush.bf16.msra.mxu0 %v2170
    %2784 = vmatmul.bf16.gmra.mxu0 %v2501
    %v2785 = vpop.f32.mrf.mxu0
    %v2786 = vadd.f32 %v2773, %v2785
    %v2787 = vpop.f32.mrf.mxu0
    %2788 = vdwg.mxu0
    %2789 = vmatpush.bf16.msra.mxu0 %v2147
    %2790 = vmatpush.bf16.msra.mxu0 %v2123
    %2791 = vmatpush.bf16.msra.mxu0 %v2099
    %2792 = vmatpush.bf16.msra.mxu0 %v2075
    %2793 = vmatpush.bf16.msra.mxu0 %v2051
    %2794 = vmatpush.bf16.msra.mxu0 %v2027
    %2795 = vmatpush.bf16.msra.mxu0 %v2003
    %2796 = vmatpush.bf16.msra.mxu0 %v1979
    %2797 = vmatmul.bf16.gmra.mxu0 %v1003
    %v2798 = vpop.f32.mrf.mxu0
    %v2799 = vadd.f32 %v2462, %v2798
    %v2800 = vpop.f32.mrf.mxu0
    %2801 = vdwg.mxu0
    %2802 = vmatpush.bf16.msra.mxu0 0
    %2803 = vmatpush.bf16.msra.mxu0 0
    %2804 = vmatpush.bf16.msra.mxu0 0
    %2805 = vmatpush.bf16.msra.mxu0 0
    %2806 = vmatpush.bf16.msra.mxu0 0
    %2807 = vmatpush.bf16.msra.mxu0 0
    %2808 = vmatpush.bf16.msra.mxu0 %v2195
    %2809 = vmatpush.bf16.msra.mxu0 %v2171
    %2810 = vmatmul.bf16.gmra.mxu0 %v2501
    %v2811 = vpop.f32.mrf.mxu0
    %v2812 = vadd.f32 %v2799, %v2811
    %v2813 = vpop.f32.mrf.mxu0
    %2814 = vdwg.mxu0
    %2815 = vmatpush.bf16.msra.mxu0 %v2148
    %2816 = vmatpush.bf16.msra.mxu0 %v2124
    %2817 = vmatpush.bf16.msra.mxu0 %v2100
    %2818 = vmatpush.bf16.msra.mxu0 %v2076
    %2819 = vmatpush.bf16.msra.mxu0 %v2052
    %2820 = vmatpush.bf16.msra.mxu0 %v2028
    %2821 = vmatpush.bf16.msra.mxu0 %v2004
    %2822 = vmatpush.bf16.msra.mxu0 %v1980
    %2823 = vmatmul.bf16.gmra.mxu0 %v1003
    %v2824 = vpop.f32.mrf.mxu0
    %v2825 = vadd.f32 %v2463, %v2824
    %v2826 = vpop.f32.mrf.mxu0
    %2827 = vdwg.mxu0
    %2828 = vmatpush.bf16.msra.mxu0 0
    %2829 = vmatpush.bf16.msra.mxu0 0
    %2830 = vmatpush.bf16.msra.mxu0 0
    %2831 = vmatpush.bf16.msra.mxu0 0
    %2832 = vmatpush.bf16.msra.mxu0 0
    %2833 = vmatpush.bf16.msra.mxu0 0
    %2834 = vmatpush.bf16.msra.mxu0 %v2196
    %2835 = vmatpush.bf16.msra.mxu0 %v2172
    %2836 = vmatmul.bf16.gmra.mxu0 %v2501
    %v2837 = vpop.f32.mrf.mxu0
    %v2838 = vadd.f32 %v2825, %v2837
    %v2839 = vpop.f32.mrf.mxu0
    %2840 = vdwg.mxu0
    %2841 = vmatpush.bf16.msra.mxu0 %v2149
    %2842 = vmatpush.bf16.msra.mxu0 %v2125
    %2843 = vmatpush.bf16.msra.mxu0 %v2101
    %2844 = vmatpush.bf16.msra.mxu0 %v2077
    %2845 = vmatpush.bf16.msra.mxu0 %v2053
    %2846 = vmatpush.bf16.msra.mxu0 %v2029
    %2847 = vmatpush.bf16.msra.mxu0 %v2005
    %2848 = vmatpush.bf16.msra.mxu0 %v1981
    %2849 = vmatmul.bf16.gmra.mxu0 %v1003
    %v2850 = vpop.f32.mrf.mxu0
    %v2851 = vadd.f32 %v2464, %v2850
    %v2852 = vpop.f32.mrf.mxu0
    %2853 = vdwg.mxu0
    %2854 = vmatpush.bf16.msra.mxu0 0
    %2855 = vmatpush.bf16.msra.mxu0 0
    %2856 = vmatpush.bf16.msra.mxu0 0
    %2857 = vmatpush.bf16.msra.mxu0 0
    %2858 = vmatpush.bf16.msra.mxu0 0
    %2859 = vmatpush.bf16.msra.mxu0 0
    %2860 = vmatpush.bf16.msra.mxu0 %v2197
    %2861 = vmatpush.bf16.msra.mxu0 %v2173
    %2862 = vmatmul.bf16.gmra.mxu0 %v2501
    %v2863 = vpop.f32.mrf.mxu0
    %v2864 = vadd.f32 %v2851, %v2863
    %v2865 = vpop.f32.mrf.mxu0
    %2866 = vdwg.mxu0
    %2867 = vmatpush.bf16.msra.mxu0 %v2150
    %2868 = vmatpush.bf16.msra.mxu0 %v2126
    %2869 = vmatpush.bf16.msra.mxu0 %v2102
    %2870 = vmatpush.bf16.msra.mxu0 %v2078
    %2871 = vmatpush.bf16.msra.mxu0 %v2054
    %2872 = vmatpush.bf16.msra.mxu0 %v2030
    %2873 = vmatpush.bf16.msra.mxu0 %v2006
    %2874 = vmatpush.bf16.msra.mxu0 %v1982
    %2875 = vmatmul.bf16.gmra.mxu0 %v1003
    %v2876 = vpop.f32.mrf.mxu0
    %v2877 = vadd.f32 %v2465, %v2876
    %v2878 = vpop.f32.mrf.mxu0
    %2879 = vdwg.mxu0
    %2880 = vmatpush.bf16.msra.mxu0 0
    %2881 = vmatpush.bf16.msra.mxu0 0
    %2882 = vmatpush.bf16.msra.mxu0 0
    %2883 = vmatpush.bf16.msra.mxu0 0
    %2884 = vmatpush.bf16.msra.mxu0 0
    %2885 = vmatpush.bf16.msra.mxu0 0
    %2886 = vmatpush.bf16.msra.mxu0 %v2198
    %2887 = vmatpush.bf16.msra.mxu0 %v2174
    %2888 = vmatmul.bf16.gmra.mxu0 %v2501
    %v2889 = vpop.f32.mrf.mxu0
    %v2890 = vadd.f32 %v2877, %v2889
    %v2891 = vpop.f32.mrf.mxu0
    %2892 = vdwg.mxu0
    %2893 = vmatpush.bf16.msra.mxu0 %v2151
    %2894 = vmatpush.bf16.msra.mxu0 %v2127
    %2895 = vmatpush.bf16.msra.mxu0 %v2103
    %2896 = vmatpush.bf16.msra.mxu0 %v2079
    %2897 = vmatpush.bf16.msra.mxu0 %v2055
    %2898 = vmatpush.bf16.msra.mxu0 %v2031
    %2899 = vmatpush.bf16.msra.mxu0 %v2007
    %2900 = vmatpush.bf16.msra.mxu0 %v1983
    %2901 = vmatmul.bf16.gmra.mxu0 %v1003
    %v2902 = vpop.f32.mrf.mxu0
    %v2903 = vadd.f32 %v2466, %v2902
    %v2904 = vpop.f32.mrf.mxu0
    %2905 = vdwg.mxu0
    %2906 = vmatpush.bf16.msra.mxu0 0
    %2907 = vmatpush.bf16.msra.mxu0 0
    %2908 = vmatpush.bf16.msra.mxu0 0
    %2909 = vmatpush.bf16.msra.mxu0 0
    %2910 = vmatpush.bf16.msra.mxu0 0
    %2911 = vmatpush.bf16.msra.mxu0 0
    %2912 = vmatpush.bf16.msra.mxu0 %v2199
    %2913 = vmatpush.bf16.msra.mxu0 %v2175
    %2914 = vmatmul.bf16.gmra.mxu0 %v2501
    %v2915 = vpop.f32.mrf.mxu0
    %v2916 = vadd.f32 %v2903, %v2915
    %v2917 = vpop.f32.mrf.mxu0
    %2918 = vdwg.mxu0
    %2919 = vmatpush.bf16.msra.mxu0 %v2152
    %2920 = vmatpush.bf16.msra.mxu0 %v2128
    %2921 = vmatpush.bf16.msra.mxu0 %v2104
    %2922 = vmatpush.bf16.msra.mxu0 %v2080
    %2923 = vmatpush.bf16.msra.mxu0 %v2056
    %2924 = vmatpush.bf16.msra.mxu0 %v2032
    %2925 = vmatpush.bf16.msra.mxu0 %v2008
    %2926 = vmatpush.bf16.msra.mxu0 %v1984
    %2927 = vmatmul.bf16.gmra.mxu0 %v1003
    %v2928 = vpop.f32.mrf.mxu0
    %v2929 = vadd.f32 %v2467, %v2928
    %v2930 = vpop.f32.mrf.mxu0
    %2931 = vdwg.mxu0
    %2932 = vmatpush.bf16.msra.mxu0 0
    %2933 = vmatpush.bf16.msra.mxu0 0
    %2934 = vmatpush.bf16.msra.mxu0 0
    %2935 = vmatpush.bf16.msra.mxu0 0
    %2936 = vmatpush.bf16.msra.mxu0 0
    %2937 = vmatpush.bf16.msra.mxu0 0
    %2938 = vmatpush.bf16.msra.mxu0 %v2200
    %2939 = vmatpush.bf16.msra.mxu0 %v2176
    %2940 = vmatmul.bf16.gmra.mxu0 %v2501
    %v2941 = vpop.f32.mrf.mxu0
    %v2942 = vadd.f32 %v2929, %v2941
    %v2943 = vpop.f32.mrf.mxu0
    %2944 = vdwg.mxu0
    %2945 = vmatpush.bf16.msra.mxu0 %v2153
    %2946 = vmatpush.bf16.msra.mxu0 %v2129
    %2947 = vmatpush.bf16.msra.mxu0 %v2105
    %2948 = vmatpush.bf16.msra.mxu0 %v2081
    %2949 = vmatpush.bf16.msra.mxu0 %v2057
    %2950 = vmatpush.bf16.msra.mxu0 %v2033
    %2951 = vmatpush.bf16.msra.mxu0 %v2009
    %2952 = vmatpush.bf16.msra.mxu0 %v1985
    %2953 = vmatmul.bf16.gmra.mxu0 %v1003
    %v2954 = vpop.f32.mrf.mxu0
    %v2955 = vadd.f32 %v2468, %v2954
    %v2956 = vpop.f32.mrf.mxu0
    %2957 = vdwg.mxu0
    %2958 = vmatpush.bf16.msra.mxu0 0
    %2959 = vmatpush.bf16.msra.mxu0 0
    %2960 = vmatpush.bf16.msra.mxu0 0
    %2961 = vmatpush.bf16.msra.mxu0 0
    %2962 = vmatpush.bf16.msra.mxu0 0
    %2963 = vmatpush.bf16.msra.mxu0 0
    %2964 = vmatpush.bf16.msra.mxu0 %v2201
    %2965 = vmatpush.bf16.msra.mxu0 %v2177
    %2966 = vmatmul.bf16.gmra.mxu0 %v2501
    %v2967 = vpop.f32.mrf.mxu0
    %v2968 = vadd.f32 %v2955, %v2967
    %v2969 = vpop.f32.mrf.mxu0
    %2970 = vdwg.mxu0
    %2971 = vmatpush.bf16.msra.mxu0 %v2154
    %2972 = vmatpush.bf16.msra.mxu0 %v2130
    %2973 = vmatpush.bf16.msra.mxu0 %v2106
    %2974 = vmatpush.bf16.msra.mxu0 %v2082
    %2975 = vmatpush.bf16.msra.mxu0 %v2058
    %2976 = vmatpush.bf16.msra.mxu0 %v2034
    %2977 = vmatpush.bf16.msra.mxu0 %v2010
    %2978 = vmatpush.bf16.msra.mxu0 %v1986
    %2979 = vmatmul.bf16.gmra.mxu0 %v1003
    %v2980 = vpop.f32.mrf.mxu0
    %v2981 = vadd.f32 %v2469, %v2980
    %v2982 = vpop.f32.mrf.mxu0
    %2983 = vdwg.mxu0
    %2984 = vmatpush.bf16.msra.mxu0 0
    %2985 = vmatpush.bf16.msra.mxu0 0
    %2986 = vmatpush.bf16.msra.mxu0 0
    %2987 = vmatpush.bf16.msra.mxu0 0
    %2988 = vmatpush.bf16.msra.mxu0 0
    %2989 = vmatpush.bf16.msra.mxu0 0
    %2990 = vmatpush.bf16.msra.mxu0 %v2202
    %2991 = vmatpush.bf16.msra.mxu0 %v2178
    %2992 = vmatmul.bf16.gmra.mxu0 %v2501
    %v2993 = vpop.f32.mrf.mxu0
    %v2994 = vadd.f32 %v2981, %v2993
    %v2995 = vpop.f32.mrf.mxu0
    %2996 = vdwg.mxu0
    %2997 = vmatpush.bf16.msra.mxu0 %v2155
    %2998 = vmatpush.bf16.msra.mxu0 %v2131
    %2999 = vmatpush.bf16.msra.mxu0 %v2107
    %3000 = vmatpush.bf16.msra.mxu0 %v2083
    %3001 = vmatpush.bf16.msra.mxu0 %v2059
    %3002 = vmatpush.bf16.msra.mxu0 %v2035
    %3003 = vmatpush.bf16.msra.mxu0 %v2011
    %3004 = vmatpush.bf16.msra.mxu0 %v1987
    %3005 = vmatmul.bf16.gmra.mxu0 %v1003
    %v3006 = vpop.f32.mrf.mxu0
    %v3007 = vadd.f32 %v2470, %v3006
    %v3008 = vpop.f32.mrf.mxu0
    %3009 = vdwg.mxu0
    %3010 = vmatpush.bf16.msra.mxu0 0
    %3011 = vmatpush.bf16.msra.mxu0 0
    %3012 = vmatpush.bf16.msra.mxu0 0
    %3013 = vmatpush.bf16.msra.mxu0 0
    %3014 = vmatpush.bf16.msra.mxu0 0
    %3015 = vmatpush.bf16.msra.mxu0 0
    %3016 = vmatpush.bf16.msra.mxu0 %v2203
    %3017 = vmatpush.bf16.msra.mxu0 %v2179
    %3018 = vmatmul.bf16.gmra.mxu0 %v2501
    %v3019 = vpop.f32.mrf.mxu0
    %v3020 = vadd.f32 %v3007, %v3019
    %v3021 = vpop.f32.mrf.mxu0
    %3022 = vdwg.mxu0
    %3023 = vmatpush.bf16.msra.mxu0 %v2156
    %3024 = vmatpush.bf16.msra.mxu0 %v2132
    %3025 = vmatpush.bf16.msra.mxu0 %v2108
    %3026 = vmatpush.bf16.msra.mxu0 %v2084
    %3027 = vmatpush.bf16.msra.mxu0 %v2060
    %3028 = vmatpush.bf16.msra.mxu0 %v2036
    %3029 = vmatpush.bf16.msra.mxu0 %v2012
    %3030 = vmatpush.bf16.msra.mxu0 %v1988
    %3031 = vmatmul.bf16.gmra.mxu0 %v1003
    %v3032 = vpop.f32.mrf.mxu0
    %v3033 = vadd.f32 %v2471, %v3032
    %v3034 = vpop.f32.mrf.mxu0
    %3035 = vdwg.mxu0
    %3036 = vmatpush.bf16.msra.mxu0 0
    %3037 = vmatpush.bf16.msra.mxu0 0
    %3038 = vmatpush.bf16.msra.mxu0 0
    %3039 = vmatpush.bf16.msra.mxu0 0
    %3040 = vmatpush.bf16.msra.mxu0 0
    %3041 = vmatpush.bf16.msra.mxu0 0
    %3042 = vmatpush.bf16.msra.mxu0 %v2204
    %3043 = vmatpush.bf16.msra.mxu0 %v2180
    %3044 = vmatmul.bf16.gmra.mxu0 %v2501
    %v3045 = vpop.f32.mrf.mxu0
    %v3046 = vadd.f32 %v3033, %v3045
    %v3047 = vpop.f32.mrf.mxu0
    %3048 = vdwg.mxu0
    %3049 = vmatpush.bf16.msra.mxu0 %v2157
    %3050 = vmatpush.bf16.msra.mxu0 %v2133
    %3051 = vmatpush.bf16.msra.mxu0 %v2109
    %3052 = vmatpush.bf16.msra.mxu0 %v2085
    %3053 = vmatpush.bf16.msra.mxu0 %v2061
    %3054 = vmatpush.bf16.msra.mxu0 %v2037
    %3055 = vmatpush.bf16.msra.mxu0 %v2013
    %3056 = vmatpush.bf16.msra.mxu0 %v1989
    %3057 = vmatmul.bf16.gmra.mxu0 %v1003
    %v3058 = vpop.f32.mrf.mxu0
    %v3059 = vadd.f32 %v2472, %v3058
    %v3060 = vpop.f32.mrf.mxu0
    %3061 = vdwg.mxu0
    %3062 = vmatpush.bf16.msra.mxu0 0
    %3063 = vmatpush.bf16.msra.mxu0 0
    %3064 = vmatpush.bf16.msra.mxu0 0
    %3065 = vmatpush.bf16.msra.mxu0 0
    %3066 = vmatpush.bf16.msra.mxu0 0
    %3067 = vmatpush.bf16.msra.mxu0 0
    %3068 = vmatpush.bf16.msra.mxu0 %v2205
    %3069 = vmatpush.bf16.msra.mxu0 %v2181
    %3070 = vmatmul.bf16.gmra.mxu0 %v2501
    %v3071 = vpop.f32.mrf.mxu0
    %v3072 = vadd.f32 %v3059, %v3071
    %v3073 = vpop.f32.mrf.mxu0
    %3074 = vdwg.mxu0
    %3075 = vmatpush.bf16.msra.mxu0 %v2158
    %3076 = vmatpush.bf16.msra.mxu0 %v2134
    %3077 = vmatpush.bf16.msra.mxu0 %v2110
    %3078 = vmatpush.bf16.msra.mxu0 %v2086
    %3079 = vmatpush.bf16.msra.mxu0 %v2062
    %3080 = vmatpush.bf16.msra.mxu0 %v2038
    %3081 = vmatpush.bf16.msra.mxu0 %v2014
    %3082 = vmatpush.bf16.msra.mxu0 %v1990
    %3083 = vmatmul.bf16.gmra.mxu0 %v1003
    %v3084 = vpop.f32.mrf.mxu0
    %v3085 = vadd.f32 %v2473, %v3084
    %v3086 = vpop.f32.mrf.mxu0
    %3087 = vdwg.mxu0
    %3088 = vmatpush.bf16.msra.mxu0 0
    %3089 = vmatpush.bf16.msra.mxu0 0
    %3090 = vmatpush.bf16.msra.mxu0 0
    %3091 = vmatpush.bf16.msra.mxu0 0
    %3092 = vmatpush.bf16.msra.mxu0 0
    %3093 = vmatpush.bf16.msra.mxu0 0
    %3094 = vmatpush.bf16.msra.mxu0 %v2206
    %3095 = vmatpush.bf16.msra.mxu0 %v2182
    %3096 = vmatmul.bf16.gmra.mxu0 %v2501
    %v3097 = vpop.f32.mrf.mxu0
    %v3098 = vadd.f32 %v3085, %v3097
    %v3099 = vpop.f32.mrf.mxu0
    %3100 = vdwg.mxu0
    %3101 = vmatpush.bf16.msra.mxu0 %v2159
    %3102 = vmatpush.bf16.msra.mxu0 %v2135
    %3103 = vmatpush.bf16.msra.mxu0 %v2111
    %3104 = vmatpush.bf16.msra.mxu0 %v2087
    %3105 = vmatpush.bf16.msra.mxu0 %v2063
    %3106 = vmatpush.bf16.msra.mxu0 %v2039
    %3107 = vmatpush.bf16.msra.mxu0 %v2015
    %3108 = vmatpush.bf16.msra.mxu0 %v1991
    %3109 = vmatmul.bf16.gmra.mxu0 %v1003
    %v3110 = vpop.f32.mrf.mxu0
    %v3111 = vadd.f32 %v2474, %v3110
    %v3112 = vpop.f32.mrf.mxu0
    %3113 = vdwg.mxu0
    %3114 = vmatpush.bf16.msra.mxu0 0
    %3115 = vmatpush.bf16.msra.mxu0 0
    %3116 = vmatpush.bf16.msra.mxu0 0
    %3117 = vmatpush.bf16.msra.mxu0 0
    %3118 = vmatpush.bf16.msra.mxu0 0
    %3119 = vmatpush.bf16.msra.mxu0 0
    %3120 = vmatpush.bf16.msra.mxu0 %v2207
    %3121 = vmatpush.bf16.msra.mxu0 %v2183
    %3122 = vmatmul.bf16.gmra.mxu0 %v2501
    %v3123 = vpop.f32.mrf.mxu0
    %v3124 = vadd.f32 %v3111, %v3123
    %v3125 = vpop.f32.mrf.mxu0
    %3126 = vdwg.mxu0
    %v3127 = vpack.c.bf16 %v2526, %v2526
    %v3128 = vpack.c.bf16 %v2552, %v2552
    %v3129 = vpack.c.bf16 %v2578, %v2578
    %v3130 = vpack.c.bf16 %v2604, %v2604
    %v3131 = vpack.c.bf16 %v2630, %v2630
    %v3132 = vpack.c.bf16 %v2656, %v2656
    %v3133 = vpack.c.bf16 %v2682, %v2682
    %v3134 = vpack.c.bf16 %v2708, %v2708
    %v3135 = vpack.c.bf16 %v2734, %v2734
    %v3136 = vpack.c.bf16 %v2760, %v2760
    %v3137 = vpack.c.bf16 %v2786, %v2786
    %v3138 = vpack.c.bf16 %v2812, %v2812
    %v3139 = vpack.c.bf16 %v2838, %v2838
    %v3140 = vpack.c.bf16 %v2864, %v2864
    %v3141 = vpack.c.bf16 %v2890, %v2890
    %v3142 = vpack.c.bf16 %v2916, %v2916
    %v3143 = vpack.c.bf16 %v2942, %v2942
    %v3144 = vpack.c.bf16 %v2968, %v2968
    %v3145 = vpack.c.bf16 %v2994, %v2994
    %v3146 = vpack.c.bf16 %v3020, %v3020
    %v3147 = vpack.c.bf16 %v3046, %v3046
    %v3148 = vpack.c.bf16 %v3072, %v3072
    %v3149 = vpack.c.bf16 %v3098, %v3098
    %v3150 = vpack.c.bf16 %v3124, %v3124
    %v3151 = vld [vmem:[%s9] sm:$0xf]
    %v3152 = vld [vmem:[%s9 + $0x4] sm:$0xf]
    %v3153 = vld [vmem:[%s9 + $0x8] sm:$0xf]
    %v3154 = vld [vmem:[%s9 + $0xc] sm:$0xf]
    %v3155 = vld [vmem:[%s9 + $0x10] sm:$0xf]
    %v3156 = vld [vmem:[%s9 + $0x14] sm:$0xf]
    %v3157 = vld [vmem:[%s9 + $0x18] sm:$0xf]
    %v3158 = vld [vmem:[%s9 + $0x1c] sm:$0xf]
    %v3159 = vld [vmem:[%s9 + $0x20] sm:$0xf]
    %v3160 = vld [vmem:[%s9 + $0x24] sm:$0xf]
    %v3161 = vld [vmem:[%s9 + $0x28] sm:$0xf]
    %v3162 = vld [vmem:[%s9 + $0x2c] sm:$0xf]
    %v3163 = vld [vmem:[%s9 + $0x30] sm:$0xf]
    %v3164 = vld [vmem:[%s9 + $0x34] sm:$0xf]
    %v3165 = vld [vmem:[%s9 + $0x38] sm:$0xf]
    %v3166 = vld [vmem:[%s9 + $0x3c] sm:$0xf]
    %v3167 = vld [vmem:[%s9 + $0x40] sm:$0xf]
    %v3168 = vld [vmem:[%s9 + $0x44] sm:$0xf]
    %v3169 = vld [vmem:[%s9 + $0x48] sm:$0xf]
    %v3170 = vld [vmem:[%s9 + $0x4c] sm:$0xf]
    %v3171 = vld [vmem:[%s9 + $0x50] sm:$0xf]
    %v3172 = vld [vmem:[%s9 + $0x54] sm:$0xf]
    %v3173 = vld [vmem:[%s9 + $0x58] sm:$0xf]
    %v3174 = vld [vmem:[%s9 + $0x5c] sm:$0xf]
    %v3175 = vld [vmem:[%s9 + $0x60] sm:$0xf]
    %v3176 = vld [vmem:[%s9 + $0x64] sm:$0xf]
    %v3177 = vld [vmem:[%s9 + $0x68] sm:$0xf]
    %v3178 = vld [vmem:[%s9 + $0x6c] sm:$0xf]
    %v3179 = vld [vmem:[%s9 + $0x70] sm:$0xf]
    %v3180 = vld [vmem:[%s9 + $0x74] sm:$0xf]
    %v3181 = vld [vmem:[%s9 + $0x78] sm:$0xf]
    %v3182 = vld [vmem:[%s9 + $0x7c] sm:$0xf]
    %v3183 = vld [vmem:[%s9 + $0x80] sm:$0xf]
    %v3184 = vld [vmem:[%s9 + $0x84] sm:$0xf]
    %v3185 = vld [vmem:[%s9 + $0x88] sm:$0xf]
    %v3186 = vld [vmem:[%s9 + $0x8c] sm:$0xf]
    %v3187 = vld [vmem:[%s9 + $0x90] sm:$0xf]
    %v3188 = vld [vmem:[%s9 + $0x94] sm:$0xf]
    %v3189 = vld [vmem:[%s9 + $0x98] sm:$0xf]
    %v3190 = vld [vmem:[%s9 + $0x9c] sm:$0xf]
    %v3191 = vld [vmem:[%s9 + $0xa0] sm:$0xf]
    %v3192 = vld [vmem:[%s9 + $0xa4] sm:$0xf]
    %v3193 = vld [vmem:[%s9 + $0xa8] sm:$0xf]
    %v3194 = vld [vmem:[%s9 + $0xac] sm:$0xf]
    %v3195 = vld [vmem:[%s9 + $0xb0] sm:$0xf]
    %v3196 = vld [vmem:[%s9 + $0xb4] sm:$0xf]
    %v3197 = vld [vmem:[%s9 + $0xb8] sm:$0xf]
    %v3198 = vld [vmem:[%s9 + $0xbc] sm:$0xf]
    %v3199 = vld [vmem:[%s9 + $0xc0] sm:$0xf]
    %v3200 = vld [vmem:[%s9 + $0xc4] sm:$0xf]
    %v3201 = vld [vmem:[%s9 + $0xc8] sm:$0xf]
    %v3202 = vld [vmem:[%s9 + $0xcc] sm:$0xf]
    %v3203 = vld [vmem:[%s9 + $0xd0] sm:$0xf]
    %v3204 = vld [vmem:[%s9 + $0xd4] sm:$0xf]
    %v3205 = vld [vmem:[%s9 + $0xd8] sm:$0xf]
    %v3206 = vld [vmem:[%s9 + $0xdc] sm:$0xf]
    %v3207 = vld [vmem:[%s9 + $0xe0] sm:$0xf]
    %v3208 = vld [vmem:[%s9 + $0xe4] sm:$0xf]
    %v3209 = vld [vmem:[%s9 + $0xe8] sm:$0xf]
    %v3210 = vld [vmem:[%s9 + $0xec] sm:$0xf]
    %v3211 = vld [vmem:[%s9 + $0xf0] sm:$0xf]
    %v3212 = vld [vmem:[%s9 + $0xf4] sm:$0xf]
    %v3213 = vld [vmem:[%s9 + $0xf8] sm:$0xf]
    %v3214 = vld [vmem:[%s9 + $0xfc] sm:$0xf]
    %v3215 = vld [vmem:[%s9 + $0x100] sm:$0xf]
    %v3216 = vld [vmem:[%s9 + $0x104] sm:$0xf]
    %v3217 = vld [vmem:[%s9 + $0x108] sm:$0xf]
    %v3218 = vld [vmem:[%s9 + $0x10c] sm:$0xf]
    %v3219 = vld [vmem:[%s9 + $0x110] sm:$0xf]
    %v3220 = vld [vmem:[%s9 + $0x114] sm:$0xf]
    %v3221 = vld [vmem:[%s9 + $0x118] sm:$0xf]
    %v3222 = vld [vmem:[%s9 + $0x11c] sm:$0xf]
    %v3223 = vld [vmem:[%s9 + $0x120] sm:$0xf]
    %v3224 = vld [vmem:[%s9 + $0x124] sm:$0xf]
    %v3225 = vld [vmem:[%s9 + $0x128] sm:$0xf]
    %v3226 = vld [vmem:[%s9 + $0x12c] sm:$0xf]
    %v3227 = vld [vmem:[%s9 + $0x130] sm:$0xf]
    %v3228 = vld [vmem:[%s9 + $0x134] sm:$0xf]
    %v3229 = vld [vmem:[%s9 + $0x138] sm:$0xf]
    %v3230 = vld [vmem:[%s9 + $0x13c] sm:$0xf]
    %v3231 = vld [vmem:[%s9 + $0x140] sm:$0xf]
    %v3232 = vld [vmem:[%s9 + $0x144] sm:$0xf]
    %v3233 = vld [vmem:[%s9 + $0x148] sm:$0xf]
    %v3234 = vld [vmem:[%s9 + $0x14c] sm:$0xf]
    %v3235 = vld [vmem:[%s9 + $0x150] sm:$0xf]
    %v3236 = vld [vmem:[%s9 + $0x154] sm:$0xf]
    %v3237 = vld [vmem:[%s9 + $0x158] sm:$0xf]
    %v3238 = vld [vmem:[%s9 + $0x15c] sm:$0xf]
    %v3239 = vld [vmem:[%s9 + $0x160] sm:$0xf]
    %v3240 = vld [vmem:[%s9 + $0x164] sm:$0xf]
    %v3241 = vld [vmem:[%s9 + $0x168] sm:$0xf]
    %v3242 = vld [vmem:[%s9 + $0x16c] sm:$0xf]
    %v3243 = vld [vmem:[%s9 + $0x170] sm:$0xf]
    %v3244 = vld [vmem:[%s9 + $0x174] sm:$0xf]
    %v3245 = vld [vmem:[%s9 + $0x178] sm:$0xf]
    %v3246 = vld [vmem:[%s9 + $0x17c] sm:$0xf]
    %v3247 = vld [vmem:[%s9 + $0x180] sm:$0xf]
    %v3248 = vld [vmem:[%s9 + $0x184] sm:$0xf]
    %v3249 = vld [vmem:[%s9 + $0x188] sm:$0xf]
    %v3250 = vld [vmem:[%s9 + $0x18c] sm:$0xf]
    %v3251 = vld [vmem:[%s9 + $0x190] sm:$0xf]
    %v3252 = vld [vmem:[%s9 + $0x194] sm:$0xf]
    %v3253 = vld [vmem:[%s9 + $0x198] sm:$0xf]
    %v3254 = vld [vmem:[%s9 + $0x19c] sm:$0xf]
    %v3255 = vld [vmem:[%s9 + $0x1a0] sm:$0xf]
    %v3256 = vld [vmem:[%s9 + $0x1a4] sm:$0xf]
    %v3257 = vld [vmem:[%s9 + $0x1a8] sm:$0xf]
    %v3258 = vld [vmem:[%s9 + $0x1ac] sm:$0xf]
    %v3259 = vld [vmem:[%s9 + $0x1b0] sm:$0xf]
    %v3260 = vld [vmem:[%s9 + $0x1b4] sm:$0xf]
    %v3261 = vld [vmem:[%s9 + $0x1b8] sm:$0xf]
    %v3262 = vld [vmem:[%s9 + $0x1bc] sm:$0xf]
    %v3263 = vld [vmem:[%s9 + $0x1c0] sm:$0xf]
    %v3264 = vld [vmem:[%s9 + $0x1c4] sm:$0xf]
    %v3265 = vld [vmem:[%s9 + $0x1c8] sm:$0xf]
    %v3266 = vld [vmem:[%s9 + $0x1cc] sm:$0xf]
    %v3267 = vld [vmem:[%s9 + $0x1d0] sm:$0xf]
    %v3268 = vld [vmem:[%s9 + $0x1d4] sm:$0xf]
    %v3269 = vld [vmem:[%s9 + $0x1d8] sm:$0xf]
    %v3270 = vld [vmem:[%s9 + $0x1dc] sm:$0xf]
    %v3271 = vld [vmem:[%s9 + $0x1e0] sm:$0xf]
    %v3272 = vld [vmem:[%s9 + $0x1e4] sm:$0xf]
    %v3273 = vld [vmem:[%s9 + $0x1e8] sm:$0xf]
    %v3274 = vld [vmem:[%s9 + $0x1ec] sm:$0xf]
    %v3275 = vld [vmem:[%s9 + $0x1f0] sm:$0xf]
    %v3276 = vld [vmem:[%s9 + $0x1f4] sm:$0xf]
    %v3277 = vld [vmem:[%s9 + $0x1f8] sm:$0xf]
    %v3278 = vld [vmem:[%s9 + $0x1fc] sm:$0xf]
    %v3279 = vld [vmem:[%s9 + $0x200] sm:$0xf]
    %v3280 = vld [vmem:[%s9 + $0x204] sm:$0xf]
    %v3281 = vld [vmem:[%s9 + $0x208] sm:$0xf]
    %v3282 = vld [vmem:[%s9 + $0x20c] sm:$0xf]
    %v3283 = vld [vmem:[%s9 + $0x210] sm:$0xf]
    %v3284 = vld [vmem:[%s9 + $0x214] sm:$0xf]
    %v3285 = vld [vmem:[%s9 + $0x218] sm:$0xf]
    %v3286 = vld [vmem:[%s9 + $0x21c] sm:$0xf]
    %v3287 = vld [vmem:[%s9 + $0x220] sm:$0xf]
    %v3288 = vld [vmem:[%s9 + $0x224] sm:$0xf]
    %v3289 = vld [vmem:[%s9 + $0x228] sm:$0xf]
    %v3290 = vld [vmem:[%s9 + $0x22c] sm:$0xf]
    %v3291 = vld [vmem:[%s9 + $0x230] sm:$0xf]
    %v3292 = vld [vmem:[%s9 + $0x234] sm:$0xf]
    %v3293 = vld [vmem:[%s9 + $0x238] sm:$0xf]
    %v3294 = vld [vmem:[%s9 + $0x23c] sm:$0xf]
    %v3295 = vld [vmem:[%s9 + $0x240] sm:$0xf]
    %v3296 = vld [vmem:[%s9 + $0x244] sm:$0xf]
    %v3297 = vld [vmem:[%s9 + $0x248] sm:$0xf]
    %v3298 = vld [vmem:[%s9 + $0x24c] sm:$0xf]
    %v3299 = vld [vmem:[%s9 + $0x250] sm:$0xf]
    %v3300 = vld [vmem:[%s9 + $0x254] sm:$0xf]
    %v3301 = vld [vmem:[%s9 + $0x258] sm:$0xf]
    %v3302 = vld [vmem:[%s9 + $0x25c] sm:$0xf]
    %v3303 = vld [vmem:[%s9 + $0x260] sm:$0xf]
    %v3304 = vld [vmem:[%s9 + $0x264] sm:$0xf]
    %v3305 = vld [vmem:[%s9 + $0x268] sm:$0xf]
    %v3306 = vld [vmem:[%s9 + $0x26c] sm:$0xf]
    %v3307 = vld [vmem:[%s9 + $0x270] sm:$0xf]
    %v3308 = vld [vmem:[%s9 + $0x274] sm:$0xf]
    %v3309 = vld [vmem:[%s9 + $0x278] sm:$0xf]
    %v3310 = vld [vmem:[%s9 + $0x27c] sm:$0xf]
    %v3311 = vld [vmem:[%s9 + $0x280] sm:$0xf]
    %v3312 = vld [vmem:[%s9 + $0x284] sm:$0xf]
    %v3313 = vld [vmem:[%s9 + $0x288] sm:$0xf]
    %v3314 = vld [vmem:[%s9 + $0x28c] sm:$0xf]
    %v3315 = vld [vmem:[%s9 + $0x290] sm:$0xf]
    %v3316 = vld [vmem:[%s9 + $0x294] sm:$0xf]
    %v3317 = vld [vmem:[%s9 + $0x298] sm:$0xf]
    %v3318 = vld [vmem:[%s9 + $0x29c] sm:$0xf]
    %v3319 = vld [vmem:[%s9 + $0x2a0] sm:$0xf]
    %v3320 = vld [vmem:[%s9 + $0x2a4] sm:$0xf]
    %v3321 = vld [vmem:[%s9 + $0x2a8] sm:$0xf]
    %v3322 = vld [vmem:[%s9 + $0x2ac] sm:$0xf]
    %v3323 = vld [vmem:[%s9 + $0x2b0] sm:$0xf]
    %v3324 = vld [vmem:[%s9 + $0x2b4] sm:$0xf]
    %v3325 = vld [vmem:[%s9 + $0x2b8] sm:$0xf]
    %v3326 = vld [vmem:[%s9 + $0x2bc] sm:$0xf]
    %v3327 = vld [vmem:[%s9 + $0x2c0] sm:$0xf]
    %v3328 = vld [vmem:[%s9 + $0x2c4] sm:$0xf]
    %v3329 = vld [vmem:[%s9 + $0x2c8] sm:$0xf]
    %v3330 = vld [vmem:[%s9 + $0x2cc] sm:$0xf]
    %v3331 = vld [vmem:[%s9 + $0x2d0] sm:$0xf]
    %v3332 = vld [vmem:[%s9 + $0x2d4] sm:$0xf]
    %v3333 = vld [vmem:[%s9 + $0x2d8] sm:$0xf]
    %v3334 = vld [vmem:[%s9 + $0x2dc] sm:$0xf]
    %v3335 = vld [vmem:[%s9 + $0x2e0] sm:$0xf]
    %v3336 = vld [vmem:[%s9 + $0x2e4] sm:$0xf]
    %v3337 = vld [vmem:[%s9 + $0x2e8] sm:$0xf]
    %v3338 = vld [vmem:[%s9 + $0x2ec] sm:$0xf]
    %v3339 = vld [vmem:[%s9 + $0x2f0] sm:$0xf]
    %v3340 = vld [vmem:[%s9 + $0x2f4] sm:$0xf]
    %v3341 = vld [vmem:[%s9 + $0x2f8] sm:$0xf]
    %v3342 = vld [vmem:[%s9 + $0x2fc] sm:$0xf]
    %v3343 = vld [vmem:[%s9 + $0x300] sm:$0xf]
    %v3344 = vld [vmem:[%s9 + $0x304] sm:$0xf]
    %v3345 = vld [vmem:[%s9 + $0x308] sm:$0xf]
    %v3346 = vld [vmem:[%s9 + $0x30c] sm:$0xf]
    %v3347 = vld [vmem:[%s9 + $0x310] sm:$0xf]
    %v3348 = vld [vmem:[%s9 + $0x314] sm:$0xf]
    %v3349 = vld [vmem:[%s9 + $0x318] sm:$0xf]
    %v3350 = vld [vmem:[%s9 + $0x31c] sm:$0xf]
    %v3351 = vld [vmem:[%s9 + $0x320] sm:$0xf]
    %v3352 = vld [vmem:[%s9 + $0x324] sm:$0xf]
    %v3353 = vld [vmem:[%s9 + $0x328] sm:$0xf]
    %v3354 = vld [vmem:[%s9 + $0x32c] sm:$0xf]
    %v3355 = vld [vmem:[%s9 + $0x330] sm:$0xf]
    %v3356 = vld [vmem:[%s9 + $0x334] sm:$0xf]
    %v3357 = vld [vmem:[%s9 + $0x338] sm:$0xf]
    %v3358 = vld [vmem:[%s9 + $0x33c] sm:$0xf]
    %v3359 = vld [vmem:[%s9 + $0x340] sm:$0xf]
    %v3360 = vld [vmem:[%s9 + $0x344] sm:$0xf]
    %v3361 = vld [vmem:[%s9 + $0x348] sm:$0xf]
    %v3362 = vld [vmem:[%s9 + $0x34c] sm:$0xf]
    %v3363 = vld [vmem:[%s9 + $0x350] sm:$0xf]
    %v3364 = vld [vmem:[%s9 + $0x354] sm:$0xf]
    %v3365 = vld [vmem:[%s9 + $0x358] sm:$0xf]
    %v3366 = vld [vmem:[%s9 + $0x35c] sm:$0xf]
    %v3367 = vld [vmem:[%s9 + $0x360] sm:$0xf]
    %v3368 = vld [vmem:[%s9 + $0x364] sm:$0xf]
    %v3369 = vld [vmem:[%s9 + $0x368] sm:$0xf]
    %v3370 = vld [vmem:[%s9 + $0x36c] sm:$0xf]
    %v3371 = vld [vmem:[%s9 + $0x370] sm:$0xf]
    %v3372 = vld [vmem:[%s9 + $0x374] sm:$0xf]
    %v3373 = vld [vmem:[%s9 + $0x378] sm:$0xf]
    %v3374 = vld [vmem:[%s9 + $0x37c] sm:$0xf]
    %v3375 = vld [vmem:[%s9 + $0x380] sm:$0xf]
    %v3376 = vld [vmem:[%s9 + $0x384] sm:$0xf]
    %v3377 = vld [vmem:[%s9 + $0x388] sm:$0xf]
    %v3378 = vld [vmem:[%s9 + $0x38c] sm:$0xf]
    %v3379 = vld [vmem:[%s9 + $0x390] sm:$0xf]
    %v3380 = vld [vmem:[%s9 + $0x394] sm:$0xf]
    %v3381 = vld [vmem:[%s9 + $0x398] sm:$0xf]
    %v3382 = vld [vmem:[%s9 + $0x39c] sm:$0xf]
    %v3383 = vld [vmem:[%s9 + $0x3a0] sm:$0xf]
    %v3384 = vld [vmem:[%s9 + $0x3a4] sm:$0xf]
    %v3385 = vld [vmem:[%s9 + $0x3a8] sm:$0xf]
    %v3386 = vld [vmem:[%s9 + $0x3ac] sm:$0xf]
    %v3387 = vld [vmem:[%s9 + $0x3b0] sm:$0xf]
    %v3388 = vld [vmem:[%s9 + $0x3b4] sm:$0xf]
    %v3389 = vld [vmem:[%s9 + $0x3b8] sm:$0xf]
    %v3390 = vld [vmem:[%s9 + $0x3bc] sm:$0xf]
    %v3391 = vld [vmem:[%s9 + $0x3c0] sm:$0xf]
    %v3392 = vld [vmem:[%s9 + $0x3c4] sm:$0xf]
    %v3393 = vld [vmem:[%s9 + $0x3c8] sm:$0xf]
    %v3394 = vld [vmem:[%s9 + $0x3cc] sm:$0xf]
    %v3395 = vld [vmem:[%s9 + $0x3d0] sm:$0xf]
    %v3396 = vld [vmem:[%s9 + $0x3d4] sm:$0xf]
    %v3397 = vld [vmem:[%s9 + $0x3d8] sm:$0xf]
    %v3398 = vld [vmem:[%s9 + $0x3dc] sm:$0xf]
    %v3399 = vld [vmem:[%s9 + $0x3e0] sm:$0xf]
    %v3400 = vld [vmem:[%s9 + $0x3e4] sm:$0xf]
    %v3401 = vld [vmem:[%s9 + $0x3e8] sm:$0xf]
    %v3402 = vld [vmem:[%s9 + $0x3ec] sm:$0xf]
    %v3403 = vld [vmem:[%s9 + $0x3f0] sm:$0xf]
    %v3404 = vld [vmem:[%s9 + $0x3f4] sm:$0xf]
    %v3405 = vld [vmem:[%s9 + $0x3f8] sm:$0xf]
    %v3406 = vld [vmem:[%s9 + $0x3fc] sm:$0xf]
    %v3407 = vld [vmem:[%s9 + $0x400] sm:$0xf]
    %v3408 = vld [vmem:[%s9 + $0x404] sm:$0xf]
    %v3409 = vld [vmem:[%s9 + $0x408] sm:$0xf]
    %v3410 = vld [vmem:[%s9 + $0x40c] sm:$0xf]
    %v3411 = vld [vmem:[%s9 + $0x410] sm:$0xf]
    %v3412 = vld [vmem:[%s9 + $0x414] sm:$0xf]
    %v3413 = vld [vmem:[%s9 + $0x418] sm:$0xf]
    %v3414 = vld [vmem:[%s9 + $0x41c] sm:$0xf]
    %v3415 = vld [vmem:[%s9 + $0x420] sm:$0xf]
    %v3416 = vld [vmem:[%s9 + $0x424] sm:$0xf]
    %v3417 = vld [vmem:[%s9 + $0x428] sm:$0xf]
    %v3418 = vld [vmem:[%s9 + $0x42c] sm:$0xf]
    %v3419 = vld [vmem:[%s9 + $0x430] sm:$0xf]
    %v3420 = vld [vmem:[%s9 + $0x434] sm:$0xf]
    %v3421 = vld [vmem:[%s9 + $0x438] sm:$0xf]
    %v3422 = vld [vmem:[%s9 + $0x43c] sm:$0xf]
    %v3423 = vld [vmem:[%s9 + $0x440] sm:$0xf]
    %v3424 = vld [vmem:[%s9 + $0x444] sm:$0xf]
    %v3425 = vld [vmem:[%s9 + $0x448] sm:$0xf]
    %v3426 = vld [vmem:[%s9 + $0x44c] sm:$0xf]
    %v3427 = vld [vmem:[%s9 + $0x450] sm:$0xf]
    %v3428 = vld [vmem:[%s9 + $0x454] sm:$0xf]
    %v3429 = vld [vmem:[%s9 + $0x458] sm:$0xf]
    %v3430 = vld [vmem:[%s9 + $0x45c] sm:$0xf]
    %v3431 = vld [vmem:[%s9 + $0x460] sm:$0xf]
    %v3432 = vld [vmem:[%s9 + $0x464] sm:$0xf]
    %v3433 = vld [vmem:[%s9 + $0x468] sm:$0xf]
    %v3434 = vld [vmem:[%s9 + $0x46c] sm:$0xf]
    %v3435 = vld [vmem:[%s9 + $0x470] sm:$0xf]
    %v3436 = vld [vmem:[%s9 + $0x474] sm:$0xf]
    %v3437 = vld [vmem:[%s9 + $0x478] sm:$0xf]
    %v3438 = vld [vmem:[%s9 + $0x47c] sm:$0xf]
    %v3439 = vld [vmem:[%s9 + $0x480] sm:$0xf]
    %v3440 = vld [vmem:[%s9 + $0x484] sm:$0xf]
    %v3441 = vld [vmem:[%s9 + $0x488] sm:$0xf]
    %v3442 = vld [vmem:[%s9 + $0x48c] sm:$0xf]
    %v3443 = vld [vmem:[%s9 + $0x490] sm:$0xf]
    %v3444 = vld [vmem:[%s9 + $0x494] sm:$0xf]
    %v3445 = vld [vmem:[%s9 + $0x498] sm:$0xf]
    %v3446 = vld [vmem:[%s9 + $0x49c] sm:$0xf]
    %v3447 = vld [vmem:[%s9 + $0x4a0] sm:$0xf]
    %v3448 = vld [vmem:[%s9 + $0x4a4] sm:$0xf]
    %v3449 = vld [vmem:[%s9 + $0x4a8] sm:$0xf]
    %v3450 = vld [vmem:[%s9 + $0x4ac] sm:$0xf]
    %v3451 = vld [vmem:[%s9 + $0x4b0] sm:$0xf]
    %v3452 = vld [vmem:[%s9 + $0x4b4] sm:$0xf]
    %v3453 = vld [vmem:[%s9 + $0x4b8] sm:$0xf]
    %v3454 = vld [vmem:[%s9 + $0x4bc] sm:$0xf]
    %v3455 = vld [vmem:[%s9 + $0x4c0] sm:$0xf]
    %v3456 = vld [vmem:[%s9 + $0x4c4] sm:$0xf]
    %v3457 = vld [vmem:[%s9 + $0x4c8] sm:$0xf]
    %v3458 = vld [vmem:[%s9 + $0x4cc] sm:$0xf]
    %v3459 = vld [vmem:[%s9 + $0x4d0] sm:$0xf]
    %v3460 = vld [vmem:[%s9 + $0x4d4] sm:$0xf]
    %v3461 = vld [vmem:[%s9 + $0x4d8] sm:$0xf]
    %v3462 = vld [vmem:[%s9 + $0x4dc] sm:$0xf]
    %v3463 = vld [vmem:[%s9 + $0x4e0] sm:$0xf]
    %v3464 = vld [vmem:[%s9 + $0x4e4] sm:$0xf]
    %v3465 = vld [vmem:[%s9 + $0x4e8] sm:$0xf]
    %v3466 = vld [vmem:[%s9 + $0x4ec] sm:$0xf]
    %v3467 = vld [vmem:[%s9 + $0x4f0] sm:$0xf]
    %v3468 = vld [vmem:[%s9 + $0x4f4] sm:$0xf]
    %v3469 = vld [vmem:[%s9 + $0x4f8] sm:$0xf]
    %v3470 = vld [vmem:[%s9 + $0x4fc] sm:$0xf]
    %v3471 = vld [vmem:[%s9 + $0x500] sm:$0xf]
    %v3472 = vld [vmem:[%s9 + $0x504] sm:$0xf]
    %v3473 = vld [vmem:[%s9 + $0x508] sm:$0xf]
    %v3474 = vld [vmem:[%s9 + $0x50c] sm:$0xf]
    %v3475 = vld [vmem:[%s9 + $0x510] sm:$0xf]
    %v3476 = vld [vmem:[%s9 + $0x514] sm:$0xf]
    %v3477 = vld [vmem:[%s9 + $0x518] sm:$0xf]
    %v3478 = vld [vmem:[%s9 + $0x51c] sm:$0xf]
    %v3479 = vld [vmem:[%s9 + $0x520] sm:$0xf]
    %v3480 = vld [vmem:[%s9 + $0x524] sm:$0xf]
    %v3481 = vld [vmem:[%s9 + $0x528] sm:$0xf]
    %v3482 = vld [vmem:[%s9 + $0x52c] sm:$0xf]
    %v3483 = vld [vmem:[%s9 + $0x530] sm:$0xf]
    %v3484 = vld [vmem:[%s9 + $0x534] sm:$0xf]
    %v3485 = vld [vmem:[%s9 + $0x538] sm:$0xf]
    %v3486 = vld [vmem:[%s9 + $0x53c] sm:$0xf]
    %v3487 = vld [vmem:[%s9 + $0x540] sm:$0xf]
    %v3488 = vld [vmem:[%s9 + $0x544] sm:$0xf]
    %v3489 = vld [vmem:[%s9 + $0x548] sm:$0xf]
    %v3490 = vld [vmem:[%s9 + $0x54c] sm:$0xf]
    %v3491 = vld [vmem:[%s9 + $0x550] sm:$0xf]
    %v3492 = vld [vmem:[%s9 + $0x554] sm:$0xf]
    %v3493 = vld [vmem:[%s9 + $0x558] sm:$0xf]
    %v3494 = vld [vmem:[%s9 + $0x55c] sm:$0xf]
    %v3495 = vld [vmem:[%s9 + $0x560] sm:$0xf]
    %v3496 = vld [vmem:[%s9 + $0x564] sm:$0xf]
    %v3497 = vld [vmem:[%s9 + $0x568] sm:$0xf]
    %v3498 = vld [vmem:[%s9 + $0x56c] sm:$0xf]
    %v3499 = vld [vmem:[%s9 + $0x570] sm:$0xf]
    %v3500 = vld [vmem:[%s9 + $0x574] sm:$0xf]
    %v3501 = vld [vmem:[%s9 + $0x578] sm:$0xf]
    %v3502 = vld [vmem:[%s9 + $0x57c] sm:$0xf]
    %v3503 = vld [vmem:[%s9 + $0x580] sm:$0xf]
    %v3504 = vld [vmem:[%s9 + $0x584] sm:$0xf]
    %v3505 = vld [vmem:[%s9 + $0x588] sm:$0xf]
    %v3506 = vld [vmem:[%s9 + $0x58c] sm:$0xf]
    %v3507 = vld [vmem:[%s9 + $0x590] sm:$0xf]
    %v3508 = vld [vmem:[%s9 + $0x594] sm:$0xf]
    %v3509 = vld [vmem:[%s9 + $0x598] sm:$0xf]
    %v3510 = vld [vmem:[%s9 + $0x59c] sm:$0xf]
    %v3511 = vld [vmem:[%s9 + $0x5a0] sm:$0xf]
    %v3512 = vld [vmem:[%s9 + $0x5a4] sm:$0xf]
    %v3513 = vld [vmem:[%s9 + $0x5a8] sm:$0xf]
    %v3514 = vld [vmem:[%s9 + $0x5ac] sm:$0xf]
    %v3515 = vld [vmem:[%s9 + $0x5b0] sm:$0xf]
    %v3516 = vld [vmem:[%s9 + $0x5b4] sm:$0xf]
    %v3517 = vld [vmem:[%s9 + $0x5b8] sm:$0xf]
    %v3518 = vld [vmem:[%s9 + $0x5bc] sm:$0xf]
    %v3519 = vld [vmem:[%s9 + $0x5c0] sm:$0xf]
    %v3520 = vld [vmem:[%s9 + $0x5c4] sm:$0xf]
    %v3521 = vld [vmem:[%s9 + $0x5c8] sm:$0xf]
    %v3522 = vld [vmem:[%s9 + $0x5cc] sm:$0xf]
    %v3523 = vld [vmem:[%s9 + $0x5d0] sm:$0xf]
    %v3524 = vld [vmem:[%s9 + $0x5d4] sm:$0xf]
    %v3525 = vld [vmem:[%s9 + $0x5d8] sm:$0xf]
    %v3526 = vld [vmem:[%s9 + $0x5dc] sm:$0xf]
    %v3527 = vld [vmem:[%s9 + $0x5e0] sm:$0xf]
    %v3528 = vld [vmem:[%s9 + $0x5e4] sm:$0xf]
    %v3529 = vld [vmem:[%s9 + $0x5e8] sm:$0xf]
    %v3530 = vld [vmem:[%s9 + $0x5ec] sm:$0xf]
    %v3531 = vld [vmem:[%s9 + $0x5f0] sm:$0xf]
    %v3532 = vld [vmem:[%s9 + $0x5f4] sm:$0xf]
    %v3533 = vld [vmem:[%s9 + $0x5f8] sm:$0xf]
    %v3534 = vld [vmem:[%s9 + $0x5fc] sm:$0xf]
    %v3535 = vld [vmem:[%s10] sm:$0x1]
    %v3920 = vunpack.c.l.b16 %v3151
    %v3921 = vunpack.c.l.b16 %v3152
    %v3922 = vunpack.c.l.b16 %v3153
    %v3923 = vunpack.c.l.b16 %v3154
    %v3924 = vunpack.c.l.b16 %v3155
    %v3925 = vunpack.c.l.b16 %v3156
    %v3926 = vunpack.c.l.b16 %v3157
    %v3927 = vunpack.c.l.b16 %v3158
    %v3928 = vunpack.c.l.b16 %v3159
    %v3929 = vunpack.c.l.b16 %v3160
    %v3930 = vunpack.c.l.b16 %v3161
    %v3931 = vunpack.c.l.b16 %v3162
    %v3932 = vunpack.c.l.b16 %v3163
    %v3933 = vunpack.c.l.b16 %v3164
    %v3934 = vunpack.c.l.b16 %v3165
    %v3935 = vunpack.c.l.b16 %v3166
    %v3936 = vunpack.c.l.b16 %v3167
    %v3937 = vunpack.c.l.b16 %v3168
    %v3938 = vunpack.c.l.b16 %v3169
    %v3939 = vunpack.c.l.b16 %v3170
    %v3940 = vunpack.c.l.b16 %v3171
    %v3941 = vunpack.c.l.b16 %v3172
    %v3942 = vunpack.c.l.b16 %v3173
    %v3943 = vunpack.c.l.b16 %v3174
    %v3944 = vunpack.c.l.b16 %v3175
    %v3945 = vunpack.c.l.b16 %v3176
    %v3946 = vunpack.c.l.b16 %v3177
    %v3947 = vunpack.c.l.b16 %v3178
    %v3948 = vunpack.c.l.b16 %v3179
    %v3949 = vunpack.c.l.b16 %v3180
    %v3950 = vunpack.c.l.b16 %v3181
    %v3951 = vunpack.c.l.b16 %v3182
    %v3952 = vunpack.c.l.b16 %v3183
    %v3953 = vunpack.c.l.b16 %v3184
    %v3954 = vunpack.c.l.b16 %v3185
    %v3955 = vunpack.c.l.b16 %v3186
    %v3956 = vunpack.c.l.b16 %v3187
    %v3957 = vunpack.c.l.b16 %v3188
    %v3958 = vunpack.c.l.b16 %v3189
    %v3959 = vunpack.c.l.b16 %v3190
    %v3960 = vunpack.c.l.b16 %v3191
    %v3961 = vunpack.c.l.b16 %v3192
    %v3962 = vunpack.c.l.b16 %v3193
    %v3963 = vunpack.c.l.b16 %v3194
    %v3964 = vunpack.c.l.b16 %v3195
    %v3965 = vunpack.c.l.b16 %v3196
    %v3966 = vunpack.c.l.b16 %v3197
    %v3967 = vunpack.c.l.b16 %v3198
    %v3968 = vunpack.c.l.b16 %v3199
    %v3969 = vunpack.c.l.b16 %v3200
    %v3970 = vunpack.c.l.b16 %v3201
    %v3971 = vunpack.c.l.b16 %v3202
    %v3972 = vunpack.c.l.b16 %v3203
    %v3973 = vunpack.c.l.b16 %v3204
    %v3974 = vunpack.c.l.b16 %v3205
    %v3975 = vunpack.c.l.b16 %v3206
    %v3976 = vunpack.c.l.b16 %v3207
    %v3977 = vunpack.c.l.b16 %v3208
    %v3978 = vunpack.c.l.b16 %v3209
    %v3979 = vunpack.c.l.b16 %v3210
    %v3980 = vunpack.c.l.b16 %v3211
    %v3981 = vunpack.c.l.b16 %v3212
    %v3982 = vunpack.c.l.b16 %v3213
    %v3983 = vunpack.c.l.b16 %v3214
    %v3984 = vunpack.c.l.b16 %v3215
    %v3985 = vunpack.c.l.b16 %v3216
    %v3986 = vunpack.c.l.b16 %v3217
    %v3987 = vunpack.c.l.b16 %v3218
    %v3988 = vunpack.c.l.b16 %v3219
    %v3989 = vunpack.c.l.b16 %v3220
    %v3990 = vunpack.c.l.b16 %v3221
    %v3991 = vunpack.c.l.b16 %v3222
    %v3992 = vunpack.c.l.b16 %v3223
    %v3993 = vunpack.c.l.b16 %v3224
    %v3994 = vunpack.c.l.b16 %v3225
    %v3995 = vunpack.c.l.b16 %v3226
    %v3996 = vunpack.c.l.b16 %v3227
    %v3997 = vunpack.c.l.b16 %v3228
    %v3998 = vunpack.c.l.b16 %v3229
    %v3999 = vunpack.c.l.b16 %v3230
    %v4000 = vunpack.c.l.b16 %v3231
    %v4001 = vunpack.c.l.b16 %v3232
    %v4002 = vunpack.c.l.b16 %v3233
    %v4003 = vunpack.c.l.b16 %v3234
    %v4004 = vunpack.c.l.b16 %v3235
    %v4005 = vunpack.c.l.b16 %v3236
    %v4006 = vunpack.c.l.b16 %v3237
    %v4007 = vunpack.c.l.b16 %v3238
    %v4008 = vunpack.c.l.b16 %v3239
    %v4009 = vunpack.c.l.b16 %v3240
    %v4010 = vunpack.c.l.b16 %v3241
    %v4011 = vunpack.c.l.b16 %v3242
    %v4012 = vunpack.c.l.b16 %v3243
    %v4013 = vunpack.c.l.b16 %v3244
    %v4014 = vunpack.c.l.b16 %v3245
    %v4015 = vunpack.c.l.b16 %v3246
    %v4016 = vunpack.c.l.b16 %v3247
    %v4017 = vunpack.c.l.b16 %v3248
    %v4018 = vunpack.c.l.b16 %v3249
    %v4019 = vunpack.c.l.b16 %v3250
    %v4020 = vunpack.c.l.b16 %v3251
    %v4021 = vunpack.c.l.b16 %v3252
    %v4022 = vunpack.c.l.b16 %v3253
    %v4023 = vunpack.c.l.b16 %v3254
    %v4024 = vunpack.c.l.b16 %v3255
    %v4025 = vunpack.c.l.b16 %v3256
    %v4026 = vunpack.c.l.b16 %v3257
    %v4027 = vunpack.c.l.b16 %v3258
    %v4028 = vunpack.c.l.b16 %v3259
    %v4029 = vunpack.c.l.b16 %v3260
    %v4030 = vunpack.c.l.b16 %v3261
    %v4031 = vunpack.c.l.b16 %v3262
    %v4032 = vunpack.c.l.b16 %v3263
    %v4033 = vunpack.c.l.b16 %v3264
    %v4034 = vunpack.c.l.b16 %v3265
    %v4035 = vunpack.c.l.b16 %v3266
    %v4036 = vunpack.c.l.b16 %v3267
    %v4037 = vunpack.c.l.b16 %v3268
    %v4038 = vunpack.c.l.b16 %v3269
    %v4039 = vunpack.c.l.b16 %v3270
    %v4040 = vunpack.c.l.b16 %v3271
    %v4041 = vunpack.c.l.b16 %v3272
    %v4042 = vunpack.c.l.b16 %v3273
    %v4043 = vunpack.c.l.b16 %v3274
    %v4044 = vunpack.c.l.b16 %v3275
    %v4045 = vunpack.c.l.b16 %v3276
    %v4046 = vunpack.c.l.b16 %v3277
    %v4047 = vunpack.c.l.b16 %v3278
    %v4048 = vunpack.c.l.b16 %v3279
    %v4049 = vunpack.c.l.b16 %v3280
    %v4050 = vunpack.c.l.b16 %v3281
    %v4051 = vunpack.c.l.b16 %v3282
    %v4052 = vunpack.c.l.b16 %v3283
    %v4053 = vunpack.c.l.b16 %v3284
    %v4054 = vunpack.c.l.b16 %v3285
    %v4055 = vunpack.c.l.b16 %v3286
    %v4056 = vunpack.c.l.b16 %v3287
    %v4057 = vunpack.c.l.b16 %v3288
    %v4058 = vunpack.c.l.b16 %v3289
    %v4059 = vunpack.c.l.b16 %v3290
    %v4060 = vunpack.c.l.b16 %v3291
    %v4061 = vunpack.c.l.b16 %v3292
    %v4062 = vunpack.c.l.b16 %v3293
    %v4063 = vunpack.c.l.b16 %v3294
    %v4064 = vunpack.c.l.b16 %v3295
    %v4065 = vunpack.c.l.b16 %v3296
    %v4066 = vunpack.c.l.b16 %v3297
    %v4067 = vunpack.c.l.b16 %v3298
    %v4068 = vunpack.c.l.b16 %v3299
    %v4069 = vunpack.c.l.b16 %v3300
    %v4070 = vunpack.c.l.b16 %v3301
    %v4071 = vunpack.c.l.b16 %v3302
    %v4072 = vunpack.c.l.b16 %v3303
    %v4073 = vunpack.c.l.b16 %v3304
    %v4074 = vunpack.c.l.b16 %v3305
    %v4075 = vunpack.c.l.b16 %v3306
    %v4076 = vunpack.c.l.b16 %v3307
    %v4077 = vunpack.c.l.b16 %v3308
    %v4078 = vunpack.c.l.b16 %v3309
    %v4079 = vunpack.c.l.b16 %v3310
    %v4080 = vunpack.c.l.b16 %v3311
    %v4081 = vunpack.c.l.b16 %v3312
    %v4082 = vunpack.c.l.b16 %v3313
    %v4083 = vunpack.c.l.b16 %v3314
    %v4084 = vunpack.c.l.b16 %v3315
    %v4085 = vunpack.c.l.b16 %v3316
    %v4086 = vunpack.c.l.b16 %v3317
    %v4087 = vunpack.c.l.b16 %v3318
    %v4088 = vunpack.c.l.b16 %v3319
    %v4089 = vunpack.c.l.b16 %v3320
    %v4090 = vunpack.c.l.b16 %v3321
    %v4091 = vunpack.c.l.b16 %v3322
    %v4092 = vunpack.c.l.b16 %v3323
    %v4093 = vunpack.c.l.b16 %v3324
    %v4094 = vunpack.c.l.b16 %v3325
    %v4095 = vunpack.c.l.b16 %v3326
    %v4096 = vunpack.c.l.b16 %v3327
    %v4097 = vunpack.c.l.b16 %v3328
    %v4098 = vunpack.c.l.b16 %v3329
    %v4099 = vunpack.c.l.b16 %v3330
    %v4100 = vunpack.c.l.b16 %v3331
    %v4101 = vunpack.c.l.b16 %v3332
    %v4102 = vunpack.c.l.b16 %v3333
    %v4103 = vunpack.c.l.b16 %v3334
    %v4104 = vunpack.c.l.b16 %v3335
    %v4105 = vunpack.c.l.b16 %v3336
    %v4106 = vunpack.c.l.b16 %v3337
    %v4107 = vunpack.c.l.b16 %v3338
    %v4108 = vunpack.c.l.b16 %v3339
    %v4109 = vunpack.c.l.b16 %v3340
    %v4110 = vunpack.c.l.b16 %v3341
    %v4111 = vunpack.c.l.b16 %v3342
    %v4112 = vunpack.c.l.b16 %v3343
    %v4113 = vunpack.c.l.b16 %v3344
    %v4114 = vunpack.c.l.b16 %v3345
    %v4115 = vunpack.c.l.b16 %v3346
    %v4116 = vunpack.c.l.b16 %v3347
    %v4117 = vunpack.c.l.b16 %v3348
    %v4118 = vunpack.c.l.b16 %v3349
    %v4119 = vunpack.c.l.b16 %v3350
    %v4120 = vunpack.c.l.b16 %v3351
    %v4121 = vunpack.c.l.b16 %v3352
    %v4122 = vunpack.c.l.b16 %v3353
    %v4123 = vunpack.c.l.b16 %v3354
    %v4124 = vunpack.c.l.b16 %v3355
    %v4125 = vunpack.c.l.b16 %v3356
    %v4126 = vunpack.c.l.b16 %v3357
    %v4127 = vunpack.c.l.b16 %v3358
    %v4128 = vunpack.c.l.b16 %v3359
    %v4129 = vunpack.c.l.b16 %v3360
    %v4130 = vunpack.c.l.b16 %v3361
    %v4131 = vunpack.c.l.b16 %v3362
    %v4132 = vunpack.c.l.b16 %v3363
    %v4133 = vunpack.c.l.b16 %v3364
    %v4134 = vunpack.c.l.b16 %v3365
    %v4135 = vunpack.c.l.b16 %v3366
    %v4136 = vunpack.c.l.b16 %v3367
    %v4137 = vunpack.c.l.b16 %v3368
    %v4138 = vunpack.c.l.b16 %v3369
    %v4139 = vunpack.c.l.b16 %v3370
    %v4140 = vunpack.c.l.b16 %v3371
    %v4141 = vunpack.c.l.b16 %v3372
    %v4142 = vunpack.c.l.b16 %v3373
    %v4143 = vunpack.c.l.b16 %v3374
    %v4144 = vunpack.c.l.b16 %v3375
    %v4145 = vunpack.c.l.b16 %v3376
    %v4146 = vunpack.c.l.b16 %v3377
    %v4147 = vunpack.c.l.b16 %v3378
    %v4148 = vunpack.c.l.b16 %v3379
    %v4149 = vunpack.c.l.b16 %v3380
    %v4150 = vunpack.c.l.b16 %v3381
    %v4151 = vunpack.c.l.b16 %v3382
    %v4152 = vunpack.c.l.b16 %v3383
    %v4153 = vunpack.c.l.b16 %v3384
    %v4154 = vunpack.c.l.b16 %v3385
    %v4155 = vunpack.c.l.b16 %v3386
    %v4156 = vunpack.c.l.b16 %v3387
    %v4157 = vunpack.c.l.b16 %v3388
    %v4158 = vunpack.c.l.b16 %v3389
    %v4159 = vunpack.c.l.b16 %v3390
    %v4160 = vunpack.c.l.b16 %v3391
    %v4161 = vunpack.c.l.b16 %v3392
    %v4162 = vunpack.c.l.b16 %v3393
    %v4163 = vunpack.c.l.b16 %v3394
    %v4164 = vunpack.c.l.b16 %v3395
    %v4165 = vunpack.c.l.b16 %v3396
    %v4166 = vunpack.c.l.b16 %v3397
    %v4167 = vunpack.c.l.b16 %v3398
    %v4168 = vunpack.c.l.b16 %v3399
    %v4169 = vunpack.c.l.b16 %v3400
    %v4170 = vunpack.c.l.b16 %v3401
    %v4171 = vunpack.c.l.b16 %v3402
    %v4172 = vunpack.c.l.b16 %v3403
    %v4173 = vunpack.c.l.b16 %v3404
    %v4174 = vunpack.c.l.b16 %v3405
    %v4175 = vunpack.c.l.b16 %v3406
    %v4176 = vunpack.c.l.b16 %v3407
    %v4177 = vunpack.c.l.b16 %v3408
    %v4178 = vunpack.c.l.b16 %v3409
    %v4179 = vunpack.c.l.b16 %v3410
    %v4180 = vunpack.c.l.b16 %v3411
    %v4181 = vunpack.c.l.b16 %v3412
    %v4182 = vunpack.c.l.b16 %v3413
    %v4183 = vunpack.c.l.b16 %v3414
    %v4184 = vunpack.c.l.b16 %v3415
    %v4185 = vunpack.c.l.b16 %v3416
    %v4186 = vunpack.c.l.b16 %v3417
    %v4187 = vunpack.c.l.b16 %v3418
    %v4188 = vunpack.c.l.b16 %v3419
    %v4189 = vunpack.c.l.b16 %v3420
    %v4190 = vunpack.c.l.b16 %v3421
    %v4191 = vunpack.c.l.b16 %v3422
    %v4192 = vunpack.c.l.b16 %v3423
    %v4193 = vunpack.c.l.b16 %v3424
    %v4194 = vunpack.c.l.b16 %v3425
    %v4195 = vunpack.c.l.b16 %v3426
    %v4196 = vunpack.c.l.b16 %v3427
    %v4197 = vunpack.c.l.b16 %v3428
    %v4198 = vunpack.c.l.b16 %v3429
    %v4199 = vunpack.c.l.b16 %v3430
    %v4200 = vunpack.c.l.b16 %v3431
    %v4201 = vunpack.c.l.b16 %v3432
    %v4202 = vunpack.c.l.b16 %v3433
    %v4203 = vunpack.c.l.b16 %v3434
    %v4204 = vunpack.c.l.b16 %v3435
    %v4205 = vunpack.c.l.b16 %v3436
    %v4206 = vunpack.c.l.b16 %v3437
    %v4207 = vunpack.c.l.b16 %v3438
    %v4208 = vunpack.c.l.b16 %v3439
    %v4209 = vunpack.c.l.b16 %v3440
    %v4210 = vunpack.c.l.b16 %v3441
    %v4211 = vunpack.c.l.b16 %v3442
    %v4212 = vunpack.c.l.b16 %v3443
    %v4213 = vunpack.c.l.b16 %v3444
    %v4214 = vunpack.c.l.b16 %v3445
    %v4215 = vunpack.c.l.b16 %v3446
    %v4216 = vunpack.c.l.b16 %v3447
    %v4217 = vunpack.c.l.b16 %v3448
    %v4218 = vunpack.c.l.b16 %v3449
    %v4219 = vunpack.c.l.b16 %v3450
    %v4220 = vunpack.c.l.b16 %v3451
    %v4221 = vunpack.c.l.b16 %v3452
    %v4222 = vunpack.c.l.b16 %v3453
    %v4223 = vunpack.c.l.b16 %v3454
    %v4224 = vunpack.c.l.b16 %v3455
    %v4225 = vunpack.c.l.b16 %v3456
    %v4226 = vunpack.c.l.b16 %v3457
    %v4227 = vunpack.c.l.b16 %v3458
    %v4228 = vunpack.c.l.b16 %v3459
    %v4229 = vunpack.c.l.b16 %v3460
    %v4230 = vunpack.c.l.b16 %v3461
    %v4231 = vunpack.c.l.b16 %v3462
    %v4232 = vunpack.c.l.b16 %v3463
    %v4233 = vunpack.c.l.b16 %v3464
    %v4234 = vunpack.c.l.b16 %v3465
    %v4235 = vunpack.c.l.b16 %v3466
    %v4236 = vunpack.c.l.b16 %v3467
    %v4237 = vunpack.c.l.b16 %v3468
    %v4238 = vunpack.c.l.b16 %v3469
    %v4239 = vunpack.c.l.b16 %v3470
    %v4240 = vunpack.c.l.b16 %v3471
    %v4241 = vunpack.c.l.b16 %v3472
    %v4242 = vunpack.c.l.b16 %v3473
    %v4243 = vunpack.c.l.b16 %v3474
    %v4244 = vunpack.c.l.b16 %v3475
    %v4245 = vunpack.c.l.b16 %v3476
    %v4246 = vunpack.c.l.b16 %v3477
    %v4247 = vunpack.c.l.b16 %v3478
    %v4248 = vunpack.c.l.b16 %v3479
    %v4249 = vunpack.c.l.b16 %v3480
    %v4250 = vunpack.c.l.b16 %v3481
    %v4251 = vunpack.c.l.b16 %v3482
    %v4252 = vunpack.c.l.b16 %v3483
    %v4253 = vunpack.c.l.b16 %v3484
    %v4254 = vunpack.c.l.b16 %v3485
    %v4255 = vunpack.c.l.b16 %v3486
    %v4256 = vunpack.c.l.b16 %v3487
    %v4257 = vunpack.c.l.b16 %v3488
    %v4258 = vunpack.c.l.b16 %v3489
    %v4259 = vunpack.c.l.b16 %v3490
    %v4260 = vunpack.c.l.b16 %v3491
    %v4261 = vunpack.c.l.b16 %v3492
    %v4262 = vunpack.c.l.b16 %v3493
    %v4263 = vunpack.c.l.b16 %v3494
    %v4264 = vunpack.c.l.b16 %v3495
    %v4265 = vunpack.c.l.b16 %v3496
    %v4266 = vunpack.c.l.b16 %v3497
    %v4267 = vunpack.c.l.b16 %v3498
    %v4268 = vunpack.c.l.b16 %v3499
    %v4269 = vunpack.c.l.b16 %v3500
    %v4270 = vunpack.c.l.b16 %v3501
    %v4271 = vunpack.c.l.b16 %v3502
    %v4272 = vunpack.c.l.b16 %v3503
    %v4273 = vunpack.c.l.b16 %v3504
    %v4274 = vunpack.c.l.b16 %v3505
    %v4275 = vunpack.c.l.b16 %v3506
    %v4276 = vunpack.c.l.b16 %v3507
    %v4277 = vunpack.c.l.b16 %v3508
    %v4278 = vunpack.c.l.b16 %v3509
    %v4279 = vunpack.c.l.b16 %v3510
    %v4280 = vunpack.c.l.b16 %v3511
    %v4281 = vunpack.c.l.b16 %v3512
    %v4282 = vunpack.c.l.b16 %v3513
    %v4283 = vunpack.c.l.b16 %v3514
    %v4284 = vunpack.c.l.b16 %v3515
    %v4285 = vunpack.c.l.b16 %v3516
    %v4286 = vunpack.c.l.b16 %v3517
    %v4287 = vunpack.c.l.b16 %v3518
    %v4288 = vunpack.c.l.b16 %v3519
    %v4289 = vunpack.c.l.b16 %v3520
    %v4290 = vunpack.c.l.b16 %v3521
    %v4291 = vunpack.c.l.b16 %v3522
    %v4292 = vunpack.c.l.b16 %v3523
    %v4293 = vunpack.c.l.b16 %v3524
    %v4294 = vunpack.c.l.b16 %v3525
    %v4295 = vunpack.c.l.b16 %v3526
    %v4296 = vunpack.c.l.b16 %v3527
    %v4297 = vunpack.c.l.b16 %v3528
    %v4298 = vunpack.c.l.b16 %v3529
    %v4299 = vunpack.c.l.b16 %v3530
    %v4300 = vunpack.c.l.b16 %v3531
    %v4301 = vunpack.c.l.b16 %v3532
    %v4302 = vunpack.c.l.b16 %v3533
    %v4303 = vunpack.c.l.b16 %v3534
    %v4304 = vpack.c.b16 %v3921, %v3920
    %v4305 = vpack.c.b16 %v3923, %v3922
    %v4306 = vpack.c.b16 %v3925, %v3924
    %v4307 = vpack.c.b16 %v3927, %v3926
    %v4308 = vpack.c.b16 %v3929, %v3928
    %v4309 = vpack.c.b16 %v3931, %v3930
    %v4310 = vpack.c.b16 %v3933, %v3932
    %v4311 = vpack.c.b16 %v3935, %v3934
    %v4312 = vpack.c.b16 %v3937, %v3936
    %v4313 = vpack.c.b16 %v3939, %v3938
    %v4314 = vpack.c.b16 %v3941, %v3940
    %v4315 = vpack.c.b16 %v3943, %v3942
    %v4316 = vpack.c.b16 %v3945, %v3944
    %v4317 = vpack.c.b16 %v3947, %v3946
    %v4318 = vpack.c.b16 %v3949, %v3948
    %v4319 = vpack.c.b16 %v3951, %v3950
    %v4320 = vpack.c.b16 %v3953, %v3952
    %v4321 = vpack.c.b16 %v3955, %v3954
    %v4322 = vpack.c.b16 %v3957, %v3956
    %v4323 = vpack.c.b16 %v3959, %v3958
    %v4324 = vpack.c.b16 %v3961, %v3960
    %v4325 = vpack.c.b16 %v3963, %v3962
    %v4326 = vpack.c.b16 %v3965, %v3964
    %v4327 = vpack.c.b16 %v3967, %v3966
    %v4328 = vpack.c.b16 %v3969, %v3968
    %v4329 = vpack.c.b16 %v3971, %v3970
    %v4330 = vpack.c.b16 %v3973, %v3972
    %v4331 = vpack.c.b16 %v3975, %v3974
    %v4332 = vpack.c.b16 %v3977, %v3976
    %v4333 = vpack.c.b16 %v3979, %v3978
    %v4334 = vpack.c.b16 %v3981, %v3980
    %v4335 = vpack.c.b16 %v3983, %v3982
    %v4336 = vpack.c.b16 %v3985, %v3984
    %v4337 = vpack.c.b16 %v3987, %v3986
    %v4338 = vpack.c.b16 %v3989, %v3988
    %v4339 = vpack.c.b16 %v3991, %v3990
    %v4340 = vpack.c.b16 %v3993, %v3992
    %v4341 = vpack.c.b16 %v3995, %v3994
    %v4342 = vpack.c.b16 %v3997, %v3996
    %v4343 = vpack.c.b16 %v3999, %v3998
    %v4344 = vpack.c.b16 %v4001, %v4000
    %v4345 = vpack.c.b16 %v4003, %v4002
    %v4346 = vpack.c.b16 %v4005, %v4004
    %v4347 = vpack.c.b16 %v4007, %v4006
    %v4348 = vpack.c.b16 %v4009, %v4008
    %v4349 = vpack.c.b16 %v4011, %v4010
    %v4350 = vpack.c.b16 %v4013, %v4012
    %v4351 = vpack.c.b16 %v4015, %v4014
    %v4352 = vpack.c.b16 %v4017, %v4016
    %v4353 = vpack.c.b16 %v4019, %v4018
    %v4354 = vpack.c.b16 %v4021, %v4020
    %v4355 = vpack.c.b16 %v4023, %v4022
    %v4356 = vpack.c.b16 %v4025, %v4024
    %v4357 = vpack.c.b16 %v4027, %v4026
    %v4358 = vpack.c.b16 %v4029, %v4028
    %v4359 = vpack.c.b16 %v4031, %v4030
    %v4360 = vpack.c.b16 %v4033, %v4032
    %v4361 = vpack.c.b16 %v4035, %v4034
    %v4362 = vpack.c.b16 %v4037, %v4036
    %v4363 = vpack.c.b16 %v4039, %v4038
    %v4364 = vpack.c.b16 %v4041, %v4040
    %v4365 = vpack.c.b16 %v4043, %v4042
    %v4366 = vpack.c.b16 %v4045, %v4044
    %v4367 = vpack.c.b16 %v4047, %v4046
    %v4368 = vpack.c.b16 %v4049, %v4048
    %v4369 = vpack.c.b16 %v4051, %v4050
    %v4370 = vpack.c.b16 %v4053, %v4052
    %v4371 = vpack.c.b16 %v4055, %v4054
    %v4372 = vpack.c.b16 %v4057, %v4056
    %v4373 = vpack.c.b16 %v4059, %v4058
    %v4374 = vpack.c.b16 %v4061, %v4060
    %v4375 = vpack.c.b16 %v4063, %v4062
    %v4376 = vpack.c.b16 %v4065, %v4064
    %v4377 = vpack.c.b16 %v4067, %v4066
    %v4378 = vpack.c.b16 %v4069, %v4068
    %v4379 = vpack.c.b16 %v4071, %v4070
    %v4380 = vpack.c.b16 %v4073, %v4072
    %v4381 = vpack.c.b16 %v4075, %v4074
    %v4382 = vpack.c.b16 %v4077, %v4076
    %v4383 = vpack.c.b16 %v4079, %v4078
    %v4384 = vpack.c.b16 %v4081, %v4080
    %v4385 = vpack.c.b16 %v4083, %v4082
    %v4386 = vpack.c.b16 %v4085, %v4084
    %v4387 = vpack.c.b16 %v4087, %v4086
    %v4388 = vpack.c.b16 %v4089, %v4088
    %v4389 = vpack.c.b16 %v4091, %v4090
    %v4390 = vpack.c.b16 %v4093, %v4092
    %v4391 = vpack.c.b16 %v4095, %v4094
    %v4392 = vpack.c.b16 %v4097, %v4096
    %v4393 = vpack.c.b16 %v4099, %v4098
    %v4394 = vpack.c.b16 %v4101, %v4100
    %v4395 = vpack.c.b16 %v4103, %v4102
    %v4396 = vpack.c.b16 %v4105, %v4104
    %v4397 = vpack.c.b16 %v4107, %v4106
    %v4398 = vpack.c.b16 %v4109, %v4108
    %v4399 = vpack.c.b16 %v4111, %v4110
    %v4400 = vpack.c.b16 %v4113, %v4112
    %v4401 = vpack.c.b16 %v4115, %v4114
    %v4402 = vpack.c.b16 %v4117, %v4116
    %v4403 = vpack.c.b16 %v4119, %v4118
    %v4404 = vpack.c.b16 %v4121, %v4120
    %v4405 = vpack.c.b16 %v4123, %v4122
    %v4406 = vpack.c.b16 %v4125, %v4124
    %v4407 = vpack.c.b16 %v4127, %v4126
    %v4408 = vpack.c.b16 %v4129, %v4128
    %v4409 = vpack.c.b16 %v4131, %v4130
    %v4410 = vpack.c.b16 %v4133, %v4132
    %v4411 = vpack.c.b16 %v4135, %v4134
    %v4412 = vpack.c.b16 %v4137, %v4136
    %v4413 = vpack.c.b16 %v4139, %v4138
    %v4414 = vpack.c.b16 %v4141, %v4140
    %v4415 = vpack.c.b16 %v4143, %v4142
    %v4416 = vpack.c.b16 %v4145, %v4144
    %v4417 = vpack.c.b16 %v4147, %v4146
    %v4418 = vpack.c.b16 %v4149, %v4148
    %v4419 = vpack.c.b16 %v4151, %v4150
    %v4420 = vpack.c.b16 %v4153, %v4152
    %v4421 = vpack.c.b16 %v4155, %v4154
    %v4422 = vpack.c.b16 %v4157, %v4156
    %v4423 = vpack.c.b16 %v4159, %v4158
    %v4424 = vpack.c.b16 %v4161, %v4160
    %v4425 = vpack.c.b16 %v4163, %v4162
    %v4426 = vpack.c.b16 %v4165, %v4164
    %v4427 = vpack.c.b16 %v4167, %v4166
    %v4428 = vpack.c.b16 %v4169, %v4168
    %v4429 = vpack.c.b16 %v4171, %v4170
    %v4430 = vpack.c.b16 %v4173, %v4172
    %v4431 = vpack.c.b16 %v4175, %v4174
    %v4432 = vpack.c.b16 %v4177, %v4176
    %v4433 = vpack.c.b16 %v4179, %v4178
    %v4434 = vpack.c.b16 %v4181, %v4180
    %v4435 = vpack.c.b16 %v4183, %v4182
    %v4436 = vpack.c.b16 %v4185, %v4184
    %v4437 = vpack.c.b16 %v4187, %v4186
    %v4438 = vpack.c.b16 %v4189, %v4188
    %v4439 = vpack.c.b16 %v4191, %v4190
    %v4440 = vpack.c.b16 %v4193, %v4192
    %v4441 = vpack.c.b16 %v4195, %v4194
    %v4442 = vpack.c.b16 %v4197, %v4196
    %v4443 = vpack.c.b16 %v4199, %v4198
    %v4444 = vpack.c.b16 %v4201, %v4200
    %v4445 = vpack.c.b16 %v4203, %v4202
    %v4446 = vpack.c.b16 %v4205, %v4204
    %v4447 = vpack.c.b16 %v4207, %v4206
    %v4448 = vpack.c.b16 %v4209, %v4208
    %v4449 = vpack.c.b16 %v4211, %v4210
    %v4450 = vpack.c.b16 %v4213, %v4212
    %v4451 = vpack.c.b16 %v4215, %v4214
    %v4452 = vpack.c.b16 %v4217, %v4216
    %v4453 = vpack.c.b16 %v4219, %v4218
    %v4454 = vpack.c.b16 %v4221, %v4220
    %v4455 = vpack.c.b16 %v4223, %v4222
    %v4456 = vpack.c.b16 %v4225, %v4224
    %v4457 = vpack.c.b16 %v4227, %v4226
    %v4458 = vpack.c.b16 %v4229, %v4228
    %v4459 = vpack.c.b16 %v4231, %v4230
    %v4460 = vpack.c.b16 %v4233, %v4232
    %v4461 = vpack.c.b16 %v4235, %v4234
    %v4462 = vpack.c.b16 %v4237, %v4236
    %v4463 = vpack.c.b16 %v4239, %v4238
    %v4464 = vpack.c.b16 %v4241, %v4240
    %v4465 = vpack.c.b16 %v4243, %v4242
    %v4466 = vpack.c.b16 %v4245, %v4244
    %v4467 = vpack.c.b16 %v4247, %v4246
    %v4468 = vpack.c.b16 %v4249, %v4248
    %v4469 = vpack.c.b16 %v4251, %v4250
    %v4470 = vpack.c.b16 %v4253, %v4252
    %v4471 = vpack.c.b16 %v4255, %v4254
    %v4472 = vpack.c.b16 %v4257, %v4256
    %v4473 = vpack.c.b16 %v4259, %v4258
    %v4474 = vpack.c.b16 %v4261, %v4260
    %v4475 = vpack.c.b16 %v4263, %v4262
    %v4476 = vpack.c.b16 %v4265, %v4264
    %v4477 = vpack.c.b16 %v4267, %v4266
    %v4478 = vpack.c.b16 %v4269, %v4268
    %v4479 = vpack.c.b16 %v4271, %v4270
    %v4480 = vpack.c.b16 %v4273, %v4272
    %v4481 = vpack.c.b16 %v4275, %v4274
    %v4482 = vpack.c.b16 %v4277, %v4276
    %v4483 = vpack.c.b16 %v4279, %v4278
    %v4484 = vpack.c.b16 %v4281, %v4280
    %v4485 = vpack.c.b16 %v4283, %v4282
    %v4486 = vpack.c.b16 %v4285, %v4284
    %v4487 = vpack.c.b16 %v4287, %v4286
    %v4488 = vpack.c.b16 %v4289, %v4288
    %v4489 = vpack.c.b16 %v4291, %v4290
    %v4490 = vpack.c.b16 %v4293, %v4292
    %v4491 = vpack.c.b16 %v4295, %v4294
    %v4492 = vpack.c.b16 %v4297, %v4296
    %v4493 = vpack.c.b16 %v4299, %v4298
    %v4494 = vpack.c.b16 %v4301, %v4300
    %v4495 = vpack.c.b16 %v4303, %v4302
    %4688 = vmatpush.bf16.msra.mxu0 %v4311
    %4689 = vmatpush.bf16.msra.mxu0 %v4310
    %4690 = vmatpush.bf16.msra.mxu0 %v4309
    %4691 = vmatpush.bf16.msra.mxu0 %v4308
    %4692 = vmatpush.bf16.msra.mxu0 %v4307
    %4693 = vmatpush.bf16.msra.mxu0 %v4306
    %4694 = vmatpush.bf16.msra.mxu0 %v4305
    %4695 = vmatpush.bf16.msra.mxu0 %v4304
    %4696 = vmatmul.bf16.gmra.mxu0 %v3127
    %v4697 = vpop.f32.mrf.mxu0
    %v4698 = vadd.f32 %v3535, %v4697
    %v4699 = vpop.f32.mrf.mxu0
    %4700 = vdwg.mxu0
    %4701 = vmatpush.bf16.msra.mxu0 %v4319
    %4702 = vmatpush.bf16.msra.mxu0 %v4318
    %4703 = vmatpush.bf16.msra.mxu0 %v4317
    %4704 = vmatpush.bf16.msra.mxu0 %v4316
    %4705 = vmatpush.bf16.msra.mxu0 %v4315
    %4706 = vmatpush.bf16.msra.mxu0 %v4314
    %4707 = vmatpush.bf16.msra.mxu0 %v4313
    %4708 = vmatpush.bf16.msra.mxu0 %v4312
    %4709 = vmatmul.bf16.gmra.mxu0 %v3128
    %v4710 = vpop.f32.mrf.mxu0
    %v4711 = vadd.f32 %v4698, %v4710
    %v4712 = vpop.f32.mrf.mxu0
    %4713 = vdwg.mxu0
    %4714 = vmatpush.bf16.msra.mxu0 %v4327
    %4715 = vmatpush.bf16.msra.mxu0 %v4326
    %4716 = vmatpush.bf16.msra.mxu0 %v4325
    %4717 = vmatpush.bf16.msra.mxu0 %v4324
    %4718 = vmatpush.bf16.msra.mxu0 %v4323
    %4719 = vmatpush.bf16.msra.mxu0 %v4322
    %4720 = vmatpush.bf16.msra.mxu0 %v4321
    %4721 = vmatpush.bf16.msra.mxu0 %v4320
    %4722 = vmatmul.bf16.gmra.mxu0 %v3129
    %v4723 = vpop.f32.mrf.mxu0
    %v4724 = vadd.f32 %v4711, %v4723
    %v4725 = vpop.f32.mrf.mxu0
    %4726 = vdwg.mxu0
    %4727 = vmatpush.bf16.msra.mxu0 %v4335
    %4728 = vmatpush.bf16.msra.mxu0 %v4334
    %4729 = vmatpush.bf16.msra.mxu0 %v4333
    %4730 = vmatpush.bf16.msra.mxu0 %v4332
    %4731 = vmatpush.bf16.msra.mxu0 %v4331
    %4732 = vmatpush.bf16.msra.mxu0 %v4330
    %4733 = vmatpush.bf16.msra.mxu0 %v4329
    %4734 = vmatpush.bf16.msra.mxu0 %v4328
    %4735 = vmatmul.bf16.gmra.mxu0 %v3130
    %v4736 = vpop.f32.mrf.mxu0
    %v4737 = vadd.f32 %v4724, %v4736
    %v4738 = vpop.f32.mrf.mxu0
    %4739 = vdwg.mxu0
    %4740 = vmatpush.bf16.msra.mxu0 %v4343
    %4741 = vmatpush.bf16.msra.mxu0 %v4342
    %4742 = vmatpush.bf16.msra.mxu0 %v4341
    %4743 = vmatpush.bf16.msra.mxu0 %v4340
    %4744 = vmatpush.bf16.msra.mxu0 %v4339
    %4745 = vmatpush.bf16.msra.mxu0 %v4338
    %4746 = vmatpush.bf16.msra.mxu0 %v4337
    %4747 = vmatpush.bf16.msra.mxu0 %v4336
    %4748 = vmatmul.bf16.gmra.mxu0 %v3131
    %v4749 = vpop.f32.mrf.mxu0
    %v4750 = vadd.f32 %v4737, %v4749
    %v4751 = vpop.f32.mrf.mxu0
    %4752 = vdwg.mxu0
    %4753 = vmatpush.bf16.msra.mxu0 %v4351
    %4754 = vmatpush.bf16.msra.mxu0 %v4350
    %4755 = vmatpush.bf16.msra.mxu0 %v4349
    %4756 = vmatpush.bf16.msra.mxu0 %v4348
    %4757 = vmatpush.bf16.msra.mxu0 %v4347
    %4758 = vmatpush.bf16.msra.mxu0 %v4346
    %4759 = vmatpush.bf16.msra.mxu0 %v4345
    %4760 = vmatpush.bf16.msra.mxu0 %v4344
    %4761 = vmatmul.bf16.gmra.mxu0 %v3132
    %v4762 = vpop.f32.mrf.mxu0
    %v4763 = vadd.f32 %v4750, %v4762
    %v4764 = vpop.f32.mrf.mxu0
    %4765 = vdwg.mxu0
    %4766 = vmatpush.bf16.msra.mxu0 %v4359
    %4767 = vmatpush.bf16.msra.mxu0 %v4358
    %4768 = vmatpush.bf16.msra.mxu0 %v4357
    %4769 = vmatpush.bf16.msra.mxu0 %v4356
    %4770 = vmatpush.bf16.msra.mxu0 %v4355
    %4771 = vmatpush.bf16.msra.mxu0 %v4354
    %4772 = vmatpush.bf16.msra.mxu0 %v4353
    %4773 = vmatpush.bf16.msra.mxu0 %v4352
    %4774 = vmatmul.bf16.gmra.mxu0 %v3133
    %v4775 = vpop.f32.mrf.mxu0
    %v4776 = vadd.f32 %v4763, %v4775
    %v4777 = vpop.f32.mrf.mxu0
    %4778 = vdwg.mxu0
    %4779 = vmatpush.bf16.msra.mxu0 %v4367
    %4780 = vmatpush.bf16.msra.mxu0 %v4366
    %4781 = vmatpush.bf16.msra.mxu0 %v4365
    %4782 = vmatpush.bf16.msra.mxu0 %v4364
    %4783 = vmatpush.bf16.msra.mxu0 %v4363
    %4784 = vmatpush.bf16.msra.mxu0 %v4362
    %4785 = vmatpush.bf16.msra.mxu0 %v4361
    %4786 = vmatpush.bf16.msra.mxu0 %v4360
    %4787 = vmatmul.bf16.gmra.mxu0 %v3134
    %v4788 = vpop.f32.mrf.mxu0
    %v4789 = vadd.f32 %v4776, %v4788
    %v4790 = vpop.f32.mrf.mxu0
    %4791 = vdwg.mxu0
    %4792 = vmatpush.bf16.msra.mxu0 %v4375
    %4793 = vmatpush.bf16.msra.mxu0 %v4374
    %4794 = vmatpush.bf16.msra.mxu0 %v4373
    %4795 = vmatpush.bf16.msra.mxu0 %v4372
    %4796 = vmatpush.bf16.msra.mxu0 %v4371
    %4797 = vmatpush.bf16.msra.mxu0 %v4370
    %4798 = vmatpush.bf16.msra.mxu0 %v4369
    %4799 = vmatpush.bf16.msra.mxu0 %v4368
    %4800 = vmatmul.bf16.gmra.mxu0 %v3135
    %v4801 = vpop.f32.mrf.mxu0
    %v4802 = vadd.f32 %v4789, %v4801
    %v4803 = vpop.f32.mrf.mxu0
    %4804 = vdwg.mxu0
    %4805 = vmatpush.bf16.msra.mxu0 %v4383
    %4806 = vmatpush.bf16.msra.mxu0 %v4382
    %4807 = vmatpush.bf16.msra.mxu0 %v4381
    %4808 = vmatpush.bf16.msra.mxu0 %v4380
    %4809 = vmatpush.bf16.msra.mxu0 %v4379
    %4810 = vmatpush.bf16.msra.mxu0 %v4378
    %4811 = vmatpush.bf16.msra.mxu0 %v4377
    %4812 = vmatpush.bf16.msra.mxu0 %v4376
    %4813 = vmatmul.bf16.gmra.mxu0 %v3136
    %v4814 = vpop.f32.mrf.mxu0
    %v4815 = vadd.f32 %v4802, %v4814
    %v4816 = vpop.f32.mrf.mxu0
    %4817 = vdwg.mxu0
    %4818 = vmatpush.bf16.msra.mxu0 %v4391
    %4819 = vmatpush.bf16.msra.mxu0 %v4390
    %4820 = vmatpush.bf16.msra.mxu0 %v4389
    %4821 = vmatpush.bf16.msra.mxu0 %v4388
    %4822 = vmatpush.bf16.msra.mxu0 %v4387
    %4823 = vmatpush.bf16.msra.mxu0 %v4386
    %4824 = vmatpush.bf16.msra.mxu0 %v4385
    %4825 = vmatpush.bf16.msra.mxu0 %v4384
    %4826 = vmatmul.bf16.gmra.mxu0 %v3137
    %v4827 = vpop.f32.mrf.mxu0
    %v4828 = vadd.f32 %v4815, %v4827
    %v4829 = vpop.f32.mrf.mxu0
    %4830 = vdwg.mxu0
    %4831 = vmatpush.bf16.msra.mxu0 %v4399
    %4832 = vmatpush.bf16.msra.mxu0 %v4398
    %4833 = vmatpush.bf16.msra.mxu0 %v4397
    %4834 = vmatpush.bf16.msra.mxu0 %v4396
    %4835 = vmatpush.bf16.msra.mxu0 %v4395
    %4836 = vmatpush.bf16.msra.mxu0 %v4394
    %4837 = vmatpush.bf16.msra.mxu0 %v4393
    %4838 = vmatpush.bf16.msra.mxu0 %v4392
    %4839 = vmatmul.bf16.gmra.mxu0 %v3138
    %v4840 = vpop.f32.mrf.mxu0
    %v4841 = vadd.f32 %v4828, %v4840
    %v4842 = vpop.f32.mrf.mxu0
    %4843 = vdwg.mxu0
    %4844 = vmatpush.bf16.msra.mxu0 %v4407
    %4845 = vmatpush.bf16.msra.mxu0 %v4406
    %4846 = vmatpush.bf16.msra.mxu0 %v4405
    %4847 = vmatpush.bf16.msra.mxu0 %v4404
    %4848 = vmatpush.bf16.msra.mxu0 %v4403
    %4849 = vmatpush.bf16.msra.mxu0 %v4402
    %4850 = vmatpush.bf16.msra.mxu0 %v4401
    %4851 = vmatpush.bf16.msra.mxu0 %v4400
    %4852 = vmatmul.bf16.gmra.mxu0 %v3139
    %v4853 = vpop.f32.mrf.mxu0
    %v4854 = vadd.f32 %v4841, %v4853
    %v4855 = vpop.f32.mrf.mxu0
    %4856 = vdwg.mxu0
    %4857 = vmatpush.bf16.msra.mxu0 %v4415
    %4858 = vmatpush.bf16.msra.mxu0 %v4414
    %4859 = vmatpush.bf16.msra.mxu0 %v4413
    %4860 = vmatpush.bf16.msra.mxu0 %v4412
    %4861 = vmatpush.bf16.msra.mxu0 %v4411
    %4862 = vmatpush.bf16.msra.mxu0 %v4410
    %4863 = vmatpush.bf16.msra.mxu0 %v4409
    %4864 = vmatpush.bf16.msra.mxu0 %v4408
    %4865 = vmatmul.bf16.gmra.mxu0 %v3140
    %v4866 = vpop.f32.mrf.mxu0
    %v4867 = vadd.f32 %v4854, %v4866
    %v4868 = vpop.f32.mrf.mxu0
    %4869 = vdwg.mxu0
    %4870 = vmatpush.bf16.msra.mxu0 %v4423
    %4871 = vmatpush.bf16.msra.mxu0 %v4422
    %4872 = vmatpush.bf16.msra.mxu0 %v4421
    %4873 = vmatpush.bf16.msra.mxu0 %v4420
    %4874 = vmatpush.bf16.msra.mxu0 %v4419
    %4875 = vmatpush.bf16.msra.mxu0 %v4418
    %4876 = vmatpush.bf16.msra.mxu0 %v4417
    %4877 = vmatpush.bf16.msra.mxu0 %v4416
    %4878 = vmatmul.bf16.gmra.mxu0 %v3141
    %v4879 = vpop.f32.mrf.mxu0
    %v4880 = vadd.f32 %v4867, %v4879
    %v4881 = vpop.f32.mrf.mxu0
    %4882 = vdwg.mxu0
    %4883 = vmatpush.bf16.msra.mxu0 %v4431
    %4884 = vmatpush.bf16.msra.mxu0 %v4430
    %4885 = vmatpush.bf16.msra.mxu0 %v4429
    %4886 = vmatpush.bf16.msra.mxu0 %v4428
    %4887 = vmatpush.bf16.msra.mxu0 %v4427
    %4888 = vmatpush.bf16.msra.mxu0 %v4426
    %4889 = vmatpush.bf16.msra.mxu0 %v4425
    %4890 = vmatpush.bf16.msra.mxu0 %v4424
    %4891 = vmatmul.bf16.gmra.mxu0 %v3142
    %v4892 = vpop.f32.mrf.mxu0
    %v4893 = vadd.f32 %v4880, %v4892
    %v4894 = vpop.f32.mrf.mxu0
    %4895 = vdwg.mxu0
    %4896 = vmatpush.bf16.msra.mxu0 %v4439
    %4897 = vmatpush.bf16.msra.mxu0 %v4438
    %4898 = vmatpush.bf16.msra.mxu0 %v4437
    %4899 = vmatpush.bf16.msra.mxu0 %v4436
    %4900 = vmatpush.bf16.msra.mxu0 %v4435
    %4901 = vmatpush.bf16.msra.mxu0 %v4434
    %4902 = vmatpush.bf16.msra.mxu0 %v4433
    %4903 = vmatpush.bf16.msra.mxu0 %v4432
    %4904 = vmatmul.bf16.gmra.mxu0 %v3143
    %v4905 = vpop.f32.mrf.mxu0
    %v4906 = vadd.f32 %v4893, %v4905
    %v4907 = vpop.f32.mrf.mxu0
    %4908 = vdwg.mxu0
    %4909 = vmatpush.bf16.msra.mxu0 %v4447
    %4910 = vmatpush.bf16.msra.mxu0 %v4446
    %4911 = vmatpush.bf16.msra.mxu0 %v4445
    %4912 = vmatpush.bf16.msra.mxu0 %v4444
    %4913 = vmatpush.bf16.msra.mxu0 %v4443
    %4914 = vmatpush.bf16.msra.mxu0 %v4442
    %4915 = vmatpush.bf16.msra.mxu0 %v4441
    %4916 = vmatpush.bf16.msra.mxu0 %v4440
    %4917 = vmatmul.bf16.gmra.mxu0 %v3144
    %v4918 = vpop.f32.mrf.mxu0
    %v4919 = vadd.f32 %v4906, %v4918
    %v4920 = vpop.f32.mrf.mxu0
    %4921 = vdwg.mxu0
    %4922 = vmatpush.bf16.msra.mxu0 %v4455
    %4923 = vmatpush.bf16.msra.mxu0 %v4454
    %4924 = vmatpush.bf16.msra.mxu0 %v4453
    %4925 = vmatpush.bf16.msra.mxu0 %v4452
    %4926 = vmatpush.bf16.msra.mxu0 %v4451
    %4927 = vmatpush.bf16.msra.mxu0 %v4450
    %4928 = vmatpush.bf16.msra.mxu0 %v4449
    %4929 = vmatpush.bf16.msra.mxu0 %v4448
    %4930 = vmatmul.bf16.gmra.mxu0 %v3145
    %v4931 = vpop.f32.mrf.mxu0
    %v4932 = vadd.f32 %v4919, %v4931
    %v4933 = vpop.f32.mrf.mxu0
    %4934 = vdwg.mxu0
    %4935 = vmatpush.bf16.msra.mxu0 %v4463
    %4936 = vmatpush.bf16.msra.mxu0 %v4462
    %4937 = vmatpush.bf16.msra.mxu0 %v4461
    %4938 = vmatpush.bf16.msra.mxu0 %v4460
    %4939 = vmatpush.bf16.msra.mxu0 %v4459
    %4940 = vmatpush.bf16.msra.mxu0 %v4458
    %4941 = vmatpush.bf16.msra.mxu0 %v4457
    %4942 = vmatpush.bf16.msra.mxu0 %v4456
    %4943 = vmatmul.bf16.gmra.mxu0 %v3146
    %v4944 = vpop.f32.mrf.mxu0
    %v4945 = vadd.f32 %v4932, %v4944
    %v4946 = vpop.f32.mrf.mxu0
    %4947 = vdwg.mxu0
    %4948 = vmatpush.bf16.msra.mxu0 %v4471
    %4949 = vmatpush.bf16.msra.mxu0 %v4470
    %4950 = vmatpush.bf16.msra.mxu0 %v4469
    %4951 = vmatpush.bf16.msra.mxu0 %v4468
    %4952 = vmatpush.bf16.msra.mxu0 %v4467
    %4953 = vmatpush.bf16.msra.mxu0 %v4466
    %4954 = vmatpush.bf16.msra.mxu0 %v4465
    %4955 = vmatpush.bf16.msra.mxu0 %v4464
    %4956 = vmatmul.bf16.gmra.mxu0 %v3147
    %v4957 = vpop.f32.mrf.mxu0
    %v4958 = vadd.f32 %v4945, %v4957
    %v4959 = vpop.f32.mrf.mxu0
    %4960 = vdwg.mxu0
    %4961 = vmatpush.bf16.msra.mxu0 %v4479
    %4962 = vmatpush.bf16.msra.mxu0 %v4478
    %4963 = vmatpush.bf16.msra.mxu0 %v4477
    %4964 = vmatpush.bf16.msra.mxu0 %v4476
    %4965 = vmatpush.bf16.msra.mxu0 %v4475
    %4966 = vmatpush.bf16.msra.mxu0 %v4474
    %4967 = vmatpush.bf16.msra.mxu0 %v4473
    %4968 = vmatpush.bf16.msra.mxu0 %v4472
    %4969 = vmatmul.bf16.gmra.mxu0 %v3148
    %v4970 = vpop.f32.mrf.mxu0
    %v4971 = vadd.f32 %v4958, %v4970
    %v4972 = vpop.f32.mrf.mxu0
    %4973 = vdwg.mxu0
    %4974 = vmatpush.bf16.msra.mxu0 %v4487
    %4975 = vmatpush.bf16.msra.mxu0 %v4486
    %4976 = vmatpush.bf16.msra.mxu0 %v4485
    %4977 = vmatpush.bf16.msra.mxu0 %v4484
    %4978 = vmatpush.bf16.msra.mxu0 %v4483
    %4979 = vmatpush.bf16.msra.mxu0 %v4482
    %4980 = vmatpush.bf16.msra.mxu0 %v4481
    %4981 = vmatpush.bf16.msra.mxu0 %v4480
    %4982 = vmatmul.bf16.gmra.mxu0 %v3149
    %v4983 = vpop.f32.mrf.mxu0
    %v4984 = vadd.f32 %v4971, %v4983
    %v4985 = vpop.f32.mrf.mxu0
    %4986 = vdwg.mxu0
    %4987 = vmatpush.bf16.msra.mxu0 %v4495
    %4988 = vmatpush.bf16.msra.mxu0 %v4494
    %4989 = vmatpush.bf16.msra.mxu0 %v4493
    %4990 = vmatpush.bf16.msra.mxu0 %v4492
    %4991 = vmatpush.bf16.msra.mxu0 %v4491
    %4992 = vmatpush.bf16.msra.mxu0 %v4490
    %4993 = vmatpush.bf16.msra.mxu0 %v4489
    %4994 = vmatpush.bf16.msra.mxu0 %v4488
    %4995 = vmatmul.bf16.gmra.mxu0 %v3150
    %v4996 = vpop.f32.mrf.mxu0
    %v4997 = vadd.f32 %v4984, %v4996
    %v4998 = vpop.f32.mrf.mxu0
    %4999 = vdwg.mxu0
    %vm5000 = vcmask 73728
    %5001 = vst.msk [vmem:[#allocation2] sm:$0x1] %vm5000, %v4997
    %s5002 = scalar_lea.vmem %s0, 16
    %v5003 = vld [vmem:[%s5002] sm:$0xff]
    %v5004 = vld [vmem:[%s5002 + $0x8] sm:$0x7f]
    %s5005 = scalar_lea.vmem %s1, 32
    %v5006 = vld [vmem:[%s5005] sm:$0xff]
    %v5007 = vld [vmem:[%s5005 + $0x8] sm:$0xff]
    %v5008 = vld [vmem:[%s5005 + $0x10] sm:$0xff]
    %v5009 = vld [vmem:[%s5005 + $0x18] sm:$0x1]
    %s5010 = scalar_lea.vmem %s2, 16
    %v5011 = vld [vmem:[%s5010] sm:$0xff]
    %v5012 = vld [vmem:[%s5010 + $0x8] sm:$0x7f]
    %s5013 = scalar_lea.vmem %s3, 1
    %v5014 = vld [vmem:[%s5013] sm:$0x1]
    %v5016 = vsel %vm49, %v5003, 0
    %v5019 = vsel %vm49, %v5004, 0
    %v5022 = vsel %vm56, %v5009, 0
    %5024 = vmatpush.msra.mxu0 0.0
    %5025 = vmatpush.msra.mxu0 0.0
    %5026 = vmatpush.msra.mxu0 0.0
    %5027 = vmatpush.msra.mxu0 0.0
    %5028 = vmatpush.msra.mxu0 0.0
    %5029 = vmatpush.msra.mxu0 0.0
    %5030 = vmatpush.msra.mxu0 0.0
    %5031 = vmatpush.msra.mxu0 0.0
    %5032 = vmatpush.msra.mxu0 0.0
    %5033 = vmatpush.msra.mxu0 0.0
    %5034 = vmatpush.msra.mxu0 0.0
    %5035 = vmatpush.msra.mxu0 0.0
    %5036 = vmatpush.msra.mxu0 %v5022
    %5037 = vmatpush.msra.mxu0 %v5008
    %5038 = vmatpush.msra.mxu0 %v5007
    %5039 = vmatpush.msra.mxu0 %v5006
    %5040 = vmatmul.f32.gmra.mxu0 %v5016
    %v5041 = vpop.f32.mrf.mxu0
    %v5042 = vadd.f32 0.0, %v5041
    %5043 = vmatmul.f32.gmra.mxu0 %v5019
    %v5044 = vpop.f32.mrf.mxu0
    %v5045 = vadd.f32 0.0, %v5044
    %5046 = vdwg.mxu0
    %v5047 = vmul.f32 %v5042, 0.04
    %v5048 = vmul.f32 %v5045, 0.04
    %5050 = vset.pattern.permute.xlu0 0
    %5051 = vperm.xlu0 %5050, %v5011
    %v5052 = vpop.permute.xlu0 %5051
    %5055 = vset.pattern.permute.xlu0 0
    %5056 = vperm.xlu0 %5055, %v5012
    %v5057 = vpop.permute.xlu0 %5056
    %v5060 = vperm.slane %v5014, 0
    %v5062 = vmul.f32 %v5052, %v5060
    %v5063 = vmul.f32 %v5057, %v5060
    %v5064 = vmul.f32 %v5062, 0.09
    %v5065 = vmul.f32 %v5063, 0.09
    %v5066 = vadd.f32 %v5047, %v5064
    %v5067 = vadd.f32 %v5048, %v5065
    %v5068 = vld [vmem:[%s5] sm:$0xff]
    %v5069 = vld [vmem:[%s5 + $0x8] sm:$0xff]
    %v5070 = vld [vmem:[%s5 + $0x10] sm:$0x7f]
    %v5071 = vld [vmem:[%s5 + $0x18] sm:$0x7f]
    %v5072 = vld [vmem:[%s6] sm:$0x3]
    %v5074 = vperm.slane %v5072, 0
    %v5075 = vperm.slane %v5072, 1
    %v5078 = vsel %vm114, %v5014, 0
    %v5081 = vsel %vm117, %v5070, 0
    %v5084 = vsel %vm117, %v5071, 0
    %5086 = vmatpush.msra.mxu0 0.0
    %5087 = vmatpush.msra.mxu0 0.0
    %5088 = vmatpush.msra.mxu0 0.0
    %5089 = vmatpush.msra.mxu0 0.0
    %5090 = vmatpush.msra.mxu0 0.0
    %5091 = vmatpush.msra.mxu0 0.0
    %5092 = vmatpush.msra.mxu0 0.0
    %5093 = vmatpush.msra.mxu0 0.0
    %5094 = vmatpush.msra.mxu0 0.0
    %5095 = vmatpush.msra.mxu0 0.0
    %5096 = vmatpush.msra.mxu0 0.0
    %5097 = vmatpush.msra.mxu0 0.0
    %5098 = vmatpush.msra.mxu0 0.0
    %5099 = vmatpush.msra.mxu0 0.0
    %5100 = vmatpush.msra.mxu0 %v5081
    %5101 = vmatpush.msra.mxu0 %v5068
    %5102 = vmatmul.f32.gmra.mxu0 %v5078
    %v5103 = vpop.f32.mrf.mxu0
    %v5104 = vadd.f32 %v5074, %v5103
    %5105 = vdwg.mxu0
    %5106 = vmatpush.msra.mxu0 0.0
    %5107 = vmatpush.msra.mxu0 0.0
    %5108 = vmatpush.msra.mxu0 0.0
    %5109 = vmatpush.msra.mxu0 0.0
    %5110 = vmatpush.msra.mxu0 0.0
    %5111 = vmatpush.msra.mxu0 0.0
    %5112 = vmatpush.msra.mxu0 0.0
    %5113 = vmatpush.msra.mxu0 0.0
    %5114 = vmatpush.msra.mxu0 0.0
    %5115 = vmatpush.msra.mxu0 0.0
    %5116 = vmatpush.msra.mxu0 0.0
    %5117 = vmatpush.msra.mxu0 0.0
    %5118 = vmatpush.msra.mxu0 0.0
    %5119 = vmatpush.msra.mxu0 0.0
    %5120 = vmatpush.msra.mxu0 %v5084
    %5121 = vmatpush.msra.mxu0 %v5069
    %5122 = vmatmul.f32.gmra.mxu0 %v5078
    %v5123 = vpop.f32.mrf.mxu0
    %v5124 = vadd.f32 %v5075, %v5123
    %5125 = vdwg.mxu0
    %v5126 = vld [vmem:[%s4] sm:$0xff]
    %v5127 = vld [vmem:[%s4 + $0x8] sm:$0xff]
    %v5128 = vld [vmem:[%s4 + $0x10] sm:$0x7f]
    %v5129 = vld [vmem:[%s4 + $0x18] sm:$0x7f]
    %v5131 = vsel %vm114, %v5066, 0
    %v5134 = vsel %vm117, %v5128, 0
    %v5137 = vsel %vm117, %v5129, 0
    %5139 = vmatpush.msra.mxu0 0.0
    %5140 = vmatpush.msra.mxu0 0.0
    %5141 = vmatpush.msra.mxu0 0.0
    %5142 = vmatpush.msra.mxu0 0.0
    %5143 = vmatpush.msra.mxu0 0.0
    %5144 = vmatpush.msra.mxu0 0.0
    %5145 = vmatpush.msra.mxu0 0.0
    %5146 = vmatpush.msra.mxu0 0.0
    %5147 = vmatpush.msra.mxu0 0.0
    %5148 = vmatpush.msra.mxu0 0.0
    %5149 = vmatpush.msra.mxu0 0.0
    %5150 = vmatpush.msra.mxu0 0.0
    %5151 = vmatpush.msra.mxu0 0.0
    %5152 = vmatpush.msra.mxu0 0.0
    %5153 = vmatpush.msra.mxu0 %v5134
    %5154 = vmatpush.msra.mxu0 %v5126
    %5155 = vmatmul.f32.gmra.mxu0 %v5131
    %v5156 = vpop.f32.mrf.mxu0
    %v5157 = vadd.f32 0.0, %v5156
    %5158 = vdwg.mxu0
    %5159 = vmatpush.msra.mxu0 0.0
    %5160 = vmatpush.msra.mxu0 0.0
    %5161 = vmatpush.msra.mxu0 0.0
    %5162 = vmatpush.msra.mxu0 0.0
    %5163 = vmatpush.msra.mxu0 0.0
    %5164 = vmatpush.msra.mxu0 0.0
    %5165 = vmatpush.msra.mxu0 0.0
    %5166 = vmatpush.msra.mxu0 0.0
    %5167 = vmatpush.msra.mxu0 0.0
    %5168 = vmatpush.msra.mxu0 0.0
    %5169 = vmatpush.msra.mxu0 0.0
    %5170 = vmatpush.msra.mxu0 0.0
    %5171 = vmatpush.msra.mxu0 0.0
    %5172 = vmatpush.msra.mxu0 0.0
    %5173 = vmatpush.msra.mxu0 %v5137
    %5174 = vmatpush.msra.mxu0 %v5127
    %5175 = vmatmul.f32.gmra.mxu0 %v5131
    %v5176 = vpop.f32.mrf.mxu0
    %v5177 = vadd.f32 0.0, %v5176
    %5178 = vdwg.mxu0
    %v5179 = vadd.f32 %v5104, %v5157
    %v5180 = vadd.f32 %v5124, %v5177
    %v5181 = vld [vmem:[%s219] sm:$0xff]
    %v5182 = vld [vmem:[%s219 + $0x8] sm:$0xff]
    %v5183 = vld [vmem:[%s219 + $0x10] sm:$0x7f]
    %v5184 = vld [vmem:[%s219 + $0x18] sm:$0x7f]
    %v5185 = vrot.slane %v5066, 1
    %v5186 = vsel %vm114, %v5185, 0
    %v5189 = vsel %vm117, %v5183, 0
    %v5192 = vsel %vm117, %v5184, 0
    %5194 = vmatpush.msra.mxu0 0.0
    %5195 = vmatpush.msra.mxu0 0.0
    %5196 = vmatpush.msra.mxu0 0.0
    %5197 = vmatpush.msra.mxu0 0.0
    %5198 = vmatpush.msra.mxu0 0.0
    %5199 = vmatpush.msra.mxu0 0.0
    %5200 = vmatpush.msra.mxu0 0.0
    %5201 = vmatpush.msra.mxu0 0.0
    %5202 = vmatpush.msra.mxu0 0.0
    %5203 = vmatpush.msra.mxu0 0.0
    %5204 = vmatpush.msra.mxu0 0.0
    %5205 = vmatpush.msra.mxu0 0.0
    %5206 = vmatpush.msra.mxu0 0.0
    %5207 = vmatpush.msra.mxu0 0.0
    %5208 = vmatpush.msra.mxu0 %v5189
    %5209 = vmatpush.msra.mxu0 %v5181
    %5210 = vmatmul.f32.gmra.mxu0 %v5186
    %v5211 = vpop.f32.mrf.mxu0
    %v5212 = vadd.f32 0.0, %v5211
    %5213 = vdwg.mxu0
    %5214 = vmatpush.msra.mxu0 0.0
    %5215 = vmatpush.msra.mxu0 0.0
    %5216 = vmatpush.msra.mxu0 0.0
    %5217 = vmatpush.msra.mxu0 0.0
    %5218 = vmatpush.msra.mxu0 0.0
    %5219 = vmatpush.msra.mxu0 0.0
    %5220 = vmatpush.msra.mxu0 0.0
    %5221 = vmatpush.msra.mxu0 0.0
    %5222 = vmatpush.msra.mxu0 0.0
    %5223 = vmatpush.msra.mxu0 0.0
    %5224 = vmatpush.msra.mxu0 0.0
    %5225 = vmatpush.msra.mxu0 0.0
    %5226 = vmatpush.msra.mxu0 0.0
    %5227 = vmatpush.msra.mxu0 0.0
    %5228 = vmatpush.msra.mxu0 %v5192
    %5229 = vmatpush.msra.mxu0 %v5182
    %5230 = vmatmul.f32.gmra.mxu0 %v5186
    %v5231 = vpop.f32.mrf.mxu0
    %v5232 = vadd.f32 0.0, %v5231
    %5233 = vdwg.mxu0
    %v5234 = vadd.f32 %v5179, %v5212
    %v5235 = vadd.f32 %v5180, %v5232
    %v5236 = vld [vmem:[%s275] sm:$0xff]
    %v5237 = vld [vmem:[%s275 + $0x8] sm:$0xff]
    %v5238 = vld [vmem:[%s275 + $0x10] sm:$0x7f]
    %v5239 = vld [vmem:[%s275 + $0x18] sm:$0x7f]
    %v5240 = vrot.slane %v5066, 2
    %v5241 = vsel %vm114, %v5240, 0
    %v5244 = vsel %vm117, %v5238, 0
    %v5247 = vsel %vm117, %v5239, 0
    %5249 = vmatpush.msra.mxu0 0.0
    %5250 = vmatpush.msra.mxu0 0.0
    %5251 = vmatpush.msra.mxu0 0.0
    %5252 = vmatpush.msra.mxu0 0.0
    %5253 = vmatpush.msra.mxu0 0.0
    %5254 = vmatpush.msra.mxu0 0.0
    %5255 = vmatpush.msra.mxu0 0.0
    %5256 = vmatpush.msra.mxu0 0.0
    %5257 = vmatpush.msra.mxu0 0.0
    %5258 = vmatpush.msra.mxu0 0.0
    %5259 = vmatpush.msra.mxu0 0.0
    %5260 = vmatpush.msra.mxu0 0.0
    %5261 = vmatpush.msra.mxu0 0.0
    %5262 = vmatpush.msra.mxu0 0.0
    %5263 = vmatpush.msra.mxu0 %v5244
    %5264 = vmatpush.msra.mxu0 %v5236
    %5265 = vmatmul.f32.gmra.mxu0 %v5241
    %v5266 = vpop.f32.mrf.mxu0
    %v5267 = vadd.f32 0.0, %v5266
    %5268 = vdwg.mxu0
    %5269 = vmatpush.msra.mxu0 0.0
    %5270 = vmatpush.msra.mxu0 0.0
    %5271 = vmatpush.msra.mxu0 0.0
    %5272 = vmatpush.msra.mxu0 0.0
    %5273 = vmatpush.msra.mxu0 0.0
    %5274 = vmatpush.msra.mxu0 0.0
    %5275 = vmatpush.msra.mxu0 0.0
    %5276 = vmatpush.msra.mxu0 0.0
    %5277 = vmatpush.msra.mxu0 0.0
    %5278 = vmatpush.msra.mxu0 0.0
    %5279 = vmatpush.msra.mxu0 0.0
    %5280 = vmatpush.msra.mxu0 0.0
    %5281 = vmatpush.msra.mxu0 0.0
    %5282 = vmatpush.msra.mxu0 0.0
    %5283 = vmatpush.msra.mxu0 %v5247
    %5284 = vmatpush.msra.mxu0 %v5237
    %5285 = vmatmul.f32.gmra.mxu0 %v5241
    %v5286 = vpop.f32.mrf.mxu0
    %v5287 = vadd.f32 0.0, %v5286
    %5288 = vdwg.mxu0
    %v5289 = vadd.f32 %v5234, %v5267
    %v5290 = vadd.f32 %v5235, %v5287
    %v5291 = vld [vmem:[%s331] sm:$0xff]
    %v5292 = vld [vmem:[%s331 + $0x8] sm:$0xff]
    %v5293 = vld [vmem:[%s331 + $0x10] sm:$0x7f]
    %v5294 = vld [vmem:[%s331 + $0x18] sm:$0x7f]
    %v5295 = vrot.slane %v5066, 3
    %v5296 = vsel %vm114, %v5295, 0
    %v5299 = vsel %vm117, %v5293, 0
    %v5302 = vsel %vm117, %v5294, 0
    %5304 = vmatpush.msra.mxu0 0.0
    %5305 = vmatpush.msra.mxu0 0.0
    %5306 = vmatpush.msra.mxu0 0.0
    %5307 = vmatpush.msra.mxu0 0.0
    %5308 = vmatpush.msra.mxu0 0.0
    %5309 = vmatpush.msra.mxu0 0.0
    %5310 = vmatpush.msra.mxu0 0.0
    %5311 = vmatpush.msra.mxu0 0.0
    %5312 = vmatpush.msra.mxu0 0.0
    %5313 = vmatpush.msra.mxu0 0.0
    %5314 = vmatpush.msra.mxu0 0.0
    %5315 = vmatpush.msra.mxu0 0.0
    %5316 = vmatpush.msra.mxu0 0.0
    %5317 = vmatpush.msra.mxu0 0.0
    %5318 = vmatpush.msra.mxu0 %v5299
    %5319 = vmatpush.msra.mxu0 %v5291
    %5320 = vmatmul.f32.gmra.mxu0 %v5296
    %v5321 = vpop.f32.mrf.mxu0
    %v5322 = vadd.f32 0.0, %v5321
    %5323 = vdwg.mxu0
    %5324 = vmatpush.msra.mxu0 0.0
    %5325 = vmatpush.msra.mxu0 0.0
    %5326 = vmatpush.msra.mxu0 0.0
    %5327 = vmatpush.msra.mxu0 0.0
    %5328 = vmatpush.msra.mxu0 0.0
    %5329 = vmatpush.msra.mxu0 0.0
    %5330 = vmatpush.msra.mxu0 0.0
    %5331 = vmatpush.msra.mxu0 0.0
    %5332 = vmatpush.msra.mxu0 0.0
    %5333 = vmatpush.msra.mxu0 0.0
    %5334 = vmatpush.msra.mxu0 0.0
    %5335 = vmatpush.msra.mxu0 0.0
    %5336 = vmatpush.msra.mxu0 0.0
    %5337 = vmatpush.msra.mxu0 0.0
    %5338 = vmatpush.msra.mxu0 %v5302
    %5339 = vmatpush.msra.mxu0 %v5292
    %5340 = vmatmul.f32.gmra.mxu0 %v5296
    %v5341 = vpop.f32.mrf.mxu0
    %v5342 = vadd.f32 0.0, %v5341
    %5343 = vdwg.mxu0
    %v5344 = vadd.f32 %v5289, %v5322
    %v5345 = vadd.f32 %v5290, %v5342
    %v5346 = vld [vmem:[%s387] sm:$0xff]
    %v5347 = vld [vmem:[%s387 + $0x8] sm:$0xff]
    %v5348 = vld [vmem:[%s387 + $0x10] sm:$0x7f]
    %v5349 = vld [vmem:[%s387 + $0x18] sm:$0x7f]
    %v5350 = vrot.slane %v5066, 4
    %v5351 = vsel %vm114, %v5350, 0
    %v5354 = vsel %vm117, %v5348, 0
    %v5357 = vsel %vm117, %v5349, 0
    %5359 = vmatpush.msra.mxu0 0.0
    %5360 = vmatpush.msra.mxu0 0.0
    %5361 = vmatpush.msra.mxu0 0.0
    %5362 = vmatpush.msra.mxu0 0.0
    %5363 = vmatpush.msra.mxu0 0.0
    %5364 = vmatpush.msra.mxu0 0.0
    %5365 = vmatpush.msra.mxu0 0.0
    %5366 = vmatpush.msra.mxu0 0.0
    %5367 = vmatpush.msra.mxu0 0.0
    %5368 = vmatpush.msra.mxu0 0.0
    %5369 = vmatpush.msra.mxu0 0.0
    %5370 = vmatpush.msra.mxu0 0.0
    %5371 = vmatpush.msra.mxu0 0.0
    %5372 = vmatpush.msra.mxu0 0.0
    %5373 = vmatpush.msra.mxu0 %v5354
    %5374 = vmatpush.msra.mxu0 %v5346
    %5375 = vmatmul.f32.gmra.mxu0 %v5351
    %v5376 = vpop.f32.mrf.mxu0
    %v5377 = vadd.f32 0.0, %v5376
    %5378 = vdwg.mxu0
    %5379 = vmatpush.msra.mxu0 0.0
    %5380 = vmatpush.msra.mxu0 0.0
    %5381 = vmatpush.msra.mxu0 0.0
    %5382 = vmatpush.msra.mxu0 0.0
    %5383 = vmatpush.msra.mxu0 0.0
    %5384 = vmatpush.msra.mxu0 0.0
    %5385 = vmatpush.msra.mxu0 0.0
    %5386 = vmatpush.msra.mxu0 0.0
    %5387 = vmatpush.msra.mxu0 0.0
    %5388 = vmatpush.msra.mxu0 0.0
    %5389 = vmatpush.msra.mxu0 0.0
    %5390 = vmatpush.msra.mxu0 0.0
    %5391 = vmatpush.msra.mxu0 0.0
    %5392 = vmatpush.msra.mxu0 0.0
    %5393 = vmatpush.msra.mxu0 %v5357
    %5394 = vmatpush.msra.mxu0 %v5347
    %5395 = vmatmul.f32.gmra.mxu0 %v5351
    %v5396 = vpop.f32.mrf.mxu0
    %v5397 = vadd.f32 0.0, %v5396
    %5398 = vdwg.mxu0
    %v5399 = vadd.f32 %v5344, %v5377
    %v5400 = vadd.f32 %v5345, %v5397
    %v5401 = vld [vmem:[%s443] sm:$0xff]
    %v5402 = vld [vmem:[%s443 + $0x8] sm:$0xff]
    %v5403 = vld [vmem:[%s443 + $0x10] sm:$0x7f]
    %v5404 = vld [vmem:[%s443 + $0x18] sm:$0x7f]
    %v5405 = vrot.slane %v5066, 5
    %v5406 = vsel %vm114, %v5405, 0
    %v5409 = vsel %vm117, %v5403, 0
    %v5412 = vsel %vm117, %v5404, 0
    %5414 = vmatpush.msra.mxu0 0.0
    %5415 = vmatpush.msra.mxu0 0.0
    %5416 = vmatpush.msra.mxu0 0.0
    %5417 = vmatpush.msra.mxu0 0.0
    %5418 = vmatpush.msra.mxu0 0.0
    %5419 = vmatpush.msra.mxu0 0.0
    %5420 = vmatpush.msra.mxu0 0.0
    %5421 = vmatpush.msra.mxu0 0.0
    %5422 = vmatpush.msra.mxu0 0.0
    %5423 = vmatpush.msra.mxu0 0.0
    %5424 = vmatpush.msra.mxu0 0.0
    %5425 = vmatpush.msra.mxu0 0.0
    %5426 = vmatpush.msra.mxu0 0.0
    %5427 = vmatpush.msra.mxu0 0.0
    %5428 = vmatpush.msra.mxu0 %v5409
    %5429 = vmatpush.msra.mxu0 %v5401
    %5430 = vmatmul.f32.gmra.mxu0 %v5406
    %v5431 = vpop.f32.mrf.mxu0
    %v5432 = vadd.f32 0.0, %v5431
    %5433 = vdwg.mxu0
    %5434 = vmatpush.msra.mxu0 0.0
    %5435 = vmatpush.msra.mxu0 0.0
    %5436 = vmatpush.msra.mxu0 0.0
    %5437 = vmatpush.msra.mxu0 0.0
    %5438 = vmatpush.msra.mxu0 0.0
    %5439 = vmatpush.msra.mxu0 0.0
    %5440 = vmatpush.msra.mxu0 0.0
    %5441 = vmatpush.msra.mxu0 0.0
    %5442 = vmatpush.msra.mxu0 0.0
    %5443 = vmatpush.msra.mxu0 0.0
    %5444 = vmatpush.msra.mxu0 0.0
    %5445 = vmatpush.msra.mxu0 0.0
    %5446 = vmatpush.msra.mxu0 0.0
    %5447 = vmatpush.msra.mxu0 0.0
    %5448 = vmatpush.msra.mxu0 %v5412
    %5449 = vmatpush.msra.mxu0 %v5402
    %5450 = vmatmul.f32.gmra.mxu0 %v5406
    %v5451 = vpop.f32.mrf.mxu0
    %v5452 = vadd.f32 0.0, %v5451
    %5453 = vdwg.mxu0
    %v5454 = vadd.f32 %v5399, %v5432
    %v5455 = vadd.f32 %v5400, %v5452
    %v5456 = vld [vmem:[%s499] sm:$0xff]
    %v5457 = vld [vmem:[%s499 + $0x8] sm:$0xff]
    %v5458 = vld [vmem:[%s499 + $0x10] sm:$0x7f]
    %v5459 = vld [vmem:[%s499 + $0x18] sm:$0x7f]
    %v5460 = vrot.slane %v5066, 6
    %v5461 = vsel %vm114, %v5460, 0
    %v5464 = vsel %vm117, %v5458, 0
    %v5467 = vsel %vm117, %v5459, 0
    %5469 = vmatpush.msra.mxu0 0.0
    %5470 = vmatpush.msra.mxu0 0.0
    %5471 = vmatpush.msra.mxu0 0.0
    %5472 = vmatpush.msra.mxu0 0.0
    %5473 = vmatpush.msra.mxu0 0.0
    %5474 = vmatpush.msra.mxu0 0.0
    %5475 = vmatpush.msra.mxu0 0.0
    %5476 = vmatpush.msra.mxu0 0.0
    %5477 = vmatpush.msra.mxu0 0.0
    %5478 = vmatpush.msra.mxu0 0.0
    %5479 = vmatpush.msra.mxu0 0.0
    %5480 = vmatpush.msra.mxu0 0.0
    %5481 = vmatpush.msra.mxu0 0.0
    %5482 = vmatpush.msra.mxu0 0.0
    %5483 = vmatpush.msra.mxu0 %v5464
    %5484 = vmatpush.msra.mxu0 %v5456
    %5485 = vmatmul.f32.gmra.mxu0 %v5461
    %v5486 = vpop.f32.mrf.mxu0
    %v5487 = vadd.f32 0.0, %v5486
    %5488 = vdwg.mxu0
    %5489 = vmatpush.msra.mxu0 0.0
    %5490 = vmatpush.msra.mxu0 0.0
    %5491 = vmatpush.msra.mxu0 0.0
    %5492 = vmatpush.msra.mxu0 0.0
    %5493 = vmatpush.msra.mxu0 0.0
    %5494 = vmatpush.msra.mxu0 0.0
    %5495 = vmatpush.msra.mxu0 0.0
    %5496 = vmatpush.msra.mxu0 0.0
    %5497 = vmatpush.msra.mxu0 0.0
    %5498 = vmatpush.msra.mxu0 0.0
    %5499 = vmatpush.msra.mxu0 0.0
    %5500 = vmatpush.msra.mxu0 0.0
    %5501 = vmatpush.msra.mxu0 0.0
    %5502 = vmatpush.msra.mxu0 0.0
    %5503 = vmatpush.msra.mxu0 %v5467
    %5504 = vmatpush.msra.mxu0 %v5457
    %5505 = vmatmul.f32.gmra.mxu0 %v5461
    %v5506 = vpop.f32.mrf.mxu0
    %v5507 = vadd.f32 0.0, %v5506
    %5508 = vdwg.mxu0
    %v5509 = vadd.f32 %v5454, %v5487
    %v5510 = vadd.f32 %v5455, %v5507
    %v5511 = vld [vmem:[%s555] sm:$0xff]
    %v5512 = vld [vmem:[%s555 + $0x8] sm:$0xff]
    %v5513 = vld [vmem:[%s555 + $0x10] sm:$0x7f]
    %v5514 = vld [vmem:[%s555 + $0x18] sm:$0x7f]
    %v5515 = vrot.slane %v5066, 7
    %v5516 = vsel %vm114, %v5515, 0
    %v5519 = vsel %vm117, %v5513, 0
    %v5522 = vsel %vm117, %v5514, 0
    %5524 = vmatpush.msra.mxu0 0.0
    %5525 = vmatpush.msra.mxu0 0.0
    %5526 = vmatpush.msra.mxu0 0.0
    %5527 = vmatpush.msra.mxu0 0.0
    %5528 = vmatpush.msra.mxu0 0.0
    %5529 = vmatpush.msra.mxu0 0.0
    %5530 = vmatpush.msra.mxu0 0.0
    %5531 = vmatpush.msra.mxu0 0.0
    %5532 = vmatpush.msra.mxu0 0.0
    %5533 = vmatpush.msra.mxu0 0.0
    %5534 = vmatpush.msra.mxu0 0.0
    %5535 = vmatpush.msra.mxu0 0.0
    %5536 = vmatpush.msra.mxu0 0.0
    %5537 = vmatpush.msra.mxu0 0.0
    %5538 = vmatpush.msra.mxu0 %v5519
    %5539 = vmatpush.msra.mxu0 %v5511
    %5540 = vmatmul.f32.gmra.mxu0 %v5516
    %v5541 = vpop.f32.mrf.mxu0
    %v5542 = vadd.f32 0.0, %v5541
    %5543 = vdwg.mxu0
    %5544 = vmatpush.msra.mxu0 0.0
    %5545 = vmatpush.msra.mxu0 0.0
    %5546 = vmatpush.msra.mxu0 0.0
    %5547 = vmatpush.msra.mxu0 0.0
    %5548 = vmatpush.msra.mxu0 0.0
    %5549 = vmatpush.msra.mxu0 0.0
    %5550 = vmatpush.msra.mxu0 0.0
    %5551 = vmatpush.msra.mxu0 0.0
    %5552 = vmatpush.msra.mxu0 0.0
    %5553 = vmatpush.msra.mxu0 0.0
    %5554 = vmatpush.msra.mxu0 0.0
    %5555 = vmatpush.msra.mxu0 0.0
    %5556 = vmatpush.msra.mxu0 0.0
    %5557 = vmatpush.msra.mxu0 0.0
    %5558 = vmatpush.msra.mxu0 %v5522
    %5559 = vmatpush.msra.mxu0 %v5512
    %5560 = vmatmul.f32.gmra.mxu0 %v5516
    %v5561 = vpop.f32.mrf.mxu0
    %v5562 = vadd.f32 0.0, %v5561
    %5563 = vdwg.mxu0
    %v5564 = vadd.f32 %v5509, %v5542
    %v5565 = vadd.f32 %v5510, %v5562
    %v5566 = vld [vmem:[%s611] sm:$0xff]
    %v5567 = vld [vmem:[%s611 + $0x8] sm:$0xff]
    %v5568 = vld [vmem:[%s611 + $0x10] sm:$0x7f]
    %v5569 = vld [vmem:[%s611 + $0x18] sm:$0x7f]
    %v5571 = vsel %vm114, %v5067, 0
    %v5574 = vsel %vm117, %v5568, 0
    %v5577 = vsel %vm117, %v5569, 0
    %5579 = vmatpush.msra.mxu0 0.0
    %5580 = vmatpush.msra.mxu0 0.0
    %5581 = vmatpush.msra.mxu0 0.0
    %5582 = vmatpush.msra.mxu0 0.0
    %5583 = vmatpush.msra.mxu0 0.0
    %5584 = vmatpush.msra.mxu0 0.0
    %5585 = vmatpush.msra.mxu0 0.0
    %5586 = vmatpush.msra.mxu0 0.0
    %5587 = vmatpush.msra.mxu0 0.0
    %5588 = vmatpush.msra.mxu0 0.0
    %5589 = vmatpush.msra.mxu0 0.0
    %5590 = vmatpush.msra.mxu0 0.0
    %5591 = vmatpush.msra.mxu0 0.0
    %5592 = vmatpush.msra.mxu0 0.0
    %5593 = vmatpush.msra.mxu0 %v5574
    %5594 = vmatpush.msra.mxu0 %v5566
    %5595 = vmatmul.f32.gmra.mxu0 %v5571
    %v5596 = vpop.f32.mrf.mxu0
    %v5597 = vadd.f32 0.0, %v5596
    %5598 = vdwg.mxu0
    %5599 = vmatpush.msra.mxu0 0.0
    %5600 = vmatpush.msra.mxu0 0.0
    %5601 = vmatpush.msra.mxu0 0.0
    %5602 = vmatpush.msra.mxu0 0.0
    %5603 = vmatpush.msra.mxu0 0.0
    %5604 = vmatpush.msra.mxu0 0.0
    %5605 = vmatpush.msra.mxu0 0.0
    %5606 = vmatpush.msra.mxu0 0.0
    %5607 = vmatpush.msra.mxu0 0.0
    %5608 = vmatpush.msra.mxu0 0.0
    %5609 = vmatpush.msra.mxu0 0.0
    %5610 = vmatpush.msra.mxu0 0.0
    %5611 = vmatpush.msra.mxu0 0.0
    %5612 = vmatpush.msra.mxu0 0.0
    %5613 = vmatpush.msra.mxu0 %v5577
    %5614 = vmatpush.msra.mxu0 %v5567
    %5615 = vmatmul.f32.gmra.mxu0 %v5571
    %v5616 = vpop.f32.mrf.mxu0
    %v5617 = vadd.f32 0.0, %v5616
    %5618 = vdwg.mxu0
    %v5619 = vadd.f32 %v5564, %v5597
    %v5620 = vadd.f32 %v5565, %v5617
    %v5621 = vld [vmem:[%s667] sm:$0xff]
    %v5622 = vld [vmem:[%s667 + $0x8] sm:$0xff]
    %v5623 = vld [vmem:[%s667 + $0x10] sm:$0x7f]
    %v5624 = vld [vmem:[%s667 + $0x18] sm:$0x7f]
    %v5625 = vrot.slane %v5067, 1
    %v5626 = vsel %vm114, %v5625, 0
    %v5629 = vsel %vm117, %v5623, 0
    %v5632 = vsel %vm117, %v5624, 0
    %5634 = vmatpush.msra.mxu0 0.0
    %5635 = vmatpush.msra.mxu0 0.0
    %5636 = vmatpush.msra.mxu0 0.0
    %5637 = vmatpush.msra.mxu0 0.0
    %5638 = vmatpush.msra.mxu0 0.0
    %5639 = vmatpush.msra.mxu0 0.0
    %5640 = vmatpush.msra.mxu0 0.0
    %5641 = vmatpush.msra.mxu0 0.0
    %5642 = vmatpush.msra.mxu0 0.0
    %5643 = vmatpush.msra.mxu0 0.0
    %5644 = vmatpush.msra.mxu0 0.0
    %5645 = vmatpush.msra.mxu0 0.0
    %5646 = vmatpush.msra.mxu0 0.0
    %5647 = vmatpush.msra.mxu0 0.0
    %5648 = vmatpush.msra.mxu0 %v5629
    %5649 = vmatpush.msra.mxu0 %v5621
    %5650 = vmatmul.f32.gmra.mxu0 %v5626
    %v5651 = vpop.f32.mrf.mxu0
    %v5652 = vadd.f32 0.0, %v5651
    %5653 = vdwg.mxu0
    %5654 = vmatpush.msra.mxu0 0.0
    %5655 = vmatpush.msra.mxu0 0.0
    %5656 = vmatpush.msra.mxu0 0.0
    %5657 = vmatpush.msra.mxu0 0.0
    %5658 = vmatpush.msra.mxu0 0.0
    %5659 = vmatpush.msra.mxu0 0.0
    %5660 = vmatpush.msra.mxu0 0.0
    %5661 = vmatpush.msra.mxu0 0.0
    %5662 = vmatpush.msra.mxu0 0.0
    %5663 = vmatpush.msra.mxu0 0.0
    %5664 = vmatpush.msra.mxu0 0.0
    %5665 = vmatpush.msra.mxu0 0.0
    %5666 = vmatpush.msra.mxu0 0.0
    %5667 = vmatpush.msra.mxu0 0.0
    %5668 = vmatpush.msra.mxu0 %v5632
    %5669 = vmatpush.msra.mxu0 %v5622
    %5670 = vmatmul.f32.gmra.mxu0 %v5626
    %v5671 = vpop.f32.mrf.mxu0
    %v5672 = vadd.f32 0.0, %v5671
    %5673 = vdwg.mxu0
    %v5674 = vadd.f32 %v5619, %v5652
    %v5675 = vadd.f32 %v5620, %v5672
    %v5676 = vld [vmem:[%s723] sm:$0xff]
    %v5677 = vld [vmem:[%s723 + $0x8] sm:$0xff]
    %v5678 = vld [vmem:[%s723 + $0x10] sm:$0x7f]
    %v5679 = vld [vmem:[%s723 + $0x18] sm:$0x7f]
    %v5680 = vrot.slane %v5067, 2
    %v5681 = vsel %vm114, %v5680, 0
    %v5684 = vsel %vm117, %v5678, 0
    %v5687 = vsel %vm117, %v5679, 0
    %5689 = vmatpush.msra.mxu0 0.0
    %5690 = vmatpush.msra.mxu0 0.0
    %5691 = vmatpush.msra.mxu0 0.0
    %5692 = vmatpush.msra.mxu0 0.0
    %5693 = vmatpush.msra.mxu0 0.0
    %5694 = vmatpush.msra.mxu0 0.0
    %5695 = vmatpush.msra.mxu0 0.0
    %5696 = vmatpush.msra.mxu0 0.0
    %5697 = vmatpush.msra.mxu0 0.0
    %5698 = vmatpush.msra.mxu0 0.0
    %5699 = vmatpush.msra.mxu0 0.0
    %5700 = vmatpush.msra.mxu0 0.0
    %5701 = vmatpush.msra.mxu0 0.0
    %5702 = vmatpush.msra.mxu0 0.0
    %5703 = vmatpush.msra.mxu0 %v5684
    %5704 = vmatpush.msra.mxu0 %v5676
    %5705 = vmatmul.f32.gmra.mxu0 %v5681
    %v5706 = vpop.f32.mrf.mxu0
    %v5707 = vadd.f32 0.0, %v5706
    %5708 = vdwg.mxu0
    %5709 = vmatpush.msra.mxu0 0.0
    %5710 = vmatpush.msra.mxu0 0.0
    %5711 = vmatpush.msra.mxu0 0.0
    %5712 = vmatpush.msra.mxu0 0.0
    %5713 = vmatpush.msra.mxu0 0.0
    %5714 = vmatpush.msra.mxu0 0.0
    %5715 = vmatpush.msra.mxu0 0.0
    %5716 = vmatpush.msra.mxu0 0.0
    %5717 = vmatpush.msra.mxu0 0.0
    %5718 = vmatpush.msra.mxu0 0.0
    %5719 = vmatpush.msra.mxu0 0.0
    %5720 = vmatpush.msra.mxu0 0.0
    %5721 = vmatpush.msra.mxu0 0.0
    %5722 = vmatpush.msra.mxu0 0.0
    %5723 = vmatpush.msra.mxu0 %v5687
    %5724 = vmatpush.msra.mxu0 %v5677
    %5725 = vmatmul.f32.gmra.mxu0 %v5681
    %v5726 = vpop.f32.mrf.mxu0
    %v5727 = vadd.f32 0.0, %v5726
    %5728 = vdwg.mxu0
    %v5729 = vadd.f32 %v5674, %v5707
    %v5730 = vadd.f32 %v5675, %v5727
    %v5731 = vld [vmem:[%s779] sm:$0xff]
    %v5732 = vld [vmem:[%s779 + $0x8] sm:$0xff]
    %v5733 = vld [vmem:[%s779 + $0x10] sm:$0x7f]
    %v5734 = vld [vmem:[%s779 + $0x18] sm:$0x7f]
    %v5735 = vrot.slane %v5067, 3
    %v5736 = vsel %vm114, %v5735, 0
    %v5739 = vsel %vm117, %v5733, 0
    %v5742 = vsel %vm117, %v5734, 0
    %5744 = vmatpush.msra.mxu0 0.0
    %5745 = vmatpush.msra.mxu0 0.0
    %5746 = vmatpush.msra.mxu0 0.0
    %5747 = vmatpush.msra.mxu0 0.0
    %5748 = vmatpush.msra.mxu0 0.0
    %5749 = vmatpush.msra.mxu0 0.0
    %5750 = vmatpush.msra.mxu0 0.0
    %5751 = vmatpush.msra.mxu0 0.0
    %5752 = vmatpush.msra.mxu0 0.0
    %5753 = vmatpush.msra.mxu0 0.0
    %5754 = vmatpush.msra.mxu0 0.0
    %5755 = vmatpush.msra.mxu0 0.0
    %5756 = vmatpush.msra.mxu0 0.0
    %5757 = vmatpush.msra.mxu0 0.0
    %5758 = vmatpush.msra.mxu0 %v5739
    %5759 = vmatpush.msra.mxu0 %v5731
    %5760 = vmatmul.f32.gmra.mxu0 %v5736
    %v5761 = vpop.f32.mrf.mxu0
    %v5762 = vadd.f32 0.0, %v5761
    %5763 = vdwg.mxu0
    %5764 = vmatpush.msra.mxu0 0.0
    %5765 = vmatpush.msra.mxu0 0.0
    %5766 = vmatpush.msra.mxu0 0.0
    %5767 = vmatpush.msra.mxu0 0.0
    %5768 = vmatpush.msra.mxu0 0.0
    %5769 = vmatpush.msra.mxu0 0.0
    %5770 = vmatpush.msra.mxu0 0.0
    %5771 = vmatpush.msra.mxu0 0.0
    %5772 = vmatpush.msra.mxu0 0.0
    %5773 = vmatpush.msra.mxu0 0.0
    %5774 = vmatpush.msra.mxu0 0.0
    %5775 = vmatpush.msra.mxu0 0.0
    %5776 = vmatpush.msra.mxu0 0.0
    %5777 = vmatpush.msra.mxu0 0.0
    %5778 = vmatpush.msra.mxu0 %v5742
    %5779 = vmatpush.msra.mxu0 %v5732
    %5780 = vmatmul.f32.gmra.mxu0 %v5736
    %v5781 = vpop.f32.mrf.mxu0
    %v5782 = vadd.f32 0.0, %v5781
    %5783 = vdwg.mxu0
    %v5784 = vadd.f32 %v5729, %v5762
    %v5785 = vadd.f32 %v5730, %v5782
    %v5786 = vld [vmem:[%s835] sm:$0xff]
    %v5787 = vld [vmem:[%s835 + $0x8] sm:$0xff]
    %v5788 = vld [vmem:[%s835 + $0x10] sm:$0x7f]
    %v5789 = vld [vmem:[%s835 + $0x18] sm:$0x7f]
    %v5790 = vrot.slane %v5067, 4
    %v5791 = vsel %vm114, %v5790, 0
    %v5794 = vsel %vm117, %v5788, 0
    %v5797 = vsel %vm117, %v5789, 0
    %5799 = vmatpush.msra.mxu0 0.0
    %5800 = vmatpush.msra.mxu0 0.0
    %5801 = vmatpush.msra.mxu0 0.0
    %5802 = vmatpush.msra.mxu0 0.0
    %5803 = vmatpush.msra.mxu0 0.0
    %5804 = vmatpush.msra.mxu0 0.0
    %5805 = vmatpush.msra.mxu0 0.0
    %5806 = vmatpush.msra.mxu0 0.0
    %5807 = vmatpush.msra.mxu0 0.0
    %5808 = vmatpush.msra.mxu0 0.0
    %5809 = vmatpush.msra.mxu0 0.0
    %5810 = vmatpush.msra.mxu0 0.0
    %5811 = vmatpush.msra.mxu0 0.0
    %5812 = vmatpush.msra.mxu0 0.0
    %5813 = vmatpush.msra.mxu0 %v5794
    %5814 = vmatpush.msra.mxu0 %v5786
    %5815 = vmatmul.f32.gmra.mxu0 %v5791
    %v5816 = vpop.f32.mrf.mxu0
    %v5817 = vadd.f32 0.0, %v5816
    %5818 = vdwg.mxu0
    %5819 = vmatpush.msra.mxu0 0.0
    %5820 = vmatpush.msra.mxu0 0.0
    %5821 = vmatpush.msra.mxu0 0.0
    %5822 = vmatpush.msra.mxu0 0.0
    %5823 = vmatpush.msra.mxu0 0.0
    %5824 = vmatpush.msra.mxu0 0.0
    %5825 = vmatpush.msra.mxu0 0.0
    %5826 = vmatpush.msra.mxu0 0.0
    %5827 = vmatpush.msra.mxu0 0.0
    %5828 = vmatpush.msra.mxu0 0.0
    %5829 = vmatpush.msra.mxu0 0.0
    %5830 = vmatpush.msra.mxu0 0.0
    %5831 = vmatpush.msra.mxu0 0.0
    %5832 = vmatpush.msra.mxu0 0.0
    %5833 = vmatpush.msra.mxu0 %v5797
    %5834 = vmatpush.msra.mxu0 %v5787
    %5835 = vmatmul.f32.gmra.mxu0 %v5791
    %v5836 = vpop.f32.mrf.mxu0
    %v5837 = vadd.f32 0.0, %v5836
    %5838 = vdwg.mxu0
    %v5839 = vadd.f32 %v5784, %v5817
    %v5840 = vadd.f32 %v5785, %v5837
    %v5841 = vld [vmem:[%s891] sm:$0xff]
    %v5842 = vld [vmem:[%s891 + $0x8] sm:$0xff]
    %v5843 = vld [vmem:[%s891 + $0x10] sm:$0x7f]
    %v5844 = vld [vmem:[%s891 + $0x18] sm:$0x7f]
    %v5845 = vrot.slane %v5067, 5
    %v5846 = vsel %vm114, %v5845, 0
    %v5849 = vsel %vm117, %v5843, 0
    %v5852 = vsel %vm117, %v5844, 0
    %5854 = vmatpush.msra.mxu0 0.0
    %5855 = vmatpush.msra.mxu0 0.0
    %5856 = vmatpush.msra.mxu0 0.0
    %5857 = vmatpush.msra.mxu0 0.0
    %5858 = vmatpush.msra.mxu0 0.0
    %5859 = vmatpush.msra.mxu0 0.0
    %5860 = vmatpush.msra.mxu0 0.0
    %5861 = vmatpush.msra.mxu0 0.0
    %5862 = vmatpush.msra.mxu0 0.0
    %5863 = vmatpush.msra.mxu0 0.0
    %5864 = vmatpush.msra.mxu0 0.0
    %5865 = vmatpush.msra.mxu0 0.0
    %5866 = vmatpush.msra.mxu0 0.0
    %5867 = vmatpush.msra.mxu0 0.0
    %5868 = vmatpush.msra.mxu0 %v5849
    %5869 = vmatpush.msra.mxu0 %v5841
    %5870 = vmatmul.f32.gmra.mxu0 %v5846
    %v5871 = vpop.f32.mrf.mxu0
    %v5872 = vadd.f32 0.0, %v5871
    %5873 = vdwg.mxu0
    %5874 = vmatpush.msra.mxu0 0.0
    %5875 = vmatpush.msra.mxu0 0.0
    %5876 = vmatpush.msra.mxu0 0.0
    %5877 = vmatpush.msra.mxu0 0.0
    %5878 = vmatpush.msra.mxu0 0.0
    %5879 = vmatpush.msra.mxu0 0.0
    %5880 = vmatpush.msra.mxu0 0.0
    %5881 = vmatpush.msra.mxu0 0.0
    %5882 = vmatpush.msra.mxu0 0.0
    %5883 = vmatpush.msra.mxu0 0.0
    %5884 = vmatpush.msra.mxu0 0.0
    %5885 = vmatpush.msra.mxu0 0.0
    %5886 = vmatpush.msra.mxu0 0.0
    %5887 = vmatpush.msra.mxu0 0.0
    %5888 = vmatpush.msra.mxu0 %v5852
    %5889 = vmatpush.msra.mxu0 %v5842
    %5890 = vmatmul.f32.gmra.mxu0 %v5846
    %v5891 = vpop.f32.mrf.mxu0
    %v5892 = vadd.f32 0.0, %v5891
    %5893 = vdwg.mxu0
    %v5894 = vadd.f32 %v5839, %v5872
    %v5895 = vadd.f32 %v5840, %v5892
    %v5896 = vld [vmem:[%s947] sm:$0xff]
    %v5897 = vld [vmem:[%s947 + $0x8] sm:$0xff]
    %v5898 = vld [vmem:[%s947 + $0x10] sm:$0x7f]
    %v5899 = vld [vmem:[%s947 + $0x18] sm:$0x7f]
    %v5900 = vrot.slane %v5067, 6
    %v5901 = vsel %vm114, %v5900, 0
    %v5904 = vsel %vm117, %v5898, 0
    %v5907 = vsel %vm117, %v5899, 0
    %5909 = vmatpush.msra.mxu0 0.0
    %5910 = vmatpush.msra.mxu0 0.0
    %5911 = vmatpush.msra.mxu0 0.0
    %5912 = vmatpush.msra.mxu0 0.0
    %5913 = vmatpush.msra.mxu0 0.0
    %5914 = vmatpush.msra.mxu0 0.0
    %5915 = vmatpush.msra.mxu0 0.0
    %5916 = vmatpush.msra.mxu0 0.0
    %5917 = vmatpush.msra.mxu0 0.0
    %5918 = vmatpush.msra.mxu0 0.0
    %5919 = vmatpush.msra.mxu0 0.0
    %5920 = vmatpush.msra.mxu0 0.0
    %5921 = vmatpush.msra.mxu0 0.0
    %5922 = vmatpush.msra.mxu0 0.0
    %5923 = vmatpush.msra.mxu0 %v5904
    %5924 = vmatpush.msra.mxu0 %v5896
    %5925 = vmatmul.f32.gmra.mxu0 %v5901
    %v5926 = vpop.f32.mrf.mxu0
    %v5927 = vadd.f32 0.0, %v5926
    %5928 = vdwg.mxu0
    %5929 = vmatpush.msra.mxu0 0.0
    %5930 = vmatpush.msra.mxu0 0.0
    %5931 = vmatpush.msra.mxu0 0.0
    %5932 = vmatpush.msra.mxu0 0.0
    %5933 = vmatpush.msra.mxu0 0.0
    %5934 = vmatpush.msra.mxu0 0.0
    %5935 = vmatpush.msra.mxu0 0.0
    %5936 = vmatpush.msra.mxu0 0.0
    %5937 = vmatpush.msra.mxu0 0.0
    %5938 = vmatpush.msra.mxu0 0.0
    %5939 = vmatpush.msra.mxu0 0.0
    %5940 = vmatpush.msra.mxu0 0.0
    %5941 = vmatpush.msra.mxu0 0.0
    %5942 = vmatpush.msra.mxu0 0.0
    %5943 = vmatpush.msra.mxu0 %v5907
    %5944 = vmatpush.msra.mxu0 %v5897
    %5945 = vmatmul.f32.gmra.mxu0 %v5901
    %v5946 = vpop.f32.mrf.mxu0
    %v5947 = vadd.f32 0.0, %v5946
    %5948 = vdwg.mxu0
    %v5949 = vadd.f32 %v5894, %v5927
    %v5950 = vadd.f32 %v5895, %v5947
    %v5951 = vpack.c.bf16 %v5949, %v5949
    %v5952 = vpack.c.bf16 %v5950, %v5950
    %v5953 = vld [vmem:[%s7] sm:$0xff]
    %v5954 = vld [vmem:[%s7 + $0x8] sm:$0xff]
    %v5955 = vld [vmem:[%s7 + $0x10] sm:$0xff]
    %v5956 = vld [vmem:[%s7 + $0x18] sm:$0xff]
    %v5957 = vld [vmem:[%s7 + $0x20] sm:$0xff]
    %v5958 = vld [vmem:[%s7 + $0x28] sm:$0xff]
    %v5959 = vld [vmem:[%s7 + $0x30] sm:$0xff]
    %v5960 = vld [vmem:[%s7 + $0x38] sm:$0xff]
    %v5961 = vld [vmem:[%s7 + $0x40] sm:$0xff]
    %v5962 = vld [vmem:[%s7 + $0x48] sm:$0xff]
    %v5963 = vld [vmem:[%s7 + $0x50] sm:$0xff]
    %v5964 = vld [vmem:[%s7 + $0x58] sm:$0xff]
    %v5965 = vld [vmem:[%s7 + $0x60] sm:$0xff]
    %v5966 = vld [vmem:[%s7 + $0x68] sm:$0xff]
    %v5967 = vld [vmem:[%s7 + $0x70] sm:$0xff]
    %v5968 = vld [vmem:[%s7 + $0x78] sm:$0xff]
    %v5969 = vld [vmem:[%s7 + $0x80] sm:$0xff]
    %v5970 = vld [vmem:[%s7 + $0x88] sm:$0xff]
    %v5971 = vld [vmem:[%s7 + $0x90] sm:$0xff]
    %v5972 = vld [vmem:[%s7 + $0x98] sm:$0xff]
    %v5973 = vld [vmem:[%s7 + $0xa0] sm:$0xff]
    %v5974 = vld [vmem:[%s7 + $0xa8] sm:$0xff]
    %v5975 = vld [vmem:[%s7 + $0xb0] sm:$0xff]
    %v5976 = vld [vmem:[%s7 + $0xb8] sm:$0xff]
    %v5977 = vld [vmem:[%s7 + $0xc0] sm:$0xff]
    %v5978 = vld [vmem:[%s7 + $0xc8] sm:$0xff]
    %v5979 = vld [vmem:[%s7 + $0xd0] sm:$0xff]
    %v5980 = vld [vmem:[%s7 + $0xd8] sm:$0xff]
    %v5981 = vld [vmem:[%s7 + $0xe0] sm:$0xff]
    %v5982 = vld [vmem:[%s7 + $0xe8] sm:$0xff]
    %v5983 = vld [vmem:[%s7 + $0xf0] sm:$0xff]
    %v5984 = vld [vmem:[%s7 + $0xf8] sm:$0xff]
    %v5985 = vld [vmem:[%s7 + $0x100] sm:$0xff]
    %v5986 = vld [vmem:[%s7 + $0x108] sm:$0xff]
    %v5987 = vld [vmem:[%s7 + $0x110] sm:$0xff]
    %v5988 = vld [vmem:[%s7 + $0x118] sm:$0xff]
    %v5989 = vld [vmem:[%s7 + $0x120] sm:$0xff]
    %v5990 = vld [vmem:[%s7 + $0x128] sm:$0xff]
    %v5991 = vld [vmem:[%s7 + $0x130] sm:$0xff]
    %v5992 = vld [vmem:[%s7 + $0x138] sm:$0xff]
    %v5993 = vld [vmem:[%s7 + $0x140] sm:$0xff]
    %v5994 = vld [vmem:[%s7 + $0x148] sm:$0xff]
    %v5995 = vld [vmem:[%s7 + $0x150] sm:$0xff]
    %v5996 = vld [vmem:[%s7 + $0x158] sm:$0xff]
    %v5997 = vld [vmem:[%s7 + $0x160] sm:$0xff]
    %v5998 = vld [vmem:[%s7 + $0x168] sm:$0xff]
    %v5999 = vld [vmem:[%s7 + $0x170] sm:$0xff]
    %v6000 = vld [vmem:[%s7 + $0x178] sm:$0xff]
    %v6001 = vld [vmem:[%s7 + $0x180] sm:$0xff]
    %v6002 = vld [vmem:[%s7 + $0x188] sm:$0xff]
    %v6003 = vld [vmem:[%s7 + $0x190] sm:$0xff]
    %v6004 = vld [vmem:[%s7 + $0x198] sm:$0xff]
    %v6005 = vld [vmem:[%s7 + $0x1a0] sm:$0xff]
    %v6006 = vld [vmem:[%s7 + $0x1a8] sm:$0xff]
    %v6007 = vld [vmem:[%s7 + $0x1b0] sm:$0xff]
    %v6008 = vld [vmem:[%s7 + $0x1b8] sm:$0xff]
    %v6009 = vld [vmem:[%s7 + $0x1c0] sm:$0xff]
    %v6010 = vld [vmem:[%s7 + $0x1c8] sm:$0xff]
    %v6011 = vld [vmem:[%s7 + $0x1d0] sm:$0xff]
    %v6012 = vld [vmem:[%s7 + $0x1d8] sm:$0xff]
    %v6013 = vld [vmem:[%s7 + $0x1e0] sm:$0xff]
    %v6014 = vld [vmem:[%s7 + $0x1e8] sm:$0xff]
    %v6015 = vld [vmem:[%s7 + $0x1f0] sm:$0xff]
    %v6016 = vld [vmem:[%s7 + $0x1f8] sm:$0xff]
    %v6017 = vld [vmem:[%s7 + $0x200] sm:$0xff]
    %v6018 = vld [vmem:[%s7 + $0x208] sm:$0xff]
    %v6019 = vld [vmem:[%s7 + $0x210] sm:$0xff]
    %v6020 = vld [vmem:[%s7 + $0x218] sm:$0xff]
    %v6021 = vld [vmem:[%s7 + $0x220] sm:$0xff]
    %v6022 = vld [vmem:[%s7 + $0x228] sm:$0xff]
    %v6023 = vld [vmem:[%s7 + $0x230] sm:$0xff]
    %v6024 = vld [vmem:[%s7 + $0x238] sm:$0xff]
    %v6025 = vld [vmem:[%s7 + $0x240] sm:$0xff]
    %v6026 = vld [vmem:[%s7 + $0x248] sm:$0xff]
    %v6027 = vld [vmem:[%s7 + $0x250] sm:$0xff]
    %v6028 = vld [vmem:[%s7 + $0x258] sm:$0xff]
    %v6029 = vld [vmem:[%s7 + $0x260] sm:$0xff]
    %v6030 = vld [vmem:[%s7 + $0x268] sm:$0xff]
    %v6031 = vld [vmem:[%s7 + $0x270] sm:$0xff]
    %v6032 = vld [vmem:[%s7 + $0x278] sm:$0xff]
    %v6033 = vld [vmem:[%s7 + $0x280] sm:$0xff]
    %v6034 = vld [vmem:[%s7 + $0x288] sm:$0xff]
    %v6035 = vld [vmem:[%s7 + $0x290] sm:$0xff]
    %v6036 = vld [vmem:[%s7 + $0x298] sm:$0xff]
    %v6037 = vld [vmem:[%s7 + $0x2a0] sm:$0xff]
    %v6038 = vld [vmem:[%s7 + $0x2a8] sm:$0xff]
    %v6039 = vld [vmem:[%s7 + $0x2b0] sm:$0xff]
    %v6040 = vld [vmem:[%s7 + $0x2b8] sm:$0xff]
    %v6041 = vld [vmem:[%s7 + $0x2c0] sm:$0xff]
    %v6042 = vld [vmem:[%s7 + $0x2c8] sm:$0xff]
    %v6043 = vld [vmem:[%s7 + $0x2d0] sm:$0xff]
    %v6044 = vld [vmem:[%s7 + $0x2d8] sm:$0xff]
    %v6045 = vld [vmem:[%s7 + $0x2e0] sm:$0xff]
    %v6046 = vld [vmem:[%s7 + $0x2e8] sm:$0xff]
    %v6047 = vld [vmem:[%s7 + $0x2f0] sm:$0xff]
    %v6048 = vld [vmem:[%s7 + $0x2f8] sm:$0xff]
    %v6049 = vld [vmem:[%s7 + $0x300] sm:$0xff]
    %v6050 = vld [vmem:[%s7 + $0x308] sm:$0xff]
    %v6051 = vld [vmem:[%s7 + $0x310] sm:$0xff]
    %v6052 = vld [vmem:[%s7 + $0x318] sm:$0xff]
    %v6053 = vld [vmem:[%s7 + $0x320] sm:$0xff]
    %v6054 = vld [vmem:[%s7 + $0x328] sm:$0xff]
    %v6055 = vld [vmem:[%s7 + $0x330] sm:$0xff]
    %v6056 = vld [vmem:[%s7 + $0x338] sm:$0xff]
    %v6057 = vld [vmem:[%s7 + $0x340] sm:$0xff]
    %v6058 = vld [vmem:[%s7 + $0x348] sm:$0xff]
    %v6059 = vld [vmem:[%s7 + $0x350] sm:$0xff]
    %v6060 = vld [vmem:[%s7 + $0x358] sm:$0xff]
    %v6061 = vld [vmem:[%s7 + $0x360] sm:$0xff]
    %v6062 = vld [vmem:[%s7 + $0x368] sm:$0xff]
    %v6063 = vld [vmem:[%s7 + $0x370] sm:$0xff]
    %v6064 = vld [vmem:[%s7 + $0x378] sm:$0xff]
    %v6065 = vld [vmem:[%s7 + $0x380] sm:$0xff]
    %v6066 = vld [vmem:[%s7 + $0x388] sm:$0xff]
    %v6067 = vld [vmem:[%s7 + $0x390] sm:$0xff]
    %v6068 = vld [vmem:[%s7 + $0x398] sm:$0xff]
    %v6069 = vld [vmem:[%s7 + $0x3a0] sm:$0xff]
    %v6070 = vld [vmem:[%s7 + $0x3a8] sm:$0xff]
    %v6071 = vld [vmem:[%s7 + $0x3b0] sm:$0xff]
    %v6072 = vld [vmem:[%s7 + $0x3b8] sm:$0xff]
    %v6073 = vld [vmem:[%s7 + $0x3c0] sm:$0xff]
    %v6074 = vld [vmem:[%s7 + $0x3c8] sm:$0xff]
    %v6075 = vld [vmem:[%s7 + $0x3d0] sm:$0xff]
    %v6076 = vld [vmem:[%s7 + $0x3d8] sm:$0xff]
    %v6077 = vld [vmem:[%s7 + $0x3e0] sm:$0xff]
    %v6078 = vld [vmem:[%s7 + $0x3e8] sm:$0xff]
    %v6079 = vld [vmem:[%s7 + $0x3f0] sm:$0xff]
    %v6080 = vld [vmem:[%s7 + $0x3f8] sm:$0xff]
    %v6081 = vld [vmem:[%s7 + $0x400] sm:$0xff]
    %v6082 = vld [vmem:[%s7 + $0x408] sm:$0xff]
    %v6083 = vld [vmem:[%s7 + $0x410] sm:$0xff]
    %v6084 = vld [vmem:[%s7 + $0x418] sm:$0xff]
    %v6085 = vld [vmem:[%s7 + $0x420] sm:$0xff]
    %v6086 = vld [vmem:[%s7 + $0x428] sm:$0xff]
    %v6087 = vld [vmem:[%s7 + $0x430] sm:$0xff]
    %v6088 = vld [vmem:[%s7 + $0x438] sm:$0xff]
    %v6089 = vld [vmem:[%s7 + $0x440] sm:$0xff]
    %v6090 = vld [vmem:[%s7 + $0x448] sm:$0xff]
    %v6091 = vld [vmem:[%s7 + $0x450] sm:$0xff]
    %v6092 = vld [vmem:[%s7 + $0x458] sm:$0xff]
    %v6093 = vld [vmem:[%s7 + $0x460] sm:$0xff]
    %v6094 = vld [vmem:[%s7 + $0x468] sm:$0xff]
    %v6095 = vld [vmem:[%s7 + $0x470] sm:$0xff]
    %v6096 = vld [vmem:[%s7 + $0x478] sm:$0xff]
    %v6097 = vld [vmem:[%s7 + $0x480] sm:$0xff]
    %v6098 = vld [vmem:[%s7 + $0x488] sm:$0xff]
    %v6099 = vld [vmem:[%s7 + $0x490] sm:$0xff]
    %v6100 = vld [vmem:[%s7 + $0x498] sm:$0xff]
    %v6101 = vld [vmem:[%s7 + $0x4a0] sm:$0xff]
    %v6102 = vld [vmem:[%s7 + $0x4a8] sm:$0xff]
    %v6103 = vld [vmem:[%s7 + $0x4b0] sm:$0xff]
    %v6104 = vld [vmem:[%s7 + $0x4b8] sm:$0xff]
    %v6105 = vld [vmem:[%s7 + $0x4c0] sm:$0xff]
    %v6106 = vld [vmem:[%s7 + $0x4c8] sm:$0xff]
    %v6107 = vld [vmem:[%s7 + $0x4d0] sm:$0xff]
    %v6108 = vld [vmem:[%s7 + $0x4d8] sm:$0xff]
    %v6109 = vld [vmem:[%s7 + $0x4e0] sm:$0xff]
    %v6110 = vld [vmem:[%s7 + $0x4e8] sm:$0xff]
    %v6111 = vld [vmem:[%s7 + $0x4f0] sm:$0xff]
    %v6112 = vld [vmem:[%s7 + $0x4f8] sm:$0xff]
    %v6113 = vld [vmem:[%s7 + $0x500] sm:$0xff]
    %v6114 = vld [vmem:[%s7 + $0x508] sm:$0xff]
    %v6115 = vld [vmem:[%s7 + $0x510] sm:$0xff]
    %v6116 = vld [vmem:[%s7 + $0x518] sm:$0xff]
    %v6117 = vld [vmem:[%s7 + $0x520] sm:$0xff]
    %v6118 = vld [vmem:[%s7 + $0x528] sm:$0xff]
    %v6119 = vld [vmem:[%s7 + $0x530] sm:$0xff]
    %v6120 = vld [vmem:[%s7 + $0x538] sm:$0xff]
    %v6121 = vld [vmem:[%s7 + $0x540] sm:$0xff]
    %v6122 = vld [vmem:[%s7 + $0x548] sm:$0xff]
    %v6123 = vld [vmem:[%s7 + $0x550] sm:$0xff]
    %v6124 = vld [vmem:[%s7 + $0x558] sm:$0xff]
    %v6125 = vld [vmem:[%s7 + $0x560] sm:$0xff]
    %v6126 = vld [vmem:[%s7 + $0x568] sm:$0xff]
    %v6127 = vld [vmem:[%s7 + $0x570] sm:$0xff]
    %v6128 = vld [vmem:[%s7 + $0x578] sm:$0xff]
    %v6129 = vld [vmem:[%s7 + $0x580] sm:$0xff]
    %v6130 = vld [vmem:[%s7 + $0x588] sm:$0xff]
    %v6131 = vld [vmem:[%s7 + $0x590] sm:$0xff]
    %v6132 = vld [vmem:[%s7 + $0x598] sm:$0xff]
    %v6133 = vld [vmem:[%s7 + $0x5a0] sm:$0xff]
    %v6134 = vld [vmem:[%s7 + $0x5a8] sm:$0xff]
    %v6135 = vld [vmem:[%s7 + $0x5b0] sm:$0xff]
    %v6136 = vld [vmem:[%s7 + $0x5b8] sm:$0xff]
    %v6137 = vld [vmem:[%s7 + $0x5c0] sm:$0xff]
    %v6138 = vld [vmem:[%s7 + $0x5c8] sm:$0xff]
    %v6139 = vld [vmem:[%s7 + $0x5d0] sm:$0xff]
    %v6140 = vld [vmem:[%s7 + $0x5d8] sm:$0xff]
    %v6141 = vld [vmem:[%s7 + $0x5e0] sm:$0xff]
    %v6142 = vld [vmem:[%s7 + $0x5e8] sm:$0xff]
    %v6143 = vld [vmem:[%s7 + $0x5f0] sm:$0xff]
    %v6144 = vld [vmem:[%s7 + $0x5f8] sm:$0xff]
    %v6145 = vld [vmem:[%s7 + $0x600] sm:$0xff]
    %v6146 = vld [vmem:[%s7 + $0x608] sm:$0xff]
    %v6147 = vld [vmem:[%s7 + $0x610] sm:$0xff]
    %v6148 = vld [vmem:[%s7 + $0x618] sm:$0xff]
    %v6149 = vld [vmem:[%s7 + $0x620] sm:$0xff]
    %v6150 = vld [vmem:[%s7 + $0x628] sm:$0xff]
    %v6151 = vld [vmem:[%s7 + $0x630] sm:$0xff]
    %v6152 = vld [vmem:[%s7 + $0x638] sm:$0xff]
    %v6153 = vld [vmem:[%s7 + $0x640] sm:$0xff]
    %v6154 = vld [vmem:[%s7 + $0x648] sm:$0xff]
    %v6155 = vld [vmem:[%s7 + $0x650] sm:$0xff]
    %v6156 = vld [vmem:[%s7 + $0x658] sm:$0xff]
    %v6157 = vld [vmem:[%s7 + $0x660] sm:$0xff]
    %v6158 = vld [vmem:[%s7 + $0x668] sm:$0xff]
    %v6159 = vld [vmem:[%s7 + $0x670] sm:$0xff]
    %v6160 = vld [vmem:[%s7 + $0x678] sm:$0xff]
    %v6161 = vld [vmem:[%s7 + $0x680] sm:$0xff]
    %v6162 = vld [vmem:[%s7 + $0x688] sm:$0xff]
    %v6163 = vld [vmem:[%s7 + $0x690] sm:$0xff]
    %v6164 = vld [vmem:[%s7 + $0x698] sm:$0xff]
    %v6165 = vld [vmem:[%s7 + $0x6a0] sm:$0xff]
    %v6166 = vld [vmem:[%s7 + $0x6a8] sm:$0xff]
    %v6167 = vld [vmem:[%s7 + $0x6b0] sm:$0xff]
    %v6168 = vld [vmem:[%s7 + $0x6b8] sm:$0xff]
    %v6169 = vld [vmem:[%s7 + $0x6c0] sm:$0xff]
    %v6170 = vld [vmem:[%s7 + $0x6c8] sm:$0xff]
    %v6171 = vld [vmem:[%s7 + $0x6d0] sm:$0xff]
    %v6172 = vld [vmem:[%s7 + $0x6d8] sm:$0xff]
    %v6173 = vld [vmem:[%s7 + $0x6e0] sm:$0xff]
    %v6174 = vld [vmem:[%s7 + $0x6e8] sm:$0xff]
    %v6175 = vld [vmem:[%s7 + $0x6f0] sm:$0xff]
    %v6176 = vld [vmem:[%s7 + $0x6f8] sm:$0xff]
    %v6177 = vld [vmem:[%s7 + $0x700] sm:$0xff]
    %v6178 = vld [vmem:[%s7 + $0x708] sm:$0xff]
    %v6179 = vld [vmem:[%s7 + $0x710] sm:$0xff]
    %v6180 = vld [vmem:[%s7 + $0x718] sm:$0xff]
    %v6181 = vld [vmem:[%s7 + $0x720] sm:$0xff]
    %v6182 = vld [vmem:[%s7 + $0x728] sm:$0xff]
    %v6183 = vld [vmem:[%s7 + $0x730] sm:$0xff]
    %v6184 = vld [vmem:[%s7 + $0x738] sm:$0xff]
    %v6185 = vld [vmem:[%s7 + $0x740] sm:$0xff]
    %v6186 = vld [vmem:[%s7 + $0x748] sm:$0xff]
    %v6187 = vld [vmem:[%s7 + $0x750] sm:$0xff]
    %v6188 = vld [vmem:[%s7 + $0x758] sm:$0xff]
    %v6189 = vld [vmem:[%s7 + $0x760] sm:$0xff]
    %v6190 = vld [vmem:[%s7 + $0x768] sm:$0xff]
    %v6191 = vld [vmem:[%s7 + $0x770] sm:$0xff]
    %v6192 = vld [vmem:[%s7 + $0x778] sm:$0xff]
    %v6193 = vld [vmem:[%s8] sm:$0xff]
    %v6194 = vld [vmem:[%s8 + $0x8] sm:$0xff]
    %v6195 = vld [vmem:[%s8 + $0x10] sm:$0xff]
    %v6436 = vunpack.c.l.b16 %v5953
    %v6437 = vunpack.c.h.b16 %v5953
    %v6438 = vunpack.c.l.b16 %v5954
    %v6439 = vunpack.c.h.b16 %v5954
    %v6440 = vunpack.c.l.b16 %v5955
    %v6441 = vunpack.c.h.b16 %v5955
    %v6442 = vunpack.c.l.b16 %v5956
    %v6443 = vunpack.c.h.b16 %v5956
    %v6444 = vunpack.c.l.b16 %v5957
    %v6445 = vunpack.c.h.b16 %v5957
    %v6446 = vunpack.c.l.b16 %v5958
    %v6447 = vunpack.c.h.b16 %v5958
    %v6448 = vunpack.c.l.b16 %v5959
    %v6449 = vunpack.c.h.b16 %v5959
    %v6450 = vunpack.c.l.b16 %v5960
    %v6451 = vunpack.c.h.b16 %v5960
    %v6452 = vunpack.c.l.b16 %v5961
    %v6453 = vunpack.c.h.b16 %v5961
    %v6454 = vunpack.c.l.b16 %v5962
    %v6455 = vunpack.c.h.b16 %v5962
    %v6456 = vunpack.c.l.b16 %v5963
    %v6457 = vunpack.c.h.b16 %v5963
    %v6458 = vunpack.c.l.b16 %v5964
    %v6459 = vunpack.c.h.b16 %v5964
    %v6460 = vunpack.c.l.b16 %v5965
    %v6461 = vunpack.c.h.b16 %v5965
    %v6462 = vunpack.c.l.b16 %v5966
    %v6463 = vunpack.c.h.b16 %v5966
    %v6464 = vunpack.c.l.b16 %v5967
    %v6465 = vunpack.c.h.b16 %v5967
    %v6466 = vunpack.c.l.b16 %v5968
    %v6467 = vunpack.c.h.b16 %v5968
    %v6468 = vunpack.c.l.b16 %v5969
    %v6469 = vunpack.c.h.b16 %v5969
    %v6470 = vunpack.c.l.b16 %v5970
    %v6471 = vunpack.c.h.b16 %v5970
    %v6472 = vunpack.c.l.b16 %v5971
    %v6473 = vunpack.c.h.b16 %v5971
    %v6474 = vunpack.c.l.b16 %v5972
    %v6475 = vunpack.c.h.b16 %v5972
    %v6476 = vunpack.c.l.b16 %v5973
    %v6477 = vunpack.c.h.b16 %v5973
    %v6478 = vunpack.c.l.b16 %v5974
    %v6479 = vunpack.c.h.b16 %v5974
    %v6480 = vunpack.c.l.b16 %v5975
    %v6481 = vunpack.c.h.b16 %v5975
    %v6482 = vunpack.c.l.b16 %v5976
    %v6483 = vunpack.c.h.b16 %v5976
    %v6484 = vunpack.c.l.b16 %v5977
    %v6485 = vunpack.c.h.b16 %v5977
    %v6486 = vunpack.c.l.b16 %v5978
    %v6487 = vunpack.c.h.b16 %v5978
    %v6488 = vunpack.c.l.b16 %v5979
    %v6489 = vunpack.c.h.b16 %v5979
    %v6490 = vunpack.c.l.b16 %v5980
    %v6491 = vunpack.c.h.b16 %v5980
    %v6492 = vunpack.c.l.b16 %v5981
    %v6493 = vunpack.c.h.b16 %v5981
    %v6494 = vunpack.c.l.b16 %v5982
    %v6495 = vunpack.c.h.b16 %v5982
    %v6496 = vunpack.c.l.b16 %v5983
    %v6497 = vunpack.c.h.b16 %v5983
    %v6498 = vunpack.c.l.b16 %v5984
    %v6499 = vunpack.c.h.b16 %v5984
    %v6500 = vunpack.c.l.b16 %v5985
    %v6501 = vunpack.c.h.b16 %v5985
    %v6502 = vunpack.c.l.b16 %v5986
    %v6503 = vunpack.c.h.b16 %v5986
    %v6504 = vunpack.c.l.b16 %v5987
    %v6505 = vunpack.c.h.b16 %v5987
    %v6506 = vunpack.c.l.b16 %v5988
    %v6507 = vunpack.c.h.b16 %v5988
    %v6508 = vunpack.c.l.b16 %v5989
    %v6509 = vunpack.c.h.b16 %v5989
    %v6510 = vunpack.c.l.b16 %v5990
    %v6511 = vunpack.c.h.b16 %v5990
    %v6512 = vunpack.c.l.b16 %v5991
    %v6513 = vunpack.c.h.b16 %v5991
    %v6514 = vunpack.c.l.b16 %v5992
    %v6515 = vunpack.c.h.b16 %v5992
    %v6516 = vunpack.c.l.b16 %v5993
    %v6517 = vunpack.c.h.b16 %v5993
    %v6518 = vunpack.c.l.b16 %v5994
    %v6519 = vunpack.c.h.b16 %v5994
    %v6520 = vunpack.c.l.b16 %v5995
    %v6521 = vunpack.c.h.b16 %v5995
    %v6522 = vunpack.c.l.b16 %v5996
    %v6523 = vunpack.c.h.b16 %v5996
    %v6524 = vunpack.c.l.b16 %v5997
    %v6525 = vunpack.c.h.b16 %v5997
    %v6526 = vunpack.c.l.b16 %v5998
    %v6527 = vunpack.c.h.b16 %v5998
    %v6528 = vunpack.c.l.b16 %v5999
    %v6529 = vunpack.c.h.b16 %v5999
    %v6530 = vunpack.c.l.b16 %v6000
    %v6531 = vunpack.c.h.b16 %v6000
    %v6532 = vunpack.c.l.b16 %v6001
    %v6533 = vunpack.c.h.b16 %v6001
    %v6534 = vunpack.c.l.b16 %v6002
    %v6535 = vunpack.c.h.b16 %v6002
    %v6536 = vunpack.c.l.b16 %v6003
    %v6537 = vunpack.c.h.b16 %v6003
    %v6538 = vunpack.c.l.b16 %v6004
    %v6539 = vunpack.c.h.b16 %v6004
    %v6540 = vunpack.c.l.b16 %v6005
    %v6541 = vunpack.c.h.b16 %v6005
    %v6542 = vunpack.c.l.b16 %v6006
    %v6543 = vunpack.c.h.b16 %v6006
    %v6544 = vunpack.c.l.b16 %v6007
    %v6545 = vunpack.c.h.b16 %v6007
    %v6546 = vunpack.c.l.b16 %v6008
    %v6547 = vunpack.c.h.b16 %v6008
    %v6548 = vunpack.c.l.b16 %v6009
    %v6549 = vunpack.c.h.b16 %v6009
    %v6550 = vunpack.c.l.b16 %v6010
    %v6551 = vunpack.c.h.b16 %v6010
    %v6552 = vunpack.c.l.b16 %v6011
    %v6553 = vunpack.c.h.b16 %v6011
    %v6554 = vunpack.c.l.b16 %v6012
    %v6555 = vunpack.c.h.b16 %v6012
    %v6556 = vunpack.c.l.b16 %v6013
    %v6557 = vunpack.c.h.b16 %v6013
    %v6558 = vunpack.c.l.b16 %v6014
    %v6559 = vunpack.c.h.b16 %v6014
    %v6560 = vunpack.c.l.b16 %v6015
    %v6561 = vunpack.c.h.b16 %v6015
    %v6562 = vunpack.c.l.b16 %v6016
    %v6563 = vunpack.c.h.b16 %v6016
    %v6564 = vunpack.c.l.b16 %v6017
    %v6565 = vunpack.c.h.b16 %v6017
    %v6566 = vunpack.c.l.b16 %v6018
    %v6567 = vunpack.c.h.b16 %v6018
    %v6568 = vunpack.c.l.b16 %v6019
    %v6569 = vunpack.c.h.b16 %v6019
    %v6570 = vunpack.c.l.b16 %v6020
    %v6571 = vunpack.c.h.b16 %v6020
    %v6572 = vunpack.c.l.b16 %v6021
    %v6573 = vunpack.c.h.b16 %v6021
    %v6574 = vunpack.c.l.b16 %v6022
    %v6575 = vunpack.c.h.b16 %v6022
    %v6576 = vunpack.c.l.b16 %v6023
    %v6577 = vunpack.c.h.b16 %v6023
    %v6578 = vunpack.c.l.b16 %v6024
    %v6579 = vunpack.c.h.b16 %v6024
    %v6580 = vunpack.c.l.b16 %v6025
    %v6581 = vunpack.c.h.b16 %v6025
    %v6582 = vunpack.c.l.b16 %v6026
    %v6583 = vunpack.c.h.b16 %v6026
    %v6584 = vunpack.c.l.b16 %v6027
    %v6585 = vunpack.c.h.b16 %v6027
    %v6586 = vunpack.c.l.b16 %v6028
    %v6587 = vunpack.c.h.b16 %v6028
    %v6588 = vunpack.c.l.b16 %v6029
    %v6589 = vunpack.c.h.b16 %v6029
    %v6590 = vunpack.c.l.b16 %v6030
    %v6591 = vunpack.c.h.b16 %v6030
    %v6592 = vunpack.c.l.b16 %v6031
    %v6593 = vunpack.c.h.b16 %v6031
    %v6594 = vunpack.c.l.b16 %v6032
    %v6595 = vunpack.c.h.b16 %v6032
    %v6596 = vunpack.c.l.b16 %v6033
    %v6597 = vunpack.c.h.b16 %v6033
    %v6598 = vunpack.c.l.b16 %v6034
    %v6599 = vunpack.c.h.b16 %v6034
    %v6600 = vunpack.c.l.b16 %v6035
    %v6601 = vunpack.c.h.b16 %v6035
    %v6602 = vunpack.c.l.b16 %v6036
    %v6603 = vunpack.c.h.b16 %v6036
    %v6604 = vunpack.c.l.b16 %v6037
    %v6605 = vunpack.c.h.b16 %v6037
    %v6606 = vunpack.c.l.b16 %v6038
    %v6607 = vunpack.c.h.b16 %v6038
    %v6608 = vunpack.c.l.b16 %v6039
    %v6609 = vunpack.c.h.b16 %v6039
    %v6610 = vunpack.c.l.b16 %v6040
    %v6611 = vunpack.c.h.b16 %v6040
    %v6612 = vunpack.c.l.b16 %v6041
    %v6613 = vunpack.c.h.b16 %v6041
    %v6614 = vunpack.c.l.b16 %v6042
    %v6615 = vunpack.c.h.b16 %v6042
    %v6616 = vunpack.c.l.b16 %v6043
    %v6617 = vunpack.c.h.b16 %v6043
    %v6618 = vunpack.c.l.b16 %v6044
    %v6619 = vunpack.c.h.b16 %v6044
    %v6620 = vunpack.c.l.b16 %v6045
    %v6621 = vunpack.c.h.b16 %v6045
    %v6622 = vunpack.c.l.b16 %v6046
    %v6623 = vunpack.c.h.b16 %v6046
    %v6624 = vunpack.c.l.b16 %v6047
    %v6625 = vunpack.c.h.b16 %v6047
    %v6626 = vunpack.c.l.b16 %v6048
    %v6627 = vunpack.c.h.b16 %v6048
    %v6628 = vunpack.c.l.b16 %v6049
    %v6629 = vunpack.c.h.b16 %v6049
    %v6630 = vunpack.c.l.b16 %v6050
    %v6631 = vunpack.c.h.b16 %v6050
    %v6632 = vunpack.c.l.b16 %v6051
    %v6633 = vunpack.c.h.b16 %v6051
    %v6634 = vunpack.c.l.b16 %v6052
    %v6635 = vunpack.c.h.b16 %v6052
    %v6636 = vunpack.c.l.b16 %v6053
    %v6637 = vunpack.c.h.b16 %v6053
    %v6638 = vunpack.c.l.b16 %v6054
    %v6639 = vunpack.c.h.b16 %v6054
    %v6640 = vunpack.c.l.b16 %v6055
    %v6641 = vunpack.c.h.b16 %v6055
    %v6642 = vunpack.c.l.b16 %v6056
    %v6643 = vunpack.c.h.b16 %v6056
    %v6644 = vunpack.c.l.b16 %v6057
    %v6645 = vunpack.c.h.b16 %v6057
    %v6646 = vunpack.c.l.b16 %v6058
    %v6647 = vunpack.c.h.b16 %v6058
    %v6648 = vunpack.c.l.b16 %v6059
    %v6649 = vunpack.c.h.b16 %v6059
    %v6650 = vunpack.c.l.b16 %v6060
    %v6651 = vunpack.c.h.b16 %v6060
    %v6652 = vunpack.c.l.b16 %v6061
    %v6653 = vunpack.c.h.b16 %v6061
    %v6654 = vunpack.c.l.b16 %v6062
    %v6655 = vunpack.c.h.b16 %v6062
    %v6656 = vunpack.c.l.b16 %v6063
    %v6657 = vunpack.c.h.b16 %v6063
    %v6658 = vunpack.c.l.b16 %v6064
    %v6659 = vunpack.c.h.b16 %v6064
    %v6660 = vunpack.c.l.b16 %v6065
    %v6661 = vunpack.c.h.b16 %v6065
    %v6662 = vunpack.c.l.b16 %v6066
    %v6663 = vunpack.c.h.b16 %v6066
    %v6664 = vunpack.c.l.b16 %v6067
    %v6665 = vunpack.c.h.b16 %v6067
    %v6666 = vunpack.c.l.b16 %v6068
    %v6667 = vunpack.c.h.b16 %v6068
    %v6668 = vunpack.c.l.b16 %v6069
    %v6669 = vunpack.c.h.b16 %v6069
    %v6670 = vunpack.c.l.b16 %v6070
    %v6671 = vunpack.c.h.b16 %v6070
    %v6672 = vunpack.c.l.b16 %v6071
    %v6673 = vunpack.c.h.b16 %v6071
    %v6674 = vunpack.c.l.b16 %v6072
    %v6675 = vunpack.c.h.b16 %v6072
    %v6676 = vunpack.c.l.b16 %v6073
    %v6677 = vunpack.c.h.b16 %v6073
    %v6678 = vunpack.c.l.b16 %v6074
    %v6679 = vunpack.c.h.b16 %v6074
    %v6680 = vunpack.c.l.b16 %v6075
    %v6681 = vunpack.c.h.b16 %v6075
    %v6682 = vunpack.c.l.b16 %v6076
    %v6683 = vunpack.c.h.b16 %v6076
    %v6684 = vunpack.c.l.b16 %v6077
    %v6685 = vunpack.c.h.b16 %v6077
    %v6686 = vunpack.c.l.b16 %v6078
    %v6687 = vunpack.c.h.b16 %v6078
    %v6688 = vunpack.c.l.b16 %v6079
    %v6689 = vunpack.c.h.b16 %v6079
    %v6690 = vunpack.c.l.b16 %v6080
    %v6691 = vunpack.c.h.b16 %v6080
    %v6692 = vunpack.c.l.b16 %v6081
    %v6693 = vunpack.c.h.b16 %v6081
    %v6694 = vunpack.c.l.b16 %v6082
    %v6695 = vunpack.c.h.b16 %v6082
    %v6696 = vunpack.c.l.b16 %v6083
    %v6697 = vunpack.c.h.b16 %v6083
    %v6698 = vunpack.c.l.b16 %v6084
    %v6699 = vunpack.c.h.b16 %v6084
    %v6700 = vunpack.c.l.b16 %v6085
    %v6701 = vunpack.c.h.b16 %v6085
    %v6702 = vunpack.c.l.b16 %v6086
    %v6703 = vunpack.c.h.b16 %v6086
    %v6704 = vunpack.c.l.b16 %v6087
    %v6705 = vunpack.c.h.b16 %v6087
    %v6706 = vunpack.c.l.b16 %v6088
    %v6707 = vunpack.c.h.b16 %v6088
    %v6708 = vunpack.c.l.b16 %v6089
    %v6709 = vunpack.c.h.b16 %v6089
    %v6710 = vunpack.c.l.b16 %v6090
    %v6711 = vunpack.c.h.b16 %v6090
    %v6712 = vunpack.c.l.b16 %v6091
    %v6713 = vunpack.c.h.b16 %v6091
    %v6714 = vunpack.c.l.b16 %v6092
    %v6715 = vunpack.c.h.b16 %v6092
    %v6716 = vunpack.c.l.b16 %v6093
    %v6717 = vunpack.c.h.b16 %v6093
    %v6718 = vunpack.c.l.b16 %v6094
    %v6719 = vunpack.c.h.b16 %v6094
    %v6720 = vunpack.c.l.b16 %v6095
    %v6721 = vunpack.c.h.b16 %v6095
    %v6722 = vunpack.c.l.b16 %v6096
    %v6723 = vunpack.c.h.b16 %v6096
    %v6724 = vunpack.c.l.b16 %v6097
    %v6725 = vunpack.c.h.b16 %v6097
    %v6726 = vunpack.c.l.b16 %v6098
    %v6727 = vunpack.c.h.b16 %v6098
    %v6728 = vunpack.c.l.b16 %v6099
    %v6729 = vunpack.c.h.b16 %v6099
    %v6730 = vunpack.c.l.b16 %v6100
    %v6731 = vunpack.c.h.b16 %v6100
    %v6732 = vunpack.c.l.b16 %v6101
    %v6733 = vunpack.c.h.b16 %v6101
    %v6734 = vunpack.c.l.b16 %v6102
    %v6735 = vunpack.c.h.b16 %v6102
    %v6736 = vunpack.c.l.b16 %v6103
    %v6737 = vunpack.c.h.b16 %v6103
    %v6738 = vunpack.c.l.b16 %v6104
    %v6739 = vunpack.c.h.b16 %v6104
    %v6740 = vunpack.c.l.b16 %v6105
    %v6741 = vunpack.c.h.b16 %v6105
    %v6742 = vunpack.c.l.b16 %v6106
    %v6743 = vunpack.c.h.b16 %v6106
    %v6744 = vunpack.c.l.b16 %v6107
    %v6745 = vunpack.c.h.b16 %v6107
    %v6746 = vunpack.c.l.b16 %v6108
    %v6747 = vunpack.c.h.b16 %v6108
    %v6748 = vunpack.c.l.b16 %v6109
    %v6749 = vunpack.c.h.b16 %v6109
    %v6750 = vunpack.c.l.b16 %v6110
    %v6751 = vunpack.c.h.b16 %v6110
    %v6752 = vunpack.c.l.b16 %v6111
    %v6753 = vunpack.c.h.b16 %v6111
    %v6754 = vunpack.c.l.b16 %v6112
    %v6755 = vunpack.c.h.b16 %v6112
    %v6756 = vunpack.c.l.b16 %v6113
    %v6757 = vunpack.c.h.b16 %v6113
    %v6758 = vunpack.c.l.b16 %v6114
    %v6759 = vunpack.c.h.b16 %v6114
    %v6760 = vunpack.c.l.b16 %v6115
    %v6761 = vunpack.c.h.b16 %v6115
    %v6762 = vunpack.c.l.b16 %v6116
    %v6763 = vunpack.c.h.b16 %v6116
    %v6764 = vunpack.c.l.b16 %v6117
    %v6765 = vunpack.c.h.b16 %v6117
    %v6766 = vunpack.c.l.b16 %v6118
    %v6767 = vunpack.c.h.b16 %v6118
    %v6768 = vunpack.c.l.b16 %v6119
    %v6769 = vunpack.c.h.b16 %v6119
    %v6770 = vunpack.c.l.b16 %v6120
    %v6771 = vunpack.c.h.b16 %v6120
    %v6772 = vunpack.c.l.b16 %v6121
    %v6773 = vunpack.c.h.b16 %v6121
    %v6774 = vunpack.c.l.b16 %v6122
    %v6775 = vunpack.c.h.b16 %v6122
    %v6776 = vunpack.c.l.b16 %v6123
    %v6777 = vunpack.c.h.b16 %v6123
    %v6778 = vunpack.c.l.b16 %v6124
    %v6779 = vunpack.c.h.b16 %v6124
    %v6780 = vunpack.c.l.b16 %v6125
    %v6781 = vunpack.c.h.b16 %v6125
    %v6782 = vunpack.c.l.b16 %v6126
    %v6783 = vunpack.c.h.b16 %v6126
    %v6784 = vunpack.c.l.b16 %v6127
    %v6785 = vunpack.c.h.b16 %v6127
    %v6786 = vunpack.c.l.b16 %v6128
    %v6787 = vunpack.c.h.b16 %v6128
    %v6788 = vunpack.c.l.b16 %v6129
    %v6789 = vunpack.c.h.b16 %v6129
    %v6790 = vunpack.c.l.b16 %v6130
    %v6791 = vunpack.c.h.b16 %v6130
    %v6792 = vunpack.c.l.b16 %v6131
    %v6793 = vunpack.c.h.b16 %v6131
    %v6794 = vunpack.c.l.b16 %v6132
    %v6795 = vunpack.c.h.b16 %v6132
    %v6796 = vunpack.c.l.b16 %v6133
    %v6797 = vunpack.c.h.b16 %v6133
    %v6798 = vunpack.c.l.b16 %v6134
    %v6799 = vunpack.c.h.b16 %v6134
    %v6800 = vunpack.c.l.b16 %v6135
    %v6801 = vunpack.c.h.b16 %v6135
    %v6802 = vunpack.c.l.b16 %v6136
    %v6803 = vunpack.c.h.b16 %v6136
    %v6804 = vunpack.c.l.b16 %v6137
    %v6805 = vunpack.c.h.b16 %v6137
    %v6806 = vunpack.c.l.b16 %v6138
    %v6807 = vunpack.c.h.b16 %v6138
    %v6808 = vunpack.c.l.b16 %v6139
    %v6809 = vunpack.c.h.b16 %v6139
    %v6810 = vunpack.c.l.b16 %v6140
    %v6811 = vunpack.c.h.b16 %v6140
    %v6812 = vunpack.c.l.b16 %v6141
    %v6813 = vunpack.c.h.b16 %v6141
    %v6814 = vunpack.c.l.b16 %v6142
    %v6815 = vunpack.c.h.b16 %v6142
    %v6816 = vunpack.c.l.b16 %v6143
    %v6817 = vunpack.c.h.b16 %v6143
    %v6818 = vunpack.c.l.b16 %v6144
    %v6819 = vunpack.c.h.b16 %v6144
    %v6820 = vunpack.c.l.b16 %v6145
    %v6821 = vunpack.c.h.b16 %v6145
    %v6822 = vunpack.c.l.b16 %v6146
    %v6823 = vunpack.c.h.b16 %v6146
    %v6824 = vunpack.c.l.b16 %v6147
    %v6825 = vunpack.c.h.b16 %v6147
    %v6826 = vunpack.c.l.b16 %v6148
    %v6827 = vunpack.c.h.b16 %v6148
    %v6828 = vunpack.c.l.b16 %v6149
    %v6829 = vunpack.c.h.b16 %v6149
    %v6830 = vunpack.c.l.b16 %v6150
    %v6831 = vunpack.c.h.b16 %v6150
    %v6832 = vunpack.c.l.b16 %v6151
    %v6833 = vunpack.c.h.b16 %v6151
    %v6834 = vunpack.c.l.b16 %v6152
    %v6835 = vunpack.c.h.b16 %v6152
    %v6836 = vunpack.c.l.b16 %v6153
    %v6837 = vunpack.c.h.b16 %v6153
    %v6838 = vunpack.c.l.b16 %v6154
    %v6839 = vunpack.c.h.b16 %v6154
    %v6840 = vunpack.c.l.b16 %v6155
    %v6841 = vunpack.c.h.b16 %v6155
    %v6842 = vunpack.c.l.b16 %v6156
    %v6843 = vunpack.c.h.b16 %v6156
    %v6844 = vunpack.c.l.b16 %v6157
    %v6845 = vunpack.c.h.b16 %v6157
    %v6846 = vunpack.c.l.b16 %v6158
    %v6847 = vunpack.c.h.b16 %v6158
    %v6848 = vunpack.c.l.b16 %v6159
    %v6849 = vunpack.c.h.b16 %v6159
    %v6850 = vunpack.c.l.b16 %v6160
    %v6851 = vunpack.c.h.b16 %v6160
    %v6852 = vunpack.c.l.b16 %v6161
    %v6853 = vunpack.c.h.b16 %v6161
    %v6854 = vunpack.c.l.b16 %v6162
    %v6855 = vunpack.c.h.b16 %v6162
    %v6856 = vunpack.c.l.b16 %v6163
    %v6857 = vunpack.c.h.b16 %v6163
    %v6858 = vunpack.c.l.b16 %v6164
    %v6859 = vunpack.c.h.b16 %v6164
    %v6860 = vunpack.c.l.b16 %v6165
    %v6861 = vunpack.c.h.b16 %v6165
    %v6862 = vunpack.c.l.b16 %v6166
    %v6863 = vunpack.c.h.b16 %v6166
    %v6864 = vunpack.c.l.b16 %v6167
    %v6865 = vunpack.c.h.b16 %v6167
    %v6866 = vunpack.c.l.b16 %v6168
    %v6867 = vunpack.c.h.b16 %v6168
    %v6868 = vunpack.c.l.b16 %v6169
    %v6869 = vunpack.c.h.b16 %v6169
    %v6870 = vunpack.c.l.b16 %v6170
    %v6871 = vunpack.c.h.b16 %v6170
    %v6872 = vunpack.c.l.b16 %v6171
    %v6873 = vunpack.c.h.b16 %v6171
    %v6874 = vunpack.c.l.b16 %v6172
    %v6875 = vunpack.c.h.b16 %v6172
    %v6876 = vunpack.c.l.b16 %v6173
    %v6877 = vunpack.c.h.b16 %v6173
    %v6878 = vunpack.c.l.b16 %v6174
    %v6879 = vunpack.c.h.b16 %v6174
    %v6880 = vunpack.c.l.b16 %v6175
    %v6881 = vunpack.c.h.b16 %v6175
    %v6882 = vunpack.c.l.b16 %v6176
    %v6883 = vunpack.c.h.b16 %v6176
    %v6884 = vunpack.c.l.b16 %v6177
    %v6885 = vunpack.c.h.b16 %v6177
    %v6886 = vunpack.c.l.b16 %v6178
    %v6887 = vunpack.c.h.b16 %v6178
    %v6888 = vunpack.c.l.b16 %v6179
    %v6889 = vunpack.c.h.b16 %v6179
    %v6890 = vunpack.c.l.b16 %v6180
    %v6891 = vunpack.c.h.b16 %v6180
    %v6892 = vunpack.c.l.b16 %v6181
    %v6893 = vunpack.c.h.b16 %v6181
    %v6894 = vunpack.c.l.b16 %v6182
    %v6895 = vunpack.c.h.b16 %v6182
    %v6896 = vunpack.c.l.b16 %v6183
    %v6897 = vunpack.c.h.b16 %v6183
    %v6898 = vunpack.c.l.b16 %v6184
    %v6899 = vunpack.c.h.b16 %v6184
    %v6900 = vunpack.c.l.b16 %v6185
    %v6901 = vunpack.c.h.b16 %v6185
    %v6902 = vunpack.c.l.b16 %v6186
    %v6903 = vunpack.c.h.b16 %v6186
    %v6904 = vunpack.c.l.b16 %v6187
    %v6905 = vunpack.c.h.b16 %v6187
    %v6906 = vunpack.c.l.b16 %v6188
    %v6907 = vunpack.c.h.b16 %v6188
    %v6908 = vunpack.c.l.b16 %v6189
    %v6909 = vunpack.c.h.b16 %v6189
    %v6910 = vunpack.c.l.b16 %v6190
    %v6911 = vunpack.c.h.b16 %v6190
    %v6912 = vunpack.c.l.b16 %v6191
    %v6913 = vunpack.c.h.b16 %v6191
    %v6914 = vunpack.c.l.b16 %v6192
    %v6915 = vunpack.c.h.b16 %v6192
    %v6916 = vpack.c.b16 %v6460, %v6436
    %v6917 = vpack.c.b16 %v6461, %v6437
    %v6918 = vpack.c.b16 %v6462, %v6438
    %v6919 = vpack.c.b16 %v6463, %v6439
    %v6920 = vpack.c.b16 %v6464, %v6440
    %v6921 = vpack.c.b16 %v6465, %v6441
    %v6922 = vpack.c.b16 %v6466, %v6442
    %v6923 = vpack.c.b16 %v6467, %v6443
    %v6924 = vpack.c.b16 %v6468, %v6444
    %v6925 = vpack.c.b16 %v6469, %v6445
    %v6926 = vpack.c.b16 %v6470, %v6446
    %v6927 = vpack.c.b16 %v6471, %v6447
    %v6928 = vpack.c.b16 %v6472, %v6448
    %v6929 = vpack.c.b16 %v6473, %v6449
    %v6930 = vpack.c.b16 %v6474, %v6450
    %v6931 = vpack.c.b16 %v6475, %v6451
    %v6932 = vpack.c.b16 %v6476, %v6452
    %v6933 = vpack.c.b16 %v6477, %v6453
    %v6934 = vpack.c.b16 %v6478, %v6454
    %v6935 = vpack.c.b16 %v6479, %v6455
    %v6936 = vpack.c.b16 %v6480, %v6456
    %v6937 = vpack.c.b16 %v6481, %v6457
    %v6938 = vpack.c.b16 %v6482, %v6458
    %v6939 = vpack.c.b16 %v6483, %v6459
    %v6940 = vpack.c.b16 %v6508, %v6484
    %v6941 = vpack.c.b16 %v6509, %v6485
    %v6942 = vpack.c.b16 %v6510, %v6486
    %v6943 = vpack.c.b16 %v6511, %v6487
    %v6944 = vpack.c.b16 %v6512, %v6488
    %v6945 = vpack.c.b16 %v6513, %v6489
    %v6946 = vpack.c.b16 %v6514, %v6490
    %v6947 = vpack.c.b16 %v6515, %v6491
    %v6948 = vpack.c.b16 %v6516, %v6492
    %v6949 = vpack.c.b16 %v6517, %v6493
    %v6950 = vpack.c.b16 %v6518, %v6494
    %v6951 = vpack.c.b16 %v6519, %v6495
    %v6952 = vpack.c.b16 %v6520, %v6496
    %v6953 = vpack.c.b16 %v6521, %v6497
    %v6954 = vpack.c.b16 %v6522, %v6498
    %v6955 = vpack.c.b16 %v6523, %v6499
    %v6956 = vpack.c.b16 %v6524, %v6500
    %v6957 = vpack.c.b16 %v6525, %v6501
    %v6958 = vpack.c.b16 %v6526, %v6502
    %v6959 = vpack.c.b16 %v6527, %v6503
    %v6960 = vpack.c.b16 %v6528, %v6504
    %v6961 = vpack.c.b16 %v6529, %v6505
    %v6962 = vpack.c.b16 %v6530, %v6506
    %v6963 = vpack.c.b16 %v6531, %v6507
    %v6964 = vpack.c.b16 %v6556, %v6532
    %v6965 = vpack.c.b16 %v6557, %v6533
    %v6966 = vpack.c.b16 %v6558, %v6534
    %v6967 = vpack.c.b16 %v6559, %v6535
    %v6968 = vpack.c.b16 %v6560, %v6536
    %v6969 = vpack.c.b16 %v6561, %v6537
    %v6970 = vpack.c.b16 %v6562, %v6538
    %v6971 = vpack.c.b16 %v6563, %v6539
    %v6972 = vpack.c.b16 %v6564, %v6540
    %v6973 = vpack.c.b16 %v6565, %v6541
    %v6974 = vpack.c.b16 %v6566, %v6542
    %v6975 = vpack.c.b16 %v6567, %v6543
    %v6976 = vpack.c.b16 %v6568, %v6544
    %v6977 = vpack.c.b16 %v6569, %v6545
    %v6978 = vpack.c.b16 %v6570, %v6546
    %v6979 = vpack.c.b16 %v6571, %v6547
    %v6980 = vpack.c.b16 %v6572, %v6548
    %v6981 = vpack.c.b16 %v6573, %v6549
    %v6982 = vpack.c.b16 %v6574, %v6550
    %v6983 = vpack.c.b16 %v6575, %v6551
    %v6984 = vpack.c.b16 %v6576, %v6552
    %v6985 = vpack.c.b16 %v6577, %v6553
    %v6986 = vpack.c.b16 %v6578, %v6554
    %v6987 = vpack.c.b16 %v6579, %v6555
    %v6988 = vpack.c.b16 %v6604, %v6580
    %v6989 = vpack.c.b16 %v6605, %v6581
    %v6990 = vpack.c.b16 %v6606, %v6582
    %v6991 = vpack.c.b16 %v6607, %v6583
    %v6992 = vpack.c.b16 %v6608, %v6584
    %v6993 = vpack.c.b16 %v6609, %v6585
    %v6994 = vpack.c.b16 %v6610, %v6586
    %v6995 = vpack.c.b16 %v6611, %v6587
    %v6996 = vpack.c.b16 %v6612, %v6588
    %v6997 = vpack.c.b16 %v6613, %v6589
    %v6998 = vpack.c.b16 %v6614, %v6590
    %v6999 = vpack.c.b16 %v6615, %v6591
    %v7000 = vpack.c.b16 %v6616, %v6592
    %v7001 = vpack.c.b16 %v6617, %v6593
    %v7002 = vpack.c.b16 %v6618, %v6594
    %v7003 = vpack.c.b16 %v6619, %v6595
    %v7004 = vpack.c.b16 %v6620, %v6596
    %v7005 = vpack.c.b16 %v6621, %v6597
    %v7006 = vpack.c.b16 %v6622, %v6598
    %v7007 = vpack.c.b16 %v6623, %v6599
    %v7008 = vpack.c.b16 %v6624, %v6600
    %v7009 = vpack.c.b16 %v6625, %v6601
    %v7010 = vpack.c.b16 %v6626, %v6602
    %v7011 = vpack.c.b16 %v6627, %v6603
    %v7012 = vpack.c.b16 %v6652, %v6628
    %v7013 = vpack.c.b16 %v6653, %v6629
    %v7014 = vpack.c.b16 %v6654, %v6630
    %v7015 = vpack.c.b16 %v6655, %v6631
    %v7016 = vpack.c.b16 %v6656, %v6632
    %v7017 = vpack.c.b16 %v6657, %v6633
    %v7018 = vpack.c.b16 %v6658, %v6634
    %v7019 = vpack.c.b16 %v6659, %v6635
    %v7020 = vpack.c.b16 %v6660, %v6636
    %v7021 = vpack.c.b16 %v6661, %v6637
    %v7022 = vpack.c.b16 %v6662, %v6638
    %v7023 = vpack.c.b16 %v6663, %v6639
    %v7024 = vpack.c.b16 %v6664, %v6640
    %v7025 = vpack.c.b16 %v6665, %v6641
    %v7026 = vpack.c.b16 %v6666, %v6642
    %v7027 = vpack.c.b16 %v6667, %v6643
    %v7028 = vpack.c.b16 %v6668, %v6644
    %v7029 = vpack.c.b16 %v6669, %v6645
    %v7030 = vpack.c.b16 %v6670, %v6646
    %v7031 = vpack.c.b16 %v6671, %v6647
    %v7032 = vpack.c.b16 %v6672, %v6648
    %v7033 = vpack.c.b16 %v6673, %v6649
    %v7034 = vpack.c.b16 %v6674, %v6650
    %v7035 = vpack.c.b16 %v6675, %v6651
    %v7036 = vpack.c.b16 %v6700, %v6676
    %v7037 = vpack.c.b16 %v6701, %v6677
    %v7038 = vpack.c.b16 %v6702, %v6678
    %v7039 = vpack.c.b16 %v6703, %v6679
    %v7040 = vpack.c.b16 %v6704, %v6680
    %v7041 = vpack.c.b16 %v6705, %v6681
    %v7042 = vpack.c.b16 %v6706, %v6682
    %v7043 = vpack.c.b16 %v6707, %v6683
    %v7044 = vpack.c.b16 %v6708, %v6684
    %v7045 = vpack.c.b16 %v6709, %v6685
    %v7046 = vpack.c.b16 %v6710, %v6686
    %v7047 = vpack.c.b16 %v6711, %v6687
    %v7048 = vpack.c.b16 %v6712, %v6688
    %v7049 = vpack.c.b16 %v6713, %v6689
    %v7050 = vpack.c.b16 %v6714, %v6690
    %v7051 = vpack.c.b16 %v6715, %v6691
    %v7052 = vpack.c.b16 %v6716, %v6692
    %v7053 = vpack.c.b16 %v6717, %v6693
    %v7054 = vpack.c.b16 %v6718, %v6694
    %v7055 = vpack.c.b16 %v6719, %v6695
    %v7056 = vpack.c.b16 %v6720, %v6696
    %v7057 = vpack.c.b16 %v6721, %v6697
    %v7058 = vpack.c.b16 %v6722, %v6698
    %v7059 = vpack.c.b16 %v6723, %v6699
    %v7060 = vpack.c.b16 %v6748, %v6724
    %v7061 = vpack.c.b16 %v6749, %v6725
    %v7062 = vpack.c.b16 %v6750, %v6726
    %v7063 = vpack.c.b16 %v6751, %v6727
    %v7064 = vpack.c.b16 %v6752, %v6728
    %v7065 = vpack.c.b16 %v6753, %v6729
    %v7066 = vpack.c.b16 %v6754, %v6730
    %v7067 = vpack.c.b16 %v6755, %v6731
    %v7068 = vpack.c.b16 %v6756, %v6732
    %v7069 = vpack.c.b16 %v6757, %v6733
    %v7070 = vpack.c.b16 %v6758, %v6734
    %v7071 = vpack.c.b16 %v6759, %v6735
    %v7072 = vpack.c.b16 %v6760, %v6736
    %v7073 = vpack.c.b16 %v6761, %v6737
    %v7074 = vpack.c.b16 %v6762, %v6738
    %v7075 = vpack.c.b16 %v6763, %v6739
    %v7076 = vpack.c.b16 %v6764, %v6740
    %v7077 = vpack.c.b16 %v6765, %v6741
    %v7078 = vpack.c.b16 %v6766, %v6742
    %v7079 = vpack.c.b16 %v6767, %v6743
    %v7080 = vpack.c.b16 %v6768, %v6744
    %v7081 = vpack.c.b16 %v6769, %v6745
    %v7082 = vpack.c.b16 %v6770, %v6746
    %v7083 = vpack.c.b16 %v6771, %v6747
    %v7084 = vpack.c.b16 %v6796, %v6772
    %v7085 = vpack.c.b16 %v6797, %v6773
    %v7086 = vpack.c.b16 %v6798, %v6774
    %v7087 = vpack.c.b16 %v6799, %v6775
    %v7088 = vpack.c.b16 %v6800, %v6776
    %v7089 = vpack.c.b16 %v6801, %v6777
    %v7090 = vpack.c.b16 %v6802, %v6778
    %v7091 = vpack.c.b16 %v6803, %v6779
    %v7092 = vpack.c.b16 %v6804, %v6780
    %v7093 = vpack.c.b16 %v6805, %v6781
    %v7094 = vpack.c.b16 %v6806, %v6782
    %v7095 = vpack.c.b16 %v6807, %v6783
    %v7096 = vpack.c.b16 %v6808, %v6784
    %v7097 = vpack.c.b16 %v6809, %v6785
    %v7098 = vpack.c.b16 %v6810, %v6786
    %v7099 = vpack.c.b16 %v6811, %v6787
    %v7100 = vpack.c.b16 %v6812, %v6788
    %v7101 = vpack.c.b16 %v6813, %v6789
    %v7102 = vpack.c.b16 %v6814, %v6790
    %v7103 = vpack.c.b16 %v6815, %v6791
    %v7104 = vpack.c.b16 %v6816, %v6792
    %v7105 = vpack.c.b16 %v6817, %v6793
    %v7106 = vpack.c.b16 %v6818, %v6794
    %v7107 = vpack.c.b16 %v6819, %v6795
    %v7108 = vpack.c.b16 %v6844, %v6820
    %v7109 = vpack.c.b16 %v6845, %v6821
    %v7110 = vpack.c.b16 %v6846, %v6822
    %v7111 = vpack.c.b16 %v6847, %v6823
    %v7112 = vpack.c.b16 %v6848, %v6824
    %v7113 = vpack.c.b16 %v6849, %v6825
    %v7114 = vpack.c.b16 %v6850, %v6826
    %v7115 = vpack.c.b16 %v6851, %v6827
    %v7116 = vpack.c.b16 %v6852, %v6828
    %v7117 = vpack.c.b16 %v6853, %v6829
    %v7118 = vpack.c.b16 %v6854, %v6830
    %v7119 = vpack.c.b16 %v6855, %v6831
    %v7120 = vpack.c.b16 %v6856, %v6832
    %v7121 = vpack.c.b16 %v6857, %v6833
    %v7122 = vpack.c.b16 %v6858, %v6834
    %v7123 = vpack.c.b16 %v6859, %v6835
    %v7124 = vpack.c.b16 %v6860, %v6836
    %v7125 = vpack.c.b16 %v6861, %v6837
    %v7126 = vpack.c.b16 %v6862, %v6838
    %v7127 = vpack.c.b16 %v6863, %v6839
    %v7128 = vpack.c.b16 %v6864, %v6840
    %v7129 = vpack.c.b16 %v6865, %v6841
    %v7130 = vpack.c.b16 %v6866, %v6842
    %v7131 = vpack.c.b16 %v6867, %v6843
    %v7132 = vpack.c.b16 %v6892, %v6868
    %v7133 = vpack.c.b16 %v6893, %v6869
    %v7134 = vpack.c.b16 %v6894, %v6870
    %v7135 = vpack.c.b16 %v6895, %v6871
    %v7136 = vpack.c.b16 %v6896, %v6872
    %v7137 = vpack.c.b16 %v6897, %v6873
    %v7138 = vpack.c.b16 %v6898, %v6874
    %v7139 = vpack.c.b16 %v6899, %v6875
    %v7140 = vpack.c.b16 %v6900, %v6876
    %v7141 = vpack.c.b16 %v6901, %v6877
    %v7142 = vpack.c.b16 %v6902, %v6878
    %v7143 = vpack.c.b16 %v6903, %v6879
    %v7144 = vpack.c.b16 %v6904, %v6880
    %v7145 = vpack.c.b16 %v6905, %v6881
    %v7146 = vpack.c.b16 %v6906, %v6882
    %v7147 = vpack.c.b16 %v6907, %v6883
    %v7148 = vpack.c.b16 %v6908, %v6884
    %v7149 = vpack.c.b16 %v6909, %v6885
    %v7150 = vpack.c.b16 %v6910, %v6886
    %v7151 = vpack.c.b16 %v6911, %v6887
    %v7152 = vpack.c.b16 %v6912, %v6888
    %v7153 = vpack.c.b16 %v6913, %v6889
    %v7154 = vpack.c.b16 %v6914, %v6890
    %v7155 = vpack.c.b16 %v6915, %v6891
    %v7399 = vperm.slane %v6193, 0
    %v7400 = vperm.slane %v6193, 1
    %v7401 = vperm.slane %v6193, 2
    %v7402 = vperm.slane %v6193, 3
    %v7403 = vperm.slane %v6193, 4
    %v7404 = vperm.slane %v6193, 5
    %v7405 = vperm.slane %v6193, 6
    %v7406 = vperm.slane %v6193, 7
    %v7407 = vperm.slane %v6194, 0
    %v7408 = vperm.slane %v6194, 1
    %v7409 = vperm.slane %v6194, 2
    %v7410 = vperm.slane %v6194, 3
    %v7411 = vperm.slane %v6194, 4
    %v7412 = vperm.slane %v6194, 5
    %v7413 = vperm.slane %v6194, 6
    %v7414 = vperm.slane %v6194, 7
    %v7415 = vperm.slane %v6195, 0
    %v7416 = vperm.slane %v6195, 1
    %v7417 = vperm.slane %v6195, 2
    %v7418 = vperm.slane %v6195, 3
    %v7419 = vperm.slane %v6195, 4
    %v7420 = vperm.slane %v6195, 5
    %v7421 = vperm.slane %v6195, 6
    %v7422 = vperm.slane %v6195, 7
    %v7448 = vsel %vm2499, %v5952, 0
    %7450 = vmatpush.bf16.msra.mxu0 %v7084
    %7451 = vmatpush.bf16.msra.mxu0 %v7060
    %7452 = vmatpush.bf16.msra.mxu0 %v7036
    %7453 = vmatpush.bf16.msra.mxu0 %v7012
    %7454 = vmatpush.bf16.msra.mxu0 %v6988
    %7455 = vmatpush.bf16.msra.mxu0 %v6964
    %7456 = vmatpush.bf16.msra.mxu0 %v6940
    %7457 = vmatpush.bf16.msra.mxu0 %v6916
    %7458 = vmatmul.bf16.gmra.mxu0 %v5951
    %v7459 = vpop.f32.mrf.mxu0
    %v7460 = vadd.f32 %v7399, %v7459
    %v7461 = vpop.f32.mrf.mxu0
    %7462 = vdwg.mxu0
    %7463 = vmatpush.bf16.msra.mxu0 0
    %7464 = vmatpush.bf16.msra.mxu0 0
    %7465 = vmatpush.bf16.msra.mxu0 0
    %7466 = vmatpush.bf16.msra.mxu0 0
    %7467 = vmatpush.bf16.msra.mxu0 0
    %7468 = vmatpush.bf16.msra.mxu0 0
    %7469 = vmatpush.bf16.msra.mxu0 %v7132
    %7470 = vmatpush.bf16.msra.mxu0 %v7108
    %7471 = vmatmul.bf16.gmra.mxu0 %v7448
    %v7472 = vpop.f32.mrf.mxu0
    %v7473 = vadd.f32 %v7460, %v7472
    %v7474 = vpop.f32.mrf.mxu0
    %7475 = vdwg.mxu0
    %7476 = vmatpush.bf16.msra.mxu0 %v7085
    %7477 = vmatpush.bf16.msra.mxu0 %v7061
    %7478 = vmatpush.bf16.msra.mxu0 %v7037
    %7479 = vmatpush.bf16.msra.mxu0 %v7013
    %7480 = vmatpush.bf16.msra.mxu0 %v6989
    %7481 = vmatpush.bf16.msra.mxu0 %v6965
    %7482 = vmatpush.bf16.msra.mxu0 %v6941
    %7483 = vmatpush.bf16.msra.mxu0 %v6917
    %7484 = vmatmul.bf16.gmra.mxu0 %v5951
    %v7485 = vpop.f32.mrf.mxu0
    %v7486 = vadd.f32 %v7400, %v7485
    %v7487 = vpop.f32.mrf.mxu0
    %7488 = vdwg.mxu0
    %7489 = vmatpush.bf16.msra.mxu0 0
    %7490 = vmatpush.bf16.msra.mxu0 0
    %7491 = vmatpush.bf16.msra.mxu0 0
    %7492 = vmatpush.bf16.msra.mxu0 0
    %7493 = vmatpush.bf16.msra.mxu0 0
    %7494 = vmatpush.bf16.msra.mxu0 0
    %7495 = vmatpush.bf16.msra.mxu0 %v7133
    %7496 = vmatpush.bf16.msra.mxu0 %v7109
    %7497 = vmatmul.bf16.gmra.mxu0 %v7448
    %v7498 = vpop.f32.mrf.mxu0
    %v7499 = vadd.f32 %v7486, %v7498
    %v7500 = vpop.f32.mrf.mxu0
    %7501 = vdwg.mxu0
    %7502 = vmatpush.bf16.msra.mxu0 %v7086
    %7503 = vmatpush.bf16.msra.mxu0 %v7062
    %7504 = vmatpush.bf16.msra.mxu0 %v7038
    %7505 = vmatpush.bf16.msra.mxu0 %v7014
    %7506 = vmatpush.bf16.msra.mxu0 %v6990
    %7507 = vmatpush.bf16.msra.mxu0 %v6966
    %7508 = vmatpush.bf16.msra.mxu0 %v6942
    %7509 = vmatpush.bf16.msra.mxu0 %v6918
    %7510 = vmatmul.bf16.gmra.mxu0 %v5951
    %v7511 = vpop.f32.mrf.mxu0
    %v7512 = vadd.f32 %v7401, %v7511
    %v7513 = vpop.f32.mrf.mxu0
    %7514 = vdwg.mxu0
    %7515 = vmatpush.bf16.msra.mxu0 0
    %7516 = vmatpush.bf16.msra.mxu0 0
    %7517 = vmatpush.bf16.msra.mxu0 0
    %7518 = vmatpush.bf16.msra.mxu0 0
    %7519 = vmatpush.bf16.msra.mxu0 0
    %7520 = vmatpush.bf16.msra.mxu0 0
    %7521 = vmatpush.bf16.msra.mxu0 %v7134
    %7522 = vmatpush.bf16.msra.mxu0 %v7110
    %7523 = vmatmul.bf16.gmra.mxu0 %v7448
    %v7524 = vpop.f32.mrf.mxu0
    %v7525 = vadd.f32 %v7512, %v7524
    %v7526 = vpop.f32.mrf.mxu0
    %7527 = vdwg.mxu0
    %7528 = vmatpush.bf16.msra.mxu0 %v7087
    %7529 = vmatpush.bf16.msra.mxu0 %v7063
    %7530 = vmatpush.bf16.msra.mxu0 %v7039
    %7531 = vmatpush.bf16.msra.mxu0 %v7015
    %7532 = vmatpush.bf16.msra.mxu0 %v6991
    %7533 = vmatpush.bf16.msra.mxu0 %v6967
    %7534 = vmatpush.bf16.msra.mxu0 %v6943
    %7535 = vmatpush.bf16.msra.mxu0 %v6919
    %7536 = vmatmul.bf16.gmra.mxu0 %v5951
    %v7537 = vpop.f32.mrf.mxu0
    %v7538 = vadd.f32 %v7402, %v7537
    %v7539 = vpop.f32.mrf.mxu0
    %7540 = vdwg.mxu0
    %7541 = vmatpush.bf16.msra.mxu0 0
    %7542 = vmatpush.bf16.msra.mxu0 0
    %7543 = vmatpush.bf16.msra.mxu0 0
    %7544 = vmatpush.bf16.msra.mxu0 0
    %7545 = vmatpush.bf16.msra.mxu0 0
    %7546 = vmatpush.bf16.msra.mxu0 0
    %7547 = vmatpush.bf16.msra.mxu0 %v7135
    %7548 = vmatpush.bf16.msra.mxu0 %v7111
    %7549 = vmatmul.bf16.gmra.mxu0 %v7448
    %v7550 = vpop.f32.mrf.mxu0
    %v7551 = vadd.f32 %v7538, %v7550
    %v7552 = vpop.f32.mrf.mxu0
    %7553 = vdwg.mxu0
    %7554 = vmatpush.bf16.msra.mxu0 %v7088
    %7555 = vmatpush.bf16.msra.mxu0 %v7064
    %7556 = vmatpush.bf16.msra.mxu0 %v7040
    %7557 = vmatpush.bf16.msra.mxu0 %v7016
    %7558 = vmatpush.bf16.msra.mxu0 %v6992
    %7559 = vmatpush.bf16.msra.mxu0 %v6968
    %7560 = vmatpush.bf16.msra.mxu0 %v6944
    %7561 = vmatpush.bf16.msra.mxu0 %v6920
    %7562 = vmatmul.bf16.gmra.mxu0 %v5951
    %v7563 = vpop.f32.mrf.mxu0
    %v7564 = vadd.f32 %v7403, %v7563
    %v7565 = vpop.f32.mrf.mxu0
    %7566 = vdwg.mxu0
    %7567 = vmatpush.bf16.msra.mxu0 0
    %7568 = vmatpush.bf16.msra.mxu0 0
    %7569 = vmatpush.bf16.msra.mxu0 0
    %7570 = vmatpush.bf16.msra.mxu0 0
    %7571 = vmatpush.bf16.msra.mxu0 0
    %7572 = vmatpush.bf16.msra.mxu0 0
    %7573 = vmatpush.bf16.msra.mxu0 %v7136
    %7574 = vmatpush.bf16.msra.mxu0 %v7112
    %7575 = vmatmul.bf16.gmra.mxu0 %v7448
    %v7576 = vpop.f32.mrf.mxu0
    %v7577 = vadd.f32 %v7564, %v7576
    %v7578 = vpop.f32.mrf.mxu0
    %7579 = vdwg.mxu0
    %7580 = vmatpush.bf16.msra.mxu0 %v7089
    %7581 = vmatpush.bf16.msra.mxu0 %v7065
    %7582 = vmatpush.bf16.msra.mxu0 %v7041
    %7583 = vmatpush.bf16.msra.mxu0 %v7017
    %7584 = vmatpush.bf16.msra.mxu0 %v6993
    %7585 = vmatpush.bf16.msra.mxu0 %v6969
    %7586 = vmatpush.bf16.msra.mxu0 %v6945
    %7587 = vmatpush.bf16.msra.mxu0 %v6921
    %7588 = vmatmul.bf16.gmra.mxu0 %v5951
    %v7589 = vpop.f32.mrf.mxu0
    %v7590 = vadd.f32 %v7404, %v7589
    %v7591 = vpop.f32.mrf.mxu0
    %7592 = vdwg.mxu0
    %7593 = vmatpush.bf16.msra.mxu0 0
    %7594 = vmatpush.bf16.msra.mxu0 0
    %7595 = vmatpush.bf16.msra.mxu0 0
    %7596 = vmatpush.bf16.msra.mxu0 0
    %7597 = vmatpush.bf16.msra.mxu0 0
    %7598 = vmatpush.bf16.msra.mxu0 0
    %7599 = vmatpush.bf16.msra.mxu0 %v7137
    %7600 = vmatpush.bf16.msra.mxu0 %v7113
    %7601 = vmatmul.bf16.gmra.mxu0 %v7448
    %v7602 = vpop.f32.mrf.mxu0
    %v7603 = vadd.f32 %v7590, %v7602
    %v7604 = vpop.f32.mrf.mxu0
    %7605 = vdwg.mxu0
    %7606 = vmatpush.bf16.msra.mxu0 %v7090
    %7607 = vmatpush.bf16.msra.mxu0 %v7066
    %7608 = vmatpush.bf16.msra.mxu0 %v7042
    %7609 = vmatpush.bf16.msra.mxu0 %v7018
    %7610 = vmatpush.bf16.msra.mxu0 %v6994
    %7611 = vmatpush.bf16.msra.mxu0 %v6970
    %7612 = vmatpush.bf16.msra.mxu0 %v6946
    %7613 = vmatpush.bf16.msra.mxu0 %v6922
    %7614 = vmatmul.bf16.gmra.mxu0 %v5951
    %v7615 = vpop.f32.mrf.mxu0
    %v7616 = vadd.f32 %v7405, %v7615
    %v7617 = vpop.f32.mrf.mxu0
    %7618 = vdwg.mxu0
    %7619 = vmatpush.bf16.msra.mxu0 0
    %7620 = vmatpush.bf16.msra.mxu0 0
    %7621 = vmatpush.bf16.msra.mxu0 0
    %7622 = vmatpush.bf16.msra.mxu0 0
    %7623 = vmatpush.bf16.msra.mxu0 0
    %7624 = vmatpush.bf16.msra.mxu0 0
    %7625 = vmatpush.bf16.msra.mxu0 %v7138
    %7626 = vmatpush.bf16.msra.mxu0 %v7114
    %7627 = vmatmul.bf16.gmra.mxu0 %v7448
    %v7628 = vpop.f32.mrf.mxu0
    %v7629 = vadd.f32 %v7616, %v7628
    %v7630 = vpop.f32.mrf.mxu0
    %7631 = vdwg.mxu0
    %7632 = vmatpush.bf16.msra.mxu0 %v7091
    %7633 = vmatpush.bf16.msra.mxu0 %v7067
    %7634 = vmatpush.bf16.msra.mxu0 %v7043
    %7635 = vmatpush.bf16.msra.mxu0 %v7019
    %7636 = vmatpush.bf16.msra.mxu0 %v6995
    %7637 = vmatpush.bf16.msra.mxu0 %v6971
    %7638 = vmatpush.bf16.msra.mxu0 %v6947
    %7639 = vmatpush.bf16.msra.mxu0 %v6923
    %7640 = vmatmul.bf16.gmra.mxu0 %v5951
    %v7641 = vpop.f32.mrf.mxu0
    %v7642 = vadd.f32 %v7406, %v7641
    %v7643 = vpop.f32.mrf.mxu0
    %7644 = vdwg.mxu0
    %7645 = vmatpush.bf16.msra.mxu0 0
    %7646 = vmatpush.bf16.msra.mxu0 0
    %7647 = vmatpush.bf16.msra.mxu0 0
    %7648 = vmatpush.bf16.msra.mxu0 0
    %7649 = vmatpush.bf16.msra.mxu0 0
    %7650 = vmatpush.bf16.msra.mxu0 0
    %7651 = vmatpush.bf16.msra.mxu0 %v7139
    %7652 = vmatpush.bf16.msra.mxu0 %v7115
    %7653 = vmatmul.bf16.gmra.mxu0 %v7448
    %v7654 = vpop.f32.mrf.mxu0
    %v7655 = vadd.f32 %v7642, %v7654
    %v7656 = vpop.f32.mrf.mxu0
    %7657 = vdwg.mxu0
    %7658 = vmatpush.bf16.msra.mxu0 %v7092
    %7659 = vmatpush.bf16.msra.mxu0 %v7068
    %7660 = vmatpush.bf16.msra.mxu0 %v7044
    %7661 = vmatpush.bf16.msra.mxu0 %v7020
    %7662 = vmatpush.bf16.msra.mxu0 %v6996
    %7663 = vmatpush.bf16.msra.mxu0 %v6972
    %7664 = vmatpush.bf16.msra.mxu0 %v6948
    %7665 = vmatpush.bf16.msra.mxu0 %v6924
    %7666 = vmatmul.bf16.gmra.mxu0 %v5951
    %v7667 = vpop.f32.mrf.mxu0
    %v7668 = vadd.f32 %v7407, %v7667
    %v7669 = vpop.f32.mrf.mxu0
    %7670 = vdwg.mxu0
    %7671 = vmatpush.bf16.msra.mxu0 0
    %7672 = vmatpush.bf16.msra.mxu0 0
    %7673 = vmatpush.bf16.msra.mxu0 0
    %7674 = vmatpush.bf16.msra.mxu0 0
    %7675 = vmatpush.bf16.msra.mxu0 0
    %7676 = vmatpush.bf16.msra.mxu0 0
    %7677 = vmatpush.bf16.msra.mxu0 %v7140
    %7678 = vmatpush.bf16.msra.mxu0 %v7116
    %7679 = vmatmul.bf16.gmra.mxu0 %v7448
    %v7680 = vpop.f32.mrf.mxu0
    %v7681 = vadd.f32 %v7668, %v7680
    %v7682 = vpop.f32.mrf.mxu0
    %7683 = vdwg.mxu0
    %7684 = vmatpush.bf16.msra.mxu0 %v7093
    %7685 = vmatpush.bf16.msra.mxu0 %v7069
    %7686 = vmatpush.bf16.msra.mxu0 %v7045
    %7687 = vmatpush.bf16.msra.mxu0 %v7021
    %7688 = vmatpush.bf16.msra.mxu0 %v6997
    %7689 = vmatpush.bf16.msra.mxu0 %v6973
    %7690 = vmatpush.bf16.msra.mxu0 %v6949
    %7691 = vmatpush.bf16.msra.mxu0 %v6925
    %7692 = vmatmul.bf16.gmra.mxu0 %v5951
    %v7693 = vpop.f32.mrf.mxu0
    %v7694 = vadd.f32 %v7408, %v7693
    %v7695 = vpop.f32.mrf.mxu0
    %7696 = vdwg.mxu0
    %7697 = vmatpush.bf16.msra.mxu0 0
    %7698 = vmatpush.bf16.msra.mxu0 0
    %7699 = vmatpush.bf16.msra.mxu0 0
    %7700 = vmatpush.bf16.msra.mxu0 0
    %7701 = vmatpush.bf16.msra.mxu0 0
    %7702 = vmatpush.bf16.msra.mxu0 0
    %7703 = vmatpush.bf16.msra.mxu0 %v7141
    %7704 = vmatpush.bf16.msra.mxu0 %v7117
    %7705 = vmatmul.bf16.gmra.mxu0 %v7448
    %v7706 = vpop.f32.mrf.mxu0
    %v7707 = vadd.f32 %v7694, %v7706
    %v7708 = vpop.f32.mrf.mxu0
    %7709 = vdwg.mxu0
    %7710 = vmatpush.bf16.msra.mxu0 %v7094
    %7711 = vmatpush.bf16.msra.mxu0 %v7070
    %7712 = vmatpush.bf16.msra.mxu0 %v7046
    %7713 = vmatpush.bf16.msra.mxu0 %v7022
    %7714 = vmatpush.bf16.msra.mxu0 %v6998
    %7715 = vmatpush.bf16.msra.mxu0 %v6974
    %7716 = vmatpush.bf16.msra.mxu0 %v6950
    %7717 = vmatpush.bf16.msra.mxu0 %v6926
    %7718 = vmatmul.bf16.gmra.mxu0 %v5951
    %v7719 = vpop.f32.mrf.mxu0
    %v7720 = vadd.f32 %v7409, %v7719
    %v7721 = vpop.f32.mrf.mxu0
    %7722 = vdwg.mxu0
    %7723 = vmatpush.bf16.msra.mxu0 0
    %7724 = vmatpush.bf16.msra.mxu0 0
    %7725 = vmatpush.bf16.msra.mxu0 0
    %7726 = vmatpush.bf16.msra.mxu0 0
    %7727 = vmatpush.bf16.msra.mxu0 0
    %7728 = vmatpush.bf16.msra.mxu0 0
    %7729 = vmatpush.bf16.msra.mxu0 %v7142
    %7730 = vmatpush.bf16.msra.mxu0 %v7118
    %7731 = vmatmul.bf16.gmra.mxu0 %v7448
    %v7732 = vpop.f32.mrf.mxu0
    %v7733 = vadd.f32 %v7720, %v7732
    %v7734 = vpop.f32.mrf.mxu0
    %7735 = vdwg.mxu0
    %7736 = vmatpush.bf16.msra.mxu0 %v7095
    %7737 = vmatpush.bf16.msra.mxu0 %v7071
    %7738 = vmatpush.bf16.msra.mxu0 %v7047
    %7739 = vmatpush.bf16.msra.mxu0 %v7023
    %7740 = vmatpush.bf16.msra.mxu0 %v6999
    %7741 = vmatpush.bf16.msra.mxu0 %v6975
    %7742 = vmatpush.bf16.msra.mxu0 %v6951
    %7743 = vmatpush.bf16.msra.mxu0 %v6927
    %7744 = vmatmul.bf16.gmra.mxu0 %v5951
    %v7745 = vpop.f32.mrf.mxu0
    %v7746 = vadd.f32 %v7410, %v7745
    %v7747 = vpop.f32.mrf.mxu0
    %7748 = vdwg.mxu0
    %7749 = vmatpush.bf16.msra.mxu0 0
    %7750 = vmatpush.bf16.msra.mxu0 0
    %7751 = vmatpush.bf16.msra.mxu0 0
    %7752 = vmatpush.bf16.msra.mxu0 0
    %7753 = vmatpush.bf16.msra.mxu0 0
    %7754 = vmatpush.bf16.msra.mxu0 0
    %7755 = vmatpush.bf16.msra.mxu0 %v7143
    %7756 = vmatpush.bf16.msra.mxu0 %v7119
    %7757 = vmatmul.bf16.gmra.mxu0 %v7448
    %v7758 = vpop.f32.mrf.mxu0
    %v7759 = vadd.f32 %v7746, %v7758
    %v7760 = vpop.f32.mrf.mxu0
    %7761 = vdwg.mxu0
    %7762 = vmatpush.bf16.msra.mxu0 %v7096
    %7763 = vmatpush.bf16.msra.mxu0 %v7072
    %7764 = vmatpush.bf16.msra.mxu0 %v7048
    %7765 = vmatpush.bf16.msra.mxu0 %v7024
    %7766 = vmatpush.bf16.msra.mxu0 %v7000
    %7767 = vmatpush.bf16.msra.mxu0 %v6976
    %7768 = vmatpush.bf16.msra.mxu0 %v6952
    %7769 = vmatpush.bf16.msra.mxu0 %v6928
    %7770 = vmatmul.bf16.gmra.mxu0 %v5951
    %v7771 = vpop.f32.mrf.mxu0
    %v7772 = vadd.f32 %v7411, %v7771
    %v7773 = vpop.f32.mrf.mxu0
    %7774 = vdwg.mxu0
    %7775 = vmatpush.bf16.msra.mxu0 0
    %7776 = vmatpush.bf16.msra.mxu0 0
    %7777 = vmatpush.bf16.msra.mxu0 0
    %7778 = vmatpush.bf16.msra.mxu0 0
    %7779 = vmatpush.bf16.msra.mxu0 0
    %7780 = vmatpush.bf16.msra.mxu0 0
    %7781 = vmatpush.bf16.msra.mxu0 %v7144
    %7782 = vmatpush.bf16.msra.mxu0 %v7120
    %7783 = vmatmul.bf16.gmra.mxu0 %v7448
    %v7784 = vpop.f32.mrf.mxu0
    %v7785 = vadd.f32 %v7772, %v7784
    %v7786 = vpop.f32.mrf.mxu0
    %7787 = vdwg.mxu0
    %7788 = vmatpush.bf16.msra.mxu0 %v7097
    %7789 = vmatpush.bf16.msra.mxu0 %v7073
    %7790 = vmatpush.bf16.msra.mxu0 %v7049
    %7791 = vmatpush.bf16.msra.mxu0 %v7025
    %7792 = vmatpush.bf16.msra.mxu0 %v7001
    %7793 = vmatpush.bf16.msra.mxu0 %v6977
    %7794 = vmatpush.bf16.msra.mxu0 %v6953
    %7795 = vmatpush.bf16.msra.mxu0 %v6929
    %7796 = vmatmul.bf16.gmra.mxu0 %v5951
    %v7797 = vpop.f32.mrf.mxu0
    %v7798 = vadd.f32 %v7412, %v7797
    %v7799 = vpop.f32.mrf.mxu0
    %7800 = vdwg.mxu0
    %7801 = vmatpush.bf16.msra.mxu0 0
    %7802 = vmatpush.bf16.msra.mxu0 0
    %7803 = vmatpush.bf16.msra.mxu0 0
    %7804 = vmatpush.bf16.msra.mxu0 0
    %7805 = vmatpush.bf16.msra.mxu0 0
    %7806 = vmatpush.bf16.msra.mxu0 0
    %7807 = vmatpush.bf16.msra.mxu0 %v7145
    %7808 = vmatpush.bf16.msra.mxu0 %v7121
    %7809 = vmatmul.bf16.gmra.mxu0 %v7448
    %v7810 = vpop.f32.mrf.mxu0
    %v7811 = vadd.f32 %v7798, %v7810
    %v7812 = vpop.f32.mrf.mxu0
    %7813 = vdwg.mxu0
    %7814 = vmatpush.bf16.msra.mxu0 %v7098
    %7815 = vmatpush.bf16.msra.mxu0 %v7074
    %7816 = vmatpush.bf16.msra.mxu0 %v7050
    %7817 = vmatpush.bf16.msra.mxu0 %v7026
    %7818 = vmatpush.bf16.msra.mxu0 %v7002
    %7819 = vmatpush.bf16.msra.mxu0 %v6978
    %7820 = vmatpush.bf16.msra.mxu0 %v6954
    %7821 = vmatpush.bf16.msra.mxu0 %v6930
    %7822 = vmatmul.bf16.gmra.mxu0 %v5951
    %v7823 = vpop.f32.mrf.mxu0
    %v7824 = vadd.f32 %v7413, %v7823
    %v7825 = vpop.f32.mrf.mxu0
    %7826 = vdwg.mxu0
    %7827 = vmatpush.bf16.msra.mxu0 0
    %7828 = vmatpush.bf16.msra.mxu0 0
    %7829 = vmatpush.bf16.msra.mxu0 0
    %7830 = vmatpush.bf16.msra.mxu0 0
    %7831 = vmatpush.bf16.msra.mxu0 0
    %7832 = vmatpush.bf16.msra.mxu0 0
    %7833 = vmatpush.bf16.msra.mxu0 %v7146
    %7834 = vmatpush.bf16.msra.mxu0 %v7122
    %7835 = vmatmul.bf16.gmra.mxu0 %v7448
    %v7836 = vpop.f32.mrf.mxu0
    %v7837 = vadd.f32 %v7824, %v7836
    %v7838 = vpop.f32.mrf.mxu0
    %7839 = vdwg.mxu0
    %7840 = vmatpush.bf16.msra.mxu0 %v7099
    %7841 = vmatpush.bf16.msra.mxu0 %v7075
    %7842 = vmatpush.bf16.msra.mxu0 %v7051
    %7843 = vmatpush.bf16.msra.mxu0 %v7027
    %7844 = vmatpush.bf16.msra.mxu0 %v7003
    %7845 = vmatpush.bf16.msra.mxu0 %v6979
    %7846 = vmatpush.bf16.msra.mxu0 %v6955
    %7847 = vmatpush.bf16.msra.mxu0 %v6931
    %7848 = vmatmul.bf16.gmra.mxu0 %v5951
    %v7849 = vpop.f32.mrf.mxu0
    %v7850 = vadd.f32 %v7414, %v7849
    %v7851 = vpop.f32.mrf.mxu0
    %7852 = vdwg.mxu0
    %7853 = vmatpush.bf16.msra.mxu0 0
    %7854 = vmatpush.bf16.msra.mxu0 0
    %7855 = vmatpush.bf16.msra.mxu0 0
    %7856 = vmatpush.bf16.msra.mxu0 0
    %7857 = vmatpush.bf16.msra.mxu0 0
    %7858 = vmatpush.bf16.msra.mxu0 0
    %7859 = vmatpush.bf16.msra.mxu0 %v7147
    %7860 = vmatpush.bf16.msra.mxu0 %v7123
    %7861 = vmatmul.bf16.gmra.mxu0 %v7448
    %v7862 = vpop.f32.mrf.mxu0
    %v7863 = vadd.f32 %v7850, %v7862
    %v7864 = vpop.f32.mrf.mxu0
    %7865 = vdwg.mxu0
    %7866 = vmatpush.bf16.msra.mxu0 %v7100
    %7867 = vmatpush.bf16.msra.mxu0 %v7076
    %7868 = vmatpush.bf16.msra.mxu0 %v7052
    %7869 = vmatpush.bf16.msra.mxu0 %v7028
    %7870 = vmatpush.bf16.msra.mxu0 %v7004
    %7871 = vmatpush.bf16.msra.mxu0 %v6980
    %7872 = vmatpush.bf16.msra.mxu0 %v6956
    %7873 = vmatpush.bf16.msra.mxu0 %v6932
    %7874 = vmatmul.bf16.gmra.mxu0 %v5951
    %v7875 = vpop.f32.mrf.mxu0
    %v7876 = vadd.f32 %v7415, %v7875
    %v7877 = vpop.f32.mrf.mxu0
    %7878 = vdwg.mxu0
    %7879 = vmatpush.bf16.msra.mxu0 0
    %7880 = vmatpush.bf16.msra.mxu0 0
    %7881 = vmatpush.bf16.msra.mxu0 0
    %7882 = vmatpush.bf16.msra.mxu0 0
    %7883 = vmatpush.bf16.msra.mxu0 0
    %7884 = vmatpush.bf16.msra.mxu0 0
    %7885 = vmatpush.bf16.msra.mxu0 %v7148
    %7886 = vmatpush.bf16.msra.mxu0 %v7124
    %7887 = vmatmul.bf16.gmra.mxu0 %v7448
    %v7888 = vpop.f32.mrf.mxu0
    %v7889 = vadd.f32 %v7876, %v7888
    %v7890 = vpop.f32.mrf.mxu0
    %7891 = vdwg.mxu0
    %7892 = vmatpush.bf16.msra.mxu0 %v7101
    %7893 = vmatpush.bf16.msra.mxu0 %v7077
    %7894 = vmatpush.bf16.msra.mxu0 %v7053
    %7895 = vmatpush.bf16.msra.mxu0 %v7029
    %7896 = vmatpush.bf16.msra.mxu0 %v7005
    %7897 = vmatpush.bf16.msra.mxu0 %v6981
    %7898 = vmatpush.bf16.msra.mxu0 %v6957
    %7899 = vmatpush.bf16.msra.mxu0 %v6933
    %7900 = vmatmul.bf16.gmra.mxu0 %v5951
    %v7901 = vpop.f32.mrf.mxu0
    %v7902 = vadd.f32 %v7416, %v7901
    %v7903 = vpop.f32.mrf.mxu0
    %7904 = vdwg.mxu0
    %7905 = vmatpush.bf16.msra.mxu0 0
    %7906 = vmatpush.bf16.msra.mxu0 0
    %7907 = vmatpush.bf16.msra.mxu0 0
    %7908 = vmatpush.bf16.msra.mxu0 0
    %7909 = vmatpush.bf16.msra.mxu0 0
    %7910 = vmatpush.bf16.msra.mxu0 0
    %7911 = vmatpush.bf16.msra.mxu0 %v7149
    %7912 = vmatpush.bf16.msra.mxu0 %v7125
    %7913 = vmatmul.bf16.gmra.mxu0 %v7448
    %v7914 = vpop.f32.mrf.mxu0
    %v7915 = vadd.f32 %v7902, %v7914
    %v7916 = vpop.f32.mrf.mxu0
    %7917 = vdwg.mxu0
    %7918 = vmatpush.bf16.msra.mxu0 %v7102
    %7919 = vmatpush.bf16.msra.mxu0 %v7078
    %7920 = vmatpush.bf16.msra.mxu0 %v7054
    %7921 = vmatpush.bf16.msra.mxu0 %v7030
    %7922 = vmatpush.bf16.msra.mxu0 %v7006
    %7923 = vmatpush.bf16.msra.mxu0 %v6982
    %7924 = vmatpush.bf16.msra.mxu0 %v6958
    %7925 = vmatpush.bf16.msra.mxu0 %v6934
    %7926 = vmatmul.bf16.gmra.mxu0 %v5951
    %v7927 = vpop.f32.mrf.mxu0
    %v7928 = vadd.f32 %v7417, %v7927
    %v7929 = vpop.f32.mrf.mxu0
    %7930 = vdwg.mxu0
    %7931 = vmatpush.bf16.msra.mxu0 0
    %7932 = vmatpush.bf16.msra.mxu0 0
    %7933 = vmatpush.bf16.msra.mxu0 0
    %7934 = vmatpush.bf16.msra.mxu0 0
    %7935 = vmatpush.bf16.msra.mxu0 0
    %7936 = vmatpush.bf16.msra.mxu0 0
    %7937 = vmatpush.bf16.msra.mxu0 %v7150
    %7938 = vmatpush.bf16.msra.mxu0 %v7126
    %7939 = vmatmul.bf16.gmra.mxu0 %v7448
    %v7940 = vpop.f32.mrf.mxu0
    %v7941 = vadd.f32 %v7928, %v7940
    %v7942 = vpop.f32.mrf.mxu0
    %7943 = vdwg.mxu0
    %7944 = vmatpush.bf16.msra.mxu0 %v7103
    %7945 = vmatpush.bf16.msra.mxu0 %v7079
    %7946 = vmatpush.bf16.msra.mxu0 %v7055
    %7947 = vmatpush.bf16.msra.mxu0 %v7031
    %7948 = vmatpush.bf16.msra.mxu0 %v7007
    %7949 = vmatpush.bf16.msra.mxu0 %v6983
    %7950 = vmatpush.bf16.msra.mxu0 %v6959
    %7951 = vmatpush.bf16.msra.mxu0 %v6935
    %7952 = vmatmul.bf16.gmra.mxu0 %v5951
    %v7953 = vpop.f32.mrf.mxu0
    %v7954 = vadd.f32 %v7418, %v7953
    %v7955 = vpop.f32.mrf.mxu0
    %7956 = vdwg.mxu0
    %7957 = vmatpush.bf16.msra.mxu0 0
    %7958 = vmatpush.bf16.msra.mxu0 0
    %7959 = vmatpush.bf16.msra.mxu0 0
    %7960 = vmatpush.bf16.msra.mxu0 0
    %7961 = vmatpush.bf16.msra.mxu0 0
    %7962 = vmatpush.bf16.msra.mxu0 0
    %7963 = vmatpush.bf16.msra.mxu0 %v7151
    %7964 = vmatpush.bf16.msra.mxu0 %v7127
    %7965 = vmatmul.bf16.gmra.mxu0 %v7448
    %v7966 = vpop.f32.mrf.mxu0
    %v7967 = vadd.f32 %v7954, %v7966
    %v7968 = vpop.f32.mrf.mxu0
    %7969 = vdwg.mxu0
    %7970 = vmatpush.bf16.msra.mxu0 %v7104
    %7971 = vmatpush.bf16.msra.mxu0 %v7080
    %7972 = vmatpush.bf16.msra.mxu0 %v7056
    %7973 = vmatpush.bf16.msra.mxu0 %v7032
    %7974 = vmatpush.bf16.msra.mxu0 %v7008
    %7975 = vmatpush.bf16.msra.mxu0 %v6984
    %7976 = vmatpush.bf16.msra.mxu0 %v6960
    %7977 = vmatpush.bf16.msra.mxu0 %v6936
    %7978 = vmatmul.bf16.gmra.mxu0 %v5951
    %v7979 = vpop.f32.mrf.mxu0
    %v7980 = vadd.f32 %v7419, %v7979
    %v7981 = vpop.f32.mrf.mxu0
    %7982 = vdwg.mxu0
    %7983 = vmatpush.bf16.msra.mxu0 0
    %7984 = vmatpush.bf16.msra.mxu0 0
    %7985 = vmatpush.bf16.msra.mxu0 0
    %7986 = vmatpush.bf16.msra.mxu0 0
    %7987 = vmatpush.bf16.msra.mxu0 0
    %7988 = vmatpush.bf16.msra.mxu0 0
    %7989 = vmatpush.bf16.msra.mxu0 %v7152
    %7990 = vmatpush.bf16.msra.mxu0 %v7128
    %7991 = vmatmul.bf16.gmra.mxu0 %v7448
    %v7992 = vpop.f32.mrf.mxu0
    %v7993 = vadd.f32 %v7980, %v7992
    %v7994 = vpop.f32.mrf.mxu0
    %7995 = vdwg.mxu0
    %7996 = vmatpush.bf16.msra.mxu0 %v7105
    %7997 = vmatpush.bf16.msra.mxu0 %v7081
    %7998 = vmatpush.bf16.msra.mxu0 %v7057
    %7999 = vmatpush.bf16.msra.mxu0 %v7033
    %8000 = vmatpush.bf16.msra.mxu0 %v7009
    %8001 = vmatpush.bf16.msra.mxu0 %v6985
    %8002 = vmatpush.bf16.msra.mxu0 %v6961
    %8003 = vmatpush.bf16.msra.mxu0 %v6937
    %8004 = vmatmul.bf16.gmra.mxu0 %v5951
    %v8005 = vpop.f32.mrf.mxu0
    %v8006 = vadd.f32 %v7420, %v8005
    %v8007 = vpop.f32.mrf.mxu0
    %8008 = vdwg.mxu0
    %8009 = vmatpush.bf16.msra.mxu0 0
    %8010 = vmatpush.bf16.msra.mxu0 0
    %8011 = vmatpush.bf16.msra.mxu0 0
    %8012 = vmatpush.bf16.msra.mxu0 0
    %8013 = vmatpush.bf16.msra.mxu0 0
    %8014 = vmatpush.bf16.msra.mxu0 0
    %8015 = vmatpush.bf16.msra.mxu0 %v7153
    %8016 = vmatpush.bf16.msra.mxu0 %v7129
    %8017 = vmatmul.bf16.gmra.mxu0 %v7448
    %v8018 = vpop.f32.mrf.mxu0
    %v8019 = vadd.f32 %v8006, %v8018
    %v8020 = vpop.f32.mrf.mxu0
    %8021 = vdwg.mxu0
    %8022 = vmatpush.bf16.msra.mxu0 %v7106
    %8023 = vmatpush.bf16.msra.mxu0 %v7082
    %8024 = vmatpush.bf16.msra.mxu0 %v7058
    %8025 = vmatpush.bf16.msra.mxu0 %v7034
    %8026 = vmatpush.bf16.msra.mxu0 %v7010
    %8027 = vmatpush.bf16.msra.mxu0 %v6986
    %8028 = vmatpush.bf16.msra.mxu0 %v6962
    %8029 = vmatpush.bf16.msra.mxu0 %v6938
    %8030 = vmatmul.bf16.gmra.mxu0 %v5951
    %v8031 = vpop.f32.mrf.mxu0
    %v8032 = vadd.f32 %v7421, %v8031
    %v8033 = vpop.f32.mrf.mxu0
    %8034 = vdwg.mxu0
    %8035 = vmatpush.bf16.msra.mxu0 0
    %8036 = vmatpush.bf16.msra.mxu0 0
    %8037 = vmatpush.bf16.msra.mxu0 0
    %8038 = vmatpush.bf16.msra.mxu0 0
    %8039 = vmatpush.bf16.msra.mxu0 0
    %8040 = vmatpush.bf16.msra.mxu0 0
    %8041 = vmatpush.bf16.msra.mxu0 %v7154
    %8042 = vmatpush.bf16.msra.mxu0 %v7130
    %8043 = vmatmul.bf16.gmra.mxu0 %v7448
    %v8044 = vpop.f32.mrf.mxu0
    %v8045 = vadd.f32 %v8032, %v8044
    %v8046 = vpop.f32.mrf.mxu0
    %8047 = vdwg.mxu0
    %8048 = vmatpush.bf16.msra.mxu0 %v7107
    %8049 = vmatpush.bf16.msra.mxu0 %v7083
    %8050 = vmatpush.bf16.msra.mxu0 %v7059
    %8051 = vmatpush.bf16.msra.mxu0 %v7035
    %8052 = vmatpush.bf16.msra.mxu0 %v7011
    %8053 = vmatpush.bf16.msra.mxu0 %v6987
    %8054 = vmatpush.bf16.msra.mxu0 %v6963
    %8055 = vmatpush.bf16.msra.mxu0 %v6939
    %8056 = vmatmul.bf16.gmra.mxu0 %v5951
    %v8057 = vpop.f32.mrf.mxu0
    %v8058 = vadd.f32 %v7422, %v8057
    %v8059 = vpop.f32.mrf.mxu0
    %8060 = vdwg.mxu0
    %8061 = vmatpush.bf16.msra.mxu0 0
    %8062 = vmatpush.bf16.msra.mxu0 0
    %8063 = vmatpush.bf16.msra.mxu0 0
    %8064 = vmatpush.bf16.msra.mxu0 0
    %8065 = vmatpush.bf16.msra.mxu0 0
    %8066 = vmatpush.bf16.msra.mxu0 0
    %8067 = vmatpush.bf16.msra.mxu0 %v7155
    %8068 = vmatpush.bf16.msra.mxu0 %v7131
    %8069 = vmatmul.bf16.gmra.mxu0 %v7448
    %v8070 = vpop.f32.mrf.mxu0
    %v8071 = vadd.f32 %v8058, %v8070
    %v8072 = vpop.f32.mrf.mxu0
    %8073 = vdwg.mxu0
    %v8074 = vpack.c.bf16 %v7473, %v7473
    %v8075 = vpack.c.bf16 %v7499, %v7499
    %v8076 = vpack.c.bf16 %v7525, %v7525
    %v8077 = vpack.c.bf16 %v7551, %v7551
    %v8078 = vpack.c.bf16 %v7577, %v7577
    %v8079 = vpack.c.bf16 %v7603, %v7603
    %v8080 = vpack.c.bf16 %v7629, %v7629
    %v8081 = vpack.c.bf16 %v7655, %v7655
    %v8082 = vpack.c.bf16 %v7681, %v7681
    %v8083 = vpack.c.bf16 %v7707, %v7707
    %v8084 = vpack.c.bf16 %v7733, %v7733
    %v8085 = vpack.c.bf16 %v7759, %v7759
    %v8086 = vpack.c.bf16 %v7785, %v7785
    %v8087 = vpack.c.bf16 %v7811, %v7811
    %v8088 = vpack.c.bf16 %v7837, %v7837
    %v8089 = vpack.c.bf16 %v7863, %v7863
    %v8090 = vpack.c.bf16 %v7889, %v7889
    %v8091 = vpack.c.bf16 %v7915, %v7915
    %v8092 = vpack.c.bf16 %v7941, %v7941
    %v8093 = vpack.c.bf16 %v7967, %v7967
    %v8094 = vpack.c.bf16 %v7993, %v7993
    %v8095 = vpack.c.bf16 %v8019, %v8019
    %v8096 = vpack.c.bf16 %v8045, %v8045
    %v8097 = vpack.c.bf16 %v8071, %v8071
    %v8098 = vld [vmem:[%s9] sm:$0xf]
    %v8099 = vld [vmem:[%s9 + $0x4] sm:$0xf]
    %v8100 = vld [vmem:[%s9 + $0x8] sm:$0xf]
    %v8101 = vld [vmem:[%s9 + $0xc] sm:$0xf]
    %v8102 = vld [vmem:[%s9 + $0x10] sm:$0xf]
    %v8103 = vld [vmem:[%s9 + $0x14] sm:$0xf]
    %v8104 = vld [vmem:[%s9 + $0x18] sm:$0xf]
    %v8105 = vld [vmem:[%s9 + $0x1c] sm:$0xf]
    %v8106 = vld [vmem:[%s9 + $0x20] sm:$0xf]
    %v8107 = vld [vmem:[%s9 + $0x24] sm:$0xf]
    %v8108 = vld [vmem:[%s9 + $0x28] sm:$0xf]
    %v8109 = vld [vmem:[%s9 + $0x2c] sm:$0xf]
    %v8110 = vld [vmem:[%s9 + $0x30] sm:$0xf]
    %v8111 = vld [vmem:[%s9 + $0x34] sm:$0xf]
    %v8112 = vld [vmem:[%s9 + $0x38] sm:$0xf]
    %v8113 = vld [vmem:[%s9 + $0x3c] sm:$0xf]
    %v8114 = vld [vmem:[%s9 + $0x40] sm:$0xf]
    %v8115 = vld [vmem:[%s9 + $0x44] sm:$0xf]
    %v8116 = vld [vmem:[%s9 + $0x48] sm:$0xf]
    %v8117 = vld [vmem:[%s9 + $0x4c] sm:$0xf]
    %v8118 = vld [vmem:[%s9 + $0x50] sm:$0xf]
    %v8119 = vld [vmem:[%s9 + $0x54] sm:$0xf]
    %v8120 = vld [vmem:[%s9 + $0x58] sm:$0xf]
    %v8121 = vld [vmem:[%s9 + $0x5c] sm:$0xf]
    %v8122 = vld [vmem:[%s9 + $0x60] sm:$0xf]
    %v8123 = vld [vmem:[%s9 + $0x64] sm:$0xf]
    %v8124 = vld [vmem:[%s9 + $0x68] sm:$0xf]
    %v8125 = vld [vmem:[%s9 + $0x6c] sm:$0xf]
    %v8126 = vld [vmem:[%s9 + $0x70] sm:$0xf]
    %v8127 = vld [vmem:[%s9 + $0x74] sm:$0xf]
    %v8128 = vld [vmem:[%s9 + $0x78] sm:$0xf]
    %v8129 = vld [vmem:[%s9 + $0x7c] sm:$0xf]
    %v8130 = vld [vmem:[%s9 + $0x80] sm:$0xf]
    %v8131 = vld [vmem:[%s9 + $0x84] sm:$0xf]
    %v8132 = vld [vmem:[%s9 + $0x88] sm:$0xf]
    %v8133 = vld [vmem:[%s9 + $0x8c] sm:$0xf]
    %v8134 = vld [vmem:[%s9 + $0x90] sm:$0xf]
    %v8135 = vld [vmem:[%s9 + $0x94] sm:$0xf]
    %v8136 = vld [vmem:[%s9 + $0x98] sm:$0xf]
    %v8137 = vld [vmem:[%s9 + $0x9c] sm:$0xf]
    %v8138 = vld [vmem:[%s9 + $0xa0] sm:$0xf]
    %v8139 = vld [vmem:[%s9 + $0xa4] sm:$0xf]
    %v8140 = vld [vmem:[%s9 + $0xa8] sm:$0xf]
    %v8141 = vld [vmem:[%s9 + $0xac] sm:$0xf]
    %v8142 = vld [vmem:[%s9 + $0xb0] sm:$0xf]
    %v8143 = vld [vmem:[%s9 + $0xb4] sm:$0xf]
    %v8144 = vld [vmem:[%s9 + $0xb8] sm:$0xf]
    %v8145 = vld [vmem:[%s9 + $0xbc] sm:$0xf]
    %v8146 = vld [vmem:[%s9 + $0xc0] sm:$0xf]
    %v8147 = vld [vmem:[%s9 + $0xc4] sm:$0xf]
    %v8148 = vld [vmem:[%s9 + $0xc8] sm:$0xf]
    %v8149 = vld [vmem:[%s9 + $0xcc] sm:$0xf]
    %v8150 = vld [vmem:[%s9 + $0xd0] sm:$0xf]
    %v8151 = vld [vmem:[%s9 + $0xd4] sm:$0xf]
    %v8152 = vld [vmem:[%s9 + $0xd8] sm:$0xf]
    %v8153 = vld [vmem:[%s9 + $0xdc] sm:$0xf]
    %v8154 = vld [vmem:[%s9 + $0xe0] sm:$0xf]
    %v8155 = vld [vmem:[%s9 + $0xe4] sm:$0xf]
    %v8156 = vld [vmem:[%s9 + $0xe8] sm:$0xf]
    %v8157 = vld [vmem:[%s9 + $0xec] sm:$0xf]
    %v8158 = vld [vmem:[%s9 + $0xf0] sm:$0xf]
    %v8159 = vld [vmem:[%s9 + $0xf4] sm:$0xf]
    %v8160 = vld [vmem:[%s9 + $0xf8] sm:$0xf]
    %v8161 = vld [vmem:[%s9 + $0xfc] sm:$0xf]
    %v8162 = vld [vmem:[%s9 + $0x100] sm:$0xf]
    %v8163 = vld [vmem:[%s9 + $0x104] sm:$0xf]
    %v8164 = vld [vmem:[%s9 + $0x108] sm:$0xf]
    %v8165 = vld [vmem:[%s9 + $0x10c] sm:$0xf]
    %v8166 = vld [vmem:[%s9 + $0x110] sm:$0xf]
    %v8167 = vld [vmem:[%s9 + $0x114] sm:$0xf]
    %v8168 = vld [vmem:[%s9 + $0x118] sm:$0xf]
    %v8169 = vld [vmem:[%s9 + $0x11c] sm:$0xf]
    %v8170 = vld [vmem:[%s9 + $0x120] sm:$0xf]
    %v8171 = vld [vmem:[%s9 + $0x124] sm:$0xf]
    %v8172 = vld [vmem:[%s9 + $0x128] sm:$0xf]
    %v8173 = vld [vmem:[%s9 + $0x12c] sm:$0xf]
    %v8174 = vld [vmem:[%s9 + $0x130] sm:$0xf]
    %v8175 = vld [vmem:[%s9 + $0x134] sm:$0xf]
    %v8176 = vld [vmem:[%s9 + $0x138] sm:$0xf]
    %v8177 = vld [vmem:[%s9 + $0x13c] sm:$0xf]
    %v8178 = vld [vmem:[%s9 + $0x140] sm:$0xf]
    %v8179 = vld [vmem:[%s9 + $0x144] sm:$0xf]
    %v8180 = vld [vmem:[%s9 + $0x148] sm:$0xf]
    %v8181 = vld [vmem:[%s9 + $0x14c] sm:$0xf]
    %v8182 = vld [vmem:[%s9 + $0x150] sm:$0xf]
    %v8183 = vld [vmem:[%s9 + $0x154] sm:$0xf]
    %v8184 = vld [vmem:[%s9 + $0x158] sm:$0xf]
    %v8185 = vld [vmem:[%s9 + $0x15c] sm:$0xf]
    %v8186 = vld [vmem:[%s9 + $0x160] sm:$0xf]
    %v8187 = vld [vmem:[%s9 + $0x164] sm:$0xf]
    %v8188 = vld [vmem:[%s9 + $0x168] sm:$0xf]
    %v8189 = vld [vmem:[%s9 + $0x16c] sm:$0xf]
    %v8190 = vld [vmem:[%s9 + $0x170] sm:$0xf]
    %v8191 = vld [vmem:[%s9 + $0x174] sm:$0xf]
    %v8192 = vld [vmem:[%s9 + $0x178] sm:$0xf]
    %v8193 = vld [vmem:[%s9 + $0x17c] sm:$0xf]
    %v8194 = vld [vmem:[%s9 + $0x180] sm:$0xf]
    %v8195 = vld [vmem:[%s9 + $0x184] sm:$0xf]
    %v8196 = vld [vmem:[%s9 + $0x188] sm:$0xf]
    %v8197 = vld [vmem:[%s9 + $0x18c] sm:$0xf]
    %v8198 = vld [vmem:[%s9 + $0x190] sm:$0xf]
    %v8199 = vld [vmem:[%s9 + $0x194] sm:$0xf]
    %v8200 = vld [vmem:[%s9 + $0x198] sm:$0xf]
    %v8201 = vld [vmem:[%s9 + $0x19c] sm:$0xf]
    %v8202 = vld [vmem:[%s9 + $0x1a0] sm:$0xf]
    %v8203 = vld [vmem:[%s9 + $0x1a4] sm:$0xf]
    %v8204 = vld [vmem:[%s9 + $0x1a8] sm:$0xf]
    %v8205 = vld [vmem:[%s9 + $0x1ac] sm:$0xf]
    %v8206 = vld [vmem:[%s9 + $0x1b0] sm:$0xf]
    %v8207 = vld [vmem:[%s9 + $0x1b4] sm:$0xf]
    %v8208 = vld [vmem:[%s9 + $0x1b8] sm:$0xf]
    %v8209 = vld [vmem:[%s9 + $0x1bc] sm:$0xf]
    %v8210 = vld [vmem:[%s9 + $0x1c0] sm:$0xf]
    %v8211 = vld [vmem:[%s9 + $0x1c4] sm:$0xf]
    %v8212 = vld [vmem:[%s9 + $0x1c8] sm:$0xf]
    %v8213 = vld [vmem:[%s9 + $0x1cc] sm:$0xf]
    %v8214 = vld [vmem:[%s9 + $0x1d0] sm:$0xf]
    %v8215 = vld [vmem:[%s9 + $0x1d4] sm:$0xf]
    %v8216 = vld [vmem:[%s9 + $0x1d8] sm:$0xf]
    %v8217 = vld [vmem:[%s9 + $0x1dc] sm:$0xf]
    %v8218 = vld [vmem:[%s9 + $0x1e0] sm:$0xf]
    %v8219 = vld [vmem:[%s9 + $0x1e4] sm:$0xf]
    %v8220 = vld [vmem:[%s9 + $0x1e8] sm:$0xf]
    %v8221 = vld [vmem:[%s9 + $0x1ec] sm:$0xf]
    %v8222 = vld [vmem:[%s9 + $0x1f0] sm:$0xf]
    %v8223 = vld [vmem:[%s9 + $0x1f4] sm:$0xf]
    %v8224 = vld [vmem:[%s9 + $0x1f8] sm:$0xf]
    %v8225 = vld [vmem:[%s9 + $0x1fc] sm:$0xf]
    %v8226 = vld [vmem:[%s9 + $0x200] sm:$0xf]
    %v8227 = vld [vmem:[%s9 + $0x204] sm:$0xf]
    %v8228 = vld [vmem:[%s9 + $0x208] sm:$0xf]
    %v8229 = vld [vmem:[%s9 + $0x20c] sm:$0xf]
    %v8230 = vld [vmem:[%s9 + $0x210] sm:$0xf]
    %v8231 = vld [vmem:[%s9 + $0x214] sm:$0xf]
    %v8232 = vld [vmem:[%s9 + $0x218] sm:$0xf]
    %v8233 = vld [vmem:[%s9 + $0x21c] sm:$0xf]
    %v8234 = vld [vmem:[%s9 + $0x220] sm:$0xf]
    %v8235 = vld [vmem:[%s9 + $0x224] sm:$0xf]
    %v8236 = vld [vmem:[%s9 + $0x228] sm:$0xf]
    %v8237 = vld [vmem:[%s9 + $0x22c] sm:$0xf]
    %v8238 = vld [vmem:[%s9 + $0x230] sm:$0xf]
    %v8239 = vld [vmem:[%s9 + $0x234] sm:$0xf]
    %v8240 = vld [vmem:[%s9 + $0x238] sm:$0xf]
    %v8241 = vld [vmem:[%s9 + $0x23c] sm:$0xf]
    %v8242 = vld [vmem:[%s9 + $0x240] sm:$0xf]
    %v8243 = vld [vmem:[%s9 + $0x244] sm:$0xf]
    %v8244 = vld [vmem:[%s9 + $0x248] sm:$0xf]
    %v8245 = vld [vmem:[%s9 + $0x24c] sm:$0xf]
    %v8246 = vld [vmem:[%s9 + $0x250] sm:$0xf]
    %v8247 = vld [vmem:[%s9 + $0x254] sm:$0xf]
    %v8248 = vld [vmem:[%s9 + $0x258] sm:$0xf]
    %v8249 = vld [vmem:[%s9 + $0x25c] sm:$0xf]
    %v8250 = vld [vmem:[%s9 + $0x260] sm:$0xf]
    %v8251 = vld [vmem:[%s9 + $0x264] sm:$0xf]
    %v8252 = vld [vmem:[%s9 + $0x268] sm:$0xf]
    %v8253 = vld [vmem:[%s9 + $0x26c] sm:$0xf]
    %v8254 = vld [vmem:[%s9 + $0x270] sm:$0xf]
    %v8255 = vld [vmem:[%s9 + $0x274] sm:$0xf]
    %v8256 = vld [vmem:[%s9 + $0x278] sm:$0xf]
    %v8257 = vld [vmem:[%s9 + $0x27c] sm:$0xf]
    %v8258 = vld [vmem:[%s9 + $0x280] sm:$0xf]
    %v8259 = vld [vmem:[%s9 + $0x284] sm:$0xf]
    %v8260 = vld [vmem:[%s9 + $0x288] sm:$0xf]
    %v8261 = vld [vmem:[%s9 + $0x28c] sm:$0xf]
    %v8262 = vld [vmem:[%s9 + $0x290] sm:$0xf]
    %v8263 = vld [vmem:[%s9 + $0x294] sm:$0xf]
    %v8264 = vld [vmem:[%s9 + $0x298] sm:$0xf]
    %v8265 = vld [vmem:[%s9 + $0x29c] sm:$0xf]
    %v8266 = vld [vmem:[%s9 + $0x2a0] sm:$0xf]
    %v8267 = vld [vmem:[%s9 + $0x2a4] sm:$0xf]
    %v8268 = vld [vmem:[%s9 + $0x2a8] sm:$0xf]
    %v8269 = vld [vmem:[%s9 + $0x2ac] sm:$0xf]
    %v8270 = vld [vmem:[%s9 + $0x2b0] sm:$0xf]
    %v8271 = vld [vmem:[%s9 + $0x2b4] sm:$0xf]
    %v8272 = vld [vmem:[%s9 + $0x2b8] sm:$0xf]
    %v8273 = vld [vmem:[%s9 + $0x2bc] sm:$0xf]
    %v8274 = vld [vmem:[%s9 + $0x2c0] sm:$0xf]
    %v8275 = vld [vmem:[%s9 + $0x2c4] sm:$0xf]
    %v8276 = vld [vmem:[%s9 + $0x2c8] sm:$0xf]
    %v8277 = vld [vmem:[%s9 + $0x2cc] sm:$0xf]
    %v8278 = vld [vmem:[%s9 + $0x2d0] sm:$0xf]
    %v8279 = vld [vmem:[%s9 + $0x2d4] sm:$0xf]
    %v8280 = vld [vmem:[%s9 + $0x2d8] sm:$0xf]
    %v8281 = vld [vmem:[%s9 + $0x2dc] sm:$0xf]
    %v8282 = vld [vmem:[%s9 + $0x2e0] sm:$0xf]
    %v8283 = vld [vmem:[%s9 + $0x2e4] sm:$0xf]
    %v8284 = vld [vmem:[%s9 + $0x2e8] sm:$0xf]
    %v8285 = vld [vmem:[%s9 + $0x2ec] sm:$0xf]
    %v8286 = vld [vmem:[%s9 + $0x2f0] sm:$0xf]
    %v8287 = vld [vmem:[%s9 + $0x2f4] sm:$0xf]
    %v8288 = vld [vmem:[%s9 + $0x2f8] sm:$0xf]
    %v8289 = vld [vmem:[%s9 + $0x2fc] sm:$0xf]
    %v8290 = vld [vmem:[%s9 + $0x300] sm:$0xf]
    %v8291 = vld [vmem:[%s9 + $0x304] sm:$0xf]
    %v8292 = vld [vmem:[%s9 + $0x308] sm:$0xf]
    %v8293 = vld [vmem:[%s9 + $0x30c] sm:$0xf]
    %v8294 = vld [vmem:[%s9 + $0x310] sm:$0xf]
    %v8295 = vld [vmem:[%s9 + $0x314] sm:$0xf]
    %v8296 = vld [vmem:[%s9 + $0x318] sm:$0xf]
    %v8297 = vld [vmem:[%s9 + $0x31c] sm:$0xf]
    %v8298 = vld [vmem:[%s9 + $0x320] sm:$0xf]
    %v8299 = vld [vmem:[%s9 + $0x324] sm:$0xf]
    %v8300 = vld [vmem:[%s9 + $0x328] sm:$0xf]
    %v8301 = vld [vmem:[%s9 + $0x32c] sm:$0xf]
    %v8302 = vld [vmem:[%s9 + $0x330] sm:$0xf]
    %v8303 = vld [vmem:[%s9 + $0x334] sm:$0xf]
    %v8304 = vld [vmem:[%s9 + $0x338] sm:$0xf]
    %v8305 = vld [vmem:[%s9 + $0x33c] sm:$0xf]
    %v8306 = vld [vmem:[%s9 + $0x340] sm:$0xf]
    %v8307 = vld [vmem:[%s9 + $0x344] sm:$0xf]
    %v8308 = vld [vmem:[%s9 + $0x348] sm:$0xf]
    %v8309 = vld [vmem:[%s9 + $0x34c] sm:$0xf]
    %v8310 = vld [vmem:[%s9 + $0x350] sm:$0xf]
    %v8311 = vld [vmem:[%s9 + $0x354] sm:$0xf]
    %v8312 = vld [vmem:[%s9 + $0x358] sm:$0xf]
    %v8313 = vld [vmem:[%s9 + $0x35c] sm:$0xf]
    %v8314 = vld [vmem:[%s9 + $0x360] sm:$0xf]
    %v8315 = vld [vmem:[%s9 + $0x364] sm:$0xf]
    %v8316 = vld [vmem:[%s9 + $0x368] sm:$0xf]
    %v8317 = vld [vmem:[%s9 + $0x36c] sm:$0xf]
    %v8318 = vld [vmem:[%s9 + $0x370] sm:$0xf]
    %v8319 = vld [vmem:[%s9 + $0x374] sm:$0xf]
    %v8320 = vld [vmem:[%s9 + $0x378] sm:$0xf]
    %v8321 = vld [vmem:[%s9 + $0x37c] sm:$0xf]
    %v8322 = vld [vmem:[%s9 + $0x380] sm:$0xf]
    %v8323 = vld [vmem:[%s9 + $0x384] sm:$0xf]
    %v8324 = vld [vmem:[%s9 + $0x388] sm:$0xf]
    %v8325 = vld [vmem:[%s9 + $0x38c] sm:$0xf]
    %v8326 = vld [vmem:[%s9 + $0x390] sm:$0xf]
    %v8327 = vld [vmem:[%s9 + $0x394] sm:$0xf]
    %v8328 = vld [vmem:[%s9 + $0x398] sm:$0xf]
    %v8329 = vld [vmem:[%s9 + $0x39c] sm:$0xf]
    %v8330 = vld [vmem:[%s9 + $0x3a0] sm:$0xf]
    %v8331 = vld [vmem:[%s9 + $0x3a4] sm:$0xf]
    %v8332 = vld [vmem:[%s9 + $0x3a8] sm:$0xf]
    %v8333 = vld [vmem:[%s9 + $0x3ac] sm:$0xf]
    %v8334 = vld [vmem:[%s9 + $0x3b0] sm:$0xf]
    %v8335 = vld [vmem:[%s9 + $0x3b4] sm:$0xf]
    %v8336 = vld [vmem:[%s9 + $0x3b8] sm:$0xf]
    %v8337 = vld [vmem:[%s9 + $0x3bc] sm:$0xf]
    %v8338 = vld [vmem:[%s9 + $0x3c0] sm:$0xf]
    %v8339 = vld [vmem:[%s9 + $0x3c4] sm:$0xf]
    %v8340 = vld [vmem:[%s9 + $0x3c8] sm:$0xf]
    %v8341 = vld [vmem:[%s9 + $0x3cc] sm:$0xf]
    %v8342 = vld [vmem:[%s9 + $0x3d0] sm:$0xf]
    %v8343 = vld [vmem:[%s9 + $0x3d4] sm:$0xf]
    %v8344 = vld [vmem:[%s9 + $0x3d8] sm:$0xf]
    %v8345 = vld [vmem:[%s9 + $0x3dc] sm:$0xf]
    %v8346 = vld [vmem:[%s9 + $0x3e0] sm:$0xf]
    %v8347 = vld [vmem:[%s9 + $0x3e4] sm:$0xf]
    %v8348 = vld [vmem:[%s9 + $0x3e8] sm:$0xf]
    %v8349 = vld [vmem:[%s9 + $0x3ec] sm:$0xf]
    %v8350 = vld [vmem:[%s9 + $0x3f0] sm:$0xf]
    %v8351 = vld [vmem:[%s9 + $0x3f4] sm:$0xf]
    %v8352 = vld [vmem:[%s9 + $0x3f8] sm:$0xf]
    %v8353 = vld [vmem:[%s9 + $0x3fc] sm:$0xf]
    %v8354 = vld [vmem:[%s9 + $0x400] sm:$0xf]
    %v8355 = vld [vmem:[%s9 + $0x404] sm:$0xf]
    %v8356 = vld [vmem:[%s9 + $0x408] sm:$0xf]
    %v8357 = vld [vmem:[%s9 + $0x40c] sm:$0xf]
    %v8358 = vld [vmem:[%s9 + $0x410] sm:$0xf]
    %v8359 = vld [vmem:[%s9 + $0x414] sm:$0xf]
    %v8360 = vld [vmem:[%s9 + $0x418] sm:$0xf]
    %v8361 = vld [vmem:[%s9 + $0x41c] sm:$0xf]
    %v8362 = vld [vmem:[%s9 + $0x420] sm:$0xf]
    %v8363 = vld [vmem:[%s9 + $0x424] sm:$0xf]
    %v8364 = vld [vmem:[%s9 + $0x428] sm:$0xf]
    %v8365 = vld [vmem:[%s9 + $0x42c] sm:$0xf]
    %v8366 = vld [vmem:[%s9 + $0x430] sm:$0xf]
    %v8367 = vld [vmem:[%s9 + $0x434] sm:$0xf]
    %v8368 = vld [vmem:[%s9 + $0x438] sm:$0xf]
    %v8369 = vld [vmem:[%s9 + $0x43c] sm:$0xf]
    %v8370 = vld [vmem:[%s9 + $0x440] sm:$0xf]
    %v8371 = vld [vmem:[%s9 + $0x444] sm:$0xf]
    %v8372 = vld [vmem:[%s9 + $0x448] sm:$0xf]
    %v8373 = vld [vmem:[%s9 + $0x44c] sm:$0xf]
    %v8374 = vld [vmem:[%s9 + $0x450] sm:$0xf]
    %v8375 = vld [vmem:[%s9 + $0x454] sm:$0xf]
    %v8376 = vld [vmem:[%s9 + $0x458] sm:$0xf]
    %v8377 = vld [vmem:[%s9 + $0x45c] sm:$0xf]
    %v8378 = vld [vmem:[%s9 + $0x460] sm:$0xf]
    %v8379 = vld [vmem:[%s9 + $0x464] sm:$0xf]
    %v8380 = vld [vmem:[%s9 + $0x468] sm:$0xf]
    %v8381 = vld [vmem:[%s9 + $0x46c] sm:$0xf]
    %v8382 = vld [vmem:[%s9 + $0x470] sm:$0xf]
    %v8383 = vld [vmem:[%s9 + $0x474] sm:$0xf]
    %v8384 = vld [vmem:[%s9 + $0x478] sm:$0xf]
    %v8385 = vld [vmem:[%s9 + $0x47c] sm:$0xf]
    %v8386 = vld [vmem:[%s9 + $0x480] sm:$0xf]
    %v8387 = vld [vmem:[%s9 + $0x484] sm:$0xf]
    %v8388 = vld [vmem:[%s9 + $0x488] sm:$0xf]
    %v8389 = vld [vmem:[%s9 + $0x48c] sm:$0xf]
    %v8390 = vld [vmem:[%s9 + $0x490] sm:$0xf]
    %v8391 = vld [vmem:[%s9 + $0x494] sm:$0xf]
    %v8392 = vld [vmem:[%s9 + $0x498] sm:$0xf]
    %v8393 = vld [vmem:[%s9 + $0x49c] sm:$0xf]
    %v8394 = vld [vmem:[%s9 + $0x4a0] sm:$0xf]
    %v8395 = vld [vmem:[%s9 + $0x4a4] sm:$0xf]
    %v8396 = vld [vmem:[%s9 + $0x4a8] sm:$0xf]
    %v8397 = vld [vmem:[%s9 + $0x4ac] sm:$0xf]
    %v8398 = vld [vmem:[%s9 + $0x4b0] sm:$0xf]
    %v8399 = vld [vmem:[%s9 + $0x4b4] sm:$0xf]
    %v8400 = vld [vmem:[%s9 + $0x4b8] sm:$0xf]
    %v8401 = vld [vmem:[%s9 + $0x4bc] sm:$0xf]
    %v8402 = vld [vmem:[%s9 + $0x4c0] sm:$0xf]
    %v8403 = vld [vmem:[%s9 + $0x4c4] sm:$0xf]
    %v8404 = vld [vmem:[%s9 + $0x4c8] sm:$0xf]
    %v8405 = vld [vmem:[%s9 + $0x4cc] sm:$0xf]
    %v8406 = vld [vmem:[%s9 + $0x4d0] sm:$0xf]
    %v8407 = vld [vmem:[%s9 + $0x4d4] sm:$0xf]
    %v8408 = vld [vmem:[%s9 + $0x4d8] sm:$0xf]
    %v8409 = vld [vmem:[%s9 + $0x4dc] sm:$0xf]
    %v8410 = vld [vmem:[%s9 + $0x4e0] sm:$0xf]
    %v8411 = vld [vmem:[%s9 + $0x4e4] sm:$0xf]
    %v8412 = vld [vmem:[%s9 + $0x4e8] sm:$0xf]
    %v8413 = vld [vmem:[%s9 + $0x4ec] sm:$0xf]
    %v8414 = vld [vmem:[%s9 + $0x4f0] sm:$0xf]
    %v8415 = vld [vmem:[%s9 + $0x4f4] sm:$0xf]
    %v8416 = vld [vmem:[%s9 + $0x4f8] sm:$0xf]
    %v8417 = vld [vmem:[%s9 + $0x4fc] sm:$0xf]
    %v8418 = vld [vmem:[%s9 + $0x500] sm:$0xf]
    %v8419 = vld [vmem:[%s9 + $0x504] sm:$0xf]
    %v8420 = vld [vmem:[%s9 + $0x508] sm:$0xf]
    %v8421 = vld [vmem:[%s9 + $0x50c] sm:$0xf]
    %v8422 = vld [vmem:[%s9 + $0x510] sm:$0xf]
    %v8423 = vld [vmem:[%s9 + $0x514] sm:$0xf]
    %v8424 = vld [vmem:[%s9 + $0x518] sm:$0xf]
    %v8425 = vld [vmem:[%s9 + $0x51c] sm:$0xf]
    %v8426 = vld [vmem:[%s9 + $0x520] sm:$0xf]
    %v8427 = vld [vmem:[%s9 + $0x524] sm:$0xf]
    %v8428 = vld [vmem:[%s9 + $0x528] sm:$0xf]
    %v8429 = vld [vmem:[%s9 + $0x52c] sm:$0xf]
    %v8430 = vld [vmem:[%s9 + $0x530] sm:$0xf]
    %v8431 = vld [vmem:[%s9 + $0x534] sm:$0xf]
    %v8432 = vld [vmem:[%s9 + $0x538] sm:$0xf]
    %v8433 = vld [vmem:[%s9 + $0x53c] sm:$0xf]
    %v8434 = vld [vmem:[%s9 + $0x540] sm:$0xf]
    %v8435 = vld [vmem:[%s9 + $0x544] sm:$0xf]
    %v8436 = vld [vmem:[%s9 + $0x548] sm:$0xf]
    %v8437 = vld [vmem:[%s9 + $0x54c] sm:$0xf]
    %v8438 = vld [vmem:[%s9 + $0x550] sm:$0xf]
    %v8439 = vld [vmem:[%s9 + $0x554] sm:$0xf]
    %v8440 = vld [vmem:[%s9 + $0x558] sm:$0xf]
    %v8441 = vld [vmem:[%s9 + $0x55c] sm:$0xf]
    %v8442 = vld [vmem:[%s9 + $0x560] sm:$0xf]
    %v8443 = vld [vmem:[%s9 + $0x564] sm:$0xf]
    %v8444 = vld [vmem:[%s9 + $0x568] sm:$0xf]
    %v8445 = vld [vmem:[%s9 + $0x56c] sm:$0xf]
    %v8446 = vld [vmem:[%s9 + $0x570] sm:$0xf]
    %v8447 = vld [vmem:[%s9 + $0x574] sm:$0xf]
    %v8448 = vld [vmem:[%s9 + $0x578] sm:$0xf]
    %v8449 = vld [vmem:[%s9 + $0x57c] sm:$0xf]
    %v8450 = vld [vmem:[%s9 + $0x580] sm:$0xf]
    %v8451 = vld [vmem:[%s9 + $0x584] sm:$0xf]
    %v8452 = vld [vmem:[%s9 + $0x588] sm:$0xf]
    %v8453 = vld [vmem:[%s9 + $0x58c] sm:$0xf]
    %v8454 = vld [vmem:[%s9 + $0x590] sm:$0xf]
    %v8455 = vld [vmem:[%s9 + $0x594] sm:$0xf]
    %v8456 = vld [vmem:[%s9 + $0x598] sm:$0xf]
    %v8457 = vld [vmem:[%s9 + $0x59c] sm:$0xf]
    %v8458 = vld [vmem:[%s9 + $0x5a0] sm:$0xf]
    %v8459 = vld [vmem:[%s9 + $0x5a4] sm:$0xf]
    %v8460 = vld [vmem:[%s9 + $0x5a8] sm:$0xf]
    %v8461 = vld [vmem:[%s9 + $0x5ac] sm:$0xf]
    %v8462 = vld [vmem:[%s9 + $0x5b0] sm:$0xf]
    %v8463 = vld [vmem:[%s9 + $0x5b4] sm:$0xf]
    %v8464 = vld [vmem:[%s9 + $0x5b8] sm:$0xf]
    %v8465 = vld [vmem:[%s9 + $0x5bc] sm:$0xf]
    %v8466 = vld [vmem:[%s9 + $0x5c0] sm:$0xf]
    %v8467 = vld [vmem:[%s9 + $0x5c4] sm:$0xf]
    %v8468 = vld [vmem:[%s9 + $0x5c8] sm:$0xf]
    %v8469 = vld [vmem:[%s9 + $0x5cc] sm:$0xf]
    %v8470 = vld [vmem:[%s9 + $0x5d0] sm:$0xf]
    %v8471 = vld [vmem:[%s9 + $0x5d4] sm:$0xf]
    %v8472 = vld [vmem:[%s9 + $0x5d8] sm:$0xf]
    %v8473 = vld [vmem:[%s9 + $0x5dc] sm:$0xf]
    %v8474 = vld [vmem:[%s9 + $0x5e0] sm:$0xf]
    %v8475 = vld [vmem:[%s9 + $0x5e4] sm:$0xf]
    %v8476 = vld [vmem:[%s9 + $0x5e8] sm:$0xf]
    %v8477 = vld [vmem:[%s9 + $0x5ec] sm:$0xf]
    %v8478 = vld [vmem:[%s9 + $0x5f0] sm:$0xf]
    %v8479 = vld [vmem:[%s9 + $0x5f4] sm:$0xf]
    %v8480 = vld [vmem:[%s9 + $0x5f8] sm:$0xf]
    %v8481 = vld [vmem:[%s9 + $0x5fc] sm:$0xf]
    %v8482 = vld [vmem:[%s10] sm:$0x1]
    %v8867 = vunpack.c.l.b16 %v8098
    %v8868 = vunpack.c.l.b16 %v8099
    %v8869 = vunpack.c.l.b16 %v8100
    %v8870 = vunpack.c.l.b16 %v8101
    %v8871 = vunpack.c.l.b16 %v8102
    %v8872 = vunpack.c.l.b16 %v8103
    %v8873 = vunpack.c.l.b16 %v8104
    %v8874 = vunpack.c.l.b16 %v8105
    %v8875 = vunpack.c.l.b16 %v8106
    %v8876 = vunpack.c.l.b16 %v8107
    %v8877 = vunpack.c.l.b16 %v8108
    %v8878 = vunpack.c.l.b16 %v8109
    %v8879 = vunpack.c.l.b16 %v8110
    %v8880 = vunpack.c.l.b16 %v8111
    %v8881 = vunpack.c.l.b16 %v8112
    %v8882 = vunpack.c.l.b16 %v8113
    %v8883 = vunpack.c.l.b16 %v8114
    %v8884 = vunpack.c.l.b16 %v8115
    %v8885 = vunpack.c.l.b16 %v8116
    %v8886 = vunpack.c.l.b16 %v8117
    %v8887 = vunpack.c.l.b16 %v8118
    %v8888 = vunpack.c.l.b16 %v8119
    %v8889 = vunpack.c.l.b16 %v8120
    %v8890 = vunpack.c.l.b16 %v8121
    %v8891 = vunpack.c.l.b16 %v8122
    %v8892 = vunpack.c.l.b16 %v8123
    %v8893 = vunpack.c.l.b16 %v8124
    %v8894 = vunpack.c.l.b16 %v8125
    %v8895 = vunpack.c.l.b16 %v8126
    %v8896 = vunpack.c.l.b16 %v8127
    %v8897 = vunpack.c.l.b16 %v8128
    %v8898 = vunpack.c.l.b16 %v8129
    %v8899 = vunpack.c.l.b16 %v8130
    %v8900 = vunpack.c.l.b16 %v8131
    %v8901 = vunpack.c.l.b16 %v8132
    %v8902 = vunpack.c.l.b16 %v8133
    %v8903 = vunpack.c.l.b16 %v8134
    %v8904 = vunpack.c.l.b16 %v8135
    %v8905 = vunpack.c.l.b16 %v8136
    %v8906 = vunpack.c.l.b16 %v8137
    %v8907 = vunpack.c.l.b16 %v8138
    %v8908 = vunpack.c.l.b16 %v8139
    %v8909 = vunpack.c.l.b16 %v8140
    %v8910 = vunpack.c.l.b16 %v8141
    %v8911 = vunpack.c.l.b16 %v8142
    %v8912 = vunpack.c.l.b16 %v8143
    %v8913 = vunpack.c.l.b16 %v8144
    %v8914 = vunpack.c.l.b16 %v8145
    %v8915 = vunpack.c.l.b16 %v8146
    %v8916 = vunpack.c.l.b16 %v8147
    %v8917 = vunpack.c.l.b16 %v8148
    %v8918 = vunpack.c.l.b16 %v8149
    %v8919 = vunpack.c.l.b16 %v8150
    %v8920 = vunpack.c.l.b16 %v8151
    %v8921 = vunpack.c.l.b16 %v8152
    %v8922 = vunpack.c.l.b16 %v8153
    %v8923 = vunpack.c.l.b16 %v8154
    %v8924 = vunpack.c.l.b16 %v8155
    %v8925 = vunpack.c.l.b16 %v8156
    %v8926 = vunpack.c.l.b16 %v8157
    %v8927 = vunpack.c.l.b16 %v8158
    %v8928 = vunpack.c.l.b16 %v8159
    %v8929 = vunpack.c.l.b16 %v8160
    %v8930 = vunpack.c.l.b16 %v8161
    %v8931 = vunpack.c.l.b16 %v8162
    %v8932 = vunpack.c.l.b16 %v8163
    %v8933 = vunpack.c.l.b16 %v8164
    %v8934 = vunpack.c.l.b16 %v8165
    %v8935 = vunpack.c.l.b16 %v8166
    %v8936 = vunpack.c.l.b16 %v8167
    %v8937 = vunpack.c.l.b16 %v8168
    %v8938 = vunpack.c.l.b16 %v8169
    %v8939 = vunpack.c.l.b16 %v8170
    %v8940 = vunpack.c.l.b16 %v8171
    %v8941 = vunpack.c.l.b16 %v8172
    %v8942 = vunpack.c.l.b16 %v8173
    %v8943 = vunpack.c.l.b16 %v8174
    %v8944 = vunpack.c.l.b16 %v8175
    %v8945 = vunpack.c.l.b16 %v8176
    %v8946 = vunpack.c.l.b16 %v8177
    %v8947 = vunpack.c.l.b16 %v8178
    %v8948 = vunpack.c.l.b16 %v8179
    %v8949 = vunpack.c.l.b16 %v8180
    %v8950 = vunpack.c.l.b16 %v8181
    %v8951 = vunpack.c.l.b16 %v8182
    %v8952 = vunpack.c.l.b16 %v8183
    %v8953 = vunpack.c.l.b16 %v8184
    %v8954 = vunpack.c.l.b16 %v8185
    %v8955 = vunpack.c.l.b16 %v8186
    %v8956 = vunpack.c.l.b16 %v8187
    %v8957 = vunpack.c.l.b16 %v8188
    %v8958 = vunpack.c.l.b16 %v8189
    %v8959 = vunpack.c.l.b16 %v8190
    %v8960 = vunpack.c.l.b16 %v8191
    %v8961 = vunpack.c.l.b16 %v8192
    %v8962 = vunpack.c.l.b16 %v8193
    %v8963 = vunpack.c.l.b16 %v8194
    %v8964 = vunpack.c.l.b16 %v8195
    %v8965 = vunpack.c.l.b16 %v8196
    %v8966 = vunpack.c.l.b16 %v8197
    %v8967 = vunpack.c.l.b16 %v8198
    %v8968 = vunpack.c.l.b16 %v8199
    %v8969 = vunpack.c.l.b16 %v8200
    %v8970 = vunpack.c.l.b16 %v8201
    %v8971 = vunpack.c.l.b16 %v8202
    %v8972 = vunpack.c.l.b16 %v8203
    %v8973 = vunpack.c.l.b16 %v8204
    %v8974 = vunpack.c.l.b16 %v8205
    %v8975 = vunpack.c.l.b16 %v8206
    %v8976 = vunpack.c.l.b16 %v8207
    %v8977 = vunpack.c.l.b16 %v8208
    %v8978 = vunpack.c.l.b16 %v8209
    %v8979 = vunpack.c.l.b16 %v8210
    %v8980 = vunpack.c.l.b16 %v8211
    %v8981 = vunpack.c.l.b16 %v8212
    %v8982 = vunpack.c.l.b16 %v8213
    %v8983 = vunpack.c.l.b16 %v8214
    %v8984 = vunpack.c.l.b16 %v8215
    %v8985 = vunpack.c.l.b16 %v8216
    %v8986 = vunpack.c.l.b16 %v8217
    %v8987 = vunpack.c.l.b16 %v8218
    %v8988 = vunpack.c.l.b16 %v8219
    %v8989 = vunpack.c.l.b16 %v8220
    %v8990 = vunpack.c.l.b16 %v8221
    %v8991 = vunpack.c.l.b16 %v8222
    %v8992 = vunpack.c.l.b16 %v8223
    %v8993 = vunpack.c.l.b16 %v8224
    %v8994 = vunpack.c.l.b16 %v8225
    %v8995 = vunpack.c.l.b16 %v8226
    %v8996 = vunpack.c.l.b16 %v8227
    %v8997 = vunpack.c.l.b16 %v8228
    %v8998 = vunpack.c.l.b16 %v8229
    %v8999 = vunpack.c.l.b16 %v8230
    %v9000 = vunpack.c.l.b16 %v8231
    %v9001 = vunpack.c.l.b16 %v8232
    %v9002 = vunpack.c.l.b16 %v8233
    %v9003 = vunpack.c.l.b16 %v8234
    %v9004 = vunpack.c.l.b16 %v8235
    %v9005 = vunpack.c.l.b16 %v8236
    %v9006 = vunpack.c.l.b16 %v8237
    %v9007 = vunpack.c.l.b16 %v8238
    %v9008 = vunpack.c.l.b16 %v8239
    %v9009 = vunpack.c.l.b16 %v8240
    %v9010 = vunpack.c.l.b16 %v8241
    %v9011 = vunpack.c.l.b16 %v8242
    %v9012 = vunpack.c.l.b16 %v8243
    %v9013 = vunpack.c.l.b16 %v8244
    %v9014 = vunpack.c.l.b16 %v8245
    %v9015 = vunpack.c.l.b16 %v8246
    %v9016 = vunpack.c.l.b16 %v8247
    %v9017 = vunpack.c.l.b16 %v8248
    %v9018 = vunpack.c.l.b16 %v8249
    %v9019 = vunpack.c.l.b16 %v8250
    %v9020 = vunpack.c.l.b16 %v8251
    %v9021 = vunpack.c.l.b16 %v8252
    %v9022 = vunpack.c.l.b16 %v8253
    %v9023 = vunpack.c.l.b16 %v8254
    %v9024 = vunpack.c.l.b16 %v8255
    %v9025 = vunpack.c.l.b16 %v8256
    %v9026 = vunpack.c.l.b16 %v8257
    %v9027 = vunpack.c.l.b16 %v8258
    %v9028 = vunpack.c.l.b16 %v8259
    %v9029 = vunpack.c.l.b16 %v8260
    %v9030 = vunpack.c.l.b16 %v8261
    %v9031 = vunpack.c.l.b16 %v8262
    %v9032 = vunpack.c.l.b16 %v8263
    %v9033 = vunpack.c.l.b16 %v8264
    %v9034 = vunpack.c.l.b16 %v8265
    %v9035 = vunpack.c.l.b16 %v8266
    %v9036 = vunpack.c.l.b16 %v8267
    %v9037 = vunpack.c.l.b16 %v8268
    %v9038 = vunpack.c.l.b16 %v8269
    %v9039 = vunpack.c.l.b16 %v8270
    %v9040 = vunpack.c.l.b16 %v8271
    %v9041 = vunpack.c.l.b16 %v8272
    %v9042 = vunpack.c.l.b16 %v8273
    %v9043 = vunpack.c.l.b16 %v8274
    %v9044 = vunpack.c.l.b16 %v8275
    %v9045 = vunpack.c.l.b16 %v8276
    %v9046 = vunpack.c.l.b16 %v8277
    %v9047 = vunpack.c.l.b16 %v8278
    %v9048 = vunpack.c.l.b16 %v8279
    %v9049 = vunpack.c.l.b16 %v8280
    %v9050 = vunpack.c.l.b16 %v8281
    %v9051 = vunpack.c.l.b16 %v8282
    %v9052 = vunpack.c.l.b16 %v8283
    %v9053 = vunpack.c.l.b16 %v8284
    %v9054 = vunpack.c.l.b16 %v8285
    %v9055 = vunpack.c.l.b16 %v8286
    %v9056 = vunpack.c.l.b16 %v8287
    %v9057 = vunpack.c.l.b16 %v8288
    %v9058 = vunpack.c.l.b16 %v8289
    %v9059 = vunpack.c.l.b16 %v8290
    %v9060 = vunpack.c.l.b16 %v8291
    %v9061 = vunpack.c.l.b16 %v8292
    %v9062 = vunpack.c.l.b16 %v8293
    %v9063 = vunpack.c.l.b16 %v8294
    %v9064 = vunpack.c.l.b16 %v8295
    %v9065 = vunpack.c.l.b16 %v8296
    %v9066 = vunpack.c.l.b16 %v8297
    %v9067 = vunpack.c.l.b16 %v8298
    %v9068 = vunpack.c.l.b16 %v8299
    %v9069 = vunpack.c.l.b16 %v8300
    %v9070 = vunpack.c.l.b16 %v8301
    %v9071 = vunpack.c.l.b16 %v8302
    %v9072 = vunpack.c.l.b16 %v8303
    %v9073 = vunpack.c.l.b16 %v8304
    %v9074 = vunpack.c.l.b16 %v8305
    %v9075 = vunpack.c.l.b16 %v8306
    %v9076 = vunpack.c.l.b16 %v8307
    %v9077 = vunpack.c.l.b16 %v8308
    %v9078 = vunpack.c.l.b16 %v8309
    %v9079 = vunpack.c.l.b16 %v8310
    %v9080 = vunpack.c.l.b16 %v8311
    %v9081 = vunpack.c.l.b16 %v8312
    %v9082 = vunpack.c.l.b16 %v8313
    %v9083 = vunpack.c.l.b16 %v8314
    %v9084 = vunpack.c.l.b16 %v8315
    %v9085 = vunpack.c.l.b16 %v8316
    %v9086 = vunpack.c.l.b16 %v8317
    %v9087 = vunpack.c.l.b16 %v8318
    %v9088 = vunpack.c.l.b16 %v8319
    %v9089 = vunpack.c.l.b16 %v8320
    %v9090 = vunpack.c.l.b16 %v8321
    %v9091 = vunpack.c.l.b16 %v8322
    %v9092 = vunpack.c.l.b16 %v8323
    %v9093 = vunpack.c.l.b16 %v8324
    %v9094 = vunpack.c.l.b16 %v8325
    %v9095 = vunpack.c.l.b16 %v8326
    %v9096 = vunpack.c.l.b16 %v8327
    %v9097 = vunpack.c.l.b16 %v8328
    %v9098 = vunpack.c.l.b16 %v8329
    %v9099 = vunpack.c.l.b16 %v8330
    %v9100 = vunpack.c.l.b16 %v8331
    %v9101 = vunpack.c.l.b16 %v8332
    %v9102 = vunpack.c.l.b16 %v8333
    %v9103 = vunpack.c.l.b16 %v8334
    %v9104 = vunpack.c.l.b16 %v8335
    %v9105 = vunpack.c.l.b16 %v8336
    %v9106 = vunpack.c.l.b16 %v8337
    %v9107 = vunpack.c.l.b16 %v8338
    %v9108 = vunpack.c.l.b16 %v8339
    %v9109 = vunpack.c.l.b16 %v8340
    %v9110 = vunpack.c.l.b16 %v8341
    %v9111 = vunpack.c.l.b16 %v8342
    %v9112 = vunpack.c.l.b16 %v8343
    %v9113 = vunpack.c.l.b16 %v8344
    %v9114 = vunpack.c.l.b16 %v8345
    %v9115 = vunpack.c.l.b16 %v8346
    %v9116 = vunpack.c.l.b16 %v8347
    %v9117 = vunpack.c.l.b16 %v8348
    %v9118 = vunpack.c.l.b16 %v8349
    %v9119 = vunpack.c.l.b16 %v8350
    %v9120 = vunpack.c.l.b16 %v8351
    %v9121 = vunpack.c.l.b16 %v8352
    %v9122 = vunpack.c.l.b16 %v8353
    %v9123 = vunpack.c.l.b16 %v8354
    %v9124 = vunpack.c.l.b16 %v8355
    %v9125 = vunpack.c.l.b16 %v8356
    %v9126 = vunpack.c.l.b16 %v8357
    %v9127 = vunpack.c.l.b16 %v8358
    %v9128 = vunpack.c.l.b16 %v8359
    %v9129 = vunpack.c.l.b16 %v8360
    %v9130 = vunpack.c.l.b16 %v8361
    %v9131 = vunpack.c.l.b16 %v8362
    %v9132 = vunpack.c.l.b16 %v8363
    %v9133 = vunpack.c.l.b16 %v8364
    %v9134 = vunpack.c.l.b16 %v8365
    %v9135 = vunpack.c.l.b16 %v8366
    %v9136 = vunpack.c.l.b16 %v8367
    %v9137 = vunpack.c.l.b16 %v8368
    %v9138 = vunpack.c.l.b16 %v8369
    %v9139 = vunpack.c.l.b16 %v8370
    %v9140 = vunpack.c.l.b16 %v8371
    %v9141 = vunpack.c.l.b16 %v8372
    %v9142 = vunpack.c.l.b16 %v8373
    %v9143 = vunpack.c.l.b16 %v8374
    %v9144 = vunpack.c.l.b16 %v8375
    %v9145 = vunpack.c.l.b16 %v8376
    %v9146 = vunpack.c.l.b16 %v8377
    %v9147 = vunpack.c.l.b16 %v8378
    %v9148 = vunpack.c.l.b16 %v8379
    %v9149 = vunpack.c.l.b16 %v8380
    %v9150 = vunpack.c.l.b16 %v8381
    %v9151 = vunpack.c.l.b16 %v8382
    %v9152 = vunpack.c.l.b16 %v8383
    %v9153 = vunpack.c.l.b16 %v8384
    %v9154 = vunpack.c.l.b16 %v8385
    %v9155 = vunpack.c.l.b16 %v8386
    %v9156 = vunpack.c.l.b16 %v8387
    %v9157 = vunpack.c.l.b16 %v8388
    %v9158 = vunpack.c.l.b16 %v8389
    %v9159 = vunpack.c.l.b16 %v8390
    %v9160 = vunpack.c.l.b16 %v8391
    %v9161 = vunpack.c.l.b16 %v8392
    %v9162 = vunpack.c.l.b16 %v8393
    %v9163 = vunpack.c.l.b16 %v8394
    %v9164 = vunpack.c.l.b16 %v8395
    %v9165 = vunpack.c.l.b16 %v8396
    %v9166 = vunpack.c.l.b16 %v8397
    %v9167 = vunpack.c.l.b16 %v8398
    %v9168 = vunpack.c.l.b16 %v8399
    %v9169 = vunpack.c.l.b16 %v8400
    %v9170 = vunpack.c.l.b16 %v8401
    %v9171 = vunpack.c.l.b16 %v8402
    %v9172 = vunpack.c.l.b16 %v8403
    %v9173 = vunpack.c.l.b16 %v8404
    %v9174 = vunpack.c.l.b16 %v8405
    %v9175 = vunpack.c.l.b16 %v8406
    %v9176 = vunpack.c.l.b16 %v8407
    %v9177 = vunpack.c.l.b16 %v8408
    %v9178 = vunpack.c.l.b16 %v8409
    %v9179 = vunpack.c.l.b16 %v8410
    %v9180 = vunpack.c.l.b16 %v8411
    %v9181 = vunpack.c.l.b16 %v8412
    %v9182 = vunpack.c.l.b16 %v8413
    %v9183 = vunpack.c.l.b16 %v8414
    %v9184 = vunpack.c.l.b16 %v8415
    %v9185 = vunpack.c.l.b16 %v8416
    %v9186 = vunpack.c.l.b16 %v8417
    %v9187 = vunpack.c.l.b16 %v8418
    %v9188 = vunpack.c.l.b16 %v8419
    %v9189 = vunpack.c.l.b16 %v8420
    %v9190 = vunpack.c.l.b16 %v8421
    %v9191 = vunpack.c.l.b16 %v8422
    %v9192 = vunpack.c.l.b16 %v8423
    %v9193 = vunpack.c.l.b16 %v8424
    %v9194 = vunpack.c.l.b16 %v8425
    %v9195 = vunpack.c.l.b16 %v8426
    %v9196 = vunpack.c.l.b16 %v8427
    %v9197 = vunpack.c.l.b16 %v8428
    %v9198 = vunpack.c.l.b16 %v8429
    %v9199 = vunpack.c.l.b16 %v8430
    %v9200 = vunpack.c.l.b16 %v8431
    %v9201 = vunpack.c.l.b16 %v8432
    %v9202 = vunpack.c.l.b16 %v8433
    %v9203 = vunpack.c.l.b16 %v8434
    %v9204 = vunpack.c.l.b16 %v8435
    %v9205 = vunpack.c.l.b16 %v8436
    %v9206 = vunpack.c.l.b16 %v8437
    %v9207 = vunpack.c.l.b16 %v8438
    %v9208 = vunpack.c.l.b16 %v8439
    %v9209 = vunpack.c.l.b16 %v8440
    %v9210 = vunpack.c.l.b16 %v8441
    %v9211 = vunpack.c.l.b16 %v8442
    %v9212 = vunpack.c.l.b16 %v8443
    %v9213 = vunpack.c.l.b16 %v8444
    %v9214 = vunpack.c.l.b16 %v8445
    %v9215 = vunpack.c.l.b16 %v8446
    %v9216 = vunpack.c.l.b16 %v8447
    %v9217 = vunpack.c.l.b16 %v8448
    %v9218 = vunpack.c.l.b16 %v8449
    %v9219 = vunpack.c.l.b16 %v8450
    %v9220 = vunpack.c.l.b16 %v8451
    %v9221 = vunpack.c.l.b16 %v8452
    %v9222 = vunpack.c.l.b16 %v8453
    %v9223 = vunpack.c.l.b16 %v8454
    %v9224 = vunpack.c.l.b16 %v8455
    %v9225 = vunpack.c.l.b16 %v8456
    %v9226 = vunpack.c.l.b16 %v8457
    %v9227 = vunpack.c.l.b16 %v8458
    %v9228 = vunpack.c.l.b16 %v8459
    %v9229 = vunpack.c.l.b16 %v8460
    %v9230 = vunpack.c.l.b16 %v8461
    %v9231 = vunpack.c.l.b16 %v8462
    %v9232 = vunpack.c.l.b16 %v8463
    %v9233 = vunpack.c.l.b16 %v8464
    %v9234 = vunpack.c.l.b16 %v8465
    %v9235 = vunpack.c.l.b16 %v8466
    %v9236 = vunpack.c.l.b16 %v8467
    %v9237 = vunpack.c.l.b16 %v8468
    %v9238 = vunpack.c.l.b16 %v8469
    %v9239 = vunpack.c.l.b16 %v8470
    %v9240 = vunpack.c.l.b16 %v8471
    %v9241 = vunpack.c.l.b16 %v8472
    %v9242 = vunpack.c.l.b16 %v8473
    %v9243 = vunpack.c.l.b16 %v8474
    %v9244 = vunpack.c.l.b16 %v8475
    %v9245 = vunpack.c.l.b16 %v8476
    %v9246 = vunpack.c.l.b16 %v8477
    %v9247 = vunpack.c.l.b16 %v8478
    %v9248 = vunpack.c.l.b16 %v8479
    %v9249 = vunpack.c.l.b16 %v8480
    %v9250 = vunpack.c.l.b16 %v8481
    %v9251 = vpack.c.b16 %v8868, %v8867
    %v9252 = vpack.c.b16 %v8870, %v8869
    %v9253 = vpack.c.b16 %v8872, %v8871
    %v9254 = vpack.c.b16 %v8874, %v8873
    %v9255 = vpack.c.b16 %v8876, %v8875
    %v9256 = vpack.c.b16 %v8878, %v8877
    %v9257 = vpack.c.b16 %v8880, %v8879
    %v9258 = vpack.c.b16 %v8882, %v8881
    %v9259 = vpack.c.b16 %v8884, %v8883
    %v9260 = vpack.c.b16 %v8886, %v8885
    %v9261 = vpack.c.b16 %v8888, %v8887
    %v9262 = vpack.c.b16 %v8890, %v8889
    %v9263 = vpack.c.b16 %v8892, %v8891
    %v9264 = vpack.c.b16 %v8894, %v8893
    %v9265 = vpack.c.b16 %v8896, %v8895
    %v9266 = vpack.c.b16 %v8898, %v8897
    %v9267 = vpack.c.b16 %v8900, %v8899
    %v9268 = vpack.c.b16 %v8902, %v8901
    %v9269 = vpack.c.b16 %v8904, %v8903
    %v9270 = vpack.c.b16 %v8906, %v8905
    %v9271 = vpack.c.b16 %v8908, %v8907
    %v9272 = vpack.c.b16 %v8910, %v8909
    %v9273 = vpack.c.b16 %v8912, %v8911
    %v9274 = vpack.c.b16 %v8914, %v8913
    %v9275 = vpack.c.b16 %v8916, %v8915
    %v9276 = vpack.c.b16 %v8918, %v8917
    %v9277 = vpack.c.b16 %v8920, %v8919
    %v9278 = vpack.c.b16 %v8922, %v8921
    %v9279 = vpack.c.b16 %v8924, %v8923
    %v9280 = vpack.c.b16 %v8926, %v8925
    %v9281 = vpack.c.b16 %v8928, %v8927
    %v9282 = vpack.c.b16 %v8930, %v8929
    %v9283 = vpack.c.b16 %v8932, %v8931
    %v9284 = vpack.c.b16 %v8934, %v8933
    %v9285 = vpack.c.b16 %v8936, %v8935
    %v9286 = vpack.c.b16 %v8938, %v8937
    %v9287 = vpack.c.b16 %v8940, %v8939
    %v9288 = vpack.c.b16 %v8942, %v8941
    %v9289 = vpack.c.b16 %v8944, %v8943
    %v9290 = vpack.c.b16 %v8946, %v8945
    %v9291 = vpack.c.b16 %v8948, %v8947
    %v9292 = vpack.c.b16 %v8950, %v8949
    %v9293 = vpack.c.b16 %v8952, %v8951
    %v9294 = vpack.c.b16 %v8954, %v8953
    %v9295 = vpack.c.b16 %v8956, %v8955
    %v9296 = vpack.c.b16 %v8958, %v8957
    %v9297 = vpack.c.b16 %v8960, %v8959
    %v9298 = vpack.c.b16 %v8962, %v8961
    %v9299 = vpack.c.b16 %v8964, %v8963
    %v9300 = vpack.c.b16 %v8966, %v8965
    %v9301 = vpack.c.b16 %v8968, %v8967
    %v9302 = vpack.c.b16 %v8970, %v8969
    %v9303 = vpack.c.b16 %v8972, %v8971
    %v9304 = vpack.c.b16 %v8974, %v8973
    %v9305 = vpack.c.b16 %v8976, %v8975
    %v9306 = vpack.c.b16 %v8978, %v8977
    %v9307 = vpack.c.b16 %v8980, %v8979
    %v9308 = vpack.c.b16 %v8982, %v8981
    %v9309 = vpack.c.b16 %v8984, %v8983
    %v9310 = vpack.c.b16 %v8986, %v8985
    %v9311 = vpack.c.b16 %v8988, %v8987
    %v9312 = vpack.c.b16 %v8990, %v8989
    %v9313 = vpack.c.b16 %v8992, %v8991
    %v9314 = vpack.c.b16 %v8994, %v8993
    %v9315 = vpack.c.b16 %v8996, %v8995
    %v9316 = vpack.c.b16 %v8998, %v8997
    %v9317 = vpack.c.b16 %v9000, %v8999
    %v9318 = vpack.c.b16 %v9002, %v9001
    %v9319 = vpack.c.b16 %v9004, %v9003
    %v9320 = vpack.c.b16 %v9006, %v9005
    %v9321 = vpack.c.b16 %v9008, %v9007
    %v9322 = vpack.c.b16 %v9010, %v9009
    %v9323 = vpack.c.b16 %v9012, %v9011
    %v9324 = vpack.c.b16 %v9014, %v9013
    %v9325 = vpack.c.b16 %v9016, %v9015
    %v9326 = vpack.c.b16 %v9018, %v9017
    %v9327 = vpack.c.b16 %v9020, %v9019
    %v9328 = vpack.c.b16 %v9022, %v9021
    %v9329 = vpack.c.b16 %v9024, %v9023
    %v9330 = vpack.c.b16 %v9026, %v9025
    %v9331 = vpack.c.b16 %v9028, %v9027
    %v9332 = vpack.c.b16 %v9030, %v9029
    %v9333 = vpack.c.b16 %v9032, %v9031
    %v9334 = vpack.c.b16 %v9034, %v9033
    %v9335 = vpack.c.b16 %v9036, %v9035
    %v9336 = vpack.c.b16 %v9038, %v9037
    %v9337 = vpack.c.b16 %v9040, %v9039
    %v9338 = vpack.c.b16 %v9042, %v9041
    %v9339 = vpack.c.b16 %v9044, %v9043
    %v9340 = vpack.c.b16 %v9046, %v9045
    %v9341 = vpack.c.b16 %v9048, %v9047
    %v9342 = vpack.c.b16 %v9050, %v9049
    %v9343 = vpack.c.b16 %v9052, %v9051
    %v9344 = vpack.c.b16 %v9054, %v9053
    %v9345 = vpack.c.b16 %v9056, %v9055
    %v9346 = vpack.c.b16 %v9058, %v9057
    %v9347 = vpack.c.b16 %v9060, %v9059
    %v9348 = vpack.c.b16 %v9062, %v9061
    %v9349 = vpack.c.b16 %v9064, %v9063
    %v9350 = vpack.c.b16 %v9066, %v9065
    %v9351 = vpack.c.b16 %v9068, %v9067
    %v9352 = vpack.c.b16 %v9070, %v9069
    %v9353 = vpack.c.b16 %v9072, %v9071
    %v9354 = vpack.c.b16 %v9074, %v9073
    %v9355 = vpack.c.b16 %v9076, %v9075
    %v9356 = vpack.c.b16 %v9078, %v9077
    %v9357 = vpack.c.b16 %v9080, %v9079
    %v9358 = vpack.c.b16 %v9082, %v9081
    %v9359 = vpack.c.b16 %v9084, %v9083
    %v9360 = vpack.c.b16 %v9086, %v9085
    %v9361 = vpack.c.b16 %v9088, %v9087
    %v9362 = vpack.c.b16 %v9090, %v9089
    %v9363 = vpack.c.b16 %v9092, %v9091
    %v9364 = vpack.c.b16 %v9094, %v9093
    %v9365 = vpack.c.b16 %v9096, %v9095
    %v9366 = vpack.c.b16 %v9098, %v9097
    %v9367 = vpack.c.b16 %v9100, %v9099
    %v9368 = vpack.c.b16 %v9102, %v9101
    %v9369 = vpack.c.b16 %v9104, %v9103
    %v9370 = vpack.c.b16 %v9106, %v9105
    %v9371 = vpack.c.b16 %v9108, %v9107
    %v9372 = vpack.c.b16 %v9110, %v9109
    %v9373 = vpack.c.b16 %v9112, %v9111
    %v9374 = vpack.c.b16 %v9114, %v9113
    %v9375 = vpack.c.b16 %v9116, %v9115
    %v9376 = vpack.c.b16 %v9118, %v9117
    %v9377 = vpack.c.b16 %v9120, %v9119
    %v9378 = vpack.c.b16 %v9122, %v9121
    %v9379 = vpack.c.b16 %v9124, %v9123
    %v9380 = vpack.c.b16 %v9126, %v9125
    %v9381 = vpack.c.b16 %v9128, %v9127
    %v9382 = vpack.c.b16 %v9130, %v9129
    %v9383 = vpack.c.b16 %v9132, %v9131
    %v9384 = vpack.c.b16 %v9134, %v9133
    %v9385 = vpack.c.b16 %v9136, %v9135
    %v9386 = vpack.c.b16 %v9138, %v9137
    %v9387 = vpack.c.b16 %v9140, %v9139
    %v9388 = vpack.c.b16 %v9142, %v9141
    %v9389 = vpack.c.b16 %v9144, %v9143
    %v9390 = vpack.c.b16 %v9146, %v9145
    %v9391 = vpack.c.b16 %v9148, %v9147
    %v9392 = vpack.c.b16 %v9150, %v9149
    %v9393 = vpack.c.b16 %v9152, %v9151
    %v9394 = vpack.c.b16 %v9154, %v9153
    %v9395 = vpack.c.b16 %v9156, %v9155
    %v9396 = vpack.c.b16 %v9158, %v9157
    %v9397 = vpack.c.b16 %v9160, %v9159
    %v9398 = vpack.c.b16 %v9162, %v9161
    %v9399 = vpack.c.b16 %v9164, %v9163
    %v9400 = vpack.c.b16 %v9166, %v9165
    %v9401 = vpack.c.b16 %v9168, %v9167
    %v9402 = vpack.c.b16 %v9170, %v9169
    %v9403 = vpack.c.b16 %v9172, %v9171
    %v9404 = vpack.c.b16 %v9174, %v9173
    %v9405 = vpack.c.b16 %v9176, %v9175
    %v9406 = vpack.c.b16 %v9178, %v9177
    %v9407 = vpack.c.b16 %v9180, %v9179
    %v9408 = vpack.c.b16 %v9182, %v9181
    %v9409 = vpack.c.b16 %v9184, %v9183
    %v9410 = vpack.c.b16 %v9186, %v9185
    %v9411 = vpack.c.b16 %v9188, %v9187
    %v9412 = vpack.c.b16 %v9190, %v9189
    %v9413 = vpack.c.b16 %v9192, %v9191
    %v9414 = vpack.c.b16 %v9194, %v9193
    %v9415 = vpack.c.b16 %v9196, %v9195
    %v9416 = vpack.c.b16 %v9198, %v9197
    %v9417 = vpack.c.b16 %v9200, %v9199
    %v9418 = vpack.c.b16 %v9202, %v9201
    %v9419 = vpack.c.b16 %v9204, %v9203
    %v9420 = vpack.c.b16 %v9206, %v9205
    %v9421 = vpack.c.b16 %v9208, %v9207
    %v9422 = vpack.c.b16 %v9210, %v9209
    %v9423 = vpack.c.b16 %v9212, %v9211
    %v9424 = vpack.c.b16 %v9214, %v9213
    %v9425 = vpack.c.b16 %v9216, %v9215
    %v9426 = vpack.c.b16 %v9218, %v9217
    %v9427 = vpack.c.b16 %v9220, %v9219
    %v9428 = vpack.c.b16 %v9222, %v9221
    %v9429 = vpack.c.b16 %v9224, %v9223
    %v9430 = vpack.c.b16 %v9226, %v9225
    %v9431 = vpack.c.b16 %v9228, %v9227
    %v9432 = vpack.c.b16 %v9230, %v9229
    %v9433 = vpack.c.b16 %v9232, %v9231
    %v9434 = vpack.c.b16 %v9234, %v9233
    %v9435 = vpack.c.b16 %v9236, %v9235
    %v9436 = vpack.c.b16 %v9238, %v9237
    %v9437 = vpack.c.b16 %v9240, %v9239
    %v9438 = vpack.c.b16 %v9242, %v9241
    %v9439 = vpack.c.b16 %v9244, %v9243
    %v9440 = vpack.c.b16 %v9246, %v9245
    %v9441 = vpack.c.b16 %v9248, %v9247
    %v9442 = vpack.c.b16 %v9250, %v9249
    %9635 = vmatpush.bf16.msra.mxu0 %v9258
    %9636 = vmatpush.bf16.msra.mxu0 %v9257
    %9637 = vmatpush.bf16.msra.mxu0 %v9256
    %9638 = vmatpush.bf16.msra.mxu0 %v9255
    %9639 = vmatpush.bf16.msra.mxu0 %v9254
    %9640 = vmatpush.bf16.msra.mxu0 %v9253
    %9641 = vmatpush.bf16.msra.mxu0 %v9252
    %9642 = vmatpush.bf16.msra.mxu0 %v9251
    %9643 = vmatmul.bf16.gmra.mxu0 %v8074
    %v9644 = vpop.f32.mrf.mxu0
    %v9645 = vadd.f32 %v8482, %v9644
    %v9646 = vpop.f32.mrf.mxu0
    %9647 = vdwg.mxu0
    %9648 = vmatpush.bf16.msra.mxu0 %v9266
    %9649 = vmatpush.bf16.msra.mxu0 %v9265
    %9650 = vmatpush.bf16.msra.mxu0 %v9264
    %9651 = vmatpush.bf16.msra.mxu0 %v9263
    %9652 = vmatpush.bf16.msra.mxu0 %v9262
    %9653 = vmatpush.bf16.msra.mxu0 %v9261
    %9654 = vmatpush.bf16.msra.mxu0 %v9260
    %9655 = vmatpush.bf16.msra.mxu0 %v9259
    %9656 = vmatmul.bf16.gmra.mxu0 %v8075
    %v9657 = vpop.f32.mrf.mxu0
    %v9658 = vadd.f32 %v9645, %v9657
    %v9659 = vpop.f32.mrf.mxu0
    %9660 = vdwg.mxu0
    %9661 = vmatpush.bf16.msra.mxu0 %v9274
    %9662 = vmatpush.bf16.msra.mxu0 %v9273
    %9663 = vmatpush.bf16.msra.mxu0 %v9272
    %9664 = vmatpush.bf16.msra.mxu0 %v9271
    %9665 = vmatpush.bf16.msra.mxu0 %v9270
    %9666 = vmatpush.bf16.msra.mxu0 %v9269
    %9667 = vmatpush.bf16.msra.mxu0 %v9268
    %9668 = vmatpush.bf16.msra.mxu0 %v9267
    %9669 = vmatmul.bf16.gmra.mxu0 %v8076
    %v9670 = vpop.f32.mrf.mxu0
    %v9671 = vadd.f32 %v9658, %v9670
    %v9672 = vpop.f32.mrf.mxu0
    %9673 = vdwg.mxu0
    %9674 = vmatpush.bf16.msra.mxu0 %v9282
    %9675 = vmatpush.bf16.msra.mxu0 %v9281
    %9676 = vmatpush.bf16.msra.mxu0 %v9280
    %9677 = vmatpush.bf16.msra.mxu0 %v9279
    %9678 = vmatpush.bf16.msra.mxu0 %v9278
    %9679 = vmatpush.bf16.msra.mxu0 %v9277
    %9680 = vmatpush.bf16.msra.mxu0 %v9276
    %9681 = vmatpush.bf16.msra.mxu0 %v9275
    %9682 = vmatmul.bf16.gmra.mxu0 %v8077
    %v9683 = vpop.f32.mrf.mxu0
    %v9684 = vadd.f32 %v9671, %v9683
    %v9685 = vpop.f32.mrf.mxu0
    %9686 = vdwg.mxu0
    %9687 = vmatpush.bf16.msra.mxu0 %v9290
    %9688 = vmatpush.bf16.msra.mxu0 %v9289
    %9689 = vmatpush.bf16.msra.mxu0 %v9288
    %9690 = vmatpush.bf16.msra.mxu0 %v9287
    %9691 = vmatpush.bf16.msra.mxu0 %v9286
    %9692 = vmatpush.bf16.msra.mxu0 %v9285
    %9693 = vmatpush.bf16.msra.mxu0 %v9284
    %9694 = vmatpush.bf16.msra.mxu0 %v9283
    %9695 = vmatmul.bf16.gmra.mxu0 %v8078
    %v9696 = vpop.f32.mrf.mxu0
    %v9697 = vadd.f32 %v9684, %v9696
    %v9698 = vpop.f32.mrf.mxu0
    %9699 = vdwg.mxu0
    %9700 = vmatpush.bf16.msra.mxu0 %v9298
    %9701 = vmatpush.bf16.msra.mxu0 %v9297
    %9702 = vmatpush.bf16.msra.mxu0 %v9296
    %9703 = vmatpush.bf16.msra.mxu0 %v9295
    %9704 = vmatpush.bf16.msra.mxu0 %v9294
    %9705 = vmatpush.bf16.msra.mxu0 %v9293
    %9706 = vmatpush.bf16.msra.mxu0 %v9292
    %9707 = vmatpush.bf16.msra.mxu0 %v9291
    %9708 = vmatmul.bf16.gmra.mxu0 %v8079
    %v9709 = vpop.f32.mrf.mxu0
    %v9710 = vadd.f32 %v9697, %v9709
    %v9711 = vpop.f32.mrf.mxu0
    %9712 = vdwg.mxu0
    %9713 = vmatpush.bf16.msra.mxu0 %v9306
    %9714 = vmatpush.bf16.msra.mxu0 %v9305
    %9715 = vmatpush.bf16.msra.mxu0 %v9304
    %9716 = vmatpush.bf16.msra.mxu0 %v9303
    %9717 = vmatpush.bf16.msra.mxu0 %v9302
    %9718 = vmatpush.bf16.msra.mxu0 %v9301
    %9719 = vmatpush.bf16.msra.mxu0 %v9300
    %9720 = vmatpush.bf16.msra.mxu0 %v9299
    %9721 = vmatmul.bf16.gmra.mxu0 %v8080
    %v9722 = vpop.f32.mrf.mxu0
    %v9723 = vadd.f32 %v9710, %v9722
    %v9724 = vpop.f32.mrf.mxu0
    %9725 = vdwg.mxu0
    %9726 = vmatpush.bf16.msra.mxu0 %v9314
    %9727 = vmatpush.bf16.msra.mxu0 %v9313
    %9728 = vmatpush.bf16.msra.mxu0 %v9312
    %9729 = vmatpush.bf16.msra.mxu0 %v9311
    %9730 = vmatpush.bf16.msra.mxu0 %v9310
    %9731 = vmatpush.bf16.msra.mxu0 %v9309
    %9732 = vmatpush.bf16.msra.mxu0 %v9308
    %9733 = vmatpush.bf16.msra.mxu0 %v9307
    %9734 = vmatmul.bf16.gmra.mxu0 %v8081
    %v9735 = vpop.f32.mrf.mxu0
    %v9736 = vadd.f32 %v9723, %v9735
    %v9737 = vpop.f32.mrf.mxu0
    %9738 = vdwg.mxu0
    %9739 = vmatpush.bf16.msra.mxu0 %v9322
    %9740 = vmatpush.bf16.msra.mxu0 %v9321
    %9741 = vmatpush.bf16.msra.mxu0 %v9320
    %9742 = vmatpush.bf16.msra.mxu0 %v9319
    %9743 = vmatpush.bf16.msra.mxu0 %v9318
    %9744 = vmatpush.bf16.msra.mxu0 %v9317
    %9745 = vmatpush.bf16.msra.mxu0 %v9316
    %9746 = vmatpush.bf16.msra.mxu0 %v9315
    %9747 = vmatmul.bf16.gmra.mxu0 %v8082
    %v9748 = vpop.f32.mrf.mxu0
    %v9749 = vadd.f32 %v9736, %v9748
    %v9750 = vpop.f32.mrf.mxu0
    %9751 = vdwg.mxu0
    %9752 = vmatpush.bf16.msra.mxu0 %v9330
    %9753 = vmatpush.bf16.msra.mxu0 %v9329
    %9754 = vmatpush.bf16.msra.mxu0 %v9328
    %9755 = vmatpush.bf16.msra.mxu0 %v9327
    %9756 = vmatpush.bf16.msra.mxu0 %v9326
    %9757 = vmatpush.bf16.msra.mxu0 %v9325
    %9758 = vmatpush.bf16.msra.mxu0 %v9324
    %9759 = vmatpush.bf16.msra.mxu0 %v9323
    %9760 = vmatmul.bf16.gmra.mxu0 %v8083
    %v9761 = vpop.f32.mrf.mxu0
    %v9762 = vadd.f32 %v9749, %v9761
    %v9763 = vpop.f32.mrf.mxu0
    %9764 = vdwg.mxu0
    %9765 = vmatpush.bf16.msra.mxu0 %v9338
    %9766 = vmatpush.bf16.msra.mxu0 %v9337
    %9767 = vmatpush.bf16.msra.mxu0 %v9336
    %9768 = vmatpush.bf16.msra.mxu0 %v9335
    %9769 = vmatpush.bf16.msra.mxu0 %v9334
    %9770 = vmatpush.bf16.msra.mxu0 %v9333
    %9771 = vmatpush.bf16.msra.mxu0 %v9332
    %9772 = vmatpush.bf16.msra.mxu0 %v9331
    %9773 = vmatmul.bf16.gmra.mxu0 %v8084
    %v9774 = vpop.f32.mrf.mxu0
    %v9775 = vadd.f32 %v9762, %v9774
    %v9776 = vpop.f32.mrf.mxu0
    %9777 = vdwg.mxu0
    %9778 = vmatpush.bf16.msra.mxu0 %v9346
    %9779 = vmatpush.bf16.msra.mxu0 %v9345
    %9780 = vmatpush.bf16.msra.mxu0 %v9344
    %9781 = vmatpush.bf16.msra.mxu0 %v9343
    %9782 = vmatpush.bf16.msra.mxu0 %v9342
    %9783 = vmatpush.bf16.msra.mxu0 %v9341
    %9784 = vmatpush.bf16.msra.mxu0 %v9340
    %9785 = vmatpush.bf16.msra.mxu0 %v9339
    %9786 = vmatmul.bf16.gmra.mxu0 %v8085
    %v9787 = vpop.f32.mrf.mxu0
    %v9788 = vadd.f32 %v9775, %v9787
    %v9789 = vpop.f32.mrf.mxu0
    %9790 = vdwg.mxu0
    %9791 = vmatpush.bf16.msra.mxu0 %v9354
    %9792 = vmatpush.bf16.msra.mxu0 %v9353
    %9793 = vmatpush.bf16.msra.mxu0 %v9352
    %9794 = vmatpush.bf16.msra.mxu0 %v9351
    %9795 = vmatpush.bf16.msra.mxu0 %v9350
    %9796 = vmatpush.bf16.msra.mxu0 %v9349
    %9797 = vmatpush.bf16.msra.mxu0 %v9348
    %9798 = vmatpush.bf16.msra.mxu0 %v9347
    %9799 = vmatmul.bf16.gmra.mxu0 %v8086
    %v9800 = vpop.f32.mrf.mxu0
    %v9801 = vadd.f32 %v9788, %v9800
    %v9802 = vpop.f32.mrf.mxu0
    %9803 = vdwg.mxu0
    %9804 = vmatpush.bf16.msra.mxu0 %v9362
    %9805 = vmatpush.bf16.msra.mxu0 %v9361
    %9806 = vmatpush.bf16.msra.mxu0 %v9360
    %9807 = vmatpush.bf16.msra.mxu0 %v9359
    %9808 = vmatpush.bf16.msra.mxu0 %v9358
    %9809 = vmatpush.bf16.msra.mxu0 %v9357
    %9810 = vmatpush.bf16.msra.mxu0 %v9356
    %9811 = vmatpush.bf16.msra.mxu0 %v9355
    %9812 = vmatmul.bf16.gmra.mxu0 %v8087
    %v9813 = vpop.f32.mrf.mxu0
    %v9814 = vadd.f32 %v9801, %v9813
    %v9815 = vpop.f32.mrf.mxu0
    %9816 = vdwg.mxu0
    %9817 = vmatpush.bf16.msra.mxu0 %v9370
    %9818 = vmatpush.bf16.msra.mxu0 %v9369
    %9819 = vmatpush.bf16.msra.mxu0 %v9368
    %9820 = vmatpush.bf16.msra.mxu0 %v9367
    %9821 = vmatpush.bf16.msra.mxu0 %v9366
    %9822 = vmatpush.bf16.msra.mxu0 %v9365
    %9823 = vmatpush.bf16.msra.mxu0 %v9364
    %9824 = vmatpush.bf16.msra.mxu0 %v9363
    %9825 = vmatmul.bf16.gmra.mxu0 %v8088
    %v9826 = vpop.f32.mrf.mxu0
    %v9827 = vadd.f32 %v9814, %v9826
    %v9828 = vpop.f32.mrf.mxu0
    %9829 = vdwg.mxu0
    %9830 = vmatpush.bf16.msra.mxu0 %v9378
    %9831 = vmatpush.bf16.msra.mxu0 %v9377
    %9832 = vmatpush.bf16.msra.mxu0 %v9376
    %9833 = vmatpush.bf16.msra.mxu0 %v9375
    %9834 = vmatpush.bf16.msra.mxu0 %v9374
    %9835 = vmatpush.bf16.msra.mxu0 %v9373
    %9836 = vmatpush.bf16.msra.mxu0 %v9372
    %9837 = vmatpush.bf16.msra.mxu0 %v9371
    %9838 = vmatmul.bf16.gmra.mxu0 %v8089
    %v9839 = vpop.f32.mrf.mxu0
    %v9840 = vadd.f32 %v9827, %v9839
    %v9841 = vpop.f32.mrf.mxu0
    %9842 = vdwg.mxu0
    %9843 = vmatpush.bf16.msra.mxu0 %v9386
    %9844 = vmatpush.bf16.msra.mxu0 %v9385
    %9845 = vmatpush.bf16.msra.mxu0 %v9384
    %9846 = vmatpush.bf16.msra.mxu0 %v9383
    %9847 = vmatpush.bf16.msra.mxu0 %v9382
    %9848 = vmatpush.bf16.msra.mxu0 %v9381
    %9849 = vmatpush.bf16.msra.mxu0 %v9380
    %9850 = vmatpush.bf16.msra.mxu0 %v9379
    %9851 = vmatmul.bf16.gmra.mxu0 %v8090
    %v9852 = vpop.f32.mrf.mxu0
    %v9853 = vadd.f32 %v9840, %v9852
    %v9854 = vpop.f32.mrf.mxu0
    %9855 = vdwg.mxu0
    %9856 = vmatpush.bf16.msra.mxu0 %v9394
    %9857 = vmatpush.bf16.msra.mxu0 %v9393
    %9858 = vmatpush.bf16.msra.mxu0 %v9392
    %9859 = vmatpush.bf16.msra.mxu0 %v9391
    %9860 = vmatpush.bf16.msra.mxu0 %v9390
    %9861 = vmatpush.bf16.msra.mxu0 %v9389
    %9862 = vmatpush.bf16.msra.mxu0 %v9388
    %9863 = vmatpush.bf16.msra.mxu0 %v9387
    %9864 = vmatmul.bf16.gmra.mxu0 %v8091
    %v9865 = vpop.f32.mrf.mxu0
    %v9866 = vadd.f32 %v9853, %v9865
    %v9867 = vpop.f32.mrf.mxu0
    %9868 = vdwg.mxu0
    %9869 = vmatpush.bf16.msra.mxu0 %v9402
    %9870 = vmatpush.bf16.msra.mxu0 %v9401
    %9871 = vmatpush.bf16.msra.mxu0 %v9400
    %9872 = vmatpush.bf16.msra.mxu0 %v9399
    %9873 = vmatpush.bf16.msra.mxu0 %v9398
    %9874 = vmatpush.bf16.msra.mxu0 %v9397
    %9875 = vmatpush.bf16.msra.mxu0 %v9396
    %9876 = vmatpush.bf16.msra.mxu0 %v9395
    %9877 = vmatmul.bf16.gmra.mxu0 %v8092
    %v9878 = vpop.f32.mrf.mxu0
    %v9879 = vadd.f32 %v9866, %v9878
    %v9880 = vpop.f32.mrf.mxu0
    %9881 = vdwg.mxu0
    %9882 = vmatpush.bf16.msra.mxu0 %v9410
    %9883 = vmatpush.bf16.msra.mxu0 %v9409
    %9884 = vmatpush.bf16.msra.mxu0 %v9408
    %9885 = vmatpush.bf16.msra.mxu0 %v9407
    %9886 = vmatpush.bf16.msra.mxu0 %v9406
    %9887 = vmatpush.bf16.msra.mxu0 %v9405
    %9888 = vmatpush.bf16.msra.mxu0 %v9404
    %9889 = vmatpush.bf16.msra.mxu0 %v9403
    %9890 = vmatmul.bf16.gmra.mxu0 %v8093
    %v9891 = vpop.f32.mrf.mxu0
    %v9892 = vadd.f32 %v9879, %v9891
    %v9893 = vpop.f32.mrf.mxu0
    %9894 = vdwg.mxu0
    %9895 = vmatpush.bf16.msra.mxu0 %v9418
    %9896 = vmatpush.bf16.msra.mxu0 %v9417
    %9897 = vmatpush.bf16.msra.mxu0 %v9416
    %9898 = vmatpush.bf16.msra.mxu0 %v9415
    %9899 = vmatpush.bf16.msra.mxu0 %v9414
    %9900 = vmatpush.bf16.msra.mxu0 %v9413
    %9901 = vmatpush.bf16.msra.mxu0 %v9412
    %9902 = vmatpush.bf16.msra.mxu0 %v9411
    %9903 = vmatmul.bf16.gmra.mxu0 %v8094
    %v9904 = vpop.f32.mrf.mxu0
    %v9905 = vadd.f32 %v9892, %v9904
    %v9906 = vpop.f32.mrf.mxu0
    %9907 = vdwg.mxu0
    %9908 = vmatpush.bf16.msra.mxu0 %v9426
    %9909 = vmatpush.bf16.msra.mxu0 %v9425
    %9910 = vmatpush.bf16.msra.mxu0 %v9424
    %9911 = vmatpush.bf16.msra.mxu0 %v9423
    %9912 = vmatpush.bf16.msra.mxu0 %v9422
    %9913 = vmatpush.bf16.msra.mxu0 %v9421
    %9914 = vmatpush.bf16.msra.mxu0 %v9420
    %9915 = vmatpush.bf16.msra.mxu0 %v9419
    %9916 = vmatmul.bf16.gmra.mxu0 %v8095
    %v9917 = vpop.f32.mrf.mxu0
    %v9918 = vadd.f32 %v9905, %v9917
    %v9919 = vpop.f32.mrf.mxu0
    %9920 = vdwg.mxu0
    %9921 = vmatpush.bf16.msra.mxu0 %v9434
    %9922 = vmatpush.bf16.msra.mxu0 %v9433
    %9923 = vmatpush.bf16.msra.mxu0 %v9432
    %9924 = vmatpush.bf16.msra.mxu0 %v9431
    %9925 = vmatpush.bf16.msra.mxu0 %v9430
    %9926 = vmatpush.bf16.msra.mxu0 %v9429
    %9927 = vmatpush.bf16.msra.mxu0 %v9428
    %9928 = vmatpush.bf16.msra.mxu0 %v9427
    %9929 = vmatmul.bf16.gmra.mxu0 %v8096
    %v9930 = vpop.f32.mrf.mxu0
    %v9931 = vadd.f32 %v9918, %v9930
    %v9932 = vpop.f32.mrf.mxu0
    %9933 = vdwg.mxu0
    %9934 = vmatpush.bf16.msra.mxu0 %v9442
    %9935 = vmatpush.bf16.msra.mxu0 %v9441
    %9936 = vmatpush.bf16.msra.mxu0 %v9440
    %9937 = vmatpush.bf16.msra.mxu0 %v9439
    %9938 = vmatpush.bf16.msra.mxu0 %v9438
    %9939 = vmatpush.bf16.msra.mxu0 %v9437
    %9940 = vmatpush.bf16.msra.mxu0 %v9436
    %9941 = vmatpush.bf16.msra.mxu0 %v9435
    %9942 = vmatmul.bf16.gmra.mxu0 %v8097
    %v9943 = vpop.f32.mrf.mxu0
    %v9944 = vadd.f32 %v9931, %v9943
    %v9945 = vpop.f32.mrf.mxu0
    %9946 = vdwg.mxu0
    %9947 = vst.msk [vmem:[#allocation2 + $0x1] sm:$0x1] %vm5000, %v9944
    // Predicated region
    $region46: #{end_to_end_forward.5} parent=1 // pred_check
      _
    $region47: #{end_to_end_forward.5} parent=1 // pred_check_branch
      %9949 = sbr.rel (0) target = $region49
    $region48: #{end_to_end_forward.5} parent=1 // pred_region
      %9951 = vsyncadd [#allocation3], 0
      %s9953 = sshll.u32 [#allocation2], 4
      %s9954 = int_to_ptr.vmem [resolvable:$true] %s9953
      %s9955 = sshll.u32 %s11, 4
      %s9956 = int_to_ptr.hbm [resolvable:$true] %s9955
      %9958 = dma.vmem_to_hbm [thread:$0]  %s9954, 32, %s9956, [#allocation3]
    $region49: #{end_to_end_forward.5} parent=1 // pred_fallthru
      _
    // Predicated region
    $region50: #{end_to_end_forward.5} parent=1 // pred_check
      _
    $region51: #{end_to_end_forward.5} parent=1 // pred_check_branch
      %9960 = sbr.rel (0) target = $region53
    $region52: #{end_to_end_forward.5} parent=1 // pred_region
      %9962 = dma.done [#allocation3], 32
    $region53: #{end_to_end_forward.5} parent=1 // pred_fallthru
      _
    %9963 = vsyncpa [#allocation3], 1

</llo_original>
